<compile_context>
chip_gen: v6e
topology: v6e:2x2x1
jax: 0.10.0
libtpu: 0.0.40
codegen_flags: <defaults>
</compile_context>

<pallas_src>
import functools

import jax
import jax.numpy as jnp
from jax.experimental import pallas as pl
from jax.experimental.pallas import tpu as pltpu

NEG_SLOPE = 0.01   # nn.LeakyReLU default negative slope
POOL = 4           # nn.AvgPool2d(4, 4)
BLOCK_B = 8        # images per grid step (folded into the matmul M dimension)


# ---------------------------------------------------------------------------
# Host-side constant-operand packing (small; folded into the jitted graph)
# ---------------------------------------------------------------------------

def _band_rhs(w, width):
    """Fold the W-axis conv + input channels into a band matrix.

    w:     (K, K, Cin, Cout) HWIO conv weights (cross-correlation, zero pad).
    width: spatial width (output width == input width, stride 1, pad (K-1)//2).

    Returns rhs of shape (K, width*Cin, width*Cout) with
      rhs[ky, wp*Cin + ci, x*Cout + co] = w[ky, wp - x + P, ci, co]
    when 0 <= wp - x + P < K, else 0  (P = (K-1)//2).  Then
      act[h, x*Cout + co] = sum_ky  xpad[h + ky, :] @ rhs[ky]
    is exactly conv output row h, where xpad is the input zero-padded along H
    only, with lanes = (w, cin), w-major.
    """
    K, _, Ci, Co = w.shape
    P = (K - 1) // 2
    wp = jnp.arange(width)[:, None]            # input column w'
    x = jnp.arange(width)[None, :]             # output column
    kx = wp - x + P                            # (width, width)
    valid = (kx >= 0) & (kx < K)
    kx_c = jnp.clip(kx, 0, K - 1)
    g = w[:, kx_c, :, :]                       # (K, w', x, Ci, Co)
    g = jnp.where(valid[None, :, :, None, None], g, 0.0)
    g = jnp.transpose(g, (0, 1, 3, 2, 4))      # (K, w', Ci, x, Co)
    return g.reshape(K, width * Ci, width * Co)


def _pool_cols(win, c, pool):
    """(win*c, (win//pool)*c): average-pool along W by `pool` for a lane layout
    (w, chan) with w-major, chan-minor.  The 1/pool scale is folded in."""
    wout = win // pool
    w = jnp.arange(win)[:, None, None, None]
    ci = jnp.arange(c)[None, :, None, None]
    w4 = jnp.arange(wout)[None, None, :, None]
    co = jnp.arange(c)[None, None, None, :]
    m = ((w // pool) == w4) & (ci == co)
    return m.astype(jnp.float32).reshape(win * c, wout * c) * (1.0 / pool)


def _pool_rows_batched(nimg, row_stride, h_valid, n_in_rows, pool, pad):
    """Block-diagonal row pool (+ H-pad emission) for a batch of images whose
    rows are stacked along the M dimension.

    Input rows: image b's valid conv-output row h lives at row b*row_stride + h
    for h in [0, h_valid); any other rows (banded-conv "garbage" rows at image
    boundaries) get zero columns and are ignored.
    Output rows: image b gets (h_valid//pool + 2*pad) rows: `pad` all-zero rows,
    the pooled rows scaled by 1/pool, then `pad` all-zero rows — i.e. the next
    conv's H zero-padding is emitted directly by the matmul.

    Shape: (nimg*(h_valid//pool + 2*pad), n_in_rows).
    """
    hout = h_valid // pool
    hp = hout + 2 * pad
    r = jnp.arange(nimg * hp)
    c = jnp.arange(n_in_rows)
    rb, rj = r // hp, r % hp
    cb, ch = c // row_stride, c % row_stride
    m = ((rb[:, None] == cb[None, :])
         & (ch[None, :] < h_valid)
         & ((rj[:, None] - pad) == (ch[None, :] // pool)))
    return m.astype(jnp.float32) * (1.0 / pool)


# ---------------------------------------------------------------------------
# Fused kernel: conv1 (im2col matmul) -> conv2/conv3 (banded) -> softmax
# All matmul operands bf16, accumulation f32; elementwise math f32.
# ---------------------------------------------------------------------------

def net_kernel(xc_ref, r1_ref, pw1_ref, ph1_ref, r2_ref, pw2_ref, ph2_ref,
               r3_ref, pw3_ref, ph3_ref, o_ref, *, K2, K3, M2, M3):
    f32, bf16 = jnp.float32, jnp.bfloat16

    def lrelu(a):
        return jnp.where(a >= 0.0, a, NEG_SLOPE * a)

    # --- stage 1: conv1 as ONE im2col matmul (M=B*64, K=7*64, N=64*8) ------
    act = jnp.dot(xc_ref[...], r1_ref[...],
                  preferred_element_type=f32)                 # (B*64, 512) f32
    act = lrelu(act).astype(bf16)
    # AvgPool(4,4): lane pool, then block-diag row pool that also emits the
    # next conv's H zero-padding rows (1/4 scales folded into both matrices).
    t = jnp.dot(act, pw1_ref[...], preferred_element_type=f32)      # (B*64, 128)
    p1 = jnp.dot(ph1_ref[...], t.astype(bf16),
                 preferred_element_type=f32)                        # (B*20, 128)

    # --- stage 2: conv2 (5x5, 8->16) as K2 banded matmuls over the block ---
    acc = jnp.dot(p1[0:M2, :].astype(bf16), r2_ref[0],
                  preferred_element_type=f32)
    for ky in range(1, K2):
        acc = acc + jnp.dot(p1[ky:ky + M2, :].astype(bf16), r2_ref[ky],
                            preferred_element_type=f32)             # (M2, 256)
    act = lrelu(acc).astype(bf16)
    t = jnp.dot(act, pw2_ref[...], preferred_element_type=f32)      # (M2, 64)
    p2 = jnp.dot(ph2_ref[...], t.astype(bf16),
                 preferred_element_type=f32)                        # (B*6, 64)

    # --- stage 3: conv3 (3x3, 16->F) as K3 banded matmuls -------------------
    acc = jnp.dot(p2[0:M3, :].astype(bf16), r3_ref[0],
                  preferred_element_type=f32)
    for ky in range(1, K3):
        acc = acc + jnp.dot(p2[ky:ky + M3, :].astype(bf16), r3_ref[ky],
                            preferred_element_type=f32)             # (M3, 4F)
    act = lrelu(acc).astype(bf16)
    # final AvgPool(4,4): W-pool (pw3) then per-image H-pool/flatten (ph3);
    # both 1/4 scales are folded into the matrices.
    t = jnp.dot(act, pw3_ref[...], preferred_element_type=f32)      # (M3, F)
    logits = jnp.dot(ph3_ref[...], t.astype(bf16),
                     preferred_element_type=f32)                    # (B, F)

    # TODO(synk): nn.Dropout2d(0.2) is identity here (inference/eval mode).

    # Flatten is trivial (1x1 spatial -> channels); softmax over features (f32).
    m = jnp.max(logits, axis=-1, keepdims=True)
    e = jnp.exp(logits - m)
    inv = pl.reciprocal(jnp.sum(e, axis=-1, keepdims=True), approx=True)
    o_ref[...] = (e * inv).astype(o_ref.dtype)


def net_forward(x_nchw, params, *, block_b=BLOCK_B):
    """Forward pass matching PyTorch Net.forward (inference semantics)."""
    w1, w2, w3 = params["w1"], params["w2"], params["w3"]
    N, Cin, H, W = x_nchw.shape
    assert Cin == 1 and H == 64 and W == 64, "Net expects (N, 1, 64, 64) inputs"
    C1, C2, F = w1.shape[-1], w2.shape[-1], w3.shape[-1]
    K1, K2, K3 = w1.shape[0], w2.shape[0], w3.shape[0]
    P1, P2, P3 = (K1 - 1) // 2, (K2 - 1) // 2, (K3 - 1) // 2
    H1, H2, H3 = H, H // POOL, H // (POOL * POOL)            # 64, 16, 4
    H2p, H3p = H2 + 2 * P2, H3 + 2 * P3                      # 20, 6

    B = block_b
    n_steps = -(-N // B)
    Npad = n_steps * B
    if Npad != N:
        x_nchw = jnp.pad(x_nchw, ((0, Npad - N), (0, 0), (0, 0), (0, 0)))

    bf16 = jnp.bfloat16

    # Stage-1 im2col on the wrapper: fold the 7 K_y taps into the lanes so the
    # kernel's stage 1 is a single lane/contraction-dense matmul.
    xp = jnp.pad(x_nchw[:, 0, :, :], ((0, 0), (P1, P1), (0, 0)))   # (Npad, 70, 64)
    xc = jnp.concatenate([xp[:, ky:ky + H1, :] for ky in range(K1)],
                         axis=-1)                                  # (Npad, 64, 448)
    xc = xc.reshape(Npad * H1, K1 * W * Cin).astype(bf16)          # (Npad*64, 448)

    # Constant operands (all small, all bf16 for the MXU).
    rhs1 = _band_rhs(w1, W).reshape(K1 * W * Cin, W * C1).astype(bf16)   # (448, 512)
    rhs2 = _band_rhs(w2, H2).astype(bf16)                                # (5, 128, 256)
    rhs3 = _band_rhs(w3, H3).astype(bf16)                                # (3, 64, 4F)
    pw1 = _pool_cols(H1, C1, POOL).astype(bf16)                          # (512, 128)
    pw2 = _pool_cols(H2, C2, POOL).astype(bf16)                          # (256, 64)
    pw3 = _pool_cols(H3, F, POOL).astype(bf16)                           # (4F, F)

    M2 = B * H2p - (K2 - 1)                                              # 156
    M3 = B * H3p - (K3 - 1)                                              # 46
    ph1 = _pool_rows_batched(B, H1, H1, B * H1, POOL, P2).astype(bf16)   # (B*20, B*64)
    ph2 = _pool_rows_batched(B, H2p, H2, M2, POOL, P3).astype(bf16)      # (B*6, M2)
    ph3 = _pool_rows_batched(B, H3p, H3, M3, POOL, 0).astype(bf16)       # (B, M3)

    kernel = functools.partial(net_kernel, K2=K2, K3=K3, M2=M2, M3=M3)

    out = pl.pallas_call(
        kernel,
        out_shape=jax.ShapeDtypeStruct((Npad, F), jnp.float32),
        grid=(n_steps,),
        in_specs=[
            pl.BlockSpec((B * H1, K1 * W * Cin), lambda n: (n, 0)),
            pl.BlockSpec(rhs1.shape, lambda n: (0, 0)),
            pl.BlockSpec(pw1.shape, lambda n: (0, 0)),
            pl.BlockSpec(ph1.shape, lambda n: (0, 0)),
            pl.BlockSpec(rhs2.shape, lambda n: (0, 0, 0)),
            pl.BlockSpec(pw2.shape, lambda n: (0, 0)),
            pl.BlockSpec(ph2.shape, lambda n: (0, 0)),
            pl.BlockSpec(rhs3.shape, lambda n: (0, 0, 0)),
            pl.BlockSpec(pw3.shape, lambda n: (0, 0)),
            pl.BlockSpec(ph3.shape, lambda n: (0, 0)),
        ],
        out_specs=pl.BlockSpec((B, F), lambda n: (n, 0)),
        compiler_params=pltpu.CompilerParams(
            dimension_semantics=("parallel",),
            vmem_limit_bytes=32 * 1024 * 1024),
    )(xc, rhs1, pw1, ph1, rhs2, pw2, ph2, rhs3, pw3, ph3)
    return out[:N]


# ---------------------------------------------------------------------------
# Params + pure-JAX reference for numerical sanity checking
# ---------------------------------------------------------------------------

def init_params(key, out_features):
    # NOTE: normal/sqrt(fan_in) rather than PyTorch's kaiming_uniform default —
    # harmless for the kernel; the harness is not bit-comparable to torch init.
    k1, k2, k3 = jax.random.split(key, 3)

    def conv_w(k, K, Cin, Cout):
        fan_in = K * K * Cin
        return (jax.random.normal(k, (K, K, Cin, Cout), jnp.float32)
                / jnp.sqrt(jnp.float32(fan_in)))

    return {
        "w1": conv_w(k1, 7, 1, 8),
        "w2": conv_w(k2, 5, 8, 16),
        "w3": conv_w(k3, 3, 16, out_features),
    }


def ref_forward(x_nchw, params):
    """Pure-JAX reference (XLA conv, f32) for numerical sanity checking."""
    def stage(x, w):
        y = jax.lax.conv_general_dilated(
            x, w, window_strides=(1, 1), padding="SAME",
            dimension_numbers=("NCHW", "HWIO", "NCHW"))
        y = jnp.where(y >= 0, y, NEG_SLOPE * y)
        y = jax.lax.reduce_window(y, 0.0, jax.lax.add,
                                  (1, 1, POOL, POOL), (1, 1, POOL, POOL),
                                  "VALID") / float(POOL * POOL)
        return y

    x = stage(x_nchw, params["w1"])
    x = stage(x, params["w2"])
    x = stage(x, params["w3"])
    x = x.reshape(x.shape[0], -1)
    return jax.nn.softmax(x, axis=1)


if __name__ == "__main__":
    out_features = 10
    batch, in_ch, hw = 16, 1, 64   # 64 = 4*4*4; 16 images -> 2 grid steps of 8

    key = jax.random.PRNGKey(0)
    kx, kp = jax.random.split(key)
    x = jax.random.normal(kx, (batch, in_ch, hw, hw), jnp.float32)
    params = init_params(kp, out_features)

    fwd = jax.jit(net_forward)
    out = jax.block_until_ready(fwd(x, params))
    assert out.shape == (batch, out_features), out.shape

    ref = jax.block_until_ready(ref_forward(x, params))
    # bf16 MXU operands (f32 accumulation) + approx reciprocal -> slightly
    # looser tolerances than the all-f32 variant.
    assert jnp.allclose(jnp.sum(out, axis=1), 1.0, atol=5e-3)
    assert jnp.allclose(out, ref, atol=3e-3, rtol=3e-2), \
        float(jnp.max(jnp.abs(out - ref)))

    print("KERNEL_OK")
</pallas_src>

<mosaic_0001>
module attributes {stable_mosaic.version = 11 : i64} {
  func.func @net_kernel(%arg0: i32, %arg1: memref<512x448xbf16, #tpu.memory_space<vmem>>, %arg2: memref<448x512xbf16, #tpu.memory_space<vmem>>, %arg3: memref<512x128xbf16, #tpu.memory_space<vmem>>, %arg4: memref<160x512xbf16, #tpu.memory_space<vmem>>, %arg5: memref<5x128x256xbf16, #tpu.memory_space<vmem>>, %arg6: memref<256x64xbf16, #tpu.memory_space<vmem>>, %arg7: memref<48x156xbf16, #tpu.memory_space<vmem>>, %arg8: memref<3x64x40xbf16, #tpu.memory_space<vmem>>, %arg9: memref<40x10xbf16, #tpu.memory_space<vmem>>, %arg10: memref<8x46xbf16, #tpu.memory_space<vmem>>, %arg11: memref<8x10xf32, #tpu.memory_space<vmem>>) attributes {dimension_semantics = [#tpu.dimension_semantics<parallel>], iteration_bounds = array<i64: 2>, scalar_prefetch = 0 : i64, scratch_operands = 0 : i64, tpu.core_type = #tpu.core_type<tc>, window_params = [{transform_indices = @transform_0, window_bounds = array<i64: 512, 448>}, {pipeline_mode = #tpu.pipeline_mode<synchronous>, transform_indices = @transform_1, window_bounds = array<i64: 448, 512>}, {pipeline_mode = #tpu.pipeline_mode<synchronous>, transform_indices = @transform_2, window_bounds = array<i64: 512, 128>}, {pipeline_mode = #tpu.pipeline_mode<synchronous>, transform_indices = @transform_3, window_bounds = array<i64: 160, 512>}, {pipeline_mode = #tpu.pipeline_mode<synchronous>, transform_indices = @transform_4, window_bounds = array<i64: 5, 128, 256>}, {pipeline_mode = #tpu.pipeline_mode<synchronous>, transform_indices = @transform_5, window_bounds = array<i64: 256, 64>}, {pipeline_mode = #tpu.pipeline_mode<synchronous>, transform_indices = @transform_6, window_bounds = array<i64: 48, 156>}, {pipeline_mode = #tpu.pipeline_mode<synchronous>, transform_indices = @transform_7, window_bounds = array<i64: 3, 64, 40>}, {pipeline_mode = #tpu.pipeline_mode<synchronous>, transform_indices = @transform_8, window_bounds = array<i64: 40, 10>}, {pipeline_mode = #tpu.pipeline_mode<synchronous>, transform_indices = @transform_9, window_bounds = array<i64: 8, 46>}, {transform_indices = @transform_10, window_bounds = array<i64: 8, 10>}]} {
    %c0 = arith.constant 0 : index
    %c0_0 = arith.constant 0 : index
    %0 = vector.load %arg1[%c0, %c0_0] : memref<512x448xbf16, #tpu.memory_space<vmem>>, vector<512x448xbf16>
    %c0_1 = arith.constant 0 : index
    %c0_2 = arith.constant 0 : index
    %1 = vector.load %arg2[%c0_1, %c0_2] : memref<448x512xbf16, #tpu.memory_space<vmem>>, vector<448x512xbf16>
    %cst = arith.constant dense<0.000000e+00> : vector<512x512xf32>
    %2 = tpu.matmul %0, %1, %cst {dimension_numbers = #tpu.dot_dimension_numbers<[1], [0], [0], [1], [0, 0, 1, 1], [], []>} : vector<512x448xbf16>, vector<448x512xbf16>, vector<512x512xf32> -> vector<512x512xf32>
    %cst_3 = arith.constant 0.000000e+00 : f32
    %3 = vector.broadcast %cst_3 : f32 to vector<512x512xf32>
    %4 = arith.cmpf oge, %2, %3 : vector<512x512xf32>
    %cst_4 = arith.constant 0.00999999977 : f32
    %5 = vector.broadcast %cst_4 : f32 to vector<512x512xf32>
    %6 = arith.mulf %5, %2 : vector<512x512xf32>
    %7 = arith.select %4, %2, %6 : vector<512x512xi1>, vector<512x512xf32>
    %8 = arith.truncf %7 : vector<512x512xf32> to vector<512x512xbf16>
    %c0_5 = arith.constant 0 : index
    %c0_6 = arith.constant 0 : index
    %9 = vector.load %arg3[%c0_5, %c0_6] : memref<512x128xbf16, #tpu.memory_space<vmem>>, vector<512x128xbf16>
    %cst_7 = arith.constant dense<0.000000e+00> : vector<512x128xf32>
    %10 = tpu.matmul %8, %9, %cst_7 {dimension_numbers = #tpu.dot_dimension_numbers<[1], [0], [0], [1], [0, 0, 1, 1], [], []>} : vector<512x512xbf16>, vector<512x128xbf16>, vector<512x128xf32> -> vector<512x128xf32>
    %c0_8 = arith.constant 0 : index
    %c0_9 = arith.constant 0 : index
    %11 = vector.load %arg4[%c0_8, %c0_9] : memref<160x512xbf16, #tpu.memory_space<vmem>>, vector<160x512xbf16>
    %12 = arith.truncf %10 : vector<512x128xf32> to vector<512x128xbf16>
    %cst_10 = arith.constant dense<0.000000e+00> : vector<160x128xf32>
    %13 = tpu.matmul %11, %12, %cst_10 {dimension_numbers = #tpu.dot_dimension_numbers<[1], [0], [0], [1], [0, 0, 1, 1], [], []>} : vector<160x512xbf16>, vector<512x128xbf16>, vector<160x128xf32> -> vector<160x128xf32>
    %14 = vector.extract_strided_slice %13 {offsets = [0, 0], sizes = [156, 128], strides = [1, 1]} : vector<160x128xf32> to vector<156x128xf32>
    %15 = arith.truncf %14 : vector<156x128xf32> to vector<156x128xbf16>
    %c0_11 = arith.constant 0 : index
    %c0_12 = arith.constant 0 : index
    %c0_13 = arith.constant 0 : index
    %16 = vector.load %arg5[%c0_11, %c0_12, %c0_13] : memref<5x128x256xbf16, #tpu.memory_space<vmem>>, vector<1x128x256xbf16>
    %17 = vector.shape_cast %16 : vector<1x128x256xbf16> to vector<128x256xbf16>
    %cst_14 = arith.constant dense<0.000000e+00> : vector<156x256xf32>
    %18 = tpu.matmul %15, %17, %cst_14 {dimension_numbers = #tpu.dot_dimension_numbers<[1], [0], [0], [1], [0, 0, 1, 1], [], []>} : vector<156x128xbf16>, vector<128x256xbf16>, vector<156x256xf32> -> vector<156x256xf32>
    %19 = vector.extract_strided_slice %13 {offsets = [1, 0], sizes = [156, 128], strides = [1, 1]} : vector<160x128xf32> to vector<156x128xf32>
    %20 = arith.truncf %19 : vector<156x128xf32> to vector<156x128xbf16>
    %c1 = arith.constant 1 : index
    %c0_15 = arith.constant 0 : index
    %c0_16 = arith.constant 0 : index
    %21 = vector.load %arg5[%c1, %c0_15, %c0_16] : memref<5x128x256xbf16, #tpu.memory_space<vmem>>, vector<1x128x256xbf16>
    %22 = vector.shape_cast %21 : vector<1x128x256xbf16> to vector<128x256xbf16>
    %cst_17 = arith.constant dense<0.000000e+00> : vector<156x256xf32>
    %23 = tpu.matmul %20, %22, %cst_17 {dimension_numbers = #tpu.dot_dimension_numbers<[1], [0], [0], [1], [0, 0, 1, 1], [], []>} : vector<156x128xbf16>, vector<128x256xbf16>, vector<156x256xf32> -> vector<156x256xf32>
    %24 = arith.addf %18, %23 : vector<156x256xf32>
    %25 = vector.extract_strided_slice %13 {offsets = [2, 0], sizes = [156, 128], strides = [1, 1]} : vector<160x128xf32> to vector<156x128xf32>
    %26 = arith.truncf %25 : vector<156x128xf32> to vector<156x128xbf16>
    %c2 = arith.constant 2 : index
    %c0_18 = arith.constant 0 : index
    %c0_19 = arith.constant 0 : index
    %27 = vector.load %arg5[%c2, %c0_18, %c0_19] : memref<5x128x256xbf16, #tpu.memory_space<vmem>>, vector<1x128x256xbf16>
    %28 = vector.shape_cast %27 : vector<1x128x256xbf16> to vector<128x256xbf16>
    %cst_20 = arith.constant dense<0.000000e+00> : vector<156x256xf32>
    %29 = tpu.matmul %26, %28, %cst_20 {dimension_numbers = #tpu.dot_dimension_numbers<[1], [0], [0], [1], [0, 0, 1, 1], [], []>} : vector<156x128xbf16>, vector<128x256xbf16>, vector<156x256xf32> -> vector<156x256xf32>
    %30 = arith.addf %24, %29 : vector<156x256xf32>
    %31 = vector.extract_strided_slice %13 {offsets = [3, 0], sizes = [156, 128], strides = [1, 1]} : vector<160x128xf32> to vector<156x128xf32>
    %32 = arith.truncf %31 : vector<156x128xf32> to vector<156x128xbf16>
    %c3 = arith.constant 3 : index
    %c0_21 = arith.constant 0 : index
    %c0_22 = arith.constant 0 : index
    %33 = vector.load %arg5[%c3, %c0_21, %c0_22] : memref<5x128x256xbf16, #tpu.memory_space<vmem>>, vector<1x128x256xbf16>
    %34 = vector.shape_cast %33 : vector<1x128x256xbf16> to vector<128x256xbf16>
    %cst_23 = arith.constant dense<0.000000e+00> : vector<156x256xf32>
    %35 = tpu.matmul %32, %34, %cst_23 {dimension_numbers = #tpu.dot_dimension_numbers<[1], [0], [0], [1], [0, 0, 1, 1], [], []>} : vector<156x128xbf16>, vector<128x256xbf16>, vector<156x256xf32> -> vector<156x256xf32>
    %36 = arith.addf %30, %35 : vector<156x256xf32>
    %37 = vector.extract_strided_slice %13 {offsets = [4, 0], sizes = [156, 128], strides = [1, 1]} : vector<160x128xf32> to vector<156x128xf32>
    %38 = arith.truncf %37 : vector<156x128xf32> to vector<156x128xbf16>
    %c4 = arith.constant 4 : index
    %c0_24 = arith.constant 0 : index
    %c0_25 = arith.constant 0 : index
    %39 = vector.load %arg5[%c4, %c0_24, %c0_25] : memref<5x128x256xbf16, #tpu.memory_space<vmem>>, vector<1x128x256xbf16>
    %40 = vector.shape_cast %39 : vector<1x128x256xbf16> to vector<128x256xbf16>
    %cst_26 = arith.constant dense<0.000000e+00> : vector<156x256xf32>
    %41 = tpu.matmul %38, %40, %cst_26 {dimension_numbers = #tpu.dot_dimension_numbers<[1], [0], [0], [1], [0, 0, 1, 1], [], []>} : vector<156x128xbf16>, vector<128x256xbf16>, vector<156x256xf32> -> vector<156x256xf32>
    %42 = arith.addf %36, %41 : vector<156x256xf32>
    %cst_27 = arith.constant 0.000000e+00 : f32
    %43 = vector.broadcast %cst_27 : f32 to vector<156x256xf32>
    %44 = arith.cmpf oge, %42, %43 : vector<156x256xf32>
    %cst_28 = arith.constant 0.00999999977 : f32
    %45 = vector.broadcast %cst_28 : f32 to vector<156x256xf32>
    %46 = arith.mulf %45, %42 : vector<156x256xf32>
    %47 = arith.select %44, %42, %46 : vector<156x256xi1>, vector<156x256xf32>
    %48 = arith.truncf %47 : vector<156x256xf32> to vector<156x256xbf16>
    %c0_29 = arith.constant 0 : index
    %c0_30 = arith.constant 0 : index
    %49 = vector.load %arg6[%c0_29, %c0_30] : memref<256x64xbf16, #tpu.memory_space<vmem>>, vector<256x64xbf16>
    %cst_31 = arith.constant dense<0.000000e+00> : vector<156x64xf32>
    %50 = tpu.matmul %48, %49, %cst_31 {dimension_numbers = #tpu.dot_dimension_numbers<[1], [0], [0], [1], [0, 0, 1, 1], [], []>} : vector<156x256xbf16>, vector<256x64xbf16>, vector<156x64xf32> -> vector<156x64xf32>
    %c0_32 = arith.constant 0 : index
    %c0_33 = arith.constant 0 : index
    %51 = vector.load %arg7[%c0_32, %c0_33] : memref<48x156xbf16, #tpu.memory_space<vmem>>, vector<48x156xbf16>
    %52 = arith.truncf %50 : vector<156x64xf32> to vector<156x64xbf16>
    %cst_34 = arith.constant dense<0.000000e+00> : vector<48x64xf32>
    %53 = tpu.matmul %51, %52, %cst_34 {dimension_numbers = #tpu.dot_dimension_numbers<[1], [0], [0], [1], [0, 0, 1, 1], [], []>} : vector<48x156xbf16>, vector<156x64xbf16>, vector<48x64xf32> -> vector<48x64xf32>
    %54 = vector.extract_strided_slice %53 {offsets = [0, 0], sizes = [46, 64], strides = [1, 1]} : vector<48x64xf32> to vector<46x64xf32>
    %55 = arith.truncf %54 : vector<46x64xf32> to vector<46x64xbf16>
    %c0_35 = arith.constant 0 : index
    %c0_36 = arith.constant 0 : index
    %c0_37 = arith.constant 0 : index
    %56 = vector.load %arg8[%c0_35, %c0_36, %c0_37] : memref<3x64x40xbf16, #tpu.memory_space<vmem>>, vector<1x64x40xbf16>
    %57 = vector.shape_cast %56 : vector<1x64x40xbf16> to vector<64x40xbf16>
    %cst_38 = arith.constant dense<0.000000e+00> : vector<46x40xf32>
    %58 = tpu.matmul %55, %57, %cst_38 {dimension_numbers = #tpu.dot_dimension_numbers<[1], [0], [0], [1], [0, 0, 1, 1], [], []>} : vector<46x64xbf16>, vector<64x40xbf16>, vector<46x40xf32> -> vector<46x40xf32>
    %59 = vector.extract_strided_slice %53 {offsets = [1, 0], sizes = [46, 64], strides = [1, 1]} : vector<48x64xf32> to vector<46x64xf32>
    %60 = arith.truncf %59 : vector<46x64xf32> to vector<46x64xbf16>
    %c1_39 = arith.constant 1 : index
    %c0_40 = arith.constant 0 : index
    %c0_41 = arith.constant 0 : index
    %61 = vector.load %arg8[%c1_39, %c0_40, %c0_41] : memref<3x64x40xbf16, #tpu.memory_space<vmem>>, vector<1x64x40xbf16>
    %62 = vector.shape_cast %61 : vector<1x64x40xbf16> to vector<64x40xbf16>
    %cst_42 = arith.constant dense<0.000000e+00> : vector<46x40xf32>
    %63 = tpu.matmul %60, %62, %cst_42 {dimension_numbers = #tpu.dot_dimension_numbers<[1], [0], [0], [1], [0, 0, 1, 1], [], []>} : vector<46x64xbf16>, vector<64x40xbf16>, vector<46x40xf32> -> vector<46x40xf32>
    %64 = arith.addf %58, %63 : vector<46x40xf32>
    %65 = vector.extract_strided_slice %53 {offsets = [2, 0], sizes = [46, 64], strides = [1, 1]} : vector<48x64xf32> to vector<46x64xf32>
    %66 = arith.truncf %65 : vector<46x64xf32> to vector<46x64xbf16>
    %c2_43 = arith.constant 2 : index
    %c0_44 = arith.constant 0 : index
    %c0_45 = arith.constant 0 : index
    %67 = vector.load %arg8[%c2_43, %c0_44, %c0_45] : memref<3x64x40xbf16, #tpu.memory_space<vmem>>, vector<1x64x40xbf16>
    %68 = vector.shape_cast %67 : vector<1x64x40xbf16> to vector<64x40xbf16>
    %cst_46 = arith.constant dense<0.000000e+00> : vector<46x40xf32>
    %69 = tpu.matmul %66, %68, %cst_46 {dimension_numbers = #tpu.dot_dimension_numbers<[1], [0], [0], [1], [0, 0, 1, 1], [], []>} : vector<46x64xbf16>, vector<64x40xbf16>, vector<46x40xf32> -> vector<46x40xf32>
    %70 = arith.addf %64, %69 : vector<46x40xf32>
    %cst_47 = arith.constant 0.000000e+00 : f32
    %71 = vector.broadcast %cst_47 : f32 to vector<46x40xf32>
    %72 = arith.cmpf oge, %70, %71 : vector<46x40xf32>
    %cst_48 = arith.constant 0.00999999977 : f32
    %73 = vector.broadcast %cst_48 : f32 to vector<46x40xf32>
    %74 = arith.mulf %73, %70 : vector<46x40xf32>
    %75 = arith.select %72, %70, %74 : vector<46x40xi1>, vector<46x40xf32>
    %76 = arith.truncf %75 : vector<46x40xf32> to vector<46x40xbf16>
    %c0_49 = arith.constant 0 : index
    %c0_50 = arith.constant 0 : index
    %77 = vector.load %arg9[%c0_49, %c0_50] : memref<40x10xbf16, #tpu.memory_space<vmem>>, vector<40x10xbf16>
    %cst_51 = arith.constant dense<0.000000e+00> : vector<46x10xf32>
    %78 = tpu.matmul %76, %77, %cst_51 {dimension_numbers = #tpu.dot_dimension_numbers<[1], [0], [0], [1], [0, 0, 1, 1], [], []>} : vector<46x40xbf16>, vector<40x10xbf16>, vector<46x10xf32> -> vector<46x10xf32>
    %c0_52 = arith.constant 0 : index
    %c0_53 = arith.constant 0 : index
    %79 = vector.load %arg10[%c0_52, %c0_53] : memref<8x46xbf16, #tpu.memory_space<vmem>>, vector<8x46xbf16>
    %80 = arith.truncf %78 : vector<46x10xf32> to vector<46x10xbf16>
    %cst_54 = arith.constant dense<0.000000e+00> : vector<8x10xf32>
    %81 = tpu.matmul %79, %80, %cst_54 {dimension_numbers = #tpu.dot_dimension_numbers<[1], [0], [0], [1], [0, 0, 1, 1], [], []>} : vector<8x46xbf16>, vector<46x10xbf16>, vector<8x10xf32> -> vector<8x10xf32>
    %cst_55 = arith.constant dense<0xFF800000> : vector<8xf32>
    %82 = vector.multi_reduction <maximumf>, %81, %cst_55 [1] : vector<8x10xf32> to vector<8xf32>
    %83 = vector.shape_cast %82 : vector<8xf32> to vector<8x1xf32>
    %84 = vector.broadcast %83 : vector<8x1xf32> to vector<8x10xf32>
    %85 = arith.subf %81, %84 : vector<8x10xf32>
    %86 = math.exp %85 : vector<8x10xf32>
    %cst_56 = arith.constant dense<0.000000e+00> : vector<8xf32>
    %87 = vector.multi_reduction <add>, %86, %cst_56 [1] : vector<8x10xf32> to vector<8xf32>
    %88 = vector.shape_cast %87 : vector<8xf32> to vector<8x1xf32>
    %89 = tpu.reciprocal %88 {approx = true} : vector<8x1xf32> -> vector<8x1xf32>
    %90 = vector.broadcast %89 : vector<8x1xf32> to vector<8x10xf32>
    %91 = arith.mulf %86, %90 : vector<8x10xf32>
    %c0_57 = arith.constant 0 : index
    %c0_58 = arith.constant 0 : index
    %92 = vector.load %arg11[%c0_57, %c0_58] : memref<8x10xf32, #tpu.memory_space<vmem>>, vector<8x10xf32>
    tpu.vector_store %arg11[%c0_57, %c0_58], %91 {strides = array<i32>} : memref<8x10xf32, #tpu.memory_space<vmem>>, vector<8x10xf32>,
    return
  }
  func.func @transform_0(%arg0: i32) -> (i32, i32) {
    %c0_i32 = arith.constant 0 : i32
    %c0_i32_0 = arith.constant 0 : i32
    return %arg0, %c0_i32 : i32, i32
  }
  func.func @transform_1(%arg0: i32) -> (i32, i32) {
    %c0_i32 = arith.constant 0 : i32
    %c0_i32_0 = arith.constant 0 : i32
    %c0_i32_1 = arith.constant 0 : i32
    return %c0_i32, %c0_i32_0 : i32, i32
  }
  func.func @transform_2(%arg0: i32) -> (i32, i32) {
    %c0_i32 = arith.constant 0 : i32
    %c0_i32_0 = arith.constant 0 : i32
    %c0_i32_1 = arith.constant 0 : i32
    return %c0_i32, %c0_i32_0 : i32, i32
  }
  func.func @transform_3(%arg0: i32) -> (i32, i32) {
    %c0_i32 = arith.constant 0 : i32
    %c0_i32_0 = arith.constant 0 : i32
    %c0_i32_1 = arith.constant 0 : i32
    return %c0_i32, %c0_i32_0 : i32, i32
  }
  func.func @transform_4(%arg0: i32) -> (i32, i32, i32) {
    %c0_i32 = arith.constant 0 : i32
    %c0_i32_0 = arith.constant 0 : i32
    %c0_i32_1 = arith.constant 0 : i32
    %c0_i32_2 = arith.constant 0 : i32
    return %c0_i32, %c0_i32_0, %c0_i32_1 : i32, i32, i32
  }
  func.func @transform_5(%arg0: i32) -> (i32, i32) {
    %c0_i32 = arith.constant 0 : i32
    %c0_i32_0 = arith.constant 0 : i32
    %c0_i32_1 = arith.constant 0 : i32
    return %c0_i32, %c0_i32_0 : i32, i32
  }
  func.func @transform_6(%arg0: i32) -> (i32, i32) {
    %c0_i32 = arith.constant 0 : i32
    %c0_i32_0 = arith.constant 0 : i32
    %c0_i32_1 = arith.constant 0 : i32
    return %c0_i32, %c0_i32_0 : i32, i32
  }
  func.func @transform_7(%arg0: i32) -> (i32, i32, i32) {
    %c0_i32 = arith.constant 0 : i32
    %c0_i32_0 = arith.constant 0 : i32
    %c0_i32_1 = arith.constant 0 : i32
    %c0_i32_2 = arith.constant 0 : i32
    return %c0_i32, %c0_i32_0, %c0_i32_1 : i32, i32, i32
  }
  func.func @transform_8(%arg0: i32) -> (i32, i32) {
    %c0_i32 = arith.constant 0 : i32
    %c0_i32_0 = arith.constant 0 : i32
    %c0_i32_1 = arith.constant 0 : i32
    return %c0_i32, %c0_i32_0 : i32, i32
  }
  func.func @transform_9(%arg0: i32) -> (i32, i32) {
    %c0_i32 = arith.constant 0 : i32
    %c0_i32_0 = arith.constant 0 : i32
    %c0_i32_1 = arith.constant 0 : i32
    return %c0_i32, %c0_i32_0 : i32, i32
  }
  func.func @transform_10(%arg0: i32) -> (i32, i32) {
    %c0_i32 = arith.constant 0 : i32
    %c0_i32_0 = arith.constant 0 : i32
    return %arg0, %c0_i32 : i32, i32
  }
}

</mosaic_0001>

<llo_original>
// kernel: net_forward.1
$region0: #{net_forward.1}
  #allocation0 [shape = 'u32[]', space=smem, size = 0x4, offset = 0x4, fixed_abs, tag = 'smem constant byte address 0x4 - core index']
  #allocation1 [shape = 'u32[144,128]{1,0:T(1,128)}', space=vmem, size = 0x12000, scoped, tag = 'internal scratch']
  %s0 = inlined_call_operand.vmem [shape: bf16[1024,448], index: 0, kind: input, shape index: {}]
  %s1 = inlined_call_operand.vmem [shape: bf16[448,512], index: 1, kind: input, shape index: {}]
  %s2 = inlined_call_operand.vmem [shape: bf16[512,128], index: 2, kind: input, shape index: {}]
  %s3 = inlined_call_operand.vmem [shape: bf16[160,512], index: 3, kind: input, shape index: {}]
  %s4 = inlined_call_operand.vmem [shape: bf16[5,128,256], index: 4, kind: input, shape index: {}]
  %s5 = inlined_call_operand.vmem [shape: bf16[256,64], index: 5, kind: input, shape index: {}]
  %s6 = inlined_call_operand.vmem [shape: bf16[48,156], index: 6, kind: input, shape index: {}]
  %s7 = inlined_call_operand.vmem [shape: bf16[3,64,40], index: 7, kind: input, shape index: {}]
  %s8 = inlined_call_operand.vmem [shape: bf16[40,10], index: 8, kind: input, shape index: {}]
  %s9 = inlined_call_operand.vmem [shape: bf16[8,46], index: 9, kind: input, shape index: {}]
  %s10 = inlined_call_operand.hbm [shape: f32[16,10], index: 10, kind: output, shape index: {}]
  %s11 = sld [smem:[#allocation0]]
  $region73: #{net_forward.1} parent=0
    _
  %s13 = ssub.s32 1, %s11
  %s14 = scalar_select 0, %s13, %s11
  $region1: #{net_forward.1} parent=0
    #allocation2 [shape = 'u8[8192]{0}', space=vmem, size = 0x2000, scoped, tag = 'output window, operand 0']
    #allocation3 [shape = 's32[2]{0}', space=sflag, size = 0x8, scoped, tag = 'scoped memory for net_forward.1']
    %15 = vsyncpa [#allocation3], 0
    %s16 = scalar_lea.sflag [#allocation3], 1
    %17 = vsyncpa %s16, 0
    loop: start=0, step=1, limit=4
    $region2: #{net_forward.1} parent=1 // loop_pre_header
      _
    $region3: #{net_forward.1} parent=1 // loop_header
      %s19 = sphi 0, %s23
      %p20 = scmp.ge.s32.totalorder %s19, 4
      %s29 = sphi 0, %s31
      %s32 = sphi 0, %s29
      %s33 = sphi 0, %s32
      %s49 = sphi 0, %s33
      %s53 = sphi 0, %s53
      %s55 = sphi 0, %s53
      %s56 = sphi 0, %s55
      %s70 = sphi 0, %s56
      %s74 = sphi 0, %s74
      %s76 = sphi 0, %s74
      %s77 = sphi 0, %s76
      %s91 = sphi 0, %s77
      %s95 = sphi 0, %s95
      %s97 = sphi 0, %s95
      %s98 = sphi 0, %s97
      %s112 = sphi 0, %s98
      %s116 = sphi 0, %s116
      %s118 = sphi 0, %s116
      %s119 = sphi 0, %s118
      %s133 = sphi 0, %s119
      %s137 = sphi 0, %s137
      %s139 = sphi 0, %s137
      %s140 = sphi 0, %s139
      %s154 = sphi 0, %s140
      %s158 = sphi 0, %s158
      %s160 = sphi 0, %s158
      %s161 = sphi 0, %s160
      %s175 = sphi 0, %s161
      %s179 = sphi 0, %s179
      %s181 = sphi 0, %s179
      %s182 = sphi 0, %s181
      %s196 = sphi 0, %s182
      %s200 = sphi 0, %s200
      %s202 = sphi 0, %s200
      %s203 = sphi 0, %s202
      %s217 = sphi 0, %s203
      %s221 = sphi 0, %s221
      %s223 = sphi 0, %s221
      %s224 = sphi 0, %s223
      %s238 = sphi 0, %s224
      %s244 = sphi 0, %s246
      %s247 = sphi 0, %s244
      %s248 = sphi 0, %s247
      %s264 = sphi 0, %s248
    $region4: #{net_forward.1} parent=1 // loop_header_branch
      %22 = sbr.rel (%p20) target = $region8
    $region5: #{net_forward.1} parent=1 // loop_body
      %s24 = ssub.s32 %s19, 1
      %s25 = ssub.s32 %s19, 2
      %s26 = sadd.s32 %s19, 1
      %s27 = ssub.s32 %s19, %s26
      %p28 = scmp.eq.s32.totalorder %s27, 0
      %s30 = sadd.s32 %s29, 1
      %s31 = scalar_select %p28, %s29, %s30
      %p34 = pneg %p28
      %p35 = scmp.eq.s32.totalorder %s19, 1
      %p36 = por %p34, %p35
      %p37 = scmp.ne.s32.totalorder %s29, %s32
      %p38 = scmp.eq.s32.totalorder %s19, 0
      %p39 = por %p37, %p38
      %p40 = scmp.ne.s32.totalorder %s29, %s32
      %p41 = scmp.eq.s32.totalorder %s24, 1
      %p42 = por %p40, %p41
      %p43 = scmp.ne.s32.totalorder %s32, %s33
      %p44 = scmp.eq.s32.totalorder %s24, 0
      %p45 = por %p43, %p44
      %p46 = scmp.ne.s32.totalorder %s32, %s33
      %p47 = scmp.eq.s32.totalorder %s25, 1
      %p48 = por %p46, %p47
      %p50 = scmp.ne.s32.totalorder %s33, %s49
      %p51 = scmp.eq.s32.totalorder %s25, 0
      %p52 = por %p50, %p51
      %s54 = sadd.s32 %s53, 1
      %p57 = scmp.eq.s32.totalorder %s19, 1
      %p58 = scmp.ne.s32.totalorder %s53, %s55
      %p59 = scmp.eq.s32.totalorder %s19, 0
      %p60 = por %p58, %p59
      %p61 = scmp.ne.s32.totalorder %s53, %s55
      %p62 = scmp.eq.s32.totalorder %s24, 1
      %p63 = por %p61, %p62
      %p64 = scmp.ne.s32.totalorder %s55, %s56
      %p65 = scmp.eq.s32.totalorder %s24, 0
      %p66 = por %p64, %p65
      %p67 = scmp.ne.s32.totalorder %s55, %s56
      %p68 = scmp.eq.s32.totalorder %s25, 1
      %p69 = por %p67, %p68
      %p71 = scmp.ne.s32.totalorder %s56, %s70
      %p72 = scmp.eq.s32.totalorder %s25, 0
      %p73 = por %p71, %p72
      %s75 = sadd.s32 %s74, 1
      %p78 = scmp.eq.s32.totalorder %s19, 1
      %p79 = scmp.ne.s32.totalorder %s74, %s76
      %p80 = scmp.eq.s32.totalorder %s19, 0
      %p81 = por %p79, %p80
      %p82 = scmp.ne.s32.totalorder %s74, %s76
      %p83 = scmp.eq.s32.totalorder %s24, 1
      %p84 = por %p82, %p83
      %p85 = scmp.ne.s32.totalorder %s76, %s77
      %p86 = scmp.eq.s32.totalorder %s24, 0
      %p87 = por %p85, %p86
      %p88 = scmp.ne.s32.totalorder %s76, %s77
      %p89 = scmp.eq.s32.totalorder %s25, 1
      %p90 = por %p88, %p89
      %p92 = scmp.ne.s32.totalorder %s77, %s91
      %p93 = scmp.eq.s32.totalorder %s25, 0
      %p94 = por %p92, %p93
      %s96 = sadd.s32 %s95, 1
      %p99 = scmp.eq.s32.totalorder %s19, 1
      %p100 = scmp.ne.s32.totalorder %s95, %s97
      %p101 = scmp.eq.s32.totalorder %s19, 0
      %p102 = por %p100, %p101
      %p103 = scmp.ne.s32.totalorder %s95, %s97
      %p104 = scmp.eq.s32.totalorder %s24, 1
      %p105 = por %p103, %p104
      %p106 = scmp.ne.s32.totalorder %s97, %s98
      %p107 = scmp.eq.s32.totalorder %s24, 0
      %p108 = por %p106, %p107
      %p109 = scmp.ne.s32.totalorder %s97, %s98
      %p110 = scmp.eq.s32.totalorder %s25, 1
      %p111 = por %p109, %p110
      %p113 = scmp.ne.s32.totalorder %s98, %s112
      %p114 = scmp.eq.s32.totalorder %s25, 0
      %p115 = por %p113, %p114
      %s117 = sadd.s32 %s116, 1
      %p120 = scmp.eq.s32.totalorder %s19, 1
      %p121 = scmp.ne.s32.totalorder %s116, %s118
      %p122 = scmp.eq.s32.totalorder %s19, 0
      %p123 = por %p121, %p122
      %p124 = scmp.ne.s32.totalorder %s116, %s118
      %p125 = scmp.eq.s32.totalorder %s24, 1
      %p126 = por %p124, %p125
      %p127 = scmp.ne.s32.totalorder %s118, %s119
      %p128 = scmp.eq.s32.totalorder %s24, 0
      %p129 = por %p127, %p128
      %p130 = scmp.ne.s32.totalorder %s118, %s119
      %p131 = scmp.eq.s32.totalorder %s25, 1
      %p132 = por %p130, %p131
      %p134 = scmp.ne.s32.totalorder %s119, %s133
      %p135 = scmp.eq.s32.totalorder %s25, 0
      %p136 = por %p134, %p135
      %s138 = sadd.s32 %s137, 1
      %p141 = scmp.eq.s32.totalorder %s19, 1
      %p142 = scmp.ne.s32.totalorder %s137, %s139
      %p143 = scmp.eq.s32.totalorder %s19, 0
      %p144 = por %p142, %p143
      %p145 = scmp.ne.s32.totalorder %s137, %s139
      %p146 = scmp.eq.s32.totalorder %s24, 1
      %p147 = por %p145, %p146
      %p148 = scmp.ne.s32.totalorder %s139, %s140
      %p149 = scmp.eq.s32.totalorder %s24, 0
      %p150 = por %p148, %p149
      %p151 = scmp.ne.s32.totalorder %s139, %s140
      %p152 = scmp.eq.s32.totalorder %s25, 1
      %p153 = por %p151, %p152
      %p155 = scmp.ne.s32.totalorder %s140, %s154
      %p156 = scmp.eq.s32.totalorder %s25, 0
      %p157 = por %p155, %p156
      %s159 = sadd.s32 %s158, 1
      %p162 = scmp.eq.s32.totalorder %s19, 1
      %p163 = scmp.ne.s32.totalorder %s158, %s160
      %p164 = scmp.eq.s32.totalorder %s19, 0
      %p165 = por %p163, %p164
      %p166 = scmp.ne.s32.totalorder %s158, %s160
      %p167 = scmp.eq.s32.totalorder %s24, 1
      %p168 = por %p166, %p167
      %p169 = scmp.ne.s32.totalorder %s160, %s161
      %p170 = scmp.eq.s32.totalorder %s24, 0
      %p171 = por %p169, %p170
      %p172 = scmp.ne.s32.totalorder %s160, %s161
      %p173 = scmp.eq.s32.totalorder %s25, 1
      %p174 = por %p172, %p173
      %p176 = scmp.ne.s32.totalorder %s161, %s175
      %p177 = scmp.eq.s32.totalorder %s25, 0
      %p178 = por %p176, %p177
      %s180 = sadd.s32 %s179, 1
      %p183 = scmp.eq.s32.totalorder %s19, 1
      %p184 = scmp.ne.s32.totalorder %s179, %s181
      %p185 = scmp.eq.s32.totalorder %s19, 0
      %p186 = por %p184, %p185
      %p187 = scmp.ne.s32.totalorder %s179, %s181
      %p188 = scmp.eq.s32.totalorder %s24, 1
      %p189 = por %p187, %p188
      %p190 = scmp.ne.s32.totalorder %s181, %s182
      %p191 = scmp.eq.s32.totalorder %s24, 0
      %p192 = por %p190, %p191
      %p193 = scmp.ne.s32.totalorder %s181, %s182
      %p194 = scmp.eq.s32.totalorder %s25, 1
      %p195 = por %p193, %p194
      %p197 = scmp.ne.s32.totalorder %s182, %s196
      %p198 = scmp.eq.s32.totalorder %s25, 0
      %p199 = por %p197, %p198
      %s201 = sadd.s32 %s200, 1
      %p204 = scmp.eq.s32.totalorder %s19, 1
      %p205 = scmp.ne.s32.totalorder %s200, %s202
      %p206 = scmp.eq.s32.totalorder %s19, 0
      %p207 = por %p205, %p206
      %p208 = scmp.ne.s32.totalorder %s200, %s202
      %p209 = scmp.eq.s32.totalorder %s24, 1
      %p210 = por %p208, %p209
      %p211 = scmp.ne.s32.totalorder %s202, %s203
      %p212 = scmp.eq.s32.totalorder %s24, 0
      %p213 = por %p211, %p212
      %p214 = scmp.ne.s32.totalorder %s202, %s203
      %p215 = scmp.eq.s32.totalorder %s25, 1
      %p216 = por %p214, %p215
      %p218 = scmp.ne.s32.totalorder %s203, %s217
      %p219 = scmp.eq.s32.totalorder %s25, 0
      %p220 = por %p218, %p219
      %s222 = sadd.s32 %s221, 1
      %p225 = scmp.eq.s32.totalorder %s19, 1
      %p226 = scmp.ne.s32.totalorder %s221, %s223
      %p227 = scmp.eq.s32.totalorder %s19, 0
      %p228 = por %p226, %p227
      %p229 = scmp.ne.s32.totalorder %s221, %s223
      %p230 = scmp.eq.s32.totalorder %s24, 1
      %p231 = por %p229, %p230
      %p232 = scmp.ne.s32.totalorder %s223, %s224
      %p233 = scmp.eq.s32.totalorder %s24, 0
      %p234 = por %p232, %p233
      %p235 = scmp.ne.s32.totalorder %s223, %s224
      %p236 = scmp.eq.s32.totalorder %s25, 1
      %p237 = por %p235, %p236
      %p239 = scmp.ne.s32.totalorder %s224, %s238
      %p240 = scmp.eq.s32.totalorder %s25, 0
      %p241 = por %p239, %p240
      %s242 = ssub.s32 %s19, %s26
      %p243 = scmp.eq.s32.totalorder %s242, 0
      %s245 = sadd.s32 %s244, 1
      %s246 = scalar_select %p243, %s244, %s245
      %p249 = pneg %p243
      %p250 = scmp.eq.s32.totalorder %s19, 1
      %p251 = por %p249, %p250
      %p252 = scmp.ne.s32.totalorder %s244, %s247
      %p253 = scmp.eq.s32.totalorder %s19, 0
      %p254 = por %p252, %p253
      %p255 = scmp.ne.s32.totalorder %s244, %s247
      %p256 = scmp.eq.s32.totalorder %s24, 1
      %p257 = por %p255, %p256
      %p258 = scmp.ne.s32.totalorder %s247, %s248
      %p259 = scmp.eq.s32.totalorder %s24, 0
      %p260 = por %p258, %p259
      %p261 = scmp.ne.s32.totalorder %s247, %s248
      %p262 = scmp.eq.s32.totalorder %s25, 1
      %p263 = por %p261, %p262
      %p265 = scmp.ne.s32.totalorder %s248, %s264
      %p266 = scmp.eq.s32.totalorder %s25, 0
      %p267 = por %p265, %p266
      %p268 = scmp.le.s32.totalorder 1, %s19
      %p269 = scmp.lt.s32.totalorder %s19, 3
      %p270 = pnand %p268, %p269
      %p271 = pneg %p270
      // Predicated region
      $region9: #{net_forward.1} parent=5 // pred_check
        _
      $region10: #{net_forward.1} parent=5 // pred_check_branch
        %273 = sbr.rel (%p270) target = $region12
      $region11: #{net_forward.1} parent=5 // pred_region
        %s274 = ssub.s32 %s19, 1
        // Predicated region
        $region13: #{net_forward.1} parent=11 // pred_check
          %p275 = pneg %p66
        $region14: #{net_forward.1} parent=11 // pred_check_branch
          %277 = sbr.rel (%p275) target = $region16
        $region15: #{net_forward.1} parent=11 // pred_region
          _
        $region16: #{net_forward.1} parent=11 // pred_fallthru
          _
        // Predicated region
        $region17: #{net_forward.1} parent=11 // pred_check
          %p278 = pneg %p87
        $region18: #{net_forward.1} parent=11 // pred_check_branch
          %280 = sbr.rel (%p278) target = $region20
        $region19: #{net_forward.1} parent=11 // pred_region
          _
        $region20: #{net_forward.1} parent=11 // pred_fallthru
          _
        // Predicated region
        $region21: #{net_forward.1} parent=11 // pred_check
          %p281 = pneg %p108
        $region22: #{net_forward.1} parent=11 // pred_check_branch
          %283 = sbr.rel (%p281) target = $region24
        $region23: #{net_forward.1} parent=11 // pred_region
          _
        $region24: #{net_forward.1} parent=11 // pred_fallthru
          _
        // Predicated region
        $region25: #{net_forward.1} parent=11 // pred_check
          %p284 = pneg %p129
        $region26: #{net_forward.1} parent=11 // pred_check_branch
          %286 = sbr.rel (%p284) target = $region28
        $region27: #{net_forward.1} parent=11 // pred_region
          _
        $region28: #{net_forward.1} parent=11 // pred_fallthru
          _
        // Predicated region
        $region29: #{net_forward.1} parent=11 // pred_check
          %p287 = pneg %p150
        $region30: #{net_forward.1} parent=11 // pred_check_branch
          %289 = sbr.rel (%p287) target = $region32
        $region31: #{net_forward.1} parent=11 // pred_region
          _
        $region32: #{net_forward.1} parent=11 // pred_fallthru
          _
        // Predicated region
        $region33: #{net_forward.1} parent=11 // pred_check
          %p290 = pneg %p171
        $region34: #{net_forward.1} parent=11 // pred_check_branch
          %292 = sbr.rel (%p290) target = $region36
        $region35: #{net_forward.1} parent=11 // pred_region
          _
        $region36: #{net_forward.1} parent=11 // pred_fallthru
          _
        // Predicated region
        $region37: #{net_forward.1} parent=11 // pred_check
          %p293 = pneg %p192
        $region38: #{net_forward.1} parent=11 // pred_check_branch
          %295 = sbr.rel (%p293) target = $region40
        $region39: #{net_forward.1} parent=11 // pred_region
          _
        $region40: #{net_forward.1} parent=11 // pred_fallthru
          _
        // Predicated region
        $region41: #{net_forward.1} parent=11 // pred_check
          %p296 = pneg %p213
        $region42: #{net_forward.1} parent=11 // pred_check_branch
          %298 = sbr.rel (%p296) target = $region44
        $region43: #{net_forward.1} parent=11 // pred_region
          _
        $region44: #{net_forward.1} parent=11 // pred_fallthru
          _
        // Predicated region
        $region45: #{net_forward.1} parent=11 // pred_check
          %p299 = pneg %p234
        $region46: #{net_forward.1} parent=11 // pred_check_branch
          %301 = sbr.rel (%p299) target = $region48
        $region47: #{net_forward.1} parent=11 // pred_region
          _
        $region48: #{net_forward.1} parent=11 // pred_fallthru
          _
      $region12: #{net_forward.1} parent=5 // pred_fallthru
        _
      %p302 = scmp.lt.s32.totalorder %s19, 2
      // Predicated region
      $region49: #{net_forward.1} parent=5 // pred_check
        %p303 = pneg %p302
      $region50: #{net_forward.1} parent=5 // pred_check_branch
        %305 = sbr.rel (%p303) target = $region52
      $region51: #{net_forward.1} parent=5 // pred_region
        // Predicated region
        $region53: #{net_forward.1} parent=51 // pred_check
          %p306 = pneg %p39
        $region54: #{net_forward.1} parent=51 // pred_check_branch
          %308 = sbr.rel (%p306) target = $region56
        $region55: #{net_forward.1} parent=51 // pred_region
          %s309 = smul.u32 64, %s19
          %p310 = scmp.lt.s32.totalorder %s309, 127
          %s311 = scalar_select %p310, %s309, 127
          %s312 = smul.addr %s311, 4
          %s313 = smul.addr %s312, 4
          %s314 = scalar_lea.vmem %s0, %s313
          %s315 = smul.u32 64, %s19
        $region56: #{net_forward.1} parent=51 // pred_fallthru
          _
      $region52: #{net_forward.1} parent=5 // pred_fallthru
        _
      %p316 = scmp.le.s32.totalorder 1, %s19
      %p317 = scmp.lt.s32.totalorder %s19, 3
      %p318 = pnand %p316, %p317
      %p319 = pneg %p318
      // Predicated region
      $region57: #{net_forward.1} parent=5 // pred_check
        _
      $region58: #{net_forward.1} parent=5 // pred_check_branch
        %321 = sbr.rel (%p318) target = $region60
      $region59: #{net_forward.1} parent=5 // pred_region
        %s322 = ssub.s32 %s19, 1
        %s323 = smul.u32 64, %s24
        %p324 = scmp.lt.s32.totalorder %s323, 127
        %s325 = scalar_select %p324, %s323, 127
        %s326 = smul.addr %s325, 4
        %s327 = smul.addr %s326, 4
        %s328 = scalar_lea.vmem %s0, %s327
        %p329 = pneg %p45
        %p330 = pneg %p42
        %p331 = pneg %p66
        %p332 = pneg %p63
        %p333 = pneg %p87
        %p334 = pneg %p84
        %p335 = pneg %p108
        %p336 = pneg %p105
        %p337 = pneg %p129
        %p338 = pneg %p126
        %p339 = pneg %p150
        %p340 = pneg %p147
        %p341 = pneg %p171
        %p342 = pneg %p168
        %p343 = pneg %p192
        %p344 = pneg %p189
        %p345 = pneg %p213
        %p346 = pneg %p210
        %p347 = pneg %p234
        %p348 = pneg %p231
        %p349 = pneg %p260
        %p350 = pneg %p257
        %s351 = sand.u32 %s247, 1
        %s352 = scalar_lea.sflag [#allocation3], %s351
        %s353 = sand.u32 %s247, 1
        %s354 = smul.addr %s353, 8
        %s355 = scalar_lea.vmem [#allocation2], %s354
        %s356 = smul.u32 64, %s24
        %p357 = scmp.lt.s32.totalorder %s356, 127
        %s358 = scalar_select %p357, %s356, 127
        %s359 = smul.addr %s358, 4
        %s360 = smul.addr %s359, 4
        %s361 = scalar_lea.vmem %s0, %s360
        %s362 = smul.u32 64, %s24
        %v364 = vld [vmem:[%s361] sm:$0xff]
        %v365 = vld [vmem:[%s361 + $0x8] sm:$0xff]
        %v366 = vld [vmem:[%s361 + $0x10] sm:$0xff]
        %v367 = vld [vmem:[%s361 + $0x18] sm:$0xff]
        %v368 = vld [vmem:[%s361 + $0x20] sm:$0xff]
        %v369 = vld [vmem:[%s361 + $0x28] sm:$0xff]
        %v370 = vld [vmem:[%s361 + $0x30] sm:$0xff]
        %v371 = vld [vmem:[%s361 + $0x38] sm:$0xff]
        %v372 = vld [vmem:[%s361 + $0x40] sm:$0xff]
        %v373 = vld [vmem:[%s361 + $0x48] sm:$0xff]
        %v374 = vld [vmem:[%s361 + $0x50] sm:$0xff]
        %v375 = vld [vmem:[%s361 + $0x58] sm:$0xff]
        %v376 = vld [vmem:[%s361 + $0x60] sm:$0xff]
        %v377 = vld [vmem:[%s361 + $0x68] sm:$0xff]
        %v378 = vld [vmem:[%s361 + $0x70] sm:$0xff]
        %v379 = vld [vmem:[%s361 + $0x78] sm:$0xff]
        %v380 = vld [vmem:[%s361 + $0x80] sm:$0xff]
        %v381 = vld [vmem:[%s361 + $0x88] sm:$0xff]
        %v382 = vld [vmem:[%s361 + $0x90] sm:$0xff]
        %v383 = vld [vmem:[%s361 + $0x98] sm:$0xff]
        %v384 = vld [vmem:[%s361 + $0xa0] sm:$0xff]
        %v385 = vld [vmem:[%s361 + $0xa8] sm:$0xff]
        %v386 = vld [vmem:[%s361 + $0xb0] sm:$0xff]
        %v387 = vld [vmem:[%s361 + $0xb8] sm:$0xff]
        %v388 = vld [vmem:[%s361 + $0xc0] sm:$0xff]
        %v389 = vld [vmem:[%s361 + $0xc8] sm:$0xff]
        %v390 = vld [vmem:[%s361 + $0xd0] sm:$0xff]
        %v391 = vld [vmem:[%s361 + $0xd8] sm:$0xff]
        %v392 = vld [vmem:[%s361 + $0xe0] sm:$0xff]
        %v393 = vld [vmem:[%s361 + $0xe8] sm:$0xff]
        %v394 = vld [vmem:[%s361 + $0xf0] sm:$0xff]
        %v395 = vld [vmem:[%s361 + $0xf8] sm:$0xff]
        %v396 = vld [vmem:[%s361 + $0x100] sm:$0xff]
        %v397 = vld [vmem:[%s361 + $0x108] sm:$0xff]
        %v398 = vld [vmem:[%s361 + $0x110] sm:$0xff]
        %v399 = vld [vmem:[%s361 + $0x118] sm:$0xff]
        %v400 = vld [vmem:[%s361 + $0x120] sm:$0xff]
        %v401 = vld [vmem:[%s361 + $0x128] sm:$0xff]
        %v402 = vld [vmem:[%s361 + $0x130] sm:$0xff]
        %v403 = vld [vmem:[%s361 + $0x138] sm:$0xff]
        %v404 = vld [vmem:[%s361 + $0x140] sm:$0xff]
        %v405 = vld [vmem:[%s361 + $0x148] sm:$0xff]
        %v406 = vld [vmem:[%s361 + $0x150] sm:$0xff]
        %v407 = vld [vmem:[%s361 + $0x158] sm:$0xff]
        %v408 = vld [vmem:[%s361 + $0x160] sm:$0xff]
        %v409 = vld [vmem:[%s361 + $0x168] sm:$0xff]
        %v410 = vld [vmem:[%s361 + $0x170] sm:$0xff]
        %v411 = vld [vmem:[%s361 + $0x178] sm:$0xff]
        %v412 = vld [vmem:[%s361 + $0x180] sm:$0xff]
        %v413 = vld [vmem:[%s361 + $0x188] sm:$0xff]
        %v414 = vld [vmem:[%s361 + $0x190] sm:$0xff]
        %v415 = vld [vmem:[%s361 + $0x198] sm:$0xff]
        %v416 = vld [vmem:[%s361 + $0x1a0] sm:$0xff]
        %v417 = vld [vmem:[%s361 + $0x1a8] sm:$0xff]
        %v418 = vld [vmem:[%s361 + $0x1b0] sm:$0xff]
        %v419 = vld [vmem:[%s361 + $0x1b8] sm:$0xff]
        %v420 = vld [vmem:[%s361 + $0x1c0] sm:$0xff]
        %v421 = vld [vmem:[%s361 + $0x1c8] sm:$0xff]
        %v422 = vld [vmem:[%s361 + $0x1d0] sm:$0xff]
        %v423 = vld [vmem:[%s361 + $0x1d8] sm:$0xff]
        %v424 = vld [vmem:[%s361 + $0x1e0] sm:$0xff]
        %v425 = vld [vmem:[%s361 + $0x1e8] sm:$0xff]
        %v426 = vld [vmem:[%s361 + $0x1f0] sm:$0xff]
        %v427 = vld [vmem:[%s361 + $0x1f8] sm:$0xff]
        %v428 = vld [vmem:[%s361 + $0x200] sm:$0xff]
        %v429 = vld [vmem:[%s361 + $0x208] sm:$0xff]
        %v430 = vld [vmem:[%s361 + $0x210] sm:$0xff]
        %v431 = vld [vmem:[%s361 + $0x218] sm:$0xff]
        %v432 = vld [vmem:[%s361 + $0x220] sm:$0xff]
        %v433 = vld [vmem:[%s361 + $0x228] sm:$0xff]
        %v434 = vld [vmem:[%s361 + $0x230] sm:$0xff]
        %v435 = vld [vmem:[%s361 + $0x238] sm:$0xff]
        %v436 = vld [vmem:[%s361 + $0x240] sm:$0xff]
        %v437 = vld [vmem:[%s361 + $0x248] sm:$0xff]
        %v438 = vld [vmem:[%s361 + $0x250] sm:$0xff]
        %v439 = vld [vmem:[%s361 + $0x258] sm:$0xff]
        %v440 = vld [vmem:[%s361 + $0x260] sm:$0xff]
        %v441 = vld [vmem:[%s361 + $0x268] sm:$0xff]
        %v442 = vld [vmem:[%s361 + $0x270] sm:$0xff]
        %v443 = vld [vmem:[%s361 + $0x278] sm:$0xff]
        %v444 = vld [vmem:[%s361 + $0x280] sm:$0xff]
        %v445 = vld [vmem:[%s361 + $0x288] sm:$0xff]
        %v446 = vld [vmem:[%s361 + $0x290] sm:$0xff]
        %v447 = vld [vmem:[%s361 + $0x298] sm:$0xff]
        %v448 = vld [vmem:[%s361 + $0x2a0] sm:$0xff]
        %v449 = vld [vmem:[%s361 + $0x2a8] sm:$0xff]
        %v450 = vld [vmem:[%s361 + $0x2b0] sm:$0xff]
        %v451 = vld [vmem:[%s361 + $0x2b8] sm:$0xff]
        %v452 = vld [vmem:[%s361 + $0x2c0] sm:$0xff]
        %v453 = vld [vmem:[%s361 + $0x2c8] sm:$0xff]
        %v454 = vld [vmem:[%s361 + $0x2d0] sm:$0xff]
        %v455 = vld [vmem:[%s361 + $0x2d8] sm:$0xff]
        %v456 = vld [vmem:[%s361 + $0x2e0] sm:$0xff]
        %v457 = vld [vmem:[%s361 + $0x2e8] sm:$0xff]
        %v458 = vld [vmem:[%s361 + $0x2f0] sm:$0xff]
        %v459 = vld [vmem:[%s361 + $0x2f8] sm:$0xff]
        %v460 = vld [vmem:[%s361 + $0x300] sm:$0xff]
        %v461 = vld [vmem:[%s361 + $0x308] sm:$0xff]
        %v462 = vld [vmem:[%s361 + $0x310] sm:$0xff]
        %v463 = vld [vmem:[%s361 + $0x318] sm:$0xff]
        %v464 = vld [vmem:[%s361 + $0x320] sm:$0xff]
        %v465 = vld [vmem:[%s361 + $0x328] sm:$0xff]
        %v466 = vld [vmem:[%s361 + $0x330] sm:$0xff]
        %v467 = vld [vmem:[%s361 + $0x338] sm:$0xff]
        %v468 = vld [vmem:[%s361 + $0x340] sm:$0xff]
        %v469 = vld [vmem:[%s361 + $0x348] sm:$0xff]
        %v470 = vld [vmem:[%s361 + $0x350] sm:$0xff]
        %v471 = vld [vmem:[%s361 + $0x358] sm:$0xff]
        %v472 = vld [vmem:[%s361 + $0x360] sm:$0xff]
        %v473 = vld [vmem:[%s361 + $0x368] sm:$0xff]
        %v474 = vld [vmem:[%s361 + $0x370] sm:$0xff]
        %v475 = vld [vmem:[%s361 + $0x378] sm:$0xff]
        %v476 = vld [vmem:[%s361 + $0x380] sm:$0xff]
        %v477 = vld [vmem:[%s361 + $0x388] sm:$0xff]
        %v478 = vld [vmem:[%s361 + $0x390] sm:$0xff]
        %v479 = vld [vmem:[%s361 + $0x398] sm:$0xff]
        %v480 = vld [vmem:[%s361 + $0x3a0] sm:$0xff]
        %v481 = vld [vmem:[%s361 + $0x3a8] sm:$0xff]
        %v482 = vld [vmem:[%s361 + $0x3b0] sm:$0xff]
        %v483 = vld [vmem:[%s361 + $0x3b8] sm:$0xff]
        %v484 = vld [vmem:[%s361 + $0x3c0] sm:$0xff]
        %v485 = vld [vmem:[%s361 + $0x3c8] sm:$0xff]
        %v486 = vld [vmem:[%s361 + $0x3d0] sm:$0xff]
        %v487 = vld [vmem:[%s361 + $0x3d8] sm:$0xff]
        %v488 = vld [vmem:[%s361 + $0x3e0] sm:$0xff]
        %v489 = vld [vmem:[%s361 + $0x3e8] sm:$0xff]
        %v490 = vld [vmem:[%s361 + $0x3f0] sm:$0xff]
        %v491 = vld [vmem:[%s361 + $0x3f8] sm:$0xff]
        %v492 = vld [vmem:[%s1] sm:$0xff]
        %v493 = vld [vmem:[%s1 + $0x8] sm:$0xff]
        %v494 = vld [vmem:[%s1 + $0x10] sm:$0xff]
        %v495 = vld [vmem:[%s1 + $0x18] sm:$0xff]
        %v496 = vld [vmem:[%s1 + $0x20] sm:$0xff]
        %v497 = vld [vmem:[%s1 + $0x28] sm:$0xff]
        %v498 = vld [vmem:[%s1 + $0x30] sm:$0xff]
        %v499 = vld [vmem:[%s1 + $0x38] sm:$0xff]
        %v500 = vld [vmem:[%s1 + $0x40] sm:$0xff]
        %v501 = vld [vmem:[%s1 + $0x48] sm:$0xff]
        %v502 = vld [vmem:[%s1 + $0x50] sm:$0xff]
        %v503 = vld [vmem:[%s1 + $0x58] sm:$0xff]
        %v504 = vld [vmem:[%s1 + $0x60] sm:$0xff]
        %v505 = vld [vmem:[%s1 + $0x68] sm:$0xff]
        %v506 = vld [vmem:[%s1 + $0x70] sm:$0xff]
        %v507 = vld [vmem:[%s1 + $0x78] sm:$0xff]
        %v508 = vld [vmem:[%s1 + $0x80] sm:$0xff]
        %v509 = vld [vmem:[%s1 + $0x88] sm:$0xff]
        %v510 = vld [vmem:[%s1 + $0x90] sm:$0xff]
        %v511 = vld [vmem:[%s1 + $0x98] sm:$0xff]
        %v512 = vld [vmem:[%s1 + $0xa0] sm:$0xff]
        %v513 = vld [vmem:[%s1 + $0xa8] sm:$0xff]
        %v514 = vld [vmem:[%s1 + $0xb0] sm:$0xff]
        %v515 = vld [vmem:[%s1 + $0xb8] sm:$0xff]
        %v516 = vld [vmem:[%s1 + $0xc0] sm:$0xff]
        %v517 = vld [vmem:[%s1 + $0xc8] sm:$0xff]
        %v518 = vld [vmem:[%s1 + $0xd0] sm:$0xff]
        %v519 = vld [vmem:[%s1 + $0xd8] sm:$0xff]
        %v520 = vld [vmem:[%s1 + $0xe0] sm:$0xff]
        %v521 = vld [vmem:[%s1 + $0xe8] sm:$0xff]
        %v522 = vld [vmem:[%s1 + $0xf0] sm:$0xff]
        %v523 = vld [vmem:[%s1 + $0xf8] sm:$0xff]
        %v524 = vld [vmem:[%s1 + $0x100] sm:$0xff]
        %v525 = vld [vmem:[%s1 + $0x108] sm:$0xff]
        %v526 = vld [vmem:[%s1 + $0x110] sm:$0xff]
        %v527 = vld [vmem:[%s1 + $0x118] sm:$0xff]
        %v528 = vld [vmem:[%s1 + $0x120] sm:$0xff]
        %v529 = vld [vmem:[%s1 + $0x128] sm:$0xff]
        %v530 = vld [vmem:[%s1 + $0x130] sm:$0xff]
        %v531 = vld [vmem:[%s1 + $0x138] sm:$0xff]
        %v532 = vld [vmem:[%s1 + $0x140] sm:$0xff]
        %v533 = vld [vmem:[%s1 + $0x148] sm:$0xff]
        %v534 = vld [vmem:[%s1 + $0x150] sm:$0xff]
        %v535 = vld [vmem:[%s1 + $0x158] sm:$0xff]
        %v536 = vld [vmem:[%s1 + $0x160] sm:$0xff]
        %v537 = vld [vmem:[%s1 + $0x168] sm:$0xff]
        %v538 = vld [vmem:[%s1 + $0x170] sm:$0xff]
        %v539 = vld [vmem:[%s1 + $0x178] sm:$0xff]
        %v540 = vld [vmem:[%s1 + $0x180] sm:$0xff]
        %v541 = vld [vmem:[%s1 + $0x188] sm:$0xff]
        %v542 = vld [vmem:[%s1 + $0x190] sm:$0xff]
        %v543 = vld [vmem:[%s1 + $0x198] sm:$0xff]
        %v544 = vld [vmem:[%s1 + $0x1a0] sm:$0xff]
        %v545 = vld [vmem:[%s1 + $0x1a8] sm:$0xff]
        %v546 = vld [vmem:[%s1 + $0x1b0] sm:$0xff]
        %v547 = vld [vmem:[%s1 + $0x1b8] sm:$0xff]
        %v548 = vld [vmem:[%s1 + $0x1c0] sm:$0xff]
        %v549 = vld [vmem:[%s1 + $0x1c8] sm:$0xff]
        %v550 = vld [vmem:[%s1 + $0x1d0] sm:$0xff]
        %v551 = vld [vmem:[%s1 + $0x1d8] sm:$0xff]
        %v552 = vld [vmem:[%s1 + $0x1e0] sm:$0xff]
        %v553 = vld [vmem:[%s1 + $0x1e8] sm:$0xff]
        %v554 = vld [vmem:[%s1 + $0x1f0] sm:$0xff]
        %v555 = vld [vmem:[%s1 + $0x1f8] sm:$0xff]
        %v556 = vld [vmem:[%s1 + $0x200] sm:$0xff]
        %v557 = vld [vmem:[%s1 + $0x208] sm:$0xff]
        %v558 = vld [vmem:[%s1 + $0x210] sm:$0xff]
        %v559 = vld [vmem:[%s1 + $0x218] sm:$0xff]
        %v560 = vld [vmem:[%s1 + $0x220] sm:$0xff]
        %v561 = vld [vmem:[%s1 + $0x228] sm:$0xff]
        %v562 = vld [vmem:[%s1 + $0x230] sm:$0xff]
        %v563 = vld [vmem:[%s1 + $0x238] sm:$0xff]
        %v564 = vld [vmem:[%s1 + $0x240] sm:$0xff]
        %v565 = vld [vmem:[%s1 + $0x248] sm:$0xff]
        %v566 = vld [vmem:[%s1 + $0x250] sm:$0xff]
        %v567 = vld [vmem:[%s1 + $0x258] sm:$0xff]
        %v568 = vld [vmem:[%s1 + $0x260] sm:$0xff]
        %v569 = vld [vmem:[%s1 + $0x268] sm:$0xff]
        %v570 = vld [vmem:[%s1 + $0x270] sm:$0xff]
        %v571 = vld [vmem:[%s1 + $0x278] sm:$0xff]
        %v572 = vld [vmem:[%s1 + $0x280] sm:$0xff]
        %v573 = vld [vmem:[%s1 + $0x288] sm:$0xff]
        %v574 = vld [vmem:[%s1 + $0x290] sm:$0xff]
        %v575 = vld [vmem:[%s1 + $0x298] sm:$0xff]
        %v576 = vld [vmem:[%s1 + $0x2a0] sm:$0xff]
        %v577 = vld [vmem:[%s1 + $0x2a8] sm:$0xff]
        %v578 = vld [vmem:[%s1 + $0x2b0] sm:$0xff]
        %v579 = vld [vmem:[%s1 + $0x2b8] sm:$0xff]
        %v580 = vld [vmem:[%s1 + $0x2c0] sm:$0xff]
        %v581 = vld [vmem:[%s1 + $0x2c8] sm:$0xff]
        %v582 = vld [vmem:[%s1 + $0x2d0] sm:$0xff]
        %v583 = vld [vmem:[%s1 + $0x2d8] sm:$0xff]
        %v584 = vld [vmem:[%s1 + $0x2e0] sm:$0xff]
        %v585 = vld [vmem:[%s1 + $0x2e8] sm:$0xff]
        %v586 = vld [vmem:[%s1 + $0x2f0] sm:$0xff]
        %v587 = vld [vmem:[%s1 + $0x2f8] sm:$0xff]
        %v588 = vld [vmem:[%s1 + $0x300] sm:$0xff]
        %v589 = vld [vmem:[%s1 + $0x308] sm:$0xff]
        %v590 = vld [vmem:[%s1 + $0x310] sm:$0xff]
        %v591 = vld [vmem:[%s1 + $0x318] sm:$0xff]
        %v592 = vld [vmem:[%s1 + $0x320] sm:$0xff]
        %v593 = vld [vmem:[%s1 + $0x328] sm:$0xff]
        %v594 = vld [vmem:[%s1 + $0x330] sm:$0xff]
        %v595 = vld [vmem:[%s1 + $0x338] sm:$0xff]
        %v596 = vld [vmem:[%s1 + $0x340] sm:$0xff]
        %v597 = vld [vmem:[%s1 + $0x348] sm:$0xff]
        %v598 = vld [vmem:[%s1 + $0x350] sm:$0xff]
        %v599 = vld [vmem:[%s1 + $0x358] sm:$0xff]
        %v600 = vld [vmem:[%s1 + $0x360] sm:$0xff]
        %v601 = vld [vmem:[%s1 + $0x368] sm:$0xff]
        %v602 = vld [vmem:[%s1 + $0x370] sm:$0xff]
        %v603 = vld [vmem:[%s1 + $0x378] sm:$0xff]
        %v732 = vunpack.c.l.b16 %v364
        %v733 = vunpack.c.h.b16 %v364
        %v734 = vunpack.c.l.b16 %v365
        %v735 = vunpack.c.h.b16 %v365
        %v736 = vunpack.c.l.b16 %v366
        %v737 = vunpack.c.h.b16 %v366
        %v738 = vunpack.c.l.b16 %v367
        %v739 = vunpack.c.h.b16 %v367
        %v740 = vunpack.c.l.b16 %v368
        %v741 = vunpack.c.h.b16 %v368
        %v742 = vunpack.c.l.b16 %v369
        %v743 = vunpack.c.h.b16 %v369
        %v744 = vunpack.c.l.b16 %v370
        %v745 = vunpack.c.h.b16 %v370
        %v746 = vunpack.c.l.b16 %v371
        %v747 = vunpack.c.h.b16 %v371
        %v748 = vunpack.c.l.b16 %v372
        %v749 = vunpack.c.h.b16 %v372
        %v750 = vunpack.c.l.b16 %v373
        %v751 = vunpack.c.h.b16 %v373
        %v752 = vunpack.c.l.b16 %v374
        %v753 = vunpack.c.h.b16 %v374
        %v754 = vunpack.c.l.b16 %v375
        %v755 = vunpack.c.h.b16 %v375
        %v756 = vunpack.c.l.b16 %v376
        %v757 = vunpack.c.h.b16 %v376
        %v758 = vunpack.c.l.b16 %v377
        %v759 = vunpack.c.h.b16 %v377
        %v760 = vunpack.c.l.b16 %v378
        %v761 = vunpack.c.h.b16 %v378
        %v762 = vunpack.c.l.b16 %v379
        %v763 = vunpack.c.h.b16 %v379
        %v764 = vunpack.c.l.b16 %v380
        %v765 = vunpack.c.h.b16 %v380
        %v766 = vunpack.c.l.b16 %v381
        %v767 = vunpack.c.h.b16 %v381
        %v768 = vunpack.c.l.b16 %v382
        %v769 = vunpack.c.h.b16 %v382
        %v770 = vunpack.c.l.b16 %v383
        %v771 = vunpack.c.h.b16 %v383
        %v772 = vunpack.c.l.b16 %v384
        %v773 = vunpack.c.h.b16 %v384
        %v774 = vunpack.c.l.b16 %v385
        %v775 = vunpack.c.h.b16 %v385
        %v776 = vunpack.c.l.b16 %v386
        %v777 = vunpack.c.h.b16 %v386
        %v778 = vunpack.c.l.b16 %v387
        %v779 = vunpack.c.h.b16 %v387
        %v780 = vunpack.c.l.b16 %v388
        %v781 = vunpack.c.h.b16 %v388
        %v782 = vunpack.c.l.b16 %v389
        %v783 = vunpack.c.h.b16 %v389
        %v784 = vunpack.c.l.b16 %v390
        %v785 = vunpack.c.h.b16 %v390
        %v786 = vunpack.c.l.b16 %v391
        %v787 = vunpack.c.h.b16 %v391
        %v788 = vunpack.c.l.b16 %v392
        %v789 = vunpack.c.h.b16 %v392
        %v790 = vunpack.c.l.b16 %v393
        %v791 = vunpack.c.h.b16 %v393
        %v792 = vunpack.c.l.b16 %v394
        %v793 = vunpack.c.h.b16 %v394
        %v794 = vunpack.c.l.b16 %v395
        %v795 = vunpack.c.h.b16 %v395
        %v796 = vunpack.c.l.b16 %v396
        %v797 = vunpack.c.h.b16 %v396
        %v798 = vunpack.c.l.b16 %v397
        %v799 = vunpack.c.h.b16 %v397
        %v800 = vunpack.c.l.b16 %v398
        %v801 = vunpack.c.h.b16 %v398
        %v802 = vunpack.c.l.b16 %v399
        %v803 = vunpack.c.h.b16 %v399
        %v804 = vunpack.c.l.b16 %v400
        %v805 = vunpack.c.h.b16 %v400
        %v806 = vunpack.c.l.b16 %v401
        %v807 = vunpack.c.h.b16 %v401
        %v808 = vunpack.c.l.b16 %v402
        %v809 = vunpack.c.h.b16 %v402
        %v810 = vunpack.c.l.b16 %v403
        %v811 = vunpack.c.h.b16 %v403
        %v812 = vunpack.c.l.b16 %v404
        %v813 = vunpack.c.h.b16 %v404
        %v814 = vunpack.c.l.b16 %v405
        %v815 = vunpack.c.h.b16 %v405
        %v816 = vunpack.c.l.b16 %v406
        %v817 = vunpack.c.h.b16 %v406
        %v818 = vunpack.c.l.b16 %v407
        %v819 = vunpack.c.h.b16 %v407
        %v820 = vunpack.c.l.b16 %v408
        %v821 = vunpack.c.h.b16 %v408
        %v822 = vunpack.c.l.b16 %v409
        %v823 = vunpack.c.h.b16 %v409
        %v824 = vunpack.c.l.b16 %v410
        %v825 = vunpack.c.h.b16 %v410
        %v826 = vunpack.c.l.b16 %v411
        %v827 = vunpack.c.h.b16 %v411
        %v828 = vunpack.c.l.b16 %v412
        %v829 = vunpack.c.h.b16 %v412
        %v830 = vunpack.c.l.b16 %v413
        %v831 = vunpack.c.h.b16 %v413
        %v832 = vunpack.c.l.b16 %v414
        %v833 = vunpack.c.h.b16 %v414
        %v834 = vunpack.c.l.b16 %v415
        %v835 = vunpack.c.h.b16 %v415
        %v836 = vunpack.c.l.b16 %v416
        %v837 = vunpack.c.h.b16 %v416
        %v838 = vunpack.c.l.b16 %v417
        %v839 = vunpack.c.h.b16 %v417
        %v840 = vunpack.c.l.b16 %v418
        %v841 = vunpack.c.h.b16 %v418
        %v842 = vunpack.c.l.b16 %v419
        %v843 = vunpack.c.h.b16 %v419
        %v844 = vunpack.c.l.b16 %v420
        %v845 = vunpack.c.h.b16 %v420
        %v846 = vunpack.c.l.b16 %v421
        %v847 = vunpack.c.h.b16 %v421
        %v848 = vunpack.c.l.b16 %v422
        %v849 = vunpack.c.h.b16 %v422
        %v850 = vunpack.c.l.b16 %v423
        %v851 = vunpack.c.h.b16 %v423
        %v852 = vunpack.c.l.b16 %v424
        %v853 = vunpack.c.h.b16 %v424
        %v854 = vunpack.c.l.b16 %v425
        %v855 = vunpack.c.h.b16 %v425
        %v856 = vunpack.c.l.b16 %v426
        %v857 = vunpack.c.h.b16 %v426
        %v858 = vunpack.c.l.b16 %v427
        %v859 = vunpack.c.h.b16 %v427
        %v860 = vunpack.c.l.b16 %v428
        %v861 = vunpack.c.h.b16 %v428
        %v862 = vunpack.c.l.b16 %v429
        %v863 = vunpack.c.h.b16 %v429
        %v864 = vunpack.c.l.b16 %v430
        %v865 = vunpack.c.h.b16 %v430
        %v866 = vunpack.c.l.b16 %v431
        %v867 = vunpack.c.h.b16 %v431
        %v868 = vunpack.c.l.b16 %v432
        %v869 = vunpack.c.h.b16 %v432
        %v870 = vunpack.c.l.b16 %v433
        %v871 = vunpack.c.h.b16 %v433
        %v872 = vunpack.c.l.b16 %v434
        %v873 = vunpack.c.h.b16 %v434
        %v874 = vunpack.c.l.b16 %v435
        %v875 = vunpack.c.h.b16 %v435
        %v876 = vunpack.c.l.b16 %v436
        %v877 = vunpack.c.h.b16 %v436
        %v878 = vunpack.c.l.b16 %v437
        %v879 = vunpack.c.h.b16 %v437
        %v880 = vunpack.c.l.b16 %v438
        %v881 = vunpack.c.h.b16 %v438
        %v882 = vunpack.c.l.b16 %v439
        %v883 = vunpack.c.h.b16 %v439
        %v884 = vunpack.c.l.b16 %v440
        %v885 = vunpack.c.h.b16 %v440
        %v886 = vunpack.c.l.b16 %v441
        %v887 = vunpack.c.h.b16 %v441
        %v888 = vunpack.c.l.b16 %v442
        %v889 = vunpack.c.h.b16 %v442
        %v890 = vunpack.c.l.b16 %v443
        %v891 = vunpack.c.h.b16 %v443
        %v892 = vunpack.c.l.b16 %v444
        %v893 = vunpack.c.h.b16 %v444
        %v894 = vunpack.c.l.b16 %v445
        %v895 = vunpack.c.h.b16 %v445
        %v896 = vunpack.c.l.b16 %v446
        %v897 = vunpack.c.h.b16 %v446
        %v898 = vunpack.c.l.b16 %v447
        %v899 = vunpack.c.h.b16 %v447
        %v900 = vunpack.c.l.b16 %v448
        %v901 = vunpack.c.h.b16 %v448
        %v902 = vunpack.c.l.b16 %v449
        %v903 = vunpack.c.h.b16 %v449
        %v904 = vunpack.c.l.b16 %v450
        %v905 = vunpack.c.h.b16 %v450
        %v906 = vunpack.c.l.b16 %v451
        %v907 = vunpack.c.h.b16 %v451
        %v908 = vunpack.c.l.b16 %v452
        %v909 = vunpack.c.h.b16 %v452
        %v910 = vunpack.c.l.b16 %v453
        %v911 = vunpack.c.h.b16 %v453
        %v912 = vunpack.c.l.b16 %v454
        %v913 = vunpack.c.h.b16 %v454
        %v914 = vunpack.c.l.b16 %v455
        %v915 = vunpack.c.h.b16 %v455
        %v916 = vunpack.c.l.b16 %v456
        %v917 = vunpack.c.h.b16 %v456
        %v918 = vunpack.c.l.b16 %v457
        %v919 = vunpack.c.h.b16 %v457
        %v920 = vunpack.c.l.b16 %v458
        %v921 = vunpack.c.h.b16 %v458
        %v922 = vunpack.c.l.b16 %v459
        %v923 = vunpack.c.h.b16 %v459
        %v924 = vunpack.c.l.b16 %v460
        %v925 = vunpack.c.h.b16 %v460
        %v926 = vunpack.c.l.b16 %v461
        %v927 = vunpack.c.h.b16 %v461
        %v928 = vunpack.c.l.b16 %v462
        %v929 = vunpack.c.h.b16 %v462
        %v930 = vunpack.c.l.b16 %v463
        %v931 = vunpack.c.h.b16 %v463
        %v932 = vunpack.c.l.b16 %v464
        %v933 = vunpack.c.h.b16 %v464
        %v934 = vunpack.c.l.b16 %v465
        %v935 = vunpack.c.h.b16 %v465
        %v936 = vunpack.c.l.b16 %v466
        %v937 = vunpack.c.h.b16 %v466
        %v938 = vunpack.c.l.b16 %v467
        %v939 = vunpack.c.h.b16 %v467
        %v940 = vunpack.c.l.b16 %v468
        %v941 = vunpack.c.h.b16 %v468
        %v942 = vunpack.c.l.b16 %v469
        %v943 = vunpack.c.h.b16 %v469
        %v944 = vunpack.c.l.b16 %v470
        %v945 = vunpack.c.h.b16 %v470
        %v946 = vunpack.c.l.b16 %v471
        %v947 = vunpack.c.h.b16 %v471
        %v948 = vunpack.c.l.b16 %v472
        %v949 = vunpack.c.h.b16 %v472
        %v950 = vunpack.c.l.b16 %v473
        %v951 = vunpack.c.h.b16 %v473
        %v952 = vunpack.c.l.b16 %v474
        %v953 = vunpack.c.h.b16 %v474
        %v954 = vunpack.c.l.b16 %v475
        %v955 = vunpack.c.h.b16 %v475
        %v956 = vunpack.c.l.b16 %v476
        %v957 = vunpack.c.h.b16 %v476
        %v958 = vunpack.c.l.b16 %v477
        %v959 = vunpack.c.h.b16 %v477
        %v960 = vunpack.c.l.b16 %v478
        %v961 = vunpack.c.h.b16 %v478
        %v962 = vunpack.c.l.b16 %v479
        %v963 = vunpack.c.h.b16 %v479
        %v964 = vunpack.c.l.b16 %v480
        %v965 = vunpack.c.h.b16 %v480
        %v966 = vunpack.c.l.b16 %v481
        %v967 = vunpack.c.h.b16 %v481
        %v968 = vunpack.c.l.b16 %v482
        %v969 = vunpack.c.h.b16 %v482
        %v970 = vunpack.c.l.b16 %v483
        %v971 = vunpack.c.h.b16 %v483
        %v972 = vunpack.c.l.b16 %v484
        %v973 = vunpack.c.h.b16 %v484
        %v974 = vunpack.c.l.b16 %v485
        %v975 = vunpack.c.h.b16 %v485
        %v976 = vunpack.c.l.b16 %v486
        %v977 = vunpack.c.h.b16 %v486
        %v978 = vunpack.c.l.b16 %v487
        %v979 = vunpack.c.h.b16 %v487
        %v980 = vunpack.c.l.b16 %v488
        %v981 = vunpack.c.h.b16 %v488
        %v982 = vunpack.c.l.b16 %v489
        %v983 = vunpack.c.h.b16 %v489
        %v984 = vunpack.c.l.b16 %v490
        %v985 = vunpack.c.h.b16 %v490
        %v986 = vunpack.c.l.b16 %v491
        %v987 = vunpack.c.h.b16 %v491
        %v988 = vpack.c.b16 %v736, %v732
        %v989 = vpack.c.b16 %v737, %v733
        %v990 = vpack.c.b16 %v738, %v734
        %v991 = vpack.c.b16 %v739, %v735
        %v992 = vpack.c.b16 %v744, %v740
        %v993 = vpack.c.b16 %v745, %v741
        %v994 = vpack.c.b16 %v746, %v742
        %v995 = vpack.c.b16 %v747, %v743
        %v996 = vpack.c.b16 %v752, %v748
        %v997 = vpack.c.b16 %v753, %v749
        %v998 = vpack.c.b16 %v754, %v750
        %v999 = vpack.c.b16 %v755, %v751
        %v1000 = vpack.c.b16 %v760, %v756
        %v1001 = vpack.c.b16 %v761, %v757
        %v1002 = vpack.c.b16 %v762, %v758
        %v1003 = vpack.c.b16 %v763, %v759
        %v1004 = vpack.c.b16 %v768, %v764
        %v1005 = vpack.c.b16 %v769, %v765
        %v1006 = vpack.c.b16 %v770, %v766
        %v1007 = vpack.c.b16 %v771, %v767
        %v1008 = vpack.c.b16 %v776, %v772
        %v1009 = vpack.c.b16 %v777, %v773
        %v1010 = vpack.c.b16 %v778, %v774
        %v1011 = vpack.c.b16 %v779, %v775
        %v1012 = vpack.c.b16 %v784, %v780
        %v1013 = vpack.c.b16 %v785, %v781
        %v1014 = vpack.c.b16 %v786, %v782
        %v1015 = vpack.c.b16 %v787, %v783
        %v1016 = vpack.c.b16 %v792, %v788
        %v1017 = vpack.c.b16 %v793, %v789
        %v1018 = vpack.c.b16 %v794, %v790
        %v1019 = vpack.c.b16 %v795, %v791
        %v1020 = vpack.c.b16 %v800, %v796
        %v1021 = vpack.c.b16 %v801, %v797
        %v1022 = vpack.c.b16 %v802, %v798
        %v1023 = vpack.c.b16 %v803, %v799
        %v1024 = vpack.c.b16 %v808, %v804
        %v1025 = vpack.c.b16 %v809, %v805
        %v1026 = vpack.c.b16 %v810, %v806
        %v1027 = vpack.c.b16 %v811, %v807
        %v1028 = vpack.c.b16 %v816, %v812
        %v1029 = vpack.c.b16 %v817, %v813
        %v1030 = vpack.c.b16 %v818, %v814
        %v1031 = vpack.c.b16 %v819, %v815
        %v1032 = vpack.c.b16 %v824, %v820
        %v1033 = vpack.c.b16 %v825, %v821
        %v1034 = vpack.c.b16 %v826, %v822
        %v1035 = vpack.c.b16 %v827, %v823
        %v1036 = vpack.c.b16 %v832, %v828
        %v1037 = vpack.c.b16 %v833, %v829
        %v1038 = vpack.c.b16 %v834, %v830
        %v1039 = vpack.c.b16 %v835, %v831
        %v1040 = vpack.c.b16 %v840, %v836
        %v1041 = vpack.c.b16 %v841, %v837
        %v1042 = vpack.c.b16 %v842, %v838
        %v1043 = vpack.c.b16 %v843, %v839
        %v1044 = vpack.c.b16 %v848, %v844
        %v1045 = vpack.c.b16 %v849, %v845
        %v1046 = vpack.c.b16 %v850, %v846
        %v1047 = vpack.c.b16 %v851, %v847
        %v1048 = vpack.c.b16 %v856, %v852
        %v1049 = vpack.c.b16 %v857, %v853
        %v1050 = vpack.c.b16 %v858, %v854
        %v1051 = vpack.c.b16 %v859, %v855
        %v1052 = vpack.c.b16 %v864, %v860
        %v1053 = vpack.c.b16 %v865, %v861
        %v1054 = vpack.c.b16 %v866, %v862
        %v1055 = vpack.c.b16 %v867, %v863
        %v1056 = vpack.c.b16 %v872, %v868
        %v1057 = vpack.c.b16 %v873, %v869
        %v1058 = vpack.c.b16 %v874, %v870
        %v1059 = vpack.c.b16 %v875, %v871
        %v1060 = vpack.c.b16 %v880, %v876
        %v1061 = vpack.c.b16 %v881, %v877
        %v1062 = vpack.c.b16 %v882, %v878
        %v1063 = vpack.c.b16 %v883, %v879
        %v1064 = vpack.c.b16 %v888, %v884
        %v1065 = vpack.c.b16 %v889, %v885
        %v1066 = vpack.c.b16 %v890, %v886
        %v1067 = vpack.c.b16 %v891, %v887
        %v1068 = vpack.c.b16 %v896, %v892
        %v1069 = vpack.c.b16 %v897, %v893
        %v1070 = vpack.c.b16 %v898, %v894
        %v1071 = vpack.c.b16 %v899, %v895
        %v1072 = vpack.c.b16 %v904, %v900
        %v1073 = vpack.c.b16 %v905, %v901
        %v1074 = vpack.c.b16 %v906, %v902
        %v1075 = vpack.c.b16 %v907, %v903
        %v1076 = vpack.c.b16 %v912, %v908
        %v1077 = vpack.c.b16 %v913, %v909
        %v1078 = vpack.c.b16 %v914, %v910
        %v1079 = vpack.c.b16 %v915, %v911
        %v1080 = vpack.c.b16 %v920, %v916
        %v1081 = vpack.c.b16 %v921, %v917
        %v1082 = vpack.c.b16 %v922, %v918
        %v1083 = vpack.c.b16 %v923, %v919
        %v1084 = vpack.c.b16 %v928, %v924
        %v1085 = vpack.c.b16 %v929, %v925
        %v1086 = vpack.c.b16 %v930, %v926
        %v1087 = vpack.c.b16 %v931, %v927
        %v1088 = vpack.c.b16 %v936, %v932
        %v1089 = vpack.c.b16 %v937, %v933
        %v1090 = vpack.c.b16 %v938, %v934
        %v1091 = vpack.c.b16 %v939, %v935
        %v1092 = vpack.c.b16 %v944, %v940
        %v1093 = vpack.c.b16 %v945, %v941
        %v1094 = vpack.c.b16 %v946, %v942
        %v1095 = vpack.c.b16 %v947, %v943
        %v1096 = vpack.c.b16 %v952, %v948
        %v1097 = vpack.c.b16 %v953, %v949
        %v1098 = vpack.c.b16 %v954, %v950
        %v1099 = vpack.c.b16 %v955, %v951
        %v1100 = vpack.c.b16 %v960, %v956
        %v1101 = vpack.c.b16 %v961, %v957
        %v1102 = vpack.c.b16 %v962, %v958
        %v1103 = vpack.c.b16 %v963, %v959
        %v1104 = vpack.c.b16 %v968, %v964
        %v1105 = vpack.c.b16 %v969, %v965
        %v1106 = vpack.c.b16 %v970, %v966
        %v1107 = vpack.c.b16 %v971, %v967
        %v1108 = vpack.c.b16 %v976, %v972
        %v1109 = vpack.c.b16 %v977, %v973
        %v1110 = vpack.c.b16 %v978, %v974
        %v1111 = vpack.c.b16 %v979, %v975
        %v1112 = vpack.c.b16 %v984, %v980
        %v1113 = vpack.c.b16 %v985, %v981
        %v1114 = vpack.c.b16 %v986, %v982
        %v1115 = vpack.c.b16 %v987, %v983
        %v1324 = vunpack.c.l.b16 %v492
        %v1325 = vunpack.c.h.b16 %v492
        %v1326 = vunpack.c.l.b16 %v493
        %v1327 = vunpack.c.h.b16 %v493
        %v1328 = vunpack.c.l.b16 %v494
        %v1329 = vunpack.c.h.b16 %v494
        %v1330 = vunpack.c.l.b16 %v495
        %v1331 = vunpack.c.h.b16 %v495
        %v1332 = vunpack.c.l.b16 %v496
        %v1333 = vunpack.c.h.b16 %v496
        %v1334 = vunpack.c.l.b16 %v497
        %v1335 = vunpack.c.h.b16 %v497
        %v1336 = vunpack.c.l.b16 %v498
        %v1337 = vunpack.c.h.b16 %v498
        %v1338 = vunpack.c.l.b16 %v499
        %v1339 = vunpack.c.h.b16 %v499
        %v1340 = vunpack.c.l.b16 %v500
        %v1341 = vunpack.c.h.b16 %v500
        %v1342 = vunpack.c.l.b16 %v501
        %v1343 = vunpack.c.h.b16 %v501
        %v1344 = vunpack.c.l.b16 %v502
        %v1345 = vunpack.c.h.b16 %v502
        %v1346 = vunpack.c.l.b16 %v503
        %v1347 = vunpack.c.h.b16 %v503
        %v1348 = vunpack.c.l.b16 %v504
        %v1349 = vunpack.c.h.b16 %v504
        %v1350 = vunpack.c.l.b16 %v505
        %v1351 = vunpack.c.h.b16 %v505
        %v1352 = vunpack.c.l.b16 %v506
        %v1353 = vunpack.c.h.b16 %v506
        %v1354 = vunpack.c.l.b16 %v507
        %v1355 = vunpack.c.h.b16 %v507
        %v1356 = vunpack.c.l.b16 %v508
        %v1357 = vunpack.c.h.b16 %v508
        %v1358 = vunpack.c.l.b16 %v509
        %v1359 = vunpack.c.h.b16 %v509
        %v1360 = vunpack.c.l.b16 %v510
        %v1361 = vunpack.c.h.b16 %v510
        %v1362 = vunpack.c.l.b16 %v511
        %v1363 = vunpack.c.h.b16 %v511
        %v1364 = vunpack.c.l.b16 %v512
        %v1365 = vunpack.c.h.b16 %v512
        %v1366 = vunpack.c.l.b16 %v513
        %v1367 = vunpack.c.h.b16 %v513
        %v1368 = vunpack.c.l.b16 %v514
        %v1369 = vunpack.c.h.b16 %v514
        %v1370 = vunpack.c.l.b16 %v515
        %v1371 = vunpack.c.h.b16 %v515
        %v1372 = vunpack.c.l.b16 %v516
        %v1373 = vunpack.c.h.b16 %v516
        %v1374 = vunpack.c.l.b16 %v517
        %v1375 = vunpack.c.h.b16 %v517
        %v1376 = vunpack.c.l.b16 %v518
        %v1377 = vunpack.c.h.b16 %v518
        %v1378 = vunpack.c.l.b16 %v519
        %v1379 = vunpack.c.h.b16 %v519
        %v1380 = vunpack.c.l.b16 %v520
        %v1381 = vunpack.c.h.b16 %v520
        %v1382 = vunpack.c.l.b16 %v521
        %v1383 = vunpack.c.h.b16 %v521
        %v1384 = vunpack.c.l.b16 %v522
        %v1385 = vunpack.c.h.b16 %v522
        %v1386 = vunpack.c.l.b16 %v523
        %v1387 = vunpack.c.h.b16 %v523
        %v1388 = vunpack.c.l.b16 %v524
        %v1389 = vunpack.c.h.b16 %v524
        %v1390 = vunpack.c.l.b16 %v525
        %v1391 = vunpack.c.h.b16 %v525
        %v1392 = vunpack.c.l.b16 %v526
        %v1393 = vunpack.c.h.b16 %v526
        %v1394 = vunpack.c.l.b16 %v527
        %v1395 = vunpack.c.h.b16 %v527
        %v1396 = vunpack.c.l.b16 %v528
        %v1397 = vunpack.c.h.b16 %v528
        %v1398 = vunpack.c.l.b16 %v529
        %v1399 = vunpack.c.h.b16 %v529
        %v1400 = vunpack.c.l.b16 %v530
        %v1401 = vunpack.c.h.b16 %v530
        %v1402 = vunpack.c.l.b16 %v531
        %v1403 = vunpack.c.h.b16 %v531
        %v1404 = vunpack.c.l.b16 %v532
        %v1405 = vunpack.c.h.b16 %v532
        %v1406 = vunpack.c.l.b16 %v533
        %v1407 = vunpack.c.h.b16 %v533
        %v1408 = vunpack.c.l.b16 %v534
        %v1409 = vunpack.c.h.b16 %v534
        %v1410 = vunpack.c.l.b16 %v535
        %v1411 = vunpack.c.h.b16 %v535
        %v1412 = vunpack.c.l.b16 %v536
        %v1413 = vunpack.c.h.b16 %v536
        %v1414 = vunpack.c.l.b16 %v537
        %v1415 = vunpack.c.h.b16 %v537
        %v1416 = vunpack.c.l.b16 %v538
        %v1417 = vunpack.c.h.b16 %v538
        %v1418 = vunpack.c.l.b16 %v539
        %v1419 = vunpack.c.h.b16 %v539
        %v1420 = vunpack.c.l.b16 %v540
        %v1421 = vunpack.c.h.b16 %v540
        %v1422 = vunpack.c.l.b16 %v541
        %v1423 = vunpack.c.h.b16 %v541
        %v1424 = vunpack.c.l.b16 %v542
        %v1425 = vunpack.c.h.b16 %v542
        %v1426 = vunpack.c.l.b16 %v543
        %v1427 = vunpack.c.h.b16 %v543
        %v1428 = vunpack.c.l.b16 %v544
        %v1429 = vunpack.c.h.b16 %v544
        %v1430 = vunpack.c.l.b16 %v545
        %v1431 = vunpack.c.h.b16 %v545
        %v1432 = vunpack.c.l.b16 %v546
        %v1433 = vunpack.c.h.b16 %v546
        %v1434 = vunpack.c.l.b16 %v547
        %v1435 = vunpack.c.h.b16 %v547
        %v1436 = vunpack.c.l.b16 %v548
        %v1437 = vunpack.c.h.b16 %v548
        %v1438 = vunpack.c.l.b16 %v549
        %v1439 = vunpack.c.h.b16 %v549
        %v1440 = vunpack.c.l.b16 %v550
        %v1441 = vunpack.c.h.b16 %v550
        %v1442 = vunpack.c.l.b16 %v551
        %v1443 = vunpack.c.h.b16 %v551
        %v1444 = vunpack.c.l.b16 %v552
        %v1445 = vunpack.c.h.b16 %v552
        %v1446 = vunpack.c.l.b16 %v553
        %v1447 = vunpack.c.h.b16 %v553
        %v1448 = vunpack.c.l.b16 %v554
        %v1449 = vunpack.c.h.b16 %v554
        %v1450 = vunpack.c.l.b16 %v555
        %v1451 = vunpack.c.h.b16 %v555
        %v1452 = vunpack.c.l.b16 %v556
        %v1453 = vunpack.c.h.b16 %v556
        %v1454 = vunpack.c.l.b16 %v557
        %v1455 = vunpack.c.h.b16 %v557
        %v1456 = vunpack.c.l.b16 %v558
        %v1457 = vunpack.c.h.b16 %v558
        %v1458 = vunpack.c.l.b16 %v559
        %v1459 = vunpack.c.h.b16 %v559
        %v1460 = vunpack.c.l.b16 %v560
        %v1461 = vunpack.c.h.b16 %v560
        %v1462 = vunpack.c.l.b16 %v561
        %v1463 = vunpack.c.h.b16 %v561
        %v1464 = vunpack.c.l.b16 %v562
        %v1465 = vunpack.c.h.b16 %v562
        %v1466 = vunpack.c.l.b16 %v563
        %v1467 = vunpack.c.h.b16 %v563
        %v1468 = vunpack.c.l.b16 %v564
        %v1469 = vunpack.c.h.b16 %v564
        %v1470 = vunpack.c.l.b16 %v565
        %v1471 = vunpack.c.h.b16 %v565
        %v1472 = vunpack.c.l.b16 %v566
        %v1473 = vunpack.c.h.b16 %v566
        %v1474 = vunpack.c.l.b16 %v567
        %v1475 = vunpack.c.h.b16 %v567
        %v1476 = vunpack.c.l.b16 %v568
        %v1477 = vunpack.c.h.b16 %v568
        %v1478 = vunpack.c.l.b16 %v569
        %v1479 = vunpack.c.h.b16 %v569
        %v1480 = vunpack.c.l.b16 %v570
        %v1481 = vunpack.c.h.b16 %v570
        %v1482 = vunpack.c.l.b16 %v571
        %v1483 = vunpack.c.h.b16 %v571
        %v1484 = vunpack.c.l.b16 %v572
        %v1485 = vunpack.c.h.b16 %v572
        %v1486 = vunpack.c.l.b16 %v573
        %v1487 = vunpack.c.h.b16 %v573
        %v1488 = vunpack.c.l.b16 %v574
        %v1489 = vunpack.c.h.b16 %v574
        %v1490 = vunpack.c.l.b16 %v575
        %v1491 = vunpack.c.h.b16 %v575
        %v1492 = vunpack.c.l.b16 %v576
        %v1493 = vunpack.c.h.b16 %v576
        %v1494 = vunpack.c.l.b16 %v577
        %v1495 = vunpack.c.h.b16 %v577
        %v1496 = vunpack.c.l.b16 %v578
        %v1497 = vunpack.c.h.b16 %v578
        %v1498 = vunpack.c.l.b16 %v579
        %v1499 = vunpack.c.h.b16 %v579
        %v1500 = vunpack.c.l.b16 %v580
        %v1501 = vunpack.c.h.b16 %v580
        %v1502 = vunpack.c.l.b16 %v581
        %v1503 = vunpack.c.h.b16 %v581
        %v1504 = vunpack.c.l.b16 %v582
        %v1505 = vunpack.c.h.b16 %v582
        %v1506 = vunpack.c.l.b16 %v583
        %v1507 = vunpack.c.h.b16 %v583
        %v1508 = vunpack.c.l.b16 %v584
        %v1509 = vunpack.c.h.b16 %v584
        %v1510 = vunpack.c.l.b16 %v585
        %v1511 = vunpack.c.h.b16 %v585
        %v1512 = vunpack.c.l.b16 %v586
        %v1513 = vunpack.c.h.b16 %v586
        %v1514 = vunpack.c.l.b16 %v587
        %v1515 = vunpack.c.h.b16 %v587
        %v1516 = vunpack.c.l.b16 %v588
        %v1517 = vunpack.c.h.b16 %v588
        %v1518 = vunpack.c.l.b16 %v589
        %v1519 = vunpack.c.h.b16 %v589
        %v1520 = vunpack.c.l.b16 %v590
        %v1521 = vunpack.c.h.b16 %v590
        %v1522 = vunpack.c.l.b16 %v591
        %v1523 = vunpack.c.h.b16 %v591
        %v1524 = vunpack.c.l.b16 %v592
        %v1525 = vunpack.c.h.b16 %v592
        %v1526 = vunpack.c.l.b16 %v593
        %v1527 = vunpack.c.h.b16 %v593
        %v1528 = vunpack.c.l.b16 %v594
        %v1529 = vunpack.c.h.b16 %v594
        %v1530 = vunpack.c.l.b16 %v595
        %v1531 = vunpack.c.h.b16 %v595
        %v1532 = vunpack.c.l.b16 %v596
        %v1533 = vunpack.c.h.b16 %v596
        %v1534 = vunpack.c.l.b16 %v597
        %v1535 = vunpack.c.h.b16 %v597
        %v1536 = vunpack.c.l.b16 %v598
        %v1537 = vunpack.c.h.b16 %v598
        %v1538 = vunpack.c.l.b16 %v599
        %v1539 = vunpack.c.h.b16 %v599
        %v1540 = vunpack.c.l.b16 %v600
        %v1541 = vunpack.c.h.b16 %v600
        %v1542 = vunpack.c.l.b16 %v601
        %v1543 = vunpack.c.h.b16 %v601
        %v1544 = vunpack.c.l.b16 %v602
        %v1545 = vunpack.c.h.b16 %v602
        %v1546 = vunpack.c.l.b16 %v603
        %v1547 = vunpack.c.h.b16 %v603
        %v1548 = vpack.c.b16 %v1328, %v1324
        %v1549 = vpack.c.b16 %v1329, %v1325
        %v1550 = vpack.c.b16 %v1330, %v1326
        %v1551 = vpack.c.b16 %v1331, %v1327
        %v1552 = vpack.c.b16 %v1336, %v1332
        %v1553 = vpack.c.b16 %v1337, %v1333
        %v1554 = vpack.c.b16 %v1338, %v1334
        %v1555 = vpack.c.b16 %v1339, %v1335
        %v1556 = vpack.c.b16 %v1344, %v1340
        %v1557 = vpack.c.b16 %v1345, %v1341
        %v1558 = vpack.c.b16 %v1346, %v1342
        %v1559 = vpack.c.b16 %v1347, %v1343
        %v1560 = vpack.c.b16 %v1352, %v1348
        %v1561 = vpack.c.b16 %v1353, %v1349
        %v1562 = vpack.c.b16 %v1354, %v1350
        %v1563 = vpack.c.b16 %v1355, %v1351
        %v1564 = vpack.c.b16 %v1360, %v1356
        %v1565 = vpack.c.b16 %v1361, %v1357
        %v1566 = vpack.c.b16 %v1362, %v1358
        %v1567 = vpack.c.b16 %v1363, %v1359
        %v1568 = vpack.c.b16 %v1368, %v1364
        %v1569 = vpack.c.b16 %v1369, %v1365
        %v1570 = vpack.c.b16 %v1370, %v1366
        %v1571 = vpack.c.b16 %v1371, %v1367
        %v1572 = vpack.c.b16 %v1376, %v1372
        %v1573 = vpack.c.b16 %v1377, %v1373
        %v1574 = vpack.c.b16 %v1378, %v1374
        %v1575 = vpack.c.b16 %v1379, %v1375
        %v1576 = vpack.c.b16 %v1384, %v1380
        %v1577 = vpack.c.b16 %v1385, %v1381
        %v1578 = vpack.c.b16 %v1386, %v1382
        %v1579 = vpack.c.b16 %v1387, %v1383
        %v1580 = vpack.c.b16 %v1392, %v1388
        %v1581 = vpack.c.b16 %v1393, %v1389
        %v1582 = vpack.c.b16 %v1394, %v1390
        %v1583 = vpack.c.b16 %v1395, %v1391
        %v1584 = vpack.c.b16 %v1400, %v1396
        %v1585 = vpack.c.b16 %v1401, %v1397
        %v1586 = vpack.c.b16 %v1402, %v1398
        %v1587 = vpack.c.b16 %v1403, %v1399
        %v1588 = vpack.c.b16 %v1408, %v1404
        %v1589 = vpack.c.b16 %v1409, %v1405
        %v1590 = vpack.c.b16 %v1410, %v1406
        %v1591 = vpack.c.b16 %v1411, %v1407
        %v1592 = vpack.c.b16 %v1416, %v1412
        %v1593 = vpack.c.b16 %v1417, %v1413
        %v1594 = vpack.c.b16 %v1418, %v1414
        %v1595 = vpack.c.b16 %v1419, %v1415
        %v1596 = vpack.c.b16 %v1424, %v1420
        %v1597 = vpack.c.b16 %v1425, %v1421
        %v1598 = vpack.c.b16 %v1426, %v1422
        %v1599 = vpack.c.b16 %v1427, %v1423
        %v1600 = vpack.c.b16 %v1432, %v1428
        %v1601 = vpack.c.b16 %v1433, %v1429
        %v1602 = vpack.c.b16 %v1434, %v1430
        %v1603 = vpack.c.b16 %v1435, %v1431
        %v1604 = vpack.c.b16 %v1440, %v1436
        %v1605 = vpack.c.b16 %v1441, %v1437
        %v1606 = vpack.c.b16 %v1442, %v1438
        %v1607 = vpack.c.b16 %v1443, %v1439
        %v1608 = vpack.c.b16 %v1448, %v1444
        %v1609 = vpack.c.b16 %v1449, %v1445
        %v1610 = vpack.c.b16 %v1450, %v1446
        %v1611 = vpack.c.b16 %v1451, %v1447
        %v1612 = vpack.c.b16 %v1456, %v1452
        %v1613 = vpack.c.b16 %v1457, %v1453
        %v1614 = vpack.c.b16 %v1458, %v1454
        %v1615 = vpack.c.b16 %v1459, %v1455
        %v1616 = vpack.c.b16 %v1464, %v1460
        %v1617 = vpack.c.b16 %v1465, %v1461
        %v1618 = vpack.c.b16 %v1466, %v1462
        %v1619 = vpack.c.b16 %v1467, %v1463
        %v1620 = vpack.c.b16 %v1472, %v1468
        %v1621 = vpack.c.b16 %v1473, %v1469
        %v1622 = vpack.c.b16 %v1474, %v1470
        %v1623 = vpack.c.b16 %v1475, %v1471
        %v1624 = vpack.c.b16 %v1480, %v1476
        %v1625 = vpack.c.b16 %v1481, %v1477
        %v1626 = vpack.c.b16 %v1482, %v1478
        %v1627 = vpack.c.b16 %v1483, %v1479
        %v1628 = vpack.c.b16 %v1488, %v1484
        %v1629 = vpack.c.b16 %v1489, %v1485
        %v1630 = vpack.c.b16 %v1490, %v1486
        %v1631 = vpack.c.b16 %v1491, %v1487
        %v1632 = vpack.c.b16 %v1496, %v1492
        %v1633 = vpack.c.b16 %v1497, %v1493
        %v1634 = vpack.c.b16 %v1498, %v1494
        %v1635 = vpack.c.b16 %v1499, %v1495
        %v1636 = vpack.c.b16 %v1504, %v1500
        %v1637 = vpack.c.b16 %v1505, %v1501
        %v1638 = vpack.c.b16 %v1506, %v1502
        %v1639 = vpack.c.b16 %v1507, %v1503
        %v1640 = vpack.c.b16 %v1512, %v1508
        %v1641 = vpack.c.b16 %v1513, %v1509
        %v1642 = vpack.c.b16 %v1514, %v1510
        %v1643 = vpack.c.b16 %v1515, %v1511
        %v1644 = vpack.c.b16 %v1520, %v1516
        %v1645 = vpack.c.b16 %v1521, %v1517
        %v1646 = vpack.c.b16 %v1522, %v1518
        %v1647 = vpack.c.b16 %v1523, %v1519
        %v1648 = vpack.c.b16 %v1528, %v1524
        %v1649 = vpack.c.b16 %v1529, %v1525
        %v1650 = vpack.c.b16 %v1530, %v1526
        %v1651 = vpack.c.b16 %v1531, %v1527
        %v1652 = vpack.c.b16 %v1536, %v1532
        %v1653 = vpack.c.b16 %v1537, %v1533
        %v1654 = vpack.c.b16 %v1538, %v1534
        %v1655 = vpack.c.b16 %v1539, %v1535
        %v1656 = vpack.c.b16 %v1544, %v1540
        %v1657 = vpack.c.b16 %v1545, %v1541
        %v1658 = vpack.c.b16 %v1546, %v1542
        %v1659 = vpack.c.b16 %v1547, %v1543
        %vm1772 = vcmask 523264
        %v1774 = vsel %vm1772, %v991, 0
        %v1777 = vsel %vm1772, %v995, 0
        %v1780 = vsel %vm1772, %v999, 0
        %v1783 = vsel %vm1772, %v1003, 0
        %v1786 = vsel %vm1772, %v1007, 0
        %v1789 = vsel %vm1772, %v1011, 0
        %v1792 = vsel %vm1772, %v1015, 0
        %v1795 = vsel %vm1772, %v1019, 0
        %v1798 = vsel %vm1772, %v1023, 0
        %v1801 = vsel %vm1772, %v1027, 0
        %v1804 = vsel %vm1772, %v1031, 0
        %v1807 = vsel %vm1772, %v1035, 0
        %v1810 = vsel %vm1772, %v1039, 0
        %v1813 = vsel %vm1772, %v1043, 0
        %v1816 = vsel %vm1772, %v1047, 0
        %v1819 = vsel %vm1772, %v1051, 0
        %v1822 = vsel %vm1772, %v1055, 0
        %v1825 = vsel %vm1772, %v1059, 0
        %v1828 = vsel %vm1772, %v1063, 0
        %v1831 = vsel %vm1772, %v1067, 0
        %v1834 = vsel %vm1772, %v1071, 0
        %v1837 = vsel %vm1772, %v1075, 0
        %v1840 = vsel %vm1772, %v1079, 0
        %v1843 = vsel %vm1772, %v1083, 0
        %v1846 = vsel %vm1772, %v1087, 0
        %v1849 = vsel %vm1772, %v1091, 0
        %v1852 = vsel %vm1772, %v1095, 0
        %v1855 = vsel %vm1772, %v1099, 0
        %v1858 = vsel %vm1772, %v1103, 0
        %v1861 = vsel %vm1772, %v1107, 0
        %v1864 = vsel %vm1772, %v1111, 0
        %v1867 = vsel %vm1772, %v1115, 0
        %1869 = vmatprep.subr.bf16.mxu0 %v1577
        %1870 = vmatpush1.bf16.msra.mxu0 %v1576
        %1871 = vmatprep.subr.bf16.mxu0 %v1573
        %1872 = vmatpush1.bf16.msra.mxu0 %v1572
        %1873 = vmatprep.subr.bf16.mxu0 %v1569
        %1874 = vmatpush1.bf16.msra.mxu0 %v1568
        %1875 = vmatprep.subr.bf16.mxu0 %v1565
        %1876 = vmatpush1.bf16.msra.mxu0 %v1564
        %1877 = vmatprep.subr.bf16.mxu0 %v1561
        %1878 = vmatpush1.bf16.msra.mxu0 %v1560
        %1879 = vmatprep.subr.bf16.mxu0 %v1557
        %1880 = vmatpush1.bf16.msra.mxu0 %v1556
        %1881 = vmatprep.subr.bf16.mxu0 %v1553
        %1882 = vmatpush1.bf16.msra.mxu0 %v1552
        %1883 = vmatprep.subr.bf16.mxu0 %v1549
        %1884 = vmatpush1.bf16.msra.mxu0 %v1548
        %1885 = vmatprep.subr.bf16.mxu0 %v1609
        %1886 = vmatpush2.bf16.msra.mxu0 %v1608
        %1887 = vmatprep.subr.bf16.mxu0 %v1605
        %1888 = vmatpush2.bf16.msra.mxu0 %v1604
        %1889 = vmatprep.subr.bf16.mxu0 %v1601
        %1890 = vmatpush2.bf16.msra.mxu0 %v1600
        %1891 = vmatprep.subr.bf16.mxu0 %v1597
        %1892 = vmatpush2.bf16.msra.mxu0 %v1596
        %1893 = vmatprep.subr.bf16.mxu0 %v1593
        %1894 = vmatpush2.bf16.msra.mxu0 %v1592
        %1895 = vmatprep.subr.bf16.mxu0 %v1589
        %1896 = vmatpush2.bf16.msra.mxu0 %v1588
        %1897 = vmatprep.subr.bf16.mxu0 %v1585
        %1898 = vmatpush2.bf16.msra.mxu0 %v1584
        %1899 = vmatprep.subr.bf16.mxu0 %v1581
        %1900 = vmatpush2.bf16.msra.mxu0 %v1580
        %1901 = vmatprep.mubr.bf16.mxu0 %v989
        %1902 = vmatmul.mubr.bf16.gmra.mxu0 %v988
        %v1903 = vpop.f32.mrf.mxu0
        %v1904 = vadd.f32 0.0, %v1903
        %v1905 = vpop.f32.mrf.mxu0
        %v1906 = vadd.f32 0.0, %v1905
        %v1907 = vpop.f32.mrf.mxu0
        %v1908 = vadd.f32 0.0, %v1907
        %v1909 = vpop.f32.mrf.mxu0
        %v1910 = vadd.f32 0.0, %v1909
        %1911 = vmatprep.mubr.bf16.mxu0 %v993
        %1912 = vmatmul.mubr.bf16.gmra.mxu0 %v992
        %v1913 = vpop.f32.mrf.mxu0
        %v1914 = vadd.f32 0.0, %v1913
        %v1915 = vpop.f32.mrf.mxu0
        %v1916 = vadd.f32 0.0, %v1915
        %v1917 = vpop.f32.mrf.mxu0
        %v1918 = vadd.f32 0.0, %v1917
        %v1919 = vpop.f32.mrf.mxu0
        %v1920 = vadd.f32 0.0, %v1919
        %1921 = vmatprep.mubr.bf16.mxu0 %v997
        %1922 = vmatmul.mubr.bf16.gmra.mxu0 %v996
        %v1923 = vpop.f32.mrf.mxu0
        %v1924 = vadd.f32 0.0, %v1923
        %v1925 = vpop.f32.mrf.mxu0
        %v1926 = vadd.f32 0.0, %v1925
        %v1927 = vpop.f32.mrf.mxu0
        %v1928 = vadd.f32 0.0, %v1927
        %v1929 = vpop.f32.mrf.mxu0
        %v1930 = vadd.f32 0.0, %v1929
        %1931 = vmatprep.mubr.bf16.mxu0 %v1001
        %1932 = vmatmul.mubr.bf16.gmra.mxu0 %v1000
        %v1933 = vpop.f32.mrf.mxu0
        %v1934 = vadd.f32 0.0, %v1933
        %v1935 = vpop.f32.mrf.mxu0
        %v1936 = vadd.f32 0.0, %v1935
        %v1937 = vpop.f32.mrf.mxu0
        %v1938 = vadd.f32 0.0, %v1937
        %v1939 = vpop.f32.mrf.mxu0
        %v1940 = vadd.f32 0.0, %v1939
        %1941 = vmatprep.mubr.bf16.mxu0 %v1005
        %1942 = vmatmul.mubr.bf16.gmra.mxu0 %v1004
        %v1943 = vpop.f32.mrf.mxu0
        %v1944 = vadd.f32 0.0, %v1943
        %v1945 = vpop.f32.mrf.mxu0
        %v1946 = vadd.f32 0.0, %v1945
        %v1947 = vpop.f32.mrf.mxu0
        %v1948 = vadd.f32 0.0, %v1947
        %v1949 = vpop.f32.mrf.mxu0
        %v1950 = vadd.f32 0.0, %v1949
        %1951 = vmatprep.mubr.bf16.mxu0 %v1009
        %1952 = vmatmul.mubr.bf16.gmra.mxu0 %v1008
        %v1953 = vpop.f32.mrf.mxu0
        %v1954 = vadd.f32 0.0, %v1953
        %v1955 = vpop.f32.mrf.mxu0
        %v1956 = vadd.f32 0.0, %v1955
        %v1957 = vpop.f32.mrf.mxu0
        %v1958 = vadd.f32 0.0, %v1957
        %v1959 = vpop.f32.mrf.mxu0
        %v1960 = vadd.f32 0.0, %v1959
        %1961 = vmatprep.mubr.bf16.mxu0 %v1013
        %1962 = vmatmul.mubr.bf16.gmra.mxu0 %v1012
        %v1963 = vpop.f32.mrf.mxu0
        %v1964 = vadd.f32 0.0, %v1963
        %v1965 = vpop.f32.mrf.mxu0
        %v1966 = vadd.f32 0.0, %v1965
        %v1967 = vpop.f32.mrf.mxu0
        %v1968 = vadd.f32 0.0, %v1967
        %v1969 = vpop.f32.mrf.mxu0
        %v1970 = vadd.f32 0.0, %v1969
        %1971 = vmatprep.mubr.bf16.mxu0 %v1017
        %1972 = vmatmul.mubr.bf16.gmra.mxu0 %v1016
        %v1973 = vpop.f32.mrf.mxu0
        %v1974 = vadd.f32 0.0, %v1973
        %v1975 = vpop.f32.mrf.mxu0
        %v1976 = vadd.f32 0.0, %v1975
        %v1977 = vpop.f32.mrf.mxu0
        %v1978 = vadd.f32 0.0, %v1977
        %v1979 = vpop.f32.mrf.mxu0
        %v1980 = vadd.f32 0.0, %v1979
        %1981 = vmatprep.mubr.bf16.mxu0 %v1021
        %1982 = vmatmul.mubr.bf16.gmra.mxu0 %v1020
        %v1983 = vpop.f32.mrf.mxu0
        %v1984 = vadd.f32 0.0, %v1983
        %v1985 = vpop.f32.mrf.mxu0
        %v1986 = vadd.f32 0.0, %v1985
        %v1987 = vpop.f32.mrf.mxu0
        %v1988 = vadd.f32 0.0, %v1987
        %v1989 = vpop.f32.mrf.mxu0
        %v1990 = vadd.f32 0.0, %v1989
        %1991 = vmatprep.mubr.bf16.mxu0 %v1025
        %1992 = vmatmul.mubr.bf16.gmra.mxu0 %v1024
        %v1993 = vpop.f32.mrf.mxu0
        %v1994 = vadd.f32 0.0, %v1993
        %v1995 = vpop.f32.mrf.mxu0
        %v1996 = vadd.f32 0.0, %v1995
        %v1997 = vpop.f32.mrf.mxu0
        %v1998 = vadd.f32 0.0, %v1997
        %v1999 = vpop.f32.mrf.mxu0
        %v2000 = vadd.f32 0.0, %v1999
        %2001 = vmatprep.mubr.bf16.mxu0 %v1029
        %2002 = vmatmul.mubr.bf16.gmra.mxu0 %v1028
        %v2003 = vpop.f32.mrf.mxu0
        %v2004 = vadd.f32 0.0, %v2003
        %v2005 = vpop.f32.mrf.mxu0
        %v2006 = vadd.f32 0.0, %v2005
        %v2007 = vpop.f32.mrf.mxu0
        %v2008 = vadd.f32 0.0, %v2007
        %v2009 = vpop.f32.mrf.mxu0
        %v2010 = vadd.f32 0.0, %v2009
        %2011 = vmatprep.mubr.bf16.mxu0 %v1033
        %2012 = vmatmul.mubr.bf16.gmra.mxu0 %v1032
        %v2013 = vpop.f32.mrf.mxu0
        %v2014 = vadd.f32 0.0, %v2013
        %v2015 = vpop.f32.mrf.mxu0
        %v2016 = vadd.f32 0.0, %v2015
        %v2017 = vpop.f32.mrf.mxu0
        %v2018 = vadd.f32 0.0, %v2017
        %v2019 = vpop.f32.mrf.mxu0
        %v2020 = vadd.f32 0.0, %v2019
        %2021 = vmatprep.mubr.bf16.mxu0 %v1037
        %2022 = vmatmul.mubr.bf16.gmra.mxu0 %v1036
        %v2023 = vpop.f32.mrf.mxu0
        %v2024 = vadd.f32 0.0, %v2023
        %v2025 = vpop.f32.mrf.mxu0
        %v2026 = vadd.f32 0.0, %v2025
        %v2027 = vpop.f32.mrf.mxu0
        %v2028 = vadd.f32 0.0, %v2027
        %v2029 = vpop.f32.mrf.mxu0
        %v2030 = vadd.f32 0.0, %v2029
        %2031 = vmatprep.mubr.bf16.mxu0 %v1041
        %2032 = vmatmul.mubr.bf16.gmra.mxu0 %v1040
        %v2033 = vpop.f32.mrf.mxu0
        %v2034 = vadd.f32 0.0, %v2033
        %v2035 = vpop.f32.mrf.mxu0
        %v2036 = vadd.f32 0.0, %v2035
        %v2037 = vpop.f32.mrf.mxu0
        %v2038 = vadd.f32 0.0, %v2037
        %v2039 = vpop.f32.mrf.mxu0
        %v2040 = vadd.f32 0.0, %v2039
        %2041 = vmatprep.mubr.bf16.mxu0 %v1045
        %2042 = vmatmul.mubr.bf16.gmra.mxu0 %v1044
        %v2043 = vpop.f32.mrf.mxu0
        %v2044 = vadd.f32 0.0, %v2043
        %v2045 = vpop.f32.mrf.mxu0
        %v2046 = vadd.f32 0.0, %v2045
        %v2047 = vpop.f32.mrf.mxu0
        %v2048 = vadd.f32 0.0, %v2047
        %v2049 = vpop.f32.mrf.mxu0
        %v2050 = vadd.f32 0.0, %v2049
        %2051 = vmatprep.mubr.bf16.mxu0 %v1049
        %2052 = vmatmul.mubr.bf16.gmra.mxu0 %v1048
        %v2053 = vpop.f32.mrf.mxu0
        %v2054 = vadd.f32 0.0, %v2053
        %v2055 = vpop.f32.mrf.mxu0
        %v2056 = vadd.f32 0.0, %v2055
        %v2057 = vpop.f32.mrf.mxu0
        %v2058 = vadd.f32 0.0, %v2057
        %v2059 = vpop.f32.mrf.mxu0
        %v2060 = vadd.f32 0.0, %v2059
        %2061 = vmatprep.mubr.bf16.mxu0 %v1053
        %2062 = vmatmul.mubr.bf16.gmra.mxu0 %v1052
        %v2063 = vpop.f32.mrf.mxu0
        %v2064 = vadd.f32 0.0, %v2063
        %v2065 = vpop.f32.mrf.mxu0
        %v2066 = vadd.f32 0.0, %v2065
        %v2067 = vpop.f32.mrf.mxu0
        %v2068 = vadd.f32 0.0, %v2067
        %v2069 = vpop.f32.mrf.mxu0
        %v2070 = vadd.f32 0.0, %v2069
        %2071 = vmatprep.mubr.bf16.mxu0 %v1057
        %2072 = vmatmul.mubr.bf16.gmra.mxu0 %v1056
        %v2073 = vpop.f32.mrf.mxu0
        %v2074 = vadd.f32 0.0, %v2073
        %v2075 = vpop.f32.mrf.mxu0
        %v2076 = vadd.f32 0.0, %v2075
        %v2077 = vpop.f32.mrf.mxu0
        %v2078 = vadd.f32 0.0, %v2077
        %v2079 = vpop.f32.mrf.mxu0
        %v2080 = vadd.f32 0.0, %v2079
        %2081 = vmatprep.mubr.bf16.mxu0 %v1061
        %2082 = vmatmul.mubr.bf16.gmra.mxu0 %v1060
        %v2083 = vpop.f32.mrf.mxu0
        %v2084 = vadd.f32 0.0, %v2083
        %v2085 = vpop.f32.mrf.mxu0
        %v2086 = vadd.f32 0.0, %v2085
        %v2087 = vpop.f32.mrf.mxu0
        %v2088 = vadd.f32 0.0, %v2087
        %v2089 = vpop.f32.mrf.mxu0
        %v2090 = vadd.f32 0.0, %v2089
        %2091 = vmatprep.mubr.bf16.mxu0 %v1065
        %2092 = vmatmul.mubr.bf16.gmra.mxu0 %v1064
        %v2093 = vpop.f32.mrf.mxu0
        %v2094 = vadd.f32 0.0, %v2093
        %v2095 = vpop.f32.mrf.mxu0
        %v2096 = vadd.f32 0.0, %v2095
        %v2097 = vpop.f32.mrf.mxu0
        %v2098 = vadd.f32 0.0, %v2097
        %v2099 = vpop.f32.mrf.mxu0
        %v2100 = vadd.f32 0.0, %v2099
        %2101 = vmatprep.mubr.bf16.mxu0 %v1069
        %2102 = vmatmul.mubr.bf16.gmra.mxu0 %v1068
        %v2103 = vpop.f32.mrf.mxu0
        %v2104 = vadd.f32 0.0, %v2103
        %v2105 = vpop.f32.mrf.mxu0
        %v2106 = vadd.f32 0.0, %v2105
        %v2107 = vpop.f32.mrf.mxu0
        %v2108 = vadd.f32 0.0, %v2107
        %v2109 = vpop.f32.mrf.mxu0
        %v2110 = vadd.f32 0.0, %v2109
        %2111 = vmatprep.mubr.bf16.mxu0 %v1073
        %2112 = vmatmul.mubr.bf16.gmra.mxu0 %v1072
        %v2113 = vpop.f32.mrf.mxu0
        %v2114 = vadd.f32 0.0, %v2113
        %v2115 = vpop.f32.mrf.mxu0
        %v2116 = vadd.f32 0.0, %v2115
        %v2117 = vpop.f32.mrf.mxu0
        %v2118 = vadd.f32 0.0, %v2117
        %v2119 = vpop.f32.mrf.mxu0
        %v2120 = vadd.f32 0.0, %v2119
        %2121 = vmatprep.mubr.bf16.mxu0 %v1077
        %2122 = vmatmul.mubr.bf16.gmra.mxu0 %v1076
        %v2123 = vpop.f32.mrf.mxu0
        %v2124 = vadd.f32 0.0, %v2123
        %v2125 = vpop.f32.mrf.mxu0
        %v2126 = vadd.f32 0.0, %v2125
        %v2127 = vpop.f32.mrf.mxu0
        %v2128 = vadd.f32 0.0, %v2127
        %v2129 = vpop.f32.mrf.mxu0
        %v2130 = vadd.f32 0.0, %v2129
        %2131 = vmatprep.mubr.bf16.mxu0 %v1081
        %2132 = vmatmul.mubr.bf16.gmra.mxu0 %v1080
        %v2133 = vpop.f32.mrf.mxu0
        %v2134 = vadd.f32 0.0, %v2133
        %v2135 = vpop.f32.mrf.mxu0
        %v2136 = vadd.f32 0.0, %v2135
        %v2137 = vpop.f32.mrf.mxu0
        %v2138 = vadd.f32 0.0, %v2137
        %v2139 = vpop.f32.mrf.mxu0
        %v2140 = vadd.f32 0.0, %v2139
        %2141 = vmatprep.mubr.bf16.mxu0 %v1085
        %2142 = vmatmul.mubr.bf16.gmra.mxu0 %v1084
        %v2143 = vpop.f32.mrf.mxu0
        %v2144 = vadd.f32 0.0, %v2143
        %v2145 = vpop.f32.mrf.mxu0
        %v2146 = vadd.f32 0.0, %v2145
        %v2147 = vpop.f32.mrf.mxu0
        %v2148 = vadd.f32 0.0, %v2147
        %v2149 = vpop.f32.mrf.mxu0
        %v2150 = vadd.f32 0.0, %v2149
        %2151 = vmatprep.mubr.bf16.mxu0 %v1089
        %2152 = vmatmul.mubr.bf16.gmra.mxu0 %v1088
        %v2153 = vpop.f32.mrf.mxu0
        %v2154 = vadd.f32 0.0, %v2153
        %v2155 = vpop.f32.mrf.mxu0
        %v2156 = vadd.f32 0.0, %v2155
        %v2157 = vpop.f32.mrf.mxu0
        %v2158 = vadd.f32 0.0, %v2157
        %v2159 = vpop.f32.mrf.mxu0
        %v2160 = vadd.f32 0.0, %v2159
        %2161 = vmatprep.mubr.bf16.mxu0 %v1093
        %2162 = vmatmul.mubr.bf16.gmra.mxu0 %v1092
        %v2163 = vpop.f32.mrf.mxu0
        %v2164 = vadd.f32 0.0, %v2163
        %v2165 = vpop.f32.mrf.mxu0
        %v2166 = vadd.f32 0.0, %v2165
        %v2167 = vpop.f32.mrf.mxu0
        %v2168 = vadd.f32 0.0, %v2167
        %v2169 = vpop.f32.mrf.mxu0
        %v2170 = vadd.f32 0.0, %v2169
        %2171 = vmatprep.mubr.bf16.mxu0 %v1097
        %2172 = vmatmul.mubr.bf16.gmra.mxu0 %v1096
        %v2173 = vpop.f32.mrf.mxu0
        %v2174 = vadd.f32 0.0, %v2173
        %v2175 = vpop.f32.mrf.mxu0
        %v2176 = vadd.f32 0.0, %v2175
        %v2177 = vpop.f32.mrf.mxu0
        %v2178 = vadd.f32 0.0, %v2177
        %v2179 = vpop.f32.mrf.mxu0
        %v2180 = vadd.f32 0.0, %v2179
        %2181 = vmatprep.mubr.bf16.mxu0 %v1101
        %2182 = vmatmul.mubr.bf16.gmra.mxu0 %v1100
        %v2183 = vpop.f32.mrf.mxu0
        %v2184 = vadd.f32 0.0, %v2183
        %v2185 = vpop.f32.mrf.mxu0
        %v2186 = vadd.f32 0.0, %v2185
        %v2187 = vpop.f32.mrf.mxu0
        %v2188 = vadd.f32 0.0, %v2187
        %v2189 = vpop.f32.mrf.mxu0
        %v2190 = vadd.f32 0.0, %v2189
        %2191 = vmatprep.mubr.bf16.mxu0 %v1105
        %2192 = vmatmul.mubr.bf16.gmra.mxu0 %v1104
        %v2193 = vpop.f32.mrf.mxu0
        %v2194 = vadd.f32 0.0, %v2193
        %v2195 = vpop.f32.mrf.mxu0
        %v2196 = vadd.f32 0.0, %v2195
        %v2197 = vpop.f32.mrf.mxu0
        %v2198 = vadd.f32 0.0, %v2197
        %v2199 = vpop.f32.mrf.mxu0
        %v2200 = vadd.f32 0.0, %v2199
        %2201 = vmatprep.mubr.bf16.mxu0 %v1109
        %2202 = vmatmul.mubr.bf16.gmra.mxu0 %v1108
        %v2203 = vpop.f32.mrf.mxu0
        %v2204 = vadd.f32 0.0, %v2203
        %v2205 = vpop.f32.mrf.mxu0
        %v2206 = vadd.f32 0.0, %v2205
        %v2207 = vpop.f32.mrf.mxu0
        %v2208 = vadd.f32 0.0, %v2207
        %v2209 = vpop.f32.mrf.mxu0
        %v2210 = vadd.f32 0.0, %v2209
        %2211 = vmatprep.mubr.bf16.mxu0 %v1113
        %2212 = vmatmul.mubr.bf16.gmra.mxu0 %v1112
        %v2213 = vpop.f32.mrf.mxu0
        %v2214 = vadd.f32 0.0, %v2213
        %v2215 = vpop.f32.mrf.mxu0
        %v2216 = vadd.f32 0.0, %v2215
        %v2217 = vpop.f32.mrf.mxu0
        %v2218 = vadd.f32 0.0, %v2217
        %v2219 = vpop.f32.mrf.mxu0
        %v2220 = vadd.f32 0.0, %v2219
        %2221 = vdwg.mxu0
        %2222 = vmatprep.subr.bf16.mxu0 %v1641
        %2223 = vmatpush1.bf16.msra.mxu0 %v1640
        %2224 = vmatprep.subr.bf16.mxu0 %v1637
        %2225 = vmatpush1.bf16.msra.mxu0 %v1636
        %2226 = vmatprep.subr.bf16.mxu0 %v1633
        %2227 = vmatpush1.bf16.msra.mxu0 %v1632
        %2228 = vmatprep.subr.bf16.mxu0 %v1629
        %2229 = vmatpush1.bf16.msra.mxu0 %v1628
        %2230 = vmatprep.subr.bf16.mxu0 %v1625
        %2231 = vmatpush1.bf16.msra.mxu0 %v1624
        %2232 = vmatprep.subr.bf16.mxu0 %v1621
        %2233 = vmatpush1.bf16.msra.mxu0 %v1620
        %2234 = vmatprep.subr.bf16.mxu0 %v1617
        %2235 = vmatpush1.bf16.msra.mxu0 %v1616
        %2236 = vmatprep.subr.bf16.mxu0 %v1613
        %2237 = vmatpush1.bf16.msra.mxu0 %v1612
        %2238 = vmatprep.subr.bf16.mxu0 0
        %2239 = vmatpush2.bf16.msra.mxu0 0
        %2240 = vmatprep.subr.bf16.mxu0 0
        %2241 = vmatpush2.bf16.msra.mxu0 0
        %2242 = vmatprep.subr.bf16.mxu0 0
        %2243 = vmatpush2.bf16.msra.mxu0 0
        %2244 = vmatprep.subr.bf16.mxu0 0
        %2245 = vmatpush2.bf16.msra.mxu0 0
        %2246 = vmatprep.subr.bf16.mxu0 %v1657
        %2247 = vmatpush2.bf16.msra.mxu0 %v1656
        %2248 = vmatprep.subr.bf16.mxu0 %v1653
        %2249 = vmatpush2.bf16.msra.mxu0 %v1652
        %2250 = vmatprep.subr.bf16.mxu0 %v1649
        %2251 = vmatpush2.bf16.msra.mxu0 %v1648
        %2252 = vmatprep.subr.bf16.mxu0 %v1645
        %2253 = vmatpush2.bf16.msra.mxu0 %v1644
        %2254 = vmatprep.mubr.bf16.mxu0 %v1774
        %2255 = vmatmul.mubr.bf16.gmra.mxu0 %v990
        %v2256 = vpop.f32.mrf.mxu0
        %v2257 = vadd.f32 %v1904, %v2256
        %v2258 = vpop.f32.mrf.mxu0
        %v2259 = vadd.f32 %v1906, %v2258
        %v2260 = vpop.f32.mrf.mxu0
        %v2261 = vadd.f32 %v1908, %v2260
        %v2262 = vpop.f32.mrf.mxu0
        %v2263 = vadd.f32 %v1910, %v2262
        %2264 = vmatprep.mubr.bf16.mxu0 %v1777
        %2265 = vmatmul.mubr.bf16.gmra.mxu0 %v994
        %v2266 = vpop.f32.mrf.mxu0
        %v2267 = vadd.f32 %v1914, %v2266
        %v2268 = vpop.f32.mrf.mxu0
        %v2269 = vadd.f32 %v1916, %v2268
        %v2270 = vpop.f32.mrf.mxu0
        %v2271 = vadd.f32 %v1918, %v2270
        %v2272 = vpop.f32.mrf.mxu0
        %v2273 = vadd.f32 %v1920, %v2272
        %2274 = vmatprep.mubr.bf16.mxu0 %v1780
        %2275 = vmatmul.mubr.bf16.gmra.mxu0 %v998
        %v2276 = vpop.f32.mrf.mxu0
        %v2277 = vadd.f32 %v1924, %v2276
        %v2278 = vpop.f32.mrf.mxu0
        %v2279 = vadd.f32 %v1926, %v2278
        %v2280 = vpop.f32.mrf.mxu0
        %v2281 = vadd.f32 %v1928, %v2280
        %v2282 = vpop.f32.mrf.mxu0
        %v2283 = vadd.f32 %v1930, %v2282
        %2284 = vmatprep.mubr.bf16.mxu0 %v1783
        %2285 = vmatmul.mubr.bf16.gmra.mxu0 %v1002
        %v2286 = vpop.f32.mrf.mxu0
        %v2287 = vadd.f32 %v1934, %v2286
        %v2288 = vpop.f32.mrf.mxu0
        %v2289 = vadd.f32 %v1936, %v2288
        %v2290 = vpop.f32.mrf.mxu0
        %v2291 = vadd.f32 %v1938, %v2290
        %v2292 = vpop.f32.mrf.mxu0
        %v2293 = vadd.f32 %v1940, %v2292
        %2294 = vmatprep.mubr.bf16.mxu0 %v1786
        %2295 = vmatmul.mubr.bf16.gmra.mxu0 %v1006
        %v2296 = vpop.f32.mrf.mxu0
        %v2297 = vadd.f32 %v1944, %v2296
        %v2298 = vpop.f32.mrf.mxu0
        %v2299 = vadd.f32 %v1946, %v2298
        %v2300 = vpop.f32.mrf.mxu0
        %v2301 = vadd.f32 %v1948, %v2300
        %v2302 = vpop.f32.mrf.mxu0
        %v2303 = vadd.f32 %v1950, %v2302
        %2304 = vmatprep.mubr.bf16.mxu0 %v1789
        %2305 = vmatmul.mubr.bf16.gmra.mxu0 %v1010
        %v2306 = vpop.f32.mrf.mxu0
        %v2307 = vadd.f32 %v1954, %v2306
        %v2308 = vpop.f32.mrf.mxu0
        %v2309 = vadd.f32 %v1956, %v2308
        %v2310 = vpop.f32.mrf.mxu0
        %v2311 = vadd.f32 %v1958, %v2310
        %v2312 = vpop.f32.mrf.mxu0
        %v2313 = vadd.f32 %v1960, %v2312
        %2314 = vmatprep.mubr.bf16.mxu0 %v1792
        %2315 = vmatmul.mubr.bf16.gmra.mxu0 %v1014
        %v2316 = vpop.f32.mrf.mxu0
        %v2317 = vadd.f32 %v1964, %v2316
        %v2318 = vpop.f32.mrf.mxu0
        %v2319 = vadd.f32 %v1966, %v2318
        %v2320 = vpop.f32.mrf.mxu0
        %v2321 = vadd.f32 %v1968, %v2320
        %v2322 = vpop.f32.mrf.mxu0
        %v2323 = vadd.f32 %v1970, %v2322
        %2324 = vmatprep.mubr.bf16.mxu0 %v1795
        %2325 = vmatmul.mubr.bf16.gmra.mxu0 %v1018
        %v2326 = vpop.f32.mrf.mxu0
        %v2327 = vadd.f32 %v1974, %v2326
        %v2328 = vpop.f32.mrf.mxu0
        %v2329 = vadd.f32 %v1976, %v2328
        %v2330 = vpop.f32.mrf.mxu0
        %v2331 = vadd.f32 %v1978, %v2330
        %v2332 = vpop.f32.mrf.mxu0
        %v2333 = vadd.f32 %v1980, %v2332
        %2334 = vmatprep.mubr.bf16.mxu0 %v1798
        %2335 = vmatmul.mubr.bf16.gmra.mxu0 %v1022
        %v2336 = vpop.f32.mrf.mxu0
        %v2337 = vadd.f32 %v1984, %v2336
        %v2338 = vpop.f32.mrf.mxu0
        %v2339 = vadd.f32 %v1986, %v2338
        %v2340 = vpop.f32.mrf.mxu0
        %v2341 = vadd.f32 %v1988, %v2340
        %v2342 = vpop.f32.mrf.mxu0
        %v2343 = vadd.f32 %v1990, %v2342
        %2344 = vmatprep.mubr.bf16.mxu0 %v1801
        %2345 = vmatmul.mubr.bf16.gmra.mxu0 %v1026
        %v2346 = vpop.f32.mrf.mxu0
        %v2347 = vadd.f32 %v1994, %v2346
        %v2348 = vpop.f32.mrf.mxu0
        %v2349 = vadd.f32 %v1996, %v2348
        %v2350 = vpop.f32.mrf.mxu0
        %v2351 = vadd.f32 %v1998, %v2350
        %v2352 = vpop.f32.mrf.mxu0
        %v2353 = vadd.f32 %v2000, %v2352
        %2354 = vmatprep.mubr.bf16.mxu0 %v1804
        %2355 = vmatmul.mubr.bf16.gmra.mxu0 %v1030
        %v2356 = vpop.f32.mrf.mxu0
        %v2357 = vadd.f32 %v2004, %v2356
        %v2358 = vpop.f32.mrf.mxu0
        %v2359 = vadd.f32 %v2006, %v2358
        %v2360 = vpop.f32.mrf.mxu0
        %v2361 = vadd.f32 %v2008, %v2360
        %v2362 = vpop.f32.mrf.mxu0
        %v2363 = vadd.f32 %v2010, %v2362
        %2364 = vmatprep.mubr.bf16.mxu0 %v1807
        %2365 = vmatmul.mubr.bf16.gmra.mxu0 %v1034
        %v2366 = vpop.f32.mrf.mxu0
        %v2367 = vadd.f32 %v2014, %v2366
        %v2368 = vpop.f32.mrf.mxu0
        %v2369 = vadd.f32 %v2016, %v2368
        %v2370 = vpop.f32.mrf.mxu0
        %v2371 = vadd.f32 %v2018, %v2370
        %v2372 = vpop.f32.mrf.mxu0
        %v2373 = vadd.f32 %v2020, %v2372
        %2374 = vmatprep.mubr.bf16.mxu0 %v1810
        %2375 = vmatmul.mubr.bf16.gmra.mxu0 %v1038
        %v2376 = vpop.f32.mrf.mxu0
        %v2377 = vadd.f32 %v2024, %v2376
        %v2378 = vpop.f32.mrf.mxu0
        %v2379 = vadd.f32 %v2026, %v2378
        %v2380 = vpop.f32.mrf.mxu0
        %v2381 = vadd.f32 %v2028, %v2380
        %v2382 = vpop.f32.mrf.mxu0
        %v2383 = vadd.f32 %v2030, %v2382
        %2384 = vmatprep.mubr.bf16.mxu0 %v1813
        %2385 = vmatmul.mubr.bf16.gmra.mxu0 %v1042
        %v2386 = vpop.f32.mrf.mxu0
        %v2387 = vadd.f32 %v2034, %v2386
        %v2388 = vpop.f32.mrf.mxu0
        %v2389 = vadd.f32 %v2036, %v2388
        %v2390 = vpop.f32.mrf.mxu0
        %v2391 = vadd.f32 %v2038, %v2390
        %v2392 = vpop.f32.mrf.mxu0
        %v2393 = vadd.f32 %v2040, %v2392
        %2394 = vmatprep.mubr.bf16.mxu0 %v1816
        %2395 = vmatmul.mubr.bf16.gmra.mxu0 %v1046
        %v2396 = vpop.f32.mrf.mxu0
        %v2397 = vadd.f32 %v2044, %v2396
        %v2398 = vpop.f32.mrf.mxu0
        %v2399 = vadd.f32 %v2046, %v2398
        %v2400 = vpop.f32.mrf.mxu0
        %v2401 = vadd.f32 %v2048, %v2400
        %v2402 = vpop.f32.mrf.mxu0
        %v2403 = vadd.f32 %v2050, %v2402
        %2404 = vmatprep.mubr.bf16.mxu0 %v1819
        %2405 = vmatmul.mubr.bf16.gmra.mxu0 %v1050
        %v2406 = vpop.f32.mrf.mxu0
        %v2407 = vadd.f32 %v2054, %v2406
        %v2408 = vpop.f32.mrf.mxu0
        %v2409 = vadd.f32 %v2056, %v2408
        %v2410 = vpop.f32.mrf.mxu0
        %v2411 = vadd.f32 %v2058, %v2410
        %v2412 = vpop.f32.mrf.mxu0
        %v2413 = vadd.f32 %v2060, %v2412
        %2414 = vmatprep.mubr.bf16.mxu0 %v1822
        %2415 = vmatmul.mubr.bf16.gmra.mxu0 %v1054
        %v2416 = vpop.f32.mrf.mxu0
        %v2417 = vadd.f32 %v2064, %v2416
        %v2418 = vpop.f32.mrf.mxu0
        %v2419 = vadd.f32 %v2066, %v2418
        %v2420 = vpop.f32.mrf.mxu0
        %v2421 = vadd.f32 %v2068, %v2420
        %v2422 = vpop.f32.mrf.mxu0
        %v2423 = vadd.f32 %v2070, %v2422
        %2424 = vmatprep.mubr.bf16.mxu0 %v1825
        %2425 = vmatmul.mubr.bf16.gmra.mxu0 %v1058
        %v2426 = vpop.f32.mrf.mxu0
        %v2427 = vadd.f32 %v2074, %v2426
        %v2428 = vpop.f32.mrf.mxu0
        %v2429 = vadd.f32 %v2076, %v2428
        %v2430 = vpop.f32.mrf.mxu0
        %v2431 = vadd.f32 %v2078, %v2430
        %v2432 = vpop.f32.mrf.mxu0
        %v2433 = vadd.f32 %v2080, %v2432
        %2434 = vmatprep.mubr.bf16.mxu0 %v1828
        %2435 = vmatmul.mubr.bf16.gmra.mxu0 %v1062
        %v2436 = vpop.f32.mrf.mxu0
        %v2437 = vadd.f32 %v2084, %v2436
        %v2438 = vpop.f32.mrf.mxu0
        %v2439 = vadd.f32 %v2086, %v2438
        %v2440 = vpop.f32.mrf.mxu0
        %v2441 = vadd.f32 %v2088, %v2440
        %v2442 = vpop.f32.mrf.mxu0
        %v2443 = vadd.f32 %v2090, %v2442
        %2444 = vmatprep.mubr.bf16.mxu0 %v1831
        %2445 = vmatmul.mubr.bf16.gmra.mxu0 %v1066
        %v2446 = vpop.f32.mrf.mxu0
        %v2447 = vadd.f32 %v2094, %v2446
        %v2448 = vpop.f32.mrf.mxu0
        %v2449 = vadd.f32 %v2096, %v2448
        %v2450 = vpop.f32.mrf.mxu0
        %v2451 = vadd.f32 %v2098, %v2450
        %v2452 = vpop.f32.mrf.mxu0
        %v2453 = vadd.f32 %v2100, %v2452
        %2454 = vmatprep.mubr.bf16.mxu0 %v1834
        %2455 = vmatmul.mubr.bf16.gmra.mxu0 %v1070
        %v2456 = vpop.f32.mrf.mxu0
        %v2457 = vadd.f32 %v2104, %v2456
        %v2458 = vpop.f32.mrf.mxu0
        %v2459 = vadd.f32 %v2106, %v2458
        %v2460 = vpop.f32.mrf.mxu0
        %v2461 = vadd.f32 %v2108, %v2460
        %v2462 = vpop.f32.mrf.mxu0
        %v2463 = vadd.f32 %v2110, %v2462
        %2464 = vmatprep.mubr.bf16.mxu0 %v1837
        %2465 = vmatmul.mubr.bf16.gmra.mxu0 %v1074
        %v2466 = vpop.f32.mrf.mxu0
        %v2467 = vadd.f32 %v2114, %v2466
        %v2468 = vpop.f32.mrf.mxu0
        %v2469 = vadd.f32 %v2116, %v2468
        %v2470 = vpop.f32.mrf.mxu0
        %v2471 = vadd.f32 %v2118, %v2470
        %v2472 = vpop.f32.mrf.mxu0
        %v2473 = vadd.f32 %v2120, %v2472
        %2474 = vmatprep.mubr.bf16.mxu0 %v1840
        %2475 = vmatmul.mubr.bf16.gmra.mxu0 %v1078
        %v2476 = vpop.f32.mrf.mxu0
        %v2477 = vadd.f32 %v2124, %v2476
        %v2478 = vpop.f32.mrf.mxu0
        %v2479 = vadd.f32 %v2126, %v2478
        %v2480 = vpop.f32.mrf.mxu0
        %v2481 = vadd.f32 %v2128, %v2480
        %v2482 = vpop.f32.mrf.mxu0
        %v2483 = vadd.f32 %v2130, %v2482
        %2484 = vmatprep.mubr.bf16.mxu0 %v1843
        %2485 = vmatmul.mubr.bf16.gmra.mxu0 %v1082
        %v2486 = vpop.f32.mrf.mxu0
        %v2487 = vadd.f32 %v2134, %v2486
        %v2488 = vpop.f32.mrf.mxu0
        %v2489 = vadd.f32 %v2136, %v2488
        %v2490 = vpop.f32.mrf.mxu0
        %v2491 = vadd.f32 %v2138, %v2490
        %v2492 = vpop.f32.mrf.mxu0
        %v2493 = vadd.f32 %v2140, %v2492
        %2494 = vmatprep.mubr.bf16.mxu0 %v1846
        %2495 = vmatmul.mubr.bf16.gmra.mxu0 %v1086
        %v2496 = vpop.f32.mrf.mxu0
        %v2497 = vadd.f32 %v2144, %v2496
        %v2498 = vpop.f32.mrf.mxu0
        %v2499 = vadd.f32 %v2146, %v2498
        %v2500 = vpop.f32.mrf.mxu0
        %v2501 = vadd.f32 %v2148, %v2500
        %v2502 = vpop.f32.mrf.mxu0
        %v2503 = vadd.f32 %v2150, %v2502
        %2504 = vmatprep.mubr.bf16.mxu0 %v1849
        %2505 = vmatmul.mubr.bf16.gmra.mxu0 %v1090
        %v2506 = vpop.f32.mrf.mxu0
        %v2507 = vadd.f32 %v2154, %v2506
        %v2508 = vpop.f32.mrf.mxu0
        %v2509 = vadd.f32 %v2156, %v2508
        %v2510 = vpop.f32.mrf.mxu0
        %v2511 = vadd.f32 %v2158, %v2510
        %v2512 = vpop.f32.mrf.mxu0
        %v2513 = vadd.f32 %v2160, %v2512
        %2514 = vmatprep.mubr.bf16.mxu0 %v1852
        %2515 = vmatmul.mubr.bf16.gmra.mxu0 %v1094
        %v2516 = vpop.f32.mrf.mxu0
        %v2517 = vadd.f32 %v2164, %v2516
        %v2518 = vpop.f32.mrf.mxu0
        %v2519 = vadd.f32 %v2166, %v2518
        %v2520 = vpop.f32.mrf.mxu0
        %v2521 = vadd.f32 %v2168, %v2520
        %v2522 = vpop.f32.mrf.mxu0
        %v2523 = vadd.f32 %v2170, %v2522
        %2524 = vmatprep.mubr.bf16.mxu0 %v1855
        %2525 = vmatmul.mubr.bf16.gmra.mxu0 %v1098
        %v2526 = vpop.f32.mrf.mxu0
        %v2527 = vadd.f32 %v2174, %v2526
        %v2528 = vpop.f32.mrf.mxu0
        %v2529 = vadd.f32 %v2176, %v2528
        %v2530 = vpop.f32.mrf.mxu0
        %v2531 = vadd.f32 %v2178, %v2530
        %v2532 = vpop.f32.mrf.mxu0
        %v2533 = vadd.f32 %v2180, %v2532
        %2534 = vmatprep.mubr.bf16.mxu0 %v1858
        %2535 = vmatmul.mubr.bf16.gmra.mxu0 %v1102
        %v2536 = vpop.f32.mrf.mxu0
        %v2537 = vadd.f32 %v2184, %v2536
        %v2538 = vpop.f32.mrf.mxu0
        %v2539 = vadd.f32 %v2186, %v2538
        %v2540 = vpop.f32.mrf.mxu0
        %v2541 = vadd.f32 %v2188, %v2540
        %v2542 = vpop.f32.mrf.mxu0
        %v2543 = vadd.f32 %v2190, %v2542
        %2544 = vmatprep.mubr.bf16.mxu0 %v1861
        %2545 = vmatmul.mubr.bf16.gmra.mxu0 %v1106
        %v2546 = vpop.f32.mrf.mxu0
        %v2547 = vadd.f32 %v2194, %v2546
        %v2548 = vpop.f32.mrf.mxu0
        %v2549 = vadd.f32 %v2196, %v2548
        %v2550 = vpop.f32.mrf.mxu0
        %v2551 = vadd.f32 %v2198, %v2550
        %v2552 = vpop.f32.mrf.mxu0
        %v2553 = vadd.f32 %v2200, %v2552
        %2554 = vmatprep.mubr.bf16.mxu0 %v1864
        %2555 = vmatmul.mubr.bf16.gmra.mxu0 %v1110
        %v2556 = vpop.f32.mrf.mxu0
        %v2557 = vadd.f32 %v2204, %v2556
        %v2558 = vpop.f32.mrf.mxu0
        %v2559 = vadd.f32 %v2206, %v2558
        %v2560 = vpop.f32.mrf.mxu0
        %v2561 = vadd.f32 %v2208, %v2560
        %v2562 = vpop.f32.mrf.mxu0
        %v2563 = vadd.f32 %v2210, %v2562
        %2564 = vmatprep.mubr.bf16.mxu0 %v1867
        %2565 = vmatmul.mubr.bf16.gmra.mxu0 %v1114
        %v2566 = vpop.f32.mrf.mxu0
        %v2567 = vadd.f32 %v2214, %v2566
        %v2568 = vpop.f32.mrf.mxu0
        %v2569 = vadd.f32 %v2216, %v2568
        %v2570 = vpop.f32.mrf.mxu0
        %v2571 = vadd.f32 %v2218, %v2570
        %v2572 = vpop.f32.mrf.mxu0
        %v2573 = vadd.f32 %v2220, %v2572
        %2574 = vdwg.mxu0
        %2575 = vmatprep.subr.bf16.mxu0 %v1579
        %2576 = vmatpush1.bf16.msra.mxu0 %v1578
        %2577 = vmatprep.subr.bf16.mxu0 %v1575
        %2578 = vmatpush1.bf16.msra.mxu0 %v1574
        %2579 = vmatprep.subr.bf16.mxu0 %v1571
        %2580 = vmatpush1.bf16.msra.mxu0 %v1570
        %2581 = vmatprep.subr.bf16.mxu0 %v1567
        %2582 = vmatpush1.bf16.msra.mxu0 %v1566
        %2583 = vmatprep.subr.bf16.mxu0 %v1563
        %2584 = vmatpush1.bf16.msra.mxu0 %v1562
        %2585 = vmatprep.subr.bf16.mxu0 %v1559
        %2586 = vmatpush1.bf16.msra.mxu0 %v1558
        %2587 = vmatprep.subr.bf16.mxu0 %v1555
        %2588 = vmatpush1.bf16.msra.mxu0 %v1554
        %2589 = vmatprep.subr.bf16.mxu0 %v1551
        %2590 = vmatpush1.bf16.msra.mxu0 %v1550
        %2591 = vmatprep.subr.bf16.mxu0 %v1611
        %2592 = vmatpush2.bf16.msra.mxu0 %v1610
        %2593 = vmatprep.subr.bf16.mxu0 %v1607
        %2594 = vmatpush2.bf16.msra.mxu0 %v1606
        %2595 = vmatprep.subr.bf16.mxu0 %v1603
        %2596 = vmatpush2.bf16.msra.mxu0 %v1602
        %2597 = vmatprep.subr.bf16.mxu0 %v1599
        %2598 = vmatpush2.bf16.msra.mxu0 %v1598
        %2599 = vmatprep.subr.bf16.mxu0 %v1595
        %2600 = vmatpush2.bf16.msra.mxu0 %v1594
        %2601 = vmatprep.subr.bf16.mxu0 %v1591
        %2602 = vmatpush2.bf16.msra.mxu0 %v1590
        %2603 = vmatprep.subr.bf16.mxu0 %v1587
        %2604 = vmatpush2.bf16.msra.mxu0 %v1586
        %2605 = vmatprep.subr.bf16.mxu0 %v1583
        %2606 = vmatpush2.bf16.msra.mxu0 %v1582
        %2607 = vmatprep.mubr.bf16.mxu0 %v989
        %2608 = vmatmul.mubr.bf16.gmra.mxu0 %v988
        %v2609 = vpop.f32.mrf.mxu0
        %v2610 = vadd.f32 0.0, %v2609
        %v2611 = vpop.f32.mrf.mxu0
        %v2612 = vadd.f32 0.0, %v2611
        %v2613 = vpop.f32.mrf.mxu0
        %v2614 = vadd.f32 0.0, %v2613
        %v2615 = vpop.f32.mrf.mxu0
        %v2616 = vadd.f32 0.0, %v2615
        %2617 = vmatprep.mubr.bf16.mxu0 %v993
        %2618 = vmatmul.mubr.bf16.gmra.mxu0 %v992
        %v2619 = vpop.f32.mrf.mxu0
        %v2620 = vadd.f32 0.0, %v2619
        %v2621 = vpop.f32.mrf.mxu0
        %v2622 = vadd.f32 0.0, %v2621
        %v2623 = vpop.f32.mrf.mxu0
        %v2624 = vadd.f32 0.0, %v2623
        %v2625 = vpop.f32.mrf.mxu0
        %v2626 = vadd.f32 0.0, %v2625
        %2627 = vmatprep.mubr.bf16.mxu0 %v997
        %2628 = vmatmul.mubr.bf16.gmra.mxu0 %v996
        %v2629 = vpop.f32.mrf.mxu0
        %v2630 = vadd.f32 0.0, %v2629
        %v2631 = vpop.f32.mrf.mxu0
        %v2632 = vadd.f32 0.0, %v2631
        %v2633 = vpop.f32.mrf.mxu0
        %v2634 = vadd.f32 0.0, %v2633
        %v2635 = vpop.f32.mrf.mxu0
        %v2636 = vadd.f32 0.0, %v2635
        %2637 = vmatprep.mubr.bf16.mxu0 %v1001
        %2638 = vmatmul.mubr.bf16.gmra.mxu0 %v1000
        %v2639 = vpop.f32.mrf.mxu0
        %v2640 = vadd.f32 0.0, %v2639
        %v2641 = vpop.f32.mrf.mxu0
        %v2642 = vadd.f32 0.0, %v2641
        %v2643 = vpop.f32.mrf.mxu0
        %v2644 = vadd.f32 0.0, %v2643
        %v2645 = vpop.f32.mrf.mxu0
        %v2646 = vadd.f32 0.0, %v2645
        %2647 = vmatprep.mubr.bf16.mxu0 %v1005
        %2648 = vmatmul.mubr.bf16.gmra.mxu0 %v1004
        %v2649 = vpop.f32.mrf.mxu0
        %v2650 = vadd.f32 0.0, %v2649
        %v2651 = vpop.f32.mrf.mxu0
        %v2652 = vadd.f32 0.0, %v2651
        %v2653 = vpop.f32.mrf.mxu0
        %v2654 = vadd.f32 0.0, %v2653
        %v2655 = vpop.f32.mrf.mxu0
        %v2656 = vadd.f32 0.0, %v2655
        %2657 = vmatprep.mubr.bf16.mxu0 %v1009
        %2658 = vmatmul.mubr.bf16.gmra.mxu0 %v1008
        %v2659 = vpop.f32.mrf.mxu0
        %v2660 = vadd.f32 0.0, %v2659
        %v2661 = vpop.f32.mrf.mxu0
        %v2662 = vadd.f32 0.0, %v2661
        %v2663 = vpop.f32.mrf.mxu0
        %v2664 = vadd.f32 0.0, %v2663
        %v2665 = vpop.f32.mrf.mxu0
        %v2666 = vadd.f32 0.0, %v2665
        %2667 = vmatprep.mubr.bf16.mxu0 %v1013
        %2668 = vmatmul.mubr.bf16.gmra.mxu0 %v1012
        %v2669 = vpop.f32.mrf.mxu0
        %v2670 = vadd.f32 0.0, %v2669
        %v2671 = vpop.f32.mrf.mxu0
        %v2672 = vadd.f32 0.0, %v2671
        %v2673 = vpop.f32.mrf.mxu0
        %v2674 = vadd.f32 0.0, %v2673
        %v2675 = vpop.f32.mrf.mxu0
        %v2676 = vadd.f32 0.0, %v2675
        %2677 = vmatprep.mubr.bf16.mxu0 %v1017
        %2678 = vmatmul.mubr.bf16.gmra.mxu0 %v1016
        %v2679 = vpop.f32.mrf.mxu0
        %v2680 = vadd.f32 0.0, %v2679
        %v2681 = vpop.f32.mrf.mxu0
        %v2682 = vadd.f32 0.0, %v2681
        %v2683 = vpop.f32.mrf.mxu0
        %v2684 = vadd.f32 0.0, %v2683
        %v2685 = vpop.f32.mrf.mxu0
        %v2686 = vadd.f32 0.0, %v2685
        %2687 = vmatprep.mubr.bf16.mxu0 %v1021
        %2688 = vmatmul.mubr.bf16.gmra.mxu0 %v1020
        %v2689 = vpop.f32.mrf.mxu0
        %v2690 = vadd.f32 0.0, %v2689
        %v2691 = vpop.f32.mrf.mxu0
        %v2692 = vadd.f32 0.0, %v2691
        %v2693 = vpop.f32.mrf.mxu0
        %v2694 = vadd.f32 0.0, %v2693
        %v2695 = vpop.f32.mrf.mxu0
        %v2696 = vadd.f32 0.0, %v2695
        %2697 = vmatprep.mubr.bf16.mxu0 %v1025
        %2698 = vmatmul.mubr.bf16.gmra.mxu0 %v1024
        %v2699 = vpop.f32.mrf.mxu0
        %v2700 = vadd.f32 0.0, %v2699
        %v2701 = vpop.f32.mrf.mxu0
        %v2702 = vadd.f32 0.0, %v2701
        %v2703 = vpop.f32.mrf.mxu0
        %v2704 = vadd.f32 0.0, %v2703
        %v2705 = vpop.f32.mrf.mxu0
        %v2706 = vadd.f32 0.0, %v2705
        %2707 = vmatprep.mubr.bf16.mxu0 %v1029
        %2708 = vmatmul.mubr.bf16.gmra.mxu0 %v1028
        %v2709 = vpop.f32.mrf.mxu0
        %v2710 = vadd.f32 0.0, %v2709
        %v2711 = vpop.f32.mrf.mxu0
        %v2712 = vadd.f32 0.0, %v2711
        %v2713 = vpop.f32.mrf.mxu0
        %v2714 = vadd.f32 0.0, %v2713
        %v2715 = vpop.f32.mrf.mxu0
        %v2716 = vadd.f32 0.0, %v2715
        %2717 = vmatprep.mubr.bf16.mxu0 %v1033
        %2718 = vmatmul.mubr.bf16.gmra.mxu0 %v1032
        %v2719 = vpop.f32.mrf.mxu0
        %v2720 = vadd.f32 0.0, %v2719
        %v2721 = vpop.f32.mrf.mxu0
        %v2722 = vadd.f32 0.0, %v2721
        %v2723 = vpop.f32.mrf.mxu0
        %v2724 = vadd.f32 0.0, %v2723
        %v2725 = vpop.f32.mrf.mxu0
        %v2726 = vadd.f32 0.0, %v2725
        %2727 = vmatprep.mubr.bf16.mxu0 %v1037
        %2728 = vmatmul.mubr.bf16.gmra.mxu0 %v1036
        %v2729 = vpop.f32.mrf.mxu0
        %v2730 = vadd.f32 0.0, %v2729
        %v2731 = vpop.f32.mrf.mxu0
        %v2732 = vadd.f32 0.0, %v2731
        %v2733 = vpop.f32.mrf.mxu0
        %v2734 = vadd.f32 0.0, %v2733
        %v2735 = vpop.f32.mrf.mxu0
        %v2736 = vadd.f32 0.0, %v2735
        %2737 = vmatprep.mubr.bf16.mxu0 %v1041
        %2738 = vmatmul.mubr.bf16.gmra.mxu0 %v1040
        %v2739 = vpop.f32.mrf.mxu0
        %v2740 = vadd.f32 0.0, %v2739
        %v2741 = vpop.f32.mrf.mxu0
        %v2742 = vadd.f32 0.0, %v2741
        %v2743 = vpop.f32.mrf.mxu0
        %v2744 = vadd.f32 0.0, %v2743
        %v2745 = vpop.f32.mrf.mxu0
        %v2746 = vadd.f32 0.0, %v2745
        %2747 = vmatprep.mubr.bf16.mxu0 %v1045
        %2748 = vmatmul.mubr.bf16.gmra.mxu0 %v1044
        %v2749 = vpop.f32.mrf.mxu0
        %v2750 = vadd.f32 0.0, %v2749
        %v2751 = vpop.f32.mrf.mxu0
        %v2752 = vadd.f32 0.0, %v2751
        %v2753 = vpop.f32.mrf.mxu0
        %v2754 = vadd.f32 0.0, %v2753
        %v2755 = vpop.f32.mrf.mxu0
        %v2756 = vadd.f32 0.0, %v2755
        %2757 = vmatprep.mubr.bf16.mxu0 %v1049
        %2758 = vmatmul.mubr.bf16.gmra.mxu0 %v1048
        %v2759 = vpop.f32.mrf.mxu0
        %v2760 = vadd.f32 0.0, %v2759
        %v2761 = vpop.f32.mrf.mxu0
        %v2762 = vadd.f32 0.0, %v2761
        %v2763 = vpop.f32.mrf.mxu0
        %v2764 = vadd.f32 0.0, %v2763
        %v2765 = vpop.f32.mrf.mxu0
        %v2766 = vadd.f32 0.0, %v2765
        %2767 = vmatprep.mubr.bf16.mxu0 %v1053
        %2768 = vmatmul.mubr.bf16.gmra.mxu0 %v1052
        %v2769 = vpop.f32.mrf.mxu0
        %v2770 = vadd.f32 0.0, %v2769
        %v2771 = vpop.f32.mrf.mxu0
        %v2772 = vadd.f32 0.0, %v2771
        %v2773 = vpop.f32.mrf.mxu0
        %v2774 = vadd.f32 0.0, %v2773
        %v2775 = vpop.f32.mrf.mxu0
        %v2776 = vadd.f32 0.0, %v2775
        %2777 = vmatprep.mubr.bf16.mxu0 %v1057
        %2778 = vmatmul.mubr.bf16.gmra.mxu0 %v1056
        %v2779 = vpop.f32.mrf.mxu0
        %v2780 = vadd.f32 0.0, %v2779
        %v2781 = vpop.f32.mrf.mxu0
        %v2782 = vadd.f32 0.0, %v2781
        %v2783 = vpop.f32.mrf.mxu0
        %v2784 = vadd.f32 0.0, %v2783
        %v2785 = vpop.f32.mrf.mxu0
        %v2786 = vadd.f32 0.0, %v2785
        %2787 = vmatprep.mubr.bf16.mxu0 %v1061
        %2788 = vmatmul.mubr.bf16.gmra.mxu0 %v1060
        %v2789 = vpop.f32.mrf.mxu0
        %v2790 = vadd.f32 0.0, %v2789
        %v2791 = vpop.f32.mrf.mxu0
        %v2792 = vadd.f32 0.0, %v2791
        %v2793 = vpop.f32.mrf.mxu0
        %v2794 = vadd.f32 0.0, %v2793
        %v2795 = vpop.f32.mrf.mxu0
        %v2796 = vadd.f32 0.0, %v2795
        %2797 = vmatprep.mubr.bf16.mxu0 %v1065
        %2798 = vmatmul.mubr.bf16.gmra.mxu0 %v1064
        %v2799 = vpop.f32.mrf.mxu0
        %v2800 = vadd.f32 0.0, %v2799
        %v2801 = vpop.f32.mrf.mxu0
        %v2802 = vadd.f32 0.0, %v2801
        %v2803 = vpop.f32.mrf.mxu0
        %v2804 = vadd.f32 0.0, %v2803
        %v2805 = vpop.f32.mrf.mxu0
        %v2806 = vadd.f32 0.0, %v2805
        %2807 = vmatprep.mubr.bf16.mxu0 %v1069
        %2808 = vmatmul.mubr.bf16.gmra.mxu0 %v1068
        %v2809 = vpop.f32.mrf.mxu0
        %v2810 = vadd.f32 0.0, %v2809
        %v2811 = vpop.f32.mrf.mxu0
        %v2812 = vadd.f32 0.0, %v2811
        %v2813 = vpop.f32.mrf.mxu0
        %v2814 = vadd.f32 0.0, %v2813
        %v2815 = vpop.f32.mrf.mxu0
        %v2816 = vadd.f32 0.0, %v2815
        %2817 = vmatprep.mubr.bf16.mxu0 %v1073
        %2818 = vmatmul.mubr.bf16.gmra.mxu0 %v1072
        %v2819 = vpop.f32.mrf.mxu0
        %v2820 = vadd.f32 0.0, %v2819
        %v2821 = vpop.f32.mrf.mxu0
        %v2822 = vadd.f32 0.0, %v2821
        %v2823 = vpop.f32.mrf.mxu0
        %v2824 = vadd.f32 0.0, %v2823
        %v2825 = vpop.f32.mrf.mxu0
        %v2826 = vadd.f32 0.0, %v2825
        %2827 = vmatprep.mubr.bf16.mxu0 %v1077
        %2828 = vmatmul.mubr.bf16.gmra.mxu0 %v1076
        %v2829 = vpop.f32.mrf.mxu0
        %v2830 = vadd.f32 0.0, %v2829
        %v2831 = vpop.f32.mrf.mxu0
        %v2832 = vadd.f32 0.0, %v2831
        %v2833 = vpop.f32.mrf.mxu0
        %v2834 = vadd.f32 0.0, %v2833
        %v2835 = vpop.f32.mrf.mxu0
        %v2836 = vadd.f32 0.0, %v2835
        %2837 = vmatprep.mubr.bf16.mxu0 %v1081
        %2838 = vmatmul.mubr.bf16.gmra.mxu0 %v1080
        %v2839 = vpop.f32.mrf.mxu0
        %v2840 = vadd.f32 0.0, %v2839
        %v2841 = vpop.f32.mrf.mxu0
        %v2842 = vadd.f32 0.0, %v2841
        %v2843 = vpop.f32.mrf.mxu0
        %v2844 = vadd.f32 0.0, %v2843
        %v2845 = vpop.f32.mrf.mxu0
        %v2846 = vadd.f32 0.0, %v2845
        %2847 = vmatprep.mubr.bf16.mxu0 %v1085
        %2848 = vmatmul.mubr.bf16.gmra.mxu0 %v1084
        %v2849 = vpop.f32.mrf.mxu0
        %v2850 = vadd.f32 0.0, %v2849
        %v2851 = vpop.f32.mrf.mxu0
        %v2852 = vadd.f32 0.0, %v2851
        %v2853 = vpop.f32.mrf.mxu0
        %v2854 = vadd.f32 0.0, %v2853
        %v2855 = vpop.f32.mrf.mxu0
        %v2856 = vadd.f32 0.0, %v2855
        %2857 = vmatprep.mubr.bf16.mxu0 %v1089
        %2858 = vmatmul.mubr.bf16.gmra.mxu0 %v1088
        %v2859 = vpop.f32.mrf.mxu0
        %v2860 = vadd.f32 0.0, %v2859
        %v2861 = vpop.f32.mrf.mxu0
        %v2862 = vadd.f32 0.0, %v2861
        %v2863 = vpop.f32.mrf.mxu0
        %v2864 = vadd.f32 0.0, %v2863
        %v2865 = vpop.f32.mrf.mxu0
        %v2866 = vadd.f32 0.0, %v2865
        %2867 = vmatprep.mubr.bf16.mxu0 %v1093
        %2868 = vmatmul.mubr.bf16.gmra.mxu0 %v1092
        %v2869 = vpop.f32.mrf.mxu0
        %v2870 = vadd.f32 0.0, %v2869
        %v2871 = vpop.f32.mrf.mxu0
        %v2872 = vadd.f32 0.0, %v2871
        %v2873 = vpop.f32.mrf.mxu0
        %v2874 = vadd.f32 0.0, %v2873
        %v2875 = vpop.f32.mrf.mxu0
        %v2876 = vadd.f32 0.0, %v2875
        %2877 = vmatprep.mubr.bf16.mxu0 %v1097
        %2878 = vmatmul.mubr.bf16.gmra.mxu0 %v1096
        %v2879 = vpop.f32.mrf.mxu0
        %v2880 = vadd.f32 0.0, %v2879
        %v2881 = vpop.f32.mrf.mxu0
        %v2882 = vadd.f32 0.0, %v2881
        %v2883 = vpop.f32.mrf.mxu0
        %v2884 = vadd.f32 0.0, %v2883
        %v2885 = vpop.f32.mrf.mxu0
        %v2886 = vadd.f32 0.0, %v2885
        %2887 = vmatprep.mubr.bf16.mxu0 %v1101
        %2888 = vmatmul.mubr.bf16.gmra.mxu0 %v1100
        %v2889 = vpop.f32.mrf.mxu0
        %v2890 = vadd.f32 0.0, %v2889
        %v2891 = vpop.f32.mrf.mxu0
        %v2892 = vadd.f32 0.0, %v2891
        %v2893 = vpop.f32.mrf.mxu0
        %v2894 = vadd.f32 0.0, %v2893
        %v2895 = vpop.f32.mrf.mxu0
        %v2896 = vadd.f32 0.0, %v2895
        %2897 = vmatprep.mubr.bf16.mxu0 %v1105
        %2898 = vmatmul.mubr.bf16.gmra.mxu0 %v1104
        %v2899 = vpop.f32.mrf.mxu0
        %v2900 = vadd.f32 0.0, %v2899
        %v2901 = vpop.f32.mrf.mxu0
        %v2902 = vadd.f32 0.0, %v2901
        %v2903 = vpop.f32.mrf.mxu0
        %v2904 = vadd.f32 0.0, %v2903
        %v2905 = vpop.f32.mrf.mxu0
        %v2906 = vadd.f32 0.0, %v2905
        %2907 = vmatprep.mubr.bf16.mxu0 %v1109
        %2908 = vmatmul.mubr.bf16.gmra.mxu0 %v1108
        %v2909 = vpop.f32.mrf.mxu0
        %v2910 = vadd.f32 0.0, %v2909
        %v2911 = vpop.f32.mrf.mxu0
        %v2912 = vadd.f32 0.0, %v2911
        %v2913 = vpop.f32.mrf.mxu0
        %v2914 = vadd.f32 0.0, %v2913
        %v2915 = vpop.f32.mrf.mxu0
        %v2916 = vadd.f32 0.0, %v2915
        %2917 = vmatprep.mubr.bf16.mxu0 %v1113
        %2918 = vmatmul.mubr.bf16.gmra.mxu0 %v1112
        %v2919 = vpop.f32.mrf.mxu0
        %v2920 = vadd.f32 0.0, %v2919
        %v2921 = vpop.f32.mrf.mxu0
        %v2922 = vadd.f32 0.0, %v2921
        %v2923 = vpop.f32.mrf.mxu0
        %v2924 = vadd.f32 0.0, %v2923
        %v2925 = vpop.f32.mrf.mxu0
        %v2926 = vadd.f32 0.0, %v2925
        %2927 = vdwg.mxu0
        %2928 = vmatprep.subr.bf16.mxu0 %v1643
        %2929 = vmatpush1.bf16.msra.mxu0 %v1642
        %2930 = vmatprep.subr.bf16.mxu0 %v1639
        %2931 = vmatpush1.bf16.msra.mxu0 %v1638
        %2932 = vmatprep.subr.bf16.mxu0 %v1635
        %2933 = vmatpush1.bf16.msra.mxu0 %v1634
        %2934 = vmatprep.subr.bf16.mxu0 %v1631
        %2935 = vmatpush1.bf16.msra.mxu0 %v1630
        %2936 = vmatprep.subr.bf16.mxu0 %v1627
        %2937 = vmatpush1.bf16.msra.mxu0 %v1626
        %2938 = vmatprep.subr.bf16.mxu0 %v1623
        %2939 = vmatpush1.bf16.msra.mxu0 %v1622
        %2940 = vmatprep.subr.bf16.mxu0 %v1619
        %2941 = vmatpush1.bf16.msra.mxu0 %v1618
        %2942 = vmatprep.subr.bf16.mxu0 %v1615
        %2943 = vmatpush1.bf16.msra.mxu0 %v1614
        %2944 = vmatprep.subr.bf16.mxu0 0
        %2945 = vmatpush2.bf16.msra.mxu0 0
        %2946 = vmatprep.subr.bf16.mxu0 0
        %2947 = vmatpush2.bf16.msra.mxu0 0
        %2948 = vmatprep.subr.bf16.mxu0 0
        %2949 = vmatpush2.bf16.msra.mxu0 0
        %2950 = vmatprep.subr.bf16.mxu0 0
        %2951 = vmatpush2.bf16.msra.mxu0 0
        %2952 = vmatprep.subr.bf16.mxu0 %v1659
        %2953 = vmatpush2.bf16.msra.mxu0 %v1658
        %2954 = vmatprep.subr.bf16.mxu0 %v1655
        %2955 = vmatpush2.bf16.msra.mxu0 %v1654
        %2956 = vmatprep.subr.bf16.mxu0 %v1651
        %2957 = vmatpush2.bf16.msra.mxu0 %v1650
        %2958 = vmatprep.subr.bf16.mxu0 %v1647
        %2959 = vmatpush2.bf16.msra.mxu0 %v1646
        %2960 = vmatprep.mubr.bf16.mxu0 %v1774
        %2961 = vmatmul.mubr.bf16.gmra.mxu0 %v990
        %v2962 = vpop.f32.mrf.mxu0
        %v2963 = vadd.f32 %v2610, %v2962
        %v2964 = vpop.f32.mrf.mxu0
        %v2965 = vadd.f32 %v2612, %v2964
        %v2966 = vpop.f32.mrf.mxu0
        %v2967 = vadd.f32 %v2614, %v2966
        %v2968 = vpop.f32.mrf.mxu0
        %v2969 = vadd.f32 %v2616, %v2968
        %2970 = vmatprep.mubr.bf16.mxu0 %v1777
        %2971 = vmatmul.mubr.bf16.gmra.mxu0 %v994
        %v2972 = vpop.f32.mrf.mxu0
        %v2973 = vadd.f32 %v2620, %v2972
        %v2974 = vpop.f32.mrf.mxu0
        %v2975 = vadd.f32 %v2622, %v2974
        %v2976 = vpop.f32.mrf.mxu0
        %v2977 = vadd.f32 %v2624, %v2976
        %v2978 = vpop.f32.mrf.mxu0
        %v2979 = vadd.f32 %v2626, %v2978
        %2980 = vmatprep.mubr.bf16.mxu0 %v1780
        %2981 = vmatmul.mubr.bf16.gmra.mxu0 %v998
        %v2982 = vpop.f32.mrf.mxu0
        %v2983 = vadd.f32 %v2630, %v2982
        %v2984 = vpop.f32.mrf.mxu0
        %v2985 = vadd.f32 %v2632, %v2984
        %v2986 = vpop.f32.mrf.mxu0
        %v2987 = vadd.f32 %v2634, %v2986
        %v2988 = vpop.f32.mrf.mxu0
        %v2989 = vadd.f32 %v2636, %v2988
        %2990 = vmatprep.mubr.bf16.mxu0 %v1783
        %2991 = vmatmul.mubr.bf16.gmra.mxu0 %v1002
        %v2992 = vpop.f32.mrf.mxu0
        %v2993 = vadd.f32 %v2640, %v2992
        %v2994 = vpop.f32.mrf.mxu0
        %v2995 = vadd.f32 %v2642, %v2994
        %v2996 = vpop.f32.mrf.mxu0
        %v2997 = vadd.f32 %v2644, %v2996
        %v2998 = vpop.f32.mrf.mxu0
        %v2999 = vadd.f32 %v2646, %v2998
        %3000 = vmatprep.mubr.bf16.mxu0 %v1786
        %3001 = vmatmul.mubr.bf16.gmra.mxu0 %v1006
        %v3002 = vpop.f32.mrf.mxu0
        %v3003 = vadd.f32 %v2650, %v3002
        %v3004 = vpop.f32.mrf.mxu0
        %v3005 = vadd.f32 %v2652, %v3004
        %v3006 = vpop.f32.mrf.mxu0
        %v3007 = vadd.f32 %v2654, %v3006
        %v3008 = vpop.f32.mrf.mxu0
        %v3009 = vadd.f32 %v2656, %v3008
        %3010 = vmatprep.mubr.bf16.mxu0 %v1789
        %3011 = vmatmul.mubr.bf16.gmra.mxu0 %v1010
        %v3012 = vpop.f32.mrf.mxu0
        %v3013 = vadd.f32 %v2660, %v3012
        %v3014 = vpop.f32.mrf.mxu0
        %v3015 = vadd.f32 %v2662, %v3014
        %v3016 = vpop.f32.mrf.mxu0
        %v3017 = vadd.f32 %v2664, %v3016
        %v3018 = vpop.f32.mrf.mxu0
        %v3019 = vadd.f32 %v2666, %v3018
        %3020 = vmatprep.mubr.bf16.mxu0 %v1792
        %3021 = vmatmul.mubr.bf16.gmra.mxu0 %v1014
        %v3022 = vpop.f32.mrf.mxu0
        %v3023 = vadd.f32 %v2670, %v3022
        %v3024 = vpop.f32.mrf.mxu0
        %v3025 = vadd.f32 %v2672, %v3024
        %v3026 = vpop.f32.mrf.mxu0
        %v3027 = vadd.f32 %v2674, %v3026
        %v3028 = vpop.f32.mrf.mxu0
        %v3029 = vadd.f32 %v2676, %v3028
        %3030 = vmatprep.mubr.bf16.mxu0 %v1795
        %3031 = vmatmul.mubr.bf16.gmra.mxu0 %v1018
        %v3032 = vpop.f32.mrf.mxu0
        %v3033 = vadd.f32 %v2680, %v3032
        %v3034 = vpop.f32.mrf.mxu0
        %v3035 = vadd.f32 %v2682, %v3034
        %v3036 = vpop.f32.mrf.mxu0
        %v3037 = vadd.f32 %v2684, %v3036
        %v3038 = vpop.f32.mrf.mxu0
        %v3039 = vadd.f32 %v2686, %v3038
        %3040 = vmatprep.mubr.bf16.mxu0 %v1798
        %3041 = vmatmul.mubr.bf16.gmra.mxu0 %v1022
        %v3042 = vpop.f32.mrf.mxu0
        %v3043 = vadd.f32 %v2690, %v3042
        %v3044 = vpop.f32.mrf.mxu0
        %v3045 = vadd.f32 %v2692, %v3044
        %v3046 = vpop.f32.mrf.mxu0
        %v3047 = vadd.f32 %v2694, %v3046
        %v3048 = vpop.f32.mrf.mxu0
        %v3049 = vadd.f32 %v2696, %v3048
        %3050 = vmatprep.mubr.bf16.mxu0 %v1801
        %3051 = vmatmul.mubr.bf16.gmra.mxu0 %v1026
        %v3052 = vpop.f32.mrf.mxu0
        %v3053 = vadd.f32 %v2700, %v3052
        %v3054 = vpop.f32.mrf.mxu0
        %v3055 = vadd.f32 %v2702, %v3054
        %v3056 = vpop.f32.mrf.mxu0
        %v3057 = vadd.f32 %v2704, %v3056
        %v3058 = vpop.f32.mrf.mxu0
        %v3059 = vadd.f32 %v2706, %v3058
        %3060 = vmatprep.mubr.bf16.mxu0 %v1804
        %3061 = vmatmul.mubr.bf16.gmra.mxu0 %v1030
        %v3062 = vpop.f32.mrf.mxu0
        %v3063 = vadd.f32 %v2710, %v3062
        %v3064 = vpop.f32.mrf.mxu0
        %v3065 = vadd.f32 %v2712, %v3064
        %v3066 = vpop.f32.mrf.mxu0
        %v3067 = vadd.f32 %v2714, %v3066
        %v3068 = vpop.f32.mrf.mxu0
        %v3069 = vadd.f32 %v2716, %v3068
        %3070 = vmatprep.mubr.bf16.mxu0 %v1807
        %3071 = vmatmul.mubr.bf16.gmra.mxu0 %v1034
        %v3072 = vpop.f32.mrf.mxu0
        %v3073 = vadd.f32 %v2720, %v3072
        %v3074 = vpop.f32.mrf.mxu0
        %v3075 = vadd.f32 %v2722, %v3074
        %v3076 = vpop.f32.mrf.mxu0
        %v3077 = vadd.f32 %v2724, %v3076
        %v3078 = vpop.f32.mrf.mxu0
        %v3079 = vadd.f32 %v2726, %v3078
        %3080 = vmatprep.mubr.bf16.mxu0 %v1810
        %3081 = vmatmul.mubr.bf16.gmra.mxu0 %v1038
        %v3082 = vpop.f32.mrf.mxu0
        %v3083 = vadd.f32 %v2730, %v3082
        %v3084 = vpop.f32.mrf.mxu0
        %v3085 = vadd.f32 %v2732, %v3084
        %v3086 = vpop.f32.mrf.mxu0
        %v3087 = vadd.f32 %v2734, %v3086
        %v3088 = vpop.f32.mrf.mxu0
        %v3089 = vadd.f32 %v2736, %v3088
        %3090 = vmatprep.mubr.bf16.mxu0 %v1813
        %3091 = vmatmul.mubr.bf16.gmra.mxu0 %v1042
        %v3092 = vpop.f32.mrf.mxu0
        %v3093 = vadd.f32 %v2740, %v3092
        %v3094 = vpop.f32.mrf.mxu0
        %v3095 = vadd.f32 %v2742, %v3094
        %v3096 = vpop.f32.mrf.mxu0
        %v3097 = vadd.f32 %v2744, %v3096
        %v3098 = vpop.f32.mrf.mxu0
        %v3099 = vadd.f32 %v2746, %v3098
        %3100 = vmatprep.mubr.bf16.mxu0 %v1816
        %3101 = vmatmul.mubr.bf16.gmra.mxu0 %v1046
        %v3102 = vpop.f32.mrf.mxu0
        %v3103 = vadd.f32 %v2750, %v3102
        %v3104 = vpop.f32.mrf.mxu0
        %v3105 = vadd.f32 %v2752, %v3104
        %v3106 = vpop.f32.mrf.mxu0
        %v3107 = vadd.f32 %v2754, %v3106
        %v3108 = vpop.f32.mrf.mxu0
        %v3109 = vadd.f32 %v2756, %v3108
        %3110 = vmatprep.mubr.bf16.mxu0 %v1819
        %3111 = vmatmul.mubr.bf16.gmra.mxu0 %v1050
        %v3112 = vpop.f32.mrf.mxu0
        %v3113 = vadd.f32 %v2760, %v3112
        %v3114 = vpop.f32.mrf.mxu0
        %v3115 = vadd.f32 %v2762, %v3114
        %v3116 = vpop.f32.mrf.mxu0
        %v3117 = vadd.f32 %v2764, %v3116
        %v3118 = vpop.f32.mrf.mxu0
        %v3119 = vadd.f32 %v2766, %v3118
        %3120 = vmatprep.mubr.bf16.mxu0 %v1822
        %3121 = vmatmul.mubr.bf16.gmra.mxu0 %v1054
        %v3122 = vpop.f32.mrf.mxu0
        %v3123 = vadd.f32 %v2770, %v3122
        %v3124 = vpop.f32.mrf.mxu0
        %v3125 = vadd.f32 %v2772, %v3124
        %v3126 = vpop.f32.mrf.mxu0
        %v3127 = vadd.f32 %v2774, %v3126
        %v3128 = vpop.f32.mrf.mxu0
        %v3129 = vadd.f32 %v2776, %v3128
        %3130 = vmatprep.mubr.bf16.mxu0 %v1825
        %3131 = vmatmul.mubr.bf16.gmra.mxu0 %v1058
        %v3132 = vpop.f32.mrf.mxu0
        %v3133 = vadd.f32 %v2780, %v3132
        %v3134 = vpop.f32.mrf.mxu0
        %v3135 = vadd.f32 %v2782, %v3134
        %v3136 = vpop.f32.mrf.mxu0
        %v3137 = vadd.f32 %v2784, %v3136
        %v3138 = vpop.f32.mrf.mxu0
        %v3139 = vadd.f32 %v2786, %v3138
        %3140 = vmatprep.mubr.bf16.mxu0 %v1828
        %3141 = vmatmul.mubr.bf16.gmra.mxu0 %v1062
        %v3142 = vpop.f32.mrf.mxu0
        %v3143 = vadd.f32 %v2790, %v3142
        %v3144 = vpop.f32.mrf.mxu0
        %v3145 = vadd.f32 %v2792, %v3144
        %v3146 = vpop.f32.mrf.mxu0
        %v3147 = vadd.f32 %v2794, %v3146
        %v3148 = vpop.f32.mrf.mxu0
        %v3149 = vadd.f32 %v2796, %v3148
        %3150 = vmatprep.mubr.bf16.mxu0 %v1831
        %3151 = vmatmul.mubr.bf16.gmra.mxu0 %v1066
        %v3152 = vpop.f32.mrf.mxu0
        %v3153 = vadd.f32 %v2800, %v3152
        %v3154 = vpop.f32.mrf.mxu0
        %v3155 = vadd.f32 %v2802, %v3154
        %v3156 = vpop.f32.mrf.mxu0
        %v3157 = vadd.f32 %v2804, %v3156
        %v3158 = vpop.f32.mrf.mxu0
        %v3159 = vadd.f32 %v2806, %v3158
        %3160 = vmatprep.mubr.bf16.mxu0 %v1834
        %3161 = vmatmul.mubr.bf16.gmra.mxu0 %v1070
        %v3162 = vpop.f32.mrf.mxu0
        %v3163 = vadd.f32 %v2810, %v3162
        %v3164 = vpop.f32.mrf.mxu0
        %v3165 = vadd.f32 %v2812, %v3164
        %v3166 = vpop.f32.mrf.mxu0
        %v3167 = vadd.f32 %v2814, %v3166
        %v3168 = vpop.f32.mrf.mxu0
        %v3169 = vadd.f32 %v2816, %v3168
        %3170 = vmatprep.mubr.bf16.mxu0 %v1837
        %3171 = vmatmul.mubr.bf16.gmra.mxu0 %v1074
        %v3172 = vpop.f32.mrf.mxu0
        %v3173 = vadd.f32 %v2820, %v3172
        %v3174 = vpop.f32.mrf.mxu0
        %v3175 = vadd.f32 %v2822, %v3174
        %v3176 = vpop.f32.mrf.mxu0
        %v3177 = vadd.f32 %v2824, %v3176
        %v3178 = vpop.f32.mrf.mxu0
        %v3179 = vadd.f32 %v2826, %v3178
        %3180 = vmatprep.mubr.bf16.mxu0 %v1840
        %3181 = vmatmul.mubr.bf16.gmra.mxu0 %v1078
        %v3182 = vpop.f32.mrf.mxu0
        %v3183 = vadd.f32 %v2830, %v3182
        %v3184 = vpop.f32.mrf.mxu0
        %v3185 = vadd.f32 %v2832, %v3184
        %v3186 = vpop.f32.mrf.mxu0
        %v3187 = vadd.f32 %v2834, %v3186
        %v3188 = vpop.f32.mrf.mxu0
        %v3189 = vadd.f32 %v2836, %v3188
        %3190 = vmatprep.mubr.bf16.mxu0 %v1843
        %3191 = vmatmul.mubr.bf16.gmra.mxu0 %v1082
        %v3192 = vpop.f32.mrf.mxu0
        %v3193 = vadd.f32 %v2840, %v3192
        %v3194 = vpop.f32.mrf.mxu0
        %v3195 = vadd.f32 %v2842, %v3194
        %v3196 = vpop.f32.mrf.mxu0
        %v3197 = vadd.f32 %v2844, %v3196
        %v3198 = vpop.f32.mrf.mxu0
        %v3199 = vadd.f32 %v2846, %v3198
        %3200 = vmatprep.mubr.bf16.mxu0 %v1846
        %3201 = vmatmul.mubr.bf16.gmra.mxu0 %v1086
        %v3202 = vpop.f32.mrf.mxu0
        %v3203 = vadd.f32 %v2850, %v3202
        %v3204 = vpop.f32.mrf.mxu0
        %v3205 = vadd.f32 %v2852, %v3204
        %v3206 = vpop.f32.mrf.mxu0
        %v3207 = vadd.f32 %v2854, %v3206
        %v3208 = vpop.f32.mrf.mxu0
        %v3209 = vadd.f32 %v2856, %v3208
        %3210 = vmatprep.mubr.bf16.mxu0 %v1849
        %3211 = vmatmul.mubr.bf16.gmra.mxu0 %v1090
        %v3212 = vpop.f32.mrf.mxu0
        %v3213 = vadd.f32 %v2860, %v3212
        %v3214 = vpop.f32.mrf.mxu0
        %v3215 = vadd.f32 %v2862, %v3214
        %v3216 = vpop.f32.mrf.mxu0
        %v3217 = vadd.f32 %v2864, %v3216
        %v3218 = vpop.f32.mrf.mxu0
        %v3219 = vadd.f32 %v2866, %v3218
        %3220 = vmatprep.mubr.bf16.mxu0 %v1852
        %3221 = vmatmul.mubr.bf16.gmra.mxu0 %v1094
        %v3222 = vpop.f32.mrf.mxu0
        %v3223 = vadd.f32 %v2870, %v3222
        %v3224 = vpop.f32.mrf.mxu0
        %v3225 = vadd.f32 %v2872, %v3224
        %v3226 = vpop.f32.mrf.mxu0
        %v3227 = vadd.f32 %v2874, %v3226
        %v3228 = vpop.f32.mrf.mxu0
        %v3229 = vadd.f32 %v2876, %v3228
        %3230 = vmatprep.mubr.bf16.mxu0 %v1855
        %3231 = vmatmul.mubr.bf16.gmra.mxu0 %v1098
        %v3232 = vpop.f32.mrf.mxu0
        %v3233 = vadd.f32 %v2880, %v3232
        %v3234 = vpop.f32.mrf.mxu0
        %v3235 = vadd.f32 %v2882, %v3234
        %v3236 = vpop.f32.mrf.mxu0
        %v3237 = vadd.f32 %v2884, %v3236
        %v3238 = vpop.f32.mrf.mxu0
        %v3239 = vadd.f32 %v2886, %v3238
        %3240 = vmatprep.mubr.bf16.mxu0 %v1858
        %3241 = vmatmul.mubr.bf16.gmra.mxu0 %v1102
        %v3242 = vpop.f32.mrf.mxu0
        %v3243 = vadd.f32 %v2890, %v3242
        %v3244 = vpop.f32.mrf.mxu0
        %v3245 = vadd.f32 %v2892, %v3244
        %v3246 = vpop.f32.mrf.mxu0
        %v3247 = vadd.f32 %v2894, %v3246
        %v3248 = vpop.f32.mrf.mxu0
        %v3249 = vadd.f32 %v2896, %v3248
        %3250 = vmatprep.mubr.bf16.mxu0 %v1861
        %3251 = vmatmul.mubr.bf16.gmra.mxu0 %v1106
        %v3252 = vpop.f32.mrf.mxu0
        %v3253 = vadd.f32 %v2900, %v3252
        %v3254 = vpop.f32.mrf.mxu0
        %v3255 = vadd.f32 %v2902, %v3254
        %v3256 = vpop.f32.mrf.mxu0
        %v3257 = vadd.f32 %v2904, %v3256
        %v3258 = vpop.f32.mrf.mxu0
        %v3259 = vadd.f32 %v2906, %v3258
        %3260 = vmatprep.mubr.bf16.mxu0 %v1864
        %3261 = vmatmul.mubr.bf16.gmra.mxu0 %v1110
        %v3262 = vpop.f32.mrf.mxu0
        %v3263 = vadd.f32 %v2910, %v3262
        %v3264 = vpop.f32.mrf.mxu0
        %v3265 = vadd.f32 %v2912, %v3264
        %v3266 = vpop.f32.mrf.mxu0
        %v3267 = vadd.f32 %v2914, %v3266
        %v3268 = vpop.f32.mrf.mxu0
        %v3269 = vadd.f32 %v2916, %v3268
        %3270 = vmatprep.mubr.bf16.mxu0 %v1867
        %3271 = vmatmul.mubr.bf16.gmra.mxu0 %v1114
        %v3272 = vpop.f32.mrf.mxu0
        %v3273 = vadd.f32 %v2920, %v3272
        %v3274 = vpop.f32.mrf.mxu0
        %v3275 = vadd.f32 %v2922, %v3274
        %v3276 = vpop.f32.mrf.mxu0
        %v3277 = vadd.f32 %v2924, %v3276
        %v3278 = vpop.f32.mrf.mxu0
        %v3279 = vadd.f32 %v2926, %v3278
        %3280 = vdwg.mxu0
        %vm3281 = vcmp.ge.f32.partialorder %v2257, 0.0
        %vm3282 = vcmp.ge.f32.partialorder %v2259, 0.0
        %vm3283 = vcmp.ge.f32.partialorder %v2963, 0.0
        %vm3284 = vcmp.ge.f32.partialorder %v2965, 0.0
        %vm3285 = vcmp.ge.f32.partialorder %v2261, 0.0
        %vm3286 = vcmp.ge.f32.partialorder %v2263, 0.0
        %vm3287 = vcmp.ge.f32.partialorder %v2967, 0.0
        %vm3288 = vcmp.ge.f32.partialorder %v2969, 0.0
        %vm3289 = vcmp.ge.f32.partialorder %v2267, 0.0
        %vm3290 = vcmp.ge.f32.partialorder %v2269, 0.0
        %vm3291 = vcmp.ge.f32.partialorder %v2973, 0.0
        %vm3292 = vcmp.ge.f32.partialorder %v2975, 0.0
        %vm3293 = vcmp.ge.f32.partialorder %v2271, 0.0
        %vm3294 = vcmp.ge.f32.partialorder %v2273, 0.0
        %vm3295 = vcmp.ge.f32.partialorder %v2977, 0.0
        %vm3296 = vcmp.ge.f32.partialorder %v2979, 0.0
        %vm3297 = vcmp.ge.f32.partialorder %v2277, 0.0
        %vm3298 = vcmp.ge.f32.partialorder %v2279, 0.0
        %vm3299 = vcmp.ge.f32.partialorder %v2983, 0.0
        %vm3300 = vcmp.ge.f32.partialorder %v2985, 0.0
        %vm3301 = vcmp.ge.f32.partialorder %v2281, 0.0
        %vm3302 = vcmp.ge.f32.partialorder %v2283, 0.0
        %vm3303 = vcmp.ge.f32.partialorder %v2987, 0.0
        %vm3304 = vcmp.ge.f32.partialorder %v2989, 0.0
        %vm3305 = vcmp.ge.f32.partialorder %v2287, 0.0
        %vm3306 = vcmp.ge.f32.partialorder %v2289, 0.0
        %vm3307 = vcmp.ge.f32.partialorder %v2993, 0.0
        %vm3308 = vcmp.ge.f32.partialorder %v2995, 0.0
        %vm3309 = vcmp.ge.f32.partialorder %v2291, 0.0
        %vm3310 = vcmp.ge.f32.partialorder %v2293, 0.0
        %vm3311 = vcmp.ge.f32.partialorder %v2997, 0.0
        %vm3312 = vcmp.ge.f32.partialorder %v2999, 0.0
        %vm3313 = vcmp.ge.f32.partialorder %v2297, 0.0
        %vm3314 = vcmp.ge.f32.partialorder %v2299, 0.0
        %vm3315 = vcmp.ge.f32.partialorder %v3003, 0.0
        %vm3316 = vcmp.ge.f32.partialorder %v3005, 0.0
        %vm3317 = vcmp.ge.f32.partialorder %v2301, 0.0
        %vm3318 = vcmp.ge.f32.partialorder %v2303, 0.0
        %vm3319 = vcmp.ge.f32.partialorder %v3007, 0.0
        %vm3320 = vcmp.ge.f32.partialorder %v3009, 0.0
        %vm3321 = vcmp.ge.f32.partialorder %v2307, 0.0
        %vm3322 = vcmp.ge.f32.partialorder %v2309, 0.0
        %vm3323 = vcmp.ge.f32.partialorder %v3013, 0.0
        %vm3324 = vcmp.ge.f32.partialorder %v3015, 0.0
        %vm3325 = vcmp.ge.f32.partialorder %v2311, 0.0
        %vm3326 = vcmp.ge.f32.partialorder %v2313, 0.0
        %vm3327 = vcmp.ge.f32.partialorder %v3017, 0.0
        %vm3328 = vcmp.ge.f32.partialorder %v3019, 0.0
        %vm3329 = vcmp.ge.f32.partialorder %v2317, 0.0
        %vm3330 = vcmp.ge.f32.partialorder %v2319, 0.0
        %vm3331 = vcmp.ge.f32.partialorder %v3023, 0.0
        %vm3332 = vcmp.ge.f32.partialorder %v3025, 0.0
        %vm3333 = vcmp.ge.f32.partialorder %v2321, 0.0
        %vm3334 = vcmp.ge.f32.partialorder %v2323, 0.0
        %vm3335 = vcmp.ge.f32.partialorder %v3027, 0.0
        %vm3336 = vcmp.ge.f32.partialorder %v3029, 0.0
        %vm3337 = vcmp.ge.f32.partialorder %v2327, 0.0
        %vm3338 = vcmp.ge.f32.partialorder %v2329, 0.0
        %vm3339 = vcmp.ge.f32.partialorder %v3033, 0.0
        %vm3340 = vcmp.ge.f32.partialorder %v3035, 0.0
        %vm3341 = vcmp.ge.f32.partialorder %v2331, 0.0
        %vm3342 = vcmp.ge.f32.partialorder %v2333, 0.0
        %vm3343 = vcmp.ge.f32.partialorder %v3037, 0.0
        %vm3344 = vcmp.ge.f32.partialorder %v3039, 0.0
        %vm3345 = vcmp.ge.f32.partialorder %v2337, 0.0
        %vm3346 = vcmp.ge.f32.partialorder %v2339, 0.0
        %vm3347 = vcmp.ge.f32.partialorder %v3043, 0.0
        %vm3348 = vcmp.ge.f32.partialorder %v3045, 0.0
        %vm3349 = vcmp.ge.f32.partialorder %v2341, 0.0
        %vm3350 = vcmp.ge.f32.partialorder %v2343, 0.0
        %vm3351 = vcmp.ge.f32.partialorder %v3047, 0.0
        %vm3352 = vcmp.ge.f32.partialorder %v3049, 0.0
        %vm3353 = vcmp.ge.f32.partialorder %v2347, 0.0
        %vm3354 = vcmp.ge.f32.partialorder %v2349, 0.0
        %vm3355 = vcmp.ge.f32.partialorder %v3053, 0.0
        %vm3356 = vcmp.ge.f32.partialorder %v3055, 0.0
        %vm3357 = vcmp.ge.f32.partialorder %v2351, 0.0
        %vm3358 = vcmp.ge.f32.partialorder %v2353, 0.0
        %vm3359 = vcmp.ge.f32.partialorder %v3057, 0.0
        %vm3360 = vcmp.ge.f32.partialorder %v3059, 0.0
        %vm3361 = vcmp.ge.f32.partialorder %v2357, 0.0
        %vm3362 = vcmp.ge.f32.partialorder %v2359, 0.0
        %vm3363 = vcmp.ge.f32.partialorder %v3063, 0.0
        %vm3364 = vcmp.ge.f32.partialorder %v3065, 0.0
        %vm3365 = vcmp.ge.f32.partialorder %v2361, 0.0
        %vm3366 = vcmp.ge.f32.partialorder %v2363, 0.0
        %vm3367 = vcmp.ge.f32.partialorder %v3067, 0.0
        %vm3368 = vcmp.ge.f32.partialorder %v3069, 0.0
        %vm3369 = vcmp.ge.f32.partialorder %v2367, 0.0
        %vm3370 = vcmp.ge.f32.partialorder %v2369, 0.0
        %vm3371 = vcmp.ge.f32.partialorder %v3073, 0.0
        %vm3372 = vcmp.ge.f32.partialorder %v3075, 0.0
        %vm3373 = vcmp.ge.f32.partialorder %v2371, 0.0
        %vm3374 = vcmp.ge.f32.partialorder %v2373, 0.0
        %vm3375 = vcmp.ge.f32.partialorder %v3077, 0.0
        %vm3376 = vcmp.ge.f32.partialorder %v3079, 0.0
        %vm3377 = vcmp.ge.f32.partialorder %v2377, 0.0
        %vm3378 = vcmp.ge.f32.partialorder %v2379, 0.0
        %vm3379 = vcmp.ge.f32.partialorder %v3083, 0.0
        %vm3380 = vcmp.ge.f32.partialorder %v3085, 0.0
        %vm3381 = vcmp.ge.f32.partialorder %v2381, 0.0
        %vm3382 = vcmp.ge.f32.partialorder %v2383, 0.0
        %vm3383 = vcmp.ge.f32.partialorder %v3087, 0.0
        %vm3384 = vcmp.ge.f32.partialorder %v3089, 0.0
        %vm3385 = vcmp.ge.f32.partialorder %v2387, 0.0
        %vm3386 = vcmp.ge.f32.partialorder %v2389, 0.0
        %vm3387 = vcmp.ge.f32.partialorder %v3093, 0.0
        %vm3388 = vcmp.ge.f32.partialorder %v3095, 0.0
        %vm3389 = vcmp.ge.f32.partialorder %v2391, 0.0
        %vm3390 = vcmp.ge.f32.partialorder %v2393, 0.0
        %vm3391 = vcmp.ge.f32.partialorder %v3097, 0.0
        %vm3392 = vcmp.ge.f32.partialorder %v3099, 0.0
        %vm3393 = vcmp.ge.f32.partialorder %v2397, 0.0
        %vm3394 = vcmp.ge.f32.partialorder %v2399, 0.0
        %vm3395 = vcmp.ge.f32.partialorder %v3103, 0.0
        %vm3396 = vcmp.ge.f32.partialorder %v3105, 0.0
        %vm3397 = vcmp.ge.f32.partialorder %v2401, 0.0
        %vm3398 = vcmp.ge.f32.partialorder %v2403, 0.0
        %vm3399 = vcmp.ge.f32.partialorder %v3107, 0.0
        %vm3400 = vcmp.ge.f32.partialorder %v3109, 0.0
        %vm3401 = vcmp.ge.f32.partialorder %v2407, 0.0
        %vm3402 = vcmp.ge.f32.partialorder %v2409, 0.0
        %vm3403 = vcmp.ge.f32.partialorder %v3113, 0.0
        %vm3404 = vcmp.ge.f32.partialorder %v3115, 0.0
        %vm3405 = vcmp.ge.f32.partialorder %v2411, 0.0
        %vm3406 = vcmp.ge.f32.partialorder %v2413, 0.0
        %vm3407 = vcmp.ge.f32.partialorder %v3117, 0.0
        %vm3408 = vcmp.ge.f32.partialorder %v3119, 0.0
        %vm3409 = vcmp.ge.f32.partialorder %v2417, 0.0
        %vm3410 = vcmp.ge.f32.partialorder %v2419, 0.0
        %vm3411 = vcmp.ge.f32.partialorder %v3123, 0.0
        %vm3412 = vcmp.ge.f32.partialorder %v3125, 0.0
        %vm3413 = vcmp.ge.f32.partialorder %v2421, 0.0
        %vm3414 = vcmp.ge.f32.partialorder %v2423, 0.0
        %vm3415 = vcmp.ge.f32.partialorder %v3127, 0.0
        %vm3416 = vcmp.ge.f32.partialorder %v3129, 0.0
        %vm3417 = vcmp.ge.f32.partialorder %v2427, 0.0
        %vm3418 = vcmp.ge.f32.partialorder %v2429, 0.0
        %vm3419 = vcmp.ge.f32.partialorder %v3133, 0.0
        %vm3420 = vcmp.ge.f32.partialorder %v3135, 0.0
        %vm3421 = vcmp.ge.f32.partialorder %v2431, 0.0
        %vm3422 = vcmp.ge.f32.partialorder %v2433, 0.0
        %vm3423 = vcmp.ge.f32.partialorder %v3137, 0.0
        %vm3424 = vcmp.ge.f32.partialorder %v3139, 0.0
        %vm3425 = vcmp.ge.f32.partialorder %v2437, 0.0
        %vm3426 = vcmp.ge.f32.partialorder %v2439, 0.0
        %vm3427 = vcmp.ge.f32.partialorder %v3143, 0.0
        %vm3428 = vcmp.ge.f32.partialorder %v3145, 0.0
        %vm3429 = vcmp.ge.f32.partialorder %v2441, 0.0
        %vm3430 = vcmp.ge.f32.partialorder %v2443, 0.0
        %vm3431 = vcmp.ge.f32.partialorder %v3147, 0.0
        %vm3432 = vcmp.ge.f32.partialorder %v3149, 0.0
        %vm3433 = vcmp.ge.f32.partialorder %v2447, 0.0
        %vm3434 = vcmp.ge.f32.partialorder %v2449, 0.0
        %vm3435 = vcmp.ge.f32.partialorder %v3153, 0.0
        %vm3436 = vcmp.ge.f32.partialorder %v3155, 0.0
        %vm3437 = vcmp.ge.f32.partialorder %v2451, 0.0
        %vm3438 = vcmp.ge.f32.partialorder %v2453, 0.0
        %vm3439 = vcmp.ge.f32.partialorder %v3157, 0.0
        %vm3440 = vcmp.ge.f32.partialorder %v3159, 0.0
        %vm3441 = vcmp.ge.f32.partialorder %v2457, 0.0
        %vm3442 = vcmp.ge.f32.partialorder %v2459, 0.0
        %vm3443 = vcmp.ge.f32.partialorder %v3163, 0.0
        %vm3444 = vcmp.ge.f32.partialorder %v3165, 0.0
        %vm3445 = vcmp.ge.f32.partialorder %v2461, 0.0
        %vm3446 = vcmp.ge.f32.partialorder %v2463, 0.0
        %vm3447 = vcmp.ge.f32.partialorder %v3167, 0.0
        %vm3448 = vcmp.ge.f32.partialorder %v3169, 0.0
        %vm3449 = vcmp.ge.f32.partialorder %v2467, 0.0
        %vm3450 = vcmp.ge.f32.partialorder %v2469, 0.0
        %vm3451 = vcmp.ge.f32.partialorder %v3173, 0.0
        %vm3452 = vcmp.ge.f32.partialorder %v3175, 0.0
        %vm3453 = vcmp.ge.f32.partialorder %v2471, 0.0
        %vm3454 = vcmp.ge.f32.partialorder %v2473, 0.0
        %vm3455 = vcmp.ge.f32.partialorder %v3177, 0.0
        %vm3456 = vcmp.ge.f32.partialorder %v3179, 0.0
        %vm3457 = vcmp.ge.f32.partialorder %v2477, 0.0
        %vm3458 = vcmp.ge.f32.partialorder %v2479, 0.0
        %vm3459 = vcmp.ge.f32.partialorder %v3183, 0.0
        %vm3460 = vcmp.ge.f32.partialorder %v3185, 0.0
        %vm3461 = vcmp.ge.f32.partialorder %v2481, 0.0
        %vm3462 = vcmp.ge.f32.partialorder %v2483, 0.0
        %vm3463 = vcmp.ge.f32.partialorder %v3187, 0.0
        %vm3464 = vcmp.ge.f32.partialorder %v3189, 0.0
        %vm3465 = vcmp.ge.f32.partialorder %v2487, 0.0
        %vm3466 = vcmp.ge.f32.partialorder %v2489, 0.0
        %vm3467 = vcmp.ge.f32.partialorder %v3193, 0.0
        %vm3468 = vcmp.ge.f32.partialorder %v3195, 0.0
        %vm3469 = vcmp.ge.f32.partialorder %v2491, 0.0
        %vm3470 = vcmp.ge.f32.partialorder %v2493, 0.0
        %vm3471 = vcmp.ge.f32.partialorder %v3197, 0.0
        %vm3472 = vcmp.ge.f32.partialorder %v3199, 0.0
        %vm3473 = vcmp.ge.f32.partialorder %v2497, 0.0
        %vm3474 = vcmp.ge.f32.partialorder %v2499, 0.0
        %vm3475 = vcmp.ge.f32.partialorder %v3203, 0.0
        %vm3476 = vcmp.ge.f32.partialorder %v3205, 0.0
        %vm3477 = vcmp.ge.f32.partialorder %v2501, 0.0
        %vm3478 = vcmp.ge.f32.partialorder %v2503, 0.0
        %vm3479 = vcmp.ge.f32.partialorder %v3207, 0.0
        %vm3480 = vcmp.ge.f32.partialorder %v3209, 0.0
        %vm3481 = vcmp.ge.f32.partialorder %v2507, 0.0
        %vm3482 = vcmp.ge.f32.partialorder %v2509, 0.0
        %vm3483 = vcmp.ge.f32.partialorder %v3213, 0.0
        %vm3484 = vcmp.ge.f32.partialorder %v3215, 0.0
        %vm3485 = vcmp.ge.f32.partialorder %v2511, 0.0
        %vm3486 = vcmp.ge.f32.partialorder %v2513, 0.0
        %vm3487 = vcmp.ge.f32.partialorder %v3217, 0.0
        %vm3488 = vcmp.ge.f32.partialorder %v3219, 0.0
        %vm3489 = vcmp.ge.f32.partialorder %v2517, 0.0
        %vm3490 = vcmp.ge.f32.partialorder %v2519, 0.0
        %vm3491 = vcmp.ge.f32.partialorder %v3223, 0.0
        %vm3492 = vcmp.ge.f32.partialorder %v3225, 0.0
        %vm3493 = vcmp.ge.f32.partialorder %v2521, 0.0
        %vm3494 = vcmp.ge.f32.partialorder %v2523, 0.0
        %vm3495 = vcmp.ge.f32.partialorder %v3227, 0.0
        %vm3496 = vcmp.ge.f32.partialorder %v3229, 0.0
        %vm3497 = vcmp.ge.f32.partialorder %v2527, 0.0
        %vm3498 = vcmp.ge.f32.partialorder %v2529, 0.0
        %vm3499 = vcmp.ge.f32.partialorder %v3233, 0.0
        %vm3500 = vcmp.ge.f32.partialorder %v3235, 0.0
        %vm3501 = vcmp.ge.f32.partialorder %v2531, 0.0
        %vm3502 = vcmp.ge.f32.partialorder %v2533, 0.0
        %vm3503 = vcmp.ge.f32.partialorder %v3237, 0.0
        %vm3504 = vcmp.ge.f32.partialorder %v3239, 0.0
        %vm3505 = vcmp.ge.f32.partialorder %v2537, 0.0
        %vm3506 = vcmp.ge.f32.partialorder %v2539, 0.0
        %vm3507 = vcmp.ge.f32.partialorder %v3243, 0.0
        %vm3508 = vcmp.ge.f32.partialorder %v3245, 0.0
        %vm3509 = vcmp.ge.f32.partialorder %v2541, 0.0
        %vm3510 = vcmp.ge.f32.partialorder %v2543, 0.0
        %vm3511 = vcmp.ge.f32.partialorder %v3247, 0.0
        %vm3512 = vcmp.ge.f32.partialorder %v3249, 0.0
        %vm3513 = vcmp.ge.f32.partialorder %v2547, 0.0
        %vm3514 = vcmp.ge.f32.partialorder %v2549, 0.0
        %vm3515 = vcmp.ge.f32.partialorder %v3253, 0.0
        %vm3516 = vcmp.ge.f32.partialorder %v3255, 0.0
        %vm3517 = vcmp.ge.f32.partialorder %v2551, 0.0
        %vm3518 = vcmp.ge.f32.partialorder %v2553, 0.0
        %vm3519 = vcmp.ge.f32.partialorder %v3257, 0.0
        %vm3520 = vcmp.ge.f32.partialorder %v3259, 0.0
        %vm3521 = vcmp.ge.f32.partialorder %v2557, 0.0
        %vm3522 = vcmp.ge.f32.partialorder %v2559, 0.0
        %vm3523 = vcmp.ge.f32.partialorder %v3263, 0.0
        %vm3524 = vcmp.ge.f32.partialorder %v3265, 0.0
        %vm3525 = vcmp.ge.f32.partialorder %v2561, 0.0
        %vm3526 = vcmp.ge.f32.partialorder %v2563, 0.0
        %vm3527 = vcmp.ge.f32.partialorder %v3267, 0.0
        %vm3528 = vcmp.ge.f32.partialorder %v3269, 0.0
        %vm3529 = vcmp.ge.f32.partialorder %v2567, 0.0
        %vm3530 = vcmp.ge.f32.partialorder %v2569, 0.0
        %vm3531 = vcmp.ge.f32.partialorder %v3273, 0.0
        %vm3532 = vcmp.ge.f32.partialorder %v3275, 0.0
        %vm3533 = vcmp.ge.f32.partialorder %v2571, 0.0
        %vm3534 = vcmp.ge.f32.partialorder %v2573, 0.0
        %vm3535 = vcmp.ge.f32.partialorder %v3277, 0.0
        %vm3536 = vcmp.ge.f32.partialorder %v3279, 0.0
        %v3537 = vmul.f32 %v2257, 0.01
        %v3538 = vmul.f32 %v2259, 0.01
        %v3539 = vmul.f32 %v2963, 0.01
        %v3540 = vmul.f32 %v2965, 0.01
        %v3541 = vmul.f32 %v2261, 0.01
        %v3542 = vmul.f32 %v2263, 0.01
        %v3543 = vmul.f32 %v2967, 0.01
        %v3544 = vmul.f32 %v2969, 0.01
        %v3545 = vmul.f32 %v2267, 0.01
        %v3546 = vmul.f32 %v2269, 0.01
        %v3547 = vmul.f32 %v2973, 0.01
        %v3548 = vmul.f32 %v2975, 0.01
        %v3549 = vmul.f32 %v2271, 0.01
        %v3550 = vmul.f32 %v2273, 0.01
        %v3551 = vmul.f32 %v2977, 0.01
        %v3552 = vmul.f32 %v2979, 0.01
        %v3553 = vmul.f32 %v2277, 0.01
        %v3554 = vmul.f32 %v2279, 0.01
        %v3555 = vmul.f32 %v2983, 0.01
        %v3556 = vmul.f32 %v2985, 0.01
        %v3557 = vmul.f32 %v2281, 0.01
        %v3558 = vmul.f32 %v2283, 0.01
        %v3559 = vmul.f32 %v2987, 0.01
        %v3560 = vmul.f32 %v2989, 0.01
        %v3561 = vmul.f32 %v2287, 0.01
        %v3562 = vmul.f32 %v2289, 0.01
        %v3563 = vmul.f32 %v2993, 0.01
        %v3564 = vmul.f32 %v2995, 0.01
        %v3565 = vmul.f32 %v2291, 0.01
        %v3566 = vmul.f32 %v2293, 0.01
        %v3567 = vmul.f32 %v2997, 0.01
        %v3568 = vmul.f32 %v2999, 0.01
        %v3569 = vmul.f32 %v2297, 0.01
        %v3570 = vmul.f32 %v2299, 0.01
        %v3571 = vmul.f32 %v3003, 0.01
        %v3572 = vmul.f32 %v3005, 0.01
        %v3573 = vmul.f32 %v2301, 0.01
        %v3574 = vmul.f32 %v2303, 0.01
        %v3575 = vmul.f32 %v3007, 0.01
        %v3576 = vmul.f32 %v3009, 0.01
        %v3577 = vmul.f32 %v2307, 0.01
        %v3578 = vmul.f32 %v2309, 0.01
        %v3579 = vmul.f32 %v3013, 0.01
        %v3580 = vmul.f32 %v3015, 0.01
        %v3581 = vmul.f32 %v2311, 0.01
        %v3582 = vmul.f32 %v2313, 0.01
        %v3583 = vmul.f32 %v3017, 0.01
        %v3584 = vmul.f32 %v3019, 0.01
        %v3585 = vmul.f32 %v2317, 0.01
        %v3586 = vmul.f32 %v2319, 0.01
        %v3587 = vmul.f32 %v3023, 0.01
        %v3588 = vmul.f32 %v3025, 0.01
        %v3589 = vmul.f32 %v2321, 0.01
        %v3590 = vmul.f32 %v2323, 0.01
        %v3591 = vmul.f32 %v3027, 0.01
        %v3592 = vmul.f32 %v3029, 0.01
        %v3593 = vmul.f32 %v2327, 0.01
        %v3594 = vmul.f32 %v2329, 0.01
        %v3595 = vmul.f32 %v3033, 0.01
        %v3596 = vmul.f32 %v3035, 0.01
        %v3597 = vmul.f32 %v2331, 0.01
        %v3598 = vmul.f32 %v2333, 0.01
        %v3599 = vmul.f32 %v3037, 0.01
        %v3600 = vmul.f32 %v3039, 0.01
        %v3601 = vmul.f32 %v2337, 0.01
        %v3602 = vmul.f32 %v2339, 0.01
        %v3603 = vmul.f32 %v3043, 0.01
        %v3604 = vmul.f32 %v3045, 0.01
        %v3605 = vmul.f32 %v2341, 0.01
        %v3606 = vmul.f32 %v2343, 0.01
        %v3607 = vmul.f32 %v3047, 0.01
        %v3608 = vmul.f32 %v3049, 0.01
        %v3609 = vmul.f32 %v2347, 0.01
        %v3610 = vmul.f32 %v2349, 0.01
        %v3611 = vmul.f32 %v3053, 0.01
        %v3612 = vmul.f32 %v3055, 0.01
        %v3613 = vmul.f32 %v2351, 0.01
        %v3614 = vmul.f32 %v2353, 0.01
        %v3615 = vmul.f32 %v3057, 0.01
        %v3616 = vmul.f32 %v3059, 0.01
        %v3617 = vmul.f32 %v2357, 0.01
        %v3618 = vmul.f32 %v2359, 0.01
        %v3619 = vmul.f32 %v3063, 0.01
        %v3620 = vmul.f32 %v3065, 0.01
        %v3621 = vmul.f32 %v2361, 0.01
        %v3622 = vmul.f32 %v2363, 0.01
        %v3623 = vmul.f32 %v3067, 0.01
        %v3624 = vmul.f32 %v3069, 0.01
        %v3625 = vmul.f32 %v2367, 0.01
        %v3626 = vmul.f32 %v2369, 0.01
        %v3627 = vmul.f32 %v3073, 0.01
        %v3628 = vmul.f32 %v3075, 0.01
        %v3629 = vmul.f32 %v2371, 0.01
        %v3630 = vmul.f32 %v2373, 0.01
        %v3631 = vmul.f32 %v3077, 0.01
        %v3632 = vmul.f32 %v3079, 0.01
        %v3633 = vmul.f32 %v2377, 0.01
        %v3634 = vmul.f32 %v2379, 0.01
        %v3635 = vmul.f32 %v3083, 0.01
        %v3636 = vmul.f32 %v3085, 0.01
        %v3637 = vmul.f32 %v2381, 0.01
        %v3638 = vmul.f32 %v2383, 0.01
        %v3639 = vmul.f32 %v3087, 0.01
        %v3640 = vmul.f32 %v3089, 0.01
        %v3641 = vmul.f32 %v2387, 0.01
        %v3642 = vmul.f32 %v2389, 0.01
        %v3643 = vmul.f32 %v3093, 0.01
        %v3644 = vmul.f32 %v3095, 0.01
        %v3645 = vmul.f32 %v2391, 0.01
        %v3646 = vmul.f32 %v2393, 0.01
        %v3647 = vmul.f32 %v3097, 0.01
        %v3648 = vmul.f32 %v3099, 0.01
        %v3649 = vmul.f32 %v2397, 0.01
        %v3650 = vmul.f32 %v2399, 0.01
        %v3651 = vmul.f32 %v3103, 0.01
        %v3652 = vmul.f32 %v3105, 0.01
        %v3653 = vmul.f32 %v2401, 0.01
        %v3654 = vmul.f32 %v2403, 0.01
        %v3655 = vmul.f32 %v3107, 0.01
        %v3656 = vmul.f32 %v3109, 0.01
        %v3657 = vmul.f32 %v2407, 0.01
        %v3658 = vmul.f32 %v2409, 0.01
        %v3659 = vmul.f32 %v3113, 0.01
        %v3660 = vmul.f32 %v3115, 0.01
        %v3661 = vmul.f32 %v2411, 0.01
        %v3662 = vmul.f32 %v2413, 0.01
        %v3663 = vmul.f32 %v3117, 0.01
        %v3664 = vmul.f32 %v3119, 0.01
        %v3665 = vmul.f32 %v2417, 0.01
        %v3666 = vmul.f32 %v2419, 0.01
        %v3667 = vmul.f32 %v3123, 0.01
        %v3668 = vmul.f32 %v3125, 0.01
        %v3669 = vmul.f32 %v2421, 0.01
        %v3670 = vmul.f32 %v2423, 0.01
        %v3671 = vmul.f32 %v3127, 0.01
        %v3672 = vmul.f32 %v3129, 0.01
        %v3673 = vmul.f32 %v2427, 0.01
        %v3674 = vmul.f32 %v2429, 0.01
        %v3675 = vmul.f32 %v3133, 0.01
        %v3676 = vmul.f32 %v3135, 0.01
        %v3677 = vmul.f32 %v2431, 0.01
        %v3678 = vmul.f32 %v2433, 0.01
        %v3679 = vmul.f32 %v3137, 0.01
        %v3680 = vmul.f32 %v3139, 0.01
        %v3681 = vmul.f32 %v2437, 0.01
        %v3682 = vmul.f32 %v2439, 0.01
        %v3683 = vmul.f32 %v3143, 0.01
        %v3684 = vmul.f32 %v3145, 0.01
        %v3685 = vmul.f32 %v2441, 0.01
        %v3686 = vmul.f32 %v2443, 0.01
        %v3687 = vmul.f32 %v3147, 0.01
        %v3688 = vmul.f32 %v3149, 0.01
        %v3689 = vmul.f32 %v2447, 0.01
        %v3690 = vmul.f32 %v2449, 0.01
        %v3691 = vmul.f32 %v3153, 0.01
        %v3692 = vmul.f32 %v3155, 0.01
        %v3693 = vmul.f32 %v2451, 0.01
        %v3694 = vmul.f32 %v2453, 0.01
        %v3695 = vmul.f32 %v3157, 0.01
        %v3696 = vmul.f32 %v3159, 0.01
        %v3697 = vmul.f32 %v2457, 0.01
        %v3698 = vmul.f32 %v2459, 0.01
        %v3699 = vmul.f32 %v3163, 0.01
        %v3700 = vmul.f32 %v3165, 0.01
        %v3701 = vmul.f32 %v2461, 0.01
        %v3702 = vmul.f32 %v2463, 0.01
        %v3703 = vmul.f32 %v3167, 0.01
        %v3704 = vmul.f32 %v3169, 0.01
        %v3705 = vmul.f32 %v2467, 0.01
        %v3706 = vmul.f32 %v2469, 0.01
        %v3707 = vmul.f32 %v3173, 0.01
        %v3708 = vmul.f32 %v3175, 0.01
        %v3709 = vmul.f32 %v2471, 0.01
        %v3710 = vmul.f32 %v2473, 0.01
        %v3711 = vmul.f32 %v3177, 0.01
        %v3712 = vmul.f32 %v3179, 0.01
        %v3713 = vmul.f32 %v2477, 0.01
        %v3714 = vmul.f32 %v2479, 0.01
        %v3715 = vmul.f32 %v3183, 0.01
        %v3716 = vmul.f32 %v3185, 0.01
        %v3717 = vmul.f32 %v2481, 0.01
        %v3718 = vmul.f32 %v2483, 0.01
        %v3719 = vmul.f32 %v3187, 0.01
        %v3720 = vmul.f32 %v3189, 0.01
        %v3721 = vmul.f32 %v2487, 0.01
        %v3722 = vmul.f32 %v2489, 0.01
        %v3723 = vmul.f32 %v3193, 0.01
        %v3724 = vmul.f32 %v3195, 0.01
        %v3725 = vmul.f32 %v2491, 0.01
        %v3726 = vmul.f32 %v2493, 0.01
        %v3727 = vmul.f32 %v3197, 0.01
        %v3728 = vmul.f32 %v3199, 0.01
        %v3729 = vmul.f32 %v2497, 0.01
        %v3730 = vmul.f32 %v2499, 0.01
        %v3731 = vmul.f32 %v3203, 0.01
        %v3732 = vmul.f32 %v3205, 0.01
        %v3733 = vmul.f32 %v2501, 0.01
        %v3734 = vmul.f32 %v2503, 0.01
        %v3735 = vmul.f32 %v3207, 0.01
        %v3736 = vmul.f32 %v3209, 0.01
        %v3737 = vmul.f32 %v2507, 0.01
        %v3738 = vmul.f32 %v2509, 0.01
        %v3739 = vmul.f32 %v3213, 0.01
        %v3740 = vmul.f32 %v3215, 0.01
        %v3741 = vmul.f32 %v2511, 0.01
        %v3742 = vmul.f32 %v2513, 0.01
        %v3743 = vmul.f32 %v3217, 0.01
        %v3744 = vmul.f32 %v3219, 0.01
        %v3745 = vmul.f32 %v2517, 0.01
        %v3746 = vmul.f32 %v2519, 0.01
        %v3747 = vmul.f32 %v3223, 0.01
        %v3748 = vmul.f32 %v3225, 0.01
        %v3749 = vmul.f32 %v2521, 0.01
        %v3750 = vmul.f32 %v2523, 0.01
        %v3751 = vmul.f32 %v3227, 0.01
        %v3752 = vmul.f32 %v3229, 0.01
        %v3753 = vmul.f32 %v2527, 0.01
        %v3754 = vmul.f32 %v2529, 0.01
        %v3755 = vmul.f32 %v3233, 0.01
        %v3756 = vmul.f32 %v3235, 0.01
        %v3757 = vmul.f32 %v2531, 0.01
        %v3758 = vmul.f32 %v2533, 0.01
        %v3759 = vmul.f32 %v3237, 0.01
        %v3760 = vmul.f32 %v3239, 0.01
        %v3761 = vmul.f32 %v2537, 0.01
        %v3762 = vmul.f32 %v2539, 0.01
        %v3763 = vmul.f32 %v3243, 0.01
        %v3764 = vmul.f32 %v3245, 0.01
        %v3765 = vmul.f32 %v2541, 0.01
        %v3766 = vmul.f32 %v2543, 0.01
        %v3767 = vmul.f32 %v3247, 0.01
        %v3768 = vmul.f32 %v3249, 0.01
        %v3769 = vmul.f32 %v2547, 0.01
        %v3770 = vmul.f32 %v2549, 0.01
        %v3771 = vmul.f32 %v3253, 0.01
        %v3772 = vmul.f32 %v3255, 0.01
        %v3773 = vmul.f32 %v2551, 0.01
        %v3774 = vmul.f32 %v2553, 0.01
        %v3775 = vmul.f32 %v3257, 0.01
        %v3776 = vmul.f32 %v3259, 0.01
        %v3777 = vmul.f32 %v2557, 0.01
        %v3778 = vmul.f32 %v2559, 0.01
        %v3779 = vmul.f32 %v3263, 0.01
        %v3780 = vmul.f32 %v3265, 0.01
        %v3781 = vmul.f32 %v2561, 0.01
        %v3782 = vmul.f32 %v2563, 0.01
        %v3783 = vmul.f32 %v3267, 0.01
        %v3784 = vmul.f32 %v3269, 0.01
        %v3785 = vmul.f32 %v2567, 0.01
        %v3786 = vmul.f32 %v2569, 0.01
        %v3787 = vmul.f32 %v3273, 0.01
        %v3788 = vmul.f32 %v3275, 0.01
        %v3789 = vmul.f32 %v2571, 0.01
        %v3790 = vmul.f32 %v2573, 0.01
        %v3791 = vmul.f32 %v3277, 0.01
        %v3792 = vmul.f32 %v3279, 0.01
        %v3793 = vsel %vm3281, %v2257, %v3537
        %v3794 = vsel %vm3282, %v2259, %v3538
        %v3795 = vsel %vm3283, %v2963, %v3539
        %v3796 = vsel %vm3284, %v2965, %v3540
        %v3797 = vsel %vm3285, %v2261, %v3541
        %v3798 = vsel %vm3286, %v2263, %v3542
        %v3799 = vsel %vm3287, %v2967, %v3543
        %v3800 = vsel %vm3288, %v2969, %v3544
        %v3801 = vsel %vm3289, %v2267, %v3545
        %v3802 = vsel %vm3290, %v2269, %v3546
        %v3803 = vsel %vm3291, %v2973, %v3547
        %v3804 = vsel %vm3292, %v2975, %v3548
        %v3805 = vsel %vm3293, %v2271, %v3549
        %v3806 = vsel %vm3294, %v2273, %v3550
        %v3807 = vsel %vm3295, %v2977, %v3551
        %v3808 = vsel %vm3296, %v2979, %v3552
        %v3809 = vsel %vm3297, %v2277, %v3553
        %v3810 = vsel %vm3298, %v2279, %v3554
        %v3811 = vsel %vm3299, %v2983, %v3555
        %v3812 = vsel %vm3300, %v2985, %v3556
        %v3813 = vsel %vm3301, %v2281, %v3557
        %v3814 = vsel %vm3302, %v2283, %v3558
        %v3815 = vsel %vm3303, %v2987, %v3559
        %v3816 = vsel %vm3304, %v2989, %v3560
        %v3817 = vsel %vm3305, %v2287, %v3561
        %v3818 = vsel %vm3306, %v2289, %v3562
        %v3819 = vsel %vm3307, %v2993, %v3563
        %v3820 = vsel %vm3308, %v2995, %v3564
        %v3821 = vsel %vm3309, %v2291, %v3565
        %v3822 = vsel %vm3310, %v2293, %v3566
        %v3823 = vsel %vm3311, %v2997, %v3567
        %v3824 = vsel %vm3312, %v2999, %v3568
        %v3825 = vsel %vm3313, %v2297, %v3569
        %v3826 = vsel %vm3314, %v2299, %v3570
        %v3827 = vsel %vm3315, %v3003, %v3571
        %v3828 = vsel %vm3316, %v3005, %v3572
        %v3829 = vsel %vm3317, %v2301, %v3573
        %v3830 = vsel %vm3318, %v2303, %v3574
        %v3831 = vsel %vm3319, %v3007, %v3575
        %v3832 = vsel %vm3320, %v3009, %v3576
        %v3833 = vsel %vm3321, %v2307, %v3577
        %v3834 = vsel %vm3322, %v2309, %v3578
        %v3835 = vsel %vm3323, %v3013, %v3579
        %v3836 = vsel %vm3324, %v3015, %v3580
        %v3837 = vsel %vm3325, %v2311, %v3581
        %v3838 = vsel %vm3326, %v2313, %v3582
        %v3839 = vsel %vm3327, %v3017, %v3583
        %v3840 = vsel %vm3328, %v3019, %v3584
        %v3841 = vsel %vm3329, %v2317, %v3585
        %v3842 = vsel %vm3330, %v2319, %v3586
        %v3843 = vsel %vm3331, %v3023, %v3587
        %v3844 = vsel %vm3332, %v3025, %v3588
        %v3845 = vsel %vm3333, %v2321, %v3589
        %v3846 = vsel %vm3334, %v2323, %v3590
        %v3847 = vsel %vm3335, %v3027, %v3591
        %v3848 = vsel %vm3336, %v3029, %v3592
        %v3849 = vsel %vm3337, %v2327, %v3593
        %v3850 = vsel %vm3338, %v2329, %v3594
        %v3851 = vsel %vm3339, %v3033, %v3595
        %v3852 = vsel %vm3340, %v3035, %v3596
        %v3853 = vsel %vm3341, %v2331, %v3597
        %v3854 = vsel %vm3342, %v2333, %v3598
        %v3855 = vsel %vm3343, %v3037, %v3599
        %v3856 = vsel %vm3344, %v3039, %v3600
        %v3857 = vsel %vm3345, %v2337, %v3601
        %v3858 = vsel %vm3346, %v2339, %v3602
        %v3859 = vsel %vm3347, %v3043, %v3603
        %v3860 = vsel %vm3348, %v3045, %v3604
        %v3861 = vsel %vm3349, %v2341, %v3605
        %v3862 = vsel %vm3350, %v2343, %v3606
        %v3863 = vsel %vm3351, %v3047, %v3607
        %v3864 = vsel %vm3352, %v3049, %v3608
        %v3865 = vsel %vm3353, %v2347, %v3609
        %v3866 = vsel %vm3354, %v2349, %v3610
        %v3867 = vsel %vm3355, %v3053, %v3611
        %v3868 = vsel %vm3356, %v3055, %v3612
        %v3869 = vsel %vm3357, %v2351, %v3613
        %v3870 = vsel %vm3358, %v2353, %v3614
        %v3871 = vsel %vm3359, %v3057, %v3615
        %v3872 = vsel %vm3360, %v3059, %v3616
        %v3873 = vsel %vm3361, %v2357, %v3617
        %v3874 = vsel %vm3362, %v2359, %v3618
        %v3875 = vsel %vm3363, %v3063, %v3619
        %v3876 = vsel %vm3364, %v3065, %v3620
        %v3877 = vsel %vm3365, %v2361, %v3621
        %v3878 = vsel %vm3366, %v2363, %v3622
        %v3879 = vsel %vm3367, %v3067, %v3623
        %v3880 = vsel %vm3368, %v3069, %v3624
        %v3881 = vsel %vm3369, %v2367, %v3625
        %v3882 = vsel %vm3370, %v2369, %v3626
        %v3883 = vsel %vm3371, %v3073, %v3627
        %v3884 = vsel %vm3372, %v3075, %v3628
        %v3885 = vsel %vm3373, %v2371, %v3629
        %v3886 = vsel %vm3374, %v2373, %v3630
        %v3887 = vsel %vm3375, %v3077, %v3631
        %v3888 = vsel %vm3376, %v3079, %v3632
        %v3889 = vsel %vm3377, %v2377, %v3633
        %v3890 = vsel %vm3378, %v2379, %v3634
        %v3891 = vsel %vm3379, %v3083, %v3635
        %v3892 = vsel %vm3380, %v3085, %v3636
        %v3893 = vsel %vm3381, %v2381, %v3637
        %v3894 = vsel %vm3382, %v2383, %v3638
        %v3895 = vsel %vm3383, %v3087, %v3639
        %v3896 = vsel %vm3384, %v3089, %v3640
        %v3897 = vsel %vm3385, %v2387, %v3641
        %v3898 = vsel %vm3386, %v2389, %v3642
        %v3899 = vsel %vm3387, %v3093, %v3643
        %v3900 = vsel %vm3388, %v3095, %v3644
        %v3901 = vsel %vm3389, %v2391, %v3645
        %v3902 = vsel %vm3390, %v2393, %v3646
        %v3903 = vsel %vm3391, %v3097, %v3647
        %v3904 = vsel %vm3392, %v3099, %v3648
        %v3905 = vsel %vm3393, %v2397, %v3649
        %v3906 = vsel %vm3394, %v2399, %v3650
        %v3907 = vsel %vm3395, %v3103, %v3651
        %v3908 = vsel %vm3396, %v3105, %v3652
        %v3909 = vsel %vm3397, %v2401, %v3653
        %v3910 = vsel %vm3398, %v2403, %v3654
        %v3911 = vsel %vm3399, %v3107, %v3655
        %v3912 = vsel %vm3400, %v3109, %v3656
        %v3913 = vsel %vm3401, %v2407, %v3657
        %v3914 = vsel %vm3402, %v2409, %v3658
        %v3915 = vsel %vm3403, %v3113, %v3659
        %v3916 = vsel %vm3404, %v3115, %v3660
        %v3917 = vsel %vm3405, %v2411, %v3661
        %v3918 = vsel %vm3406, %v2413, %v3662
        %v3919 = vsel %vm3407, %v3117, %v3663
        %v3920 = vsel %vm3408, %v3119, %v3664
        %v3921 = vsel %vm3409, %v2417, %v3665
        %v3922 = vsel %vm3410, %v2419, %v3666
        %v3923 = vsel %vm3411, %v3123, %v3667
        %v3924 = vsel %vm3412, %v3125, %v3668
        %v3925 = vsel %vm3413, %v2421, %v3669
        %v3926 = vsel %vm3414, %v2423, %v3670
        %v3927 = vsel %vm3415, %v3127, %v3671
        %v3928 = vsel %vm3416, %v3129, %v3672
        %v3929 = vsel %vm3417, %v2427, %v3673
        %v3930 = vsel %vm3418, %v2429, %v3674
        %v3931 = vsel %vm3419, %v3133, %v3675
        %v3932 = vsel %vm3420, %v3135, %v3676
        %v3933 = vsel %vm3421, %v2431, %v3677
        %v3934 = vsel %vm3422, %v2433, %v3678
        %v3935 = vsel %vm3423, %v3137, %v3679
        %v3936 = vsel %vm3424, %v3139, %v3680
        %v3937 = vsel %vm3425, %v2437, %v3681
        %v3938 = vsel %vm3426, %v2439, %v3682
        %v3939 = vsel %vm3427, %v3143, %v3683
        %v3940 = vsel %vm3428, %v3145, %v3684
        %v3941 = vsel %vm3429, %v2441, %v3685
        %v3942 = vsel %vm3430, %v2443, %v3686
        %v3943 = vsel %vm3431, %v3147, %v3687
        %v3944 = vsel %vm3432, %v3149, %v3688
        %v3945 = vsel %vm3433, %v2447, %v3689
        %v3946 = vsel %vm3434, %v2449, %v3690
        %v3947 = vsel %vm3435, %v3153, %v3691
        %v3948 = vsel %vm3436, %v3155, %v3692
        %v3949 = vsel %vm3437, %v2451, %v3693
        %v3950 = vsel %vm3438, %v2453, %v3694
        %v3951 = vsel %vm3439, %v3157, %v3695
        %v3952 = vsel %vm3440, %v3159, %v3696
        %v3953 = vsel %vm3441, %v2457, %v3697
        %v3954 = vsel %vm3442, %v2459, %v3698
        %v3955 = vsel %vm3443, %v3163, %v3699
        %v3956 = vsel %vm3444, %v3165, %v3700
        %v3957 = vsel %vm3445, %v2461, %v3701
        %v3958 = vsel %vm3446, %v2463, %v3702
        %v3959 = vsel %vm3447, %v3167, %v3703
        %v3960 = vsel %vm3448, %v3169, %v3704
        %v3961 = vsel %vm3449, %v2467, %v3705
        %v3962 = vsel %vm3450, %v2469, %v3706
        %v3963 = vsel %vm3451, %v3173, %v3707
        %v3964 = vsel %vm3452, %v3175, %v3708
        %v3965 = vsel %vm3453, %v2471, %v3709
        %v3966 = vsel %vm3454, %v2473, %v3710
        %v3967 = vsel %vm3455, %v3177, %v3711
        %v3968 = vsel %vm3456, %v3179, %v3712
        %v3969 = vsel %vm3457, %v2477, %v3713
        %v3970 = vsel %vm3458, %v2479, %v3714
        %v3971 = vsel %vm3459, %v3183, %v3715
        %v3972 = vsel %vm3460, %v3185, %v3716
        %v3973 = vsel %vm3461, %v2481, %v3717
        %v3974 = vsel %vm3462, %v2483, %v3718
        %v3975 = vsel %vm3463, %v3187, %v3719
        %v3976 = vsel %vm3464, %v3189, %v3720
        %v3977 = vsel %vm3465, %v2487, %v3721
        %v3978 = vsel %vm3466, %v2489, %v3722
        %v3979 = vsel %vm3467, %v3193, %v3723
        %v3980 = vsel %vm3468, %v3195, %v3724
        %v3981 = vsel %vm3469, %v2491, %v3725
        %v3982 = vsel %vm3470, %v2493, %v3726
        %v3983 = vsel %vm3471, %v3197, %v3727
        %v3984 = vsel %vm3472, %v3199, %v3728
        %v3985 = vsel %vm3473, %v2497, %v3729
        %v3986 = vsel %vm3474, %v2499, %v3730
        %v3987 = vsel %vm3475, %v3203, %v3731
        %v3988 = vsel %vm3476, %v3205, %v3732
        %v3989 = vsel %vm3477, %v2501, %v3733
        %v3990 = vsel %vm3478, %v2503, %v3734
        %v3991 = vsel %vm3479, %v3207, %v3735
        %v3992 = vsel %vm3480, %v3209, %v3736
        %v3993 = vsel %vm3481, %v2507, %v3737
        %v3994 = vsel %vm3482, %v2509, %v3738
        %v3995 = vsel %vm3483, %v3213, %v3739
        %v3996 = vsel %vm3484, %v3215, %v3740
        %v3997 = vsel %vm3485, %v2511, %v3741
        %v3998 = vsel %vm3486, %v2513, %v3742
        %v3999 = vsel %vm3487, %v3217, %v3743
        %v4000 = vsel %vm3488, %v3219, %v3744
        %v4001 = vsel %vm3489, %v2517, %v3745
        %v4002 = vsel %vm3490, %v2519, %v3746
        %v4003 = vsel %vm3491, %v3223, %v3747
        %v4004 = vsel %vm3492, %v3225, %v3748
        %v4005 = vsel %vm3493, %v2521, %v3749
        %v4006 = vsel %vm3494, %v2523, %v3750
        %v4007 = vsel %vm3495, %v3227, %v3751
        %v4008 = vsel %vm3496, %v3229, %v3752
        %v4009 = vsel %vm3497, %v2527, %v3753
        %v4010 = vsel %vm3498, %v2529, %v3754
        %v4011 = vsel %vm3499, %v3233, %v3755
        %v4012 = vsel %vm3500, %v3235, %v3756
        %v4013 = vsel %vm3501, %v2531, %v3757
        %v4014 = vsel %vm3502, %v2533, %v3758
        %v4015 = vsel %vm3503, %v3237, %v3759
        %v4016 = vsel %vm3504, %v3239, %v3760
        %v4017 = vsel %vm3505, %v2537, %v3761
        %v4018 = vsel %vm3506, %v2539, %v3762
        %v4019 = vsel %vm3507, %v3243, %v3763
        %v4020 = vsel %vm3508, %v3245, %v3764
        %v4021 = vsel %vm3509, %v2541, %v3765
        %v4022 = vsel %vm3510, %v2543, %v3766
        %v4023 = vsel %vm3511, %v3247, %v3767
        %v4024 = vsel %vm3512, %v3249, %v3768
        %v4025 = vsel %vm3513, %v2547, %v3769
        %v4026 = vsel %vm3514, %v2549, %v3770
        %v4027 = vsel %vm3515, %v3253, %v3771
        %v4028 = vsel %vm3516, %v3255, %v3772
        %v4029 = vsel %vm3517, %v2551, %v3773
        %v4030 = vsel %vm3518, %v2553, %v3774
        %v4031 = vsel %vm3519, %v3257, %v3775
        %v4032 = vsel %vm3520, %v3259, %v3776
        %v4033 = vsel %vm3521, %v2557, %v3777
        %v4034 = vsel %vm3522, %v2559, %v3778
        %v4035 = vsel %vm3523, %v3263, %v3779
        %v4036 = vsel %vm3524, %v3265, %v3780
        %v4037 = vsel %vm3525, %v2561, %v3781
        %v4038 = vsel %vm3526, %v2563, %v3782
        %v4039 = vsel %vm3527, %v3267, %v3783
        %v4040 = vsel %vm3528, %v3269, %v3784
        %v4041 = vsel %vm3529, %v2567, %v3785
        %v4042 = vsel %vm3530, %v2569, %v3786
        %v4043 = vsel %vm3531, %v3273, %v3787
        %v4044 = vsel %vm3532, %v3275, %v3788
        %v4045 = vsel %vm3533, %v2571, %v3789
        %v4046 = vsel %vm3534, %v2573, %v3790
        %v4047 = vsel %vm3535, %v3277, %v3791
        %v4048 = vsel %vm3536, %v3279, %v3792
        %v4049 = vpack.c.bf16 %v3797, %v3793
        %v4050 = vpack.c.bf16 %v3798, %v3794
        %v4051 = vpack.c.bf16 %v3799, %v3795
        %v4052 = vpack.c.bf16 %v3800, %v3796
        %v4053 = vpack.c.bf16 %v3805, %v3801
        %v4054 = vpack.c.bf16 %v3806, %v3802
        %v4055 = vpack.c.bf16 %v3807, %v3803
        %v4056 = vpack.c.bf16 %v3808, %v3804
        %v4057 = vpack.c.bf16 %v3813, %v3809
        %v4058 = vpack.c.bf16 %v3814, %v3810
        %v4059 = vpack.c.bf16 %v3815, %v3811
        %v4060 = vpack.c.bf16 %v3816, %v3812
        %v4061 = vpack.c.bf16 %v3821, %v3817
        %v4062 = vpack.c.bf16 %v3822, %v3818
        %v4063 = vpack.c.bf16 %v3823, %v3819
        %v4064 = vpack.c.bf16 %v3824, %v3820
        %v4065 = vpack.c.bf16 %v3829, %v3825
        %v4066 = vpack.c.bf16 %v3830, %v3826
        %v4067 = vpack.c.bf16 %v3831, %v3827
        %v4068 = vpack.c.bf16 %v3832, %v3828
        %v4069 = vpack.c.bf16 %v3837, %v3833
        %v4070 = vpack.c.bf16 %v3838, %v3834
        %v4071 = vpack.c.bf16 %v3839, %v3835
        %v4072 = vpack.c.bf16 %v3840, %v3836
        %v4073 = vpack.c.bf16 %v3845, %v3841
        %v4074 = vpack.c.bf16 %v3846, %v3842
        %v4075 = vpack.c.bf16 %v3847, %v3843
        %v4076 = vpack.c.bf16 %v3848, %v3844
        %v4077 = vpack.c.bf16 %v3853, %v3849
        %v4078 = vpack.c.bf16 %v3854, %v3850
        %v4079 = vpack.c.bf16 %v3855, %v3851
        %v4080 = vpack.c.bf16 %v3856, %v3852
        %v4081 = vpack.c.bf16 %v3861, %v3857
        %v4082 = vpack.c.bf16 %v3862, %v3858
        %v4083 = vpack.c.bf16 %v3863, %v3859
        %v4084 = vpack.c.bf16 %v3864, %v3860
        %v4085 = vpack.c.bf16 %v3869, %v3865
        %v4086 = vpack.c.bf16 %v3870, %v3866
        %v4087 = vpack.c.bf16 %v3871, %v3867
        %v4088 = vpack.c.bf16 %v3872, %v3868
        %v4089 = vpack.c.bf16 %v3877, %v3873
        %v4090 = vpack.c.bf16 %v3878, %v3874
        %v4091 = vpack.c.bf16 %v3879, %v3875
        %v4092 = vpack.c.bf16 %v3880, %v3876
        %v4093 = vpack.c.bf16 %v3885, %v3881
        %v4094 = vpack.c.bf16 %v3886, %v3882
        %v4095 = vpack.c.bf16 %v3887, %v3883
        %v4096 = vpack.c.bf16 %v3888, %v3884
        %v4097 = vpack.c.bf16 %v3893, %v3889
        %v4098 = vpack.c.bf16 %v3894, %v3890
        %v4099 = vpack.c.bf16 %v3895, %v3891
        %v4100 = vpack.c.bf16 %v3896, %v3892
        %v4101 = vpack.c.bf16 %v3901, %v3897
        %v4102 = vpack.c.bf16 %v3902, %v3898
        %v4103 = vpack.c.bf16 %v3903, %v3899
        %v4104 = vpack.c.bf16 %v3904, %v3900
        %v4105 = vpack.c.bf16 %v3909, %v3905
        %v4106 = vpack.c.bf16 %v3910, %v3906
        %v4107 = vpack.c.bf16 %v3911, %v3907
        %v4108 = vpack.c.bf16 %v3912, %v3908
        %v4109 = vpack.c.bf16 %v3917, %v3913
        %v4110 = vpack.c.bf16 %v3918, %v3914
        %v4111 = vpack.c.bf16 %v3919, %v3915
        %v4112 = vpack.c.bf16 %v3920, %v3916
        %v4113 = vpack.c.bf16 %v3925, %v3921
        %v4114 = vpack.c.bf16 %v3926, %v3922
        %v4115 = vpack.c.bf16 %v3927, %v3923
        %v4116 = vpack.c.bf16 %v3928, %v3924
        %v4117 = vpack.c.bf16 %v3933, %v3929
        %v4118 = vpack.c.bf16 %v3934, %v3930
        %v4119 = vpack.c.bf16 %v3935, %v3931
        %v4120 = vpack.c.bf16 %v3936, %v3932
        %v4121 = vpack.c.bf16 %v3941, %v3937
        %v4122 = vpack.c.bf16 %v3942, %v3938
        %v4123 = vpack.c.bf16 %v3943, %v3939
        %v4124 = vpack.c.bf16 %v3944, %v3940
        %v4125 = vpack.c.bf16 %v3949, %v3945
        %v4126 = vpack.c.bf16 %v3950, %v3946
        %v4127 = vpack.c.bf16 %v3951, %v3947
        %v4128 = vpack.c.bf16 %v3952, %v3948
        %v4129 = vpack.c.bf16 %v3957, %v3953
        %v4130 = vpack.c.bf16 %v3958, %v3954
        %v4131 = vpack.c.bf16 %v3959, %v3955
        %v4132 = vpack.c.bf16 %v3960, %v3956
        %v4133 = vpack.c.bf16 %v3965, %v3961
        %v4134 = vpack.c.bf16 %v3966, %v3962
        %v4135 = vpack.c.bf16 %v3967, %v3963
        %v4136 = vpack.c.bf16 %v3968, %v3964
        %v4137 = vpack.c.bf16 %v3973, %v3969
        %v4138 = vpack.c.bf16 %v3974, %v3970
        %v4139 = vpack.c.bf16 %v3975, %v3971
        %v4140 = vpack.c.bf16 %v3976, %v3972
        %v4141 = vpack.c.bf16 %v3981, %v3977
        %v4142 = vpack.c.bf16 %v3982, %v3978
        %v4143 = vpack.c.bf16 %v3983, %v3979
        %v4144 = vpack.c.bf16 %v3984, %v3980
        %v4145 = vpack.c.bf16 %v3989, %v3985
        %v4146 = vpack.c.bf16 %v3990, %v3986
        %v4147 = vpack.c.bf16 %v3991, %v3987
        %v4148 = vpack.c.bf16 %v3992, %v3988
        %v4149 = vpack.c.bf16 %v3997, %v3993
        %v4150 = vpack.c.bf16 %v3998, %v3994
        %v4151 = vpack.c.bf16 %v3999, %v3995
        %v4152 = vpack.c.bf16 %v4000, %v3996
        %v4153 = vpack.c.bf16 %v4005, %v4001
        %v4154 = vpack.c.bf16 %v4006, %v4002
        %v4155 = vpack.c.bf16 %v4007, %v4003
        %v4156 = vpack.c.bf16 %v4008, %v4004
        %v4157 = vpack.c.bf16 %v4013, %v4009
        %v4158 = vpack.c.bf16 %v4014, %v4010
        %v4159 = vpack.c.bf16 %v4015, %v4011
        %v4160 = vpack.c.bf16 %v4016, %v4012
        %v4161 = vpack.c.bf16 %v4021, %v4017
        %v4162 = vpack.c.bf16 %v4022, %v4018
        %v4163 = vpack.c.bf16 %v4023, %v4019
        %v4164 = vpack.c.bf16 %v4024, %v4020
        %v4165 = vpack.c.bf16 %v4029, %v4025
        %v4166 = vpack.c.bf16 %v4030, %v4026
        %v4167 = vpack.c.bf16 %v4031, %v4027
        %v4168 = vpack.c.bf16 %v4032, %v4028
        %v4169 = vpack.c.bf16 %v4037, %v4033
        %v4170 = vpack.c.bf16 %v4038, %v4034
        %v4171 = vpack.c.bf16 %v4039, %v4035
        %v4172 = vpack.c.bf16 %v4040, %v4036
        %v4173 = vpack.c.bf16 %v4045, %v4041
        %v4174 = vpack.c.bf16 %v4046, %v4042
        %v4175 = vpack.c.bf16 %v4047, %v4043
        %v4176 = vpack.c.bf16 %v4048, %v4044
        %v4177 = vld [vmem:[%s2] sm:$0xf]
        %v4178 = vld [vmem:[%s2 + $0x4] sm:$0xf]
        %v4179 = vld [vmem:[%s2 + $0x8] sm:$0xf]
        %v4180 = vld [vmem:[%s2 + $0xc] sm:$0xf]
        %v4181 = vld [vmem:[%s2 + $0x10] sm:$0xf]
        %v4182 = vld [vmem:[%s2 + $0x14] sm:$0xf]
        %v4183 = vld [vmem:[%s2 + $0x18] sm:$0xf]
        %v4184 = vld [vmem:[%s2 + $0x1c] sm:$0xf]
        %v4185 = vld [vmem:[%s2 + $0x20] sm:$0xf]
        %v4186 = vld [vmem:[%s2 + $0x24] sm:$0xf]
        %v4187 = vld [vmem:[%s2 + $0x28] sm:$0xf]
        %v4188 = vld [vmem:[%s2 + $0x2c] sm:$0xf]
        %v4189 = vld [vmem:[%s2 + $0x30] sm:$0xf]
        %v4190 = vld [vmem:[%s2 + $0x34] sm:$0xf]
        %v4191 = vld [vmem:[%s2 + $0x38] sm:$0xf]
        %v4192 = vld [vmem:[%s2 + $0x3c] sm:$0xf]
        %v4193 = vld [vmem:[%s2 + $0x40] sm:$0xf]
        %v4194 = vld [vmem:[%s2 + $0x44] sm:$0xf]
        %v4195 = vld [vmem:[%s2 + $0x48] sm:$0xf]
        %v4196 = vld [vmem:[%s2 + $0x4c] sm:$0xf]
        %v4197 = vld [vmem:[%s2 + $0x50] sm:$0xf]
        %v4198 = vld [vmem:[%s2 + $0x54] sm:$0xf]
        %v4199 = vld [vmem:[%s2 + $0x58] sm:$0xf]
        %v4200 = vld [vmem:[%s2 + $0x5c] sm:$0xf]
        %v4201 = vld [vmem:[%s2 + $0x60] sm:$0xf]
        %v4202 = vld [vmem:[%s2 + $0x64] sm:$0xf]
        %v4203 = vld [vmem:[%s2 + $0x68] sm:$0xf]
        %v4204 = vld [vmem:[%s2 + $0x6c] sm:$0xf]
        %v4205 = vld [vmem:[%s2 + $0x70] sm:$0xf]
        %v4206 = vld [vmem:[%s2 + $0x74] sm:$0xf]
        %v4207 = vld [vmem:[%s2 + $0x78] sm:$0xf]
        %v4208 = vld [vmem:[%s2 + $0x7c] sm:$0xf]
        %v4209 = vld [vmem:[%s2 + $0x80] sm:$0xf]
        %v4210 = vld [vmem:[%s2 + $0x84] sm:$0xf]
        %v4211 = vld [vmem:[%s2 + $0x88] sm:$0xf]
        %v4212 = vld [vmem:[%s2 + $0x8c] sm:$0xf]
        %v4213 = vld [vmem:[%s2 + $0x90] sm:$0xf]
        %v4214 = vld [vmem:[%s2 + $0x94] sm:$0xf]
        %v4215 = vld [vmem:[%s2 + $0x98] sm:$0xf]
        %v4216 = vld [vmem:[%s2 + $0x9c] sm:$0xf]
        %v4217 = vld [vmem:[%s2 + $0xa0] sm:$0xf]
        %v4218 = vld [vmem:[%s2 + $0xa4] sm:$0xf]
        %v4219 = vld [vmem:[%s2 + $0xa8] sm:$0xf]
        %v4220 = vld [vmem:[%s2 + $0xac] sm:$0xf]
        %v4221 = vld [vmem:[%s2 + $0xb0] sm:$0xf]
        %v4222 = vld [vmem:[%s2 + $0xb4] sm:$0xf]
        %v4223 = vld [vmem:[%s2 + $0xb8] sm:$0xf]
        %v4224 = vld [vmem:[%s2 + $0xbc] sm:$0xf]
        %v4225 = vld [vmem:[%s2 + $0xc0] sm:$0xf]
        %v4226 = vld [vmem:[%s2 + $0xc4] sm:$0xf]
        %v4227 = vld [vmem:[%s2 + $0xc8] sm:$0xf]
        %v4228 = vld [vmem:[%s2 + $0xcc] sm:$0xf]
        %v4229 = vld [vmem:[%s2 + $0xd0] sm:$0xf]
        %v4230 = vld [vmem:[%s2 + $0xd4] sm:$0xf]
        %v4231 = vld [vmem:[%s2 + $0xd8] sm:$0xf]
        %v4232 = vld [vmem:[%s2 + $0xdc] sm:$0xf]
        %v4233 = vld [vmem:[%s2 + $0xe0] sm:$0xf]
        %v4234 = vld [vmem:[%s2 + $0xe4] sm:$0xf]
        %v4235 = vld [vmem:[%s2 + $0xe8] sm:$0xf]
        %v4236 = vld [vmem:[%s2 + $0xec] sm:$0xf]
        %v4237 = vld [vmem:[%s2 + $0xf0] sm:$0xf]
        %v4238 = vld [vmem:[%s2 + $0xf4] sm:$0xf]
        %v4239 = vld [vmem:[%s2 + $0xf8] sm:$0xf]
        %v4240 = vld [vmem:[%s2 + $0xfc] sm:$0xf]
        %v4305 = vunpack.c.l.b16 %v4177
        %v4306 = vunpack.c.l.b16 %v4178
        %v4307 = vunpack.c.l.b16 %v4179
        %v4308 = vunpack.c.l.b16 %v4180
        %v4309 = vunpack.c.l.b16 %v4181
        %v4310 = vunpack.c.l.b16 %v4182
        %v4311 = vunpack.c.l.b16 %v4183
        %v4312 = vunpack.c.l.b16 %v4184
        %v4313 = vunpack.c.l.b16 %v4185
        %v4314 = vunpack.c.l.b16 %v4186
        %v4315 = vunpack.c.l.b16 %v4187
        %v4316 = vunpack.c.l.b16 %v4188
        %v4317 = vunpack.c.l.b16 %v4189
        %v4318 = vunpack.c.l.b16 %v4190
        %v4319 = vunpack.c.l.b16 %v4191
        %v4320 = vunpack.c.l.b16 %v4192
        %v4321 = vunpack.c.l.b16 %v4193
        %v4322 = vunpack.c.l.b16 %v4194
        %v4323 = vunpack.c.l.b16 %v4195
        %v4324 = vunpack.c.l.b16 %v4196
        %v4325 = vunpack.c.l.b16 %v4197
        %v4326 = vunpack.c.l.b16 %v4198
        %v4327 = vunpack.c.l.b16 %v4199
        %v4328 = vunpack.c.l.b16 %v4200
        %v4329 = vunpack.c.l.b16 %v4201
        %v4330 = vunpack.c.l.b16 %v4202
        %v4331 = vunpack.c.l.b16 %v4203
        %v4332 = vunpack.c.l.b16 %v4204
        %v4333 = vunpack.c.l.b16 %v4205
        %v4334 = vunpack.c.l.b16 %v4206
        %v4335 = vunpack.c.l.b16 %v4207
        %v4336 = vunpack.c.l.b16 %v4208
        %v4337 = vunpack.c.l.b16 %v4209
        %v4338 = vunpack.c.l.b16 %v4210
        %v4339 = vunpack.c.l.b16 %v4211
        %v4340 = vunpack.c.l.b16 %v4212
        %v4341 = vunpack.c.l.b16 %v4213
        %v4342 = vunpack.c.l.b16 %v4214
        %v4343 = vunpack.c.l.b16 %v4215
        %v4344 = vunpack.c.l.b16 %v4216
        %v4345 = vunpack.c.l.b16 %v4217
        %v4346 = vunpack.c.l.b16 %v4218
        %v4347 = vunpack.c.l.b16 %v4219
        %v4348 = vunpack.c.l.b16 %v4220
        %v4349 = vunpack.c.l.b16 %v4221
        %v4350 = vunpack.c.l.b16 %v4222
        %v4351 = vunpack.c.l.b16 %v4223
        %v4352 = vunpack.c.l.b16 %v4224
        %v4353 = vunpack.c.l.b16 %v4225
        %v4354 = vunpack.c.l.b16 %v4226
        %v4355 = vunpack.c.l.b16 %v4227
        %v4356 = vunpack.c.l.b16 %v4228
        %v4357 = vunpack.c.l.b16 %v4229
        %v4358 = vunpack.c.l.b16 %v4230
        %v4359 = vunpack.c.l.b16 %v4231
        %v4360 = vunpack.c.l.b16 %v4232
        %v4361 = vunpack.c.l.b16 %v4233
        %v4362 = vunpack.c.l.b16 %v4234
        %v4363 = vunpack.c.l.b16 %v4235
        %v4364 = vunpack.c.l.b16 %v4236
        %v4365 = vunpack.c.l.b16 %v4237
        %v4366 = vunpack.c.l.b16 %v4238
        %v4367 = vunpack.c.l.b16 %v4239
        %v4368 = vunpack.c.l.b16 %v4240
        %v4369 = vpack.c.b16 %v4306, %v4305
        %v4370 = vpack.c.b16 %v4308, %v4307
        %v4371 = vpack.c.b16 %v4310, %v4309
        %v4372 = vpack.c.b16 %v4312, %v4311
        %v4373 = vpack.c.b16 %v4314, %v4313
        %v4374 = vpack.c.b16 %v4316, %v4315
        %v4375 = vpack.c.b16 %v4318, %v4317
        %v4376 = vpack.c.b16 %v4320, %v4319
        %v4377 = vpack.c.b16 %v4322, %v4321
        %v4378 = vpack.c.b16 %v4324, %v4323
        %v4379 = vpack.c.b16 %v4326, %v4325
        %v4380 = vpack.c.b16 %v4328, %v4327
        %v4381 = vpack.c.b16 %v4330, %v4329
        %v4382 = vpack.c.b16 %v4332, %v4331
        %v4383 = vpack.c.b16 %v4334, %v4333
        %v4384 = vpack.c.b16 %v4336, %v4335
        %v4385 = vpack.c.b16 %v4338, %v4337
        %v4386 = vpack.c.b16 %v4340, %v4339
        %v4387 = vpack.c.b16 %v4342, %v4341
        %v4388 = vpack.c.b16 %v4344, %v4343
        %v4389 = vpack.c.b16 %v4346, %v4345
        %v4390 = vpack.c.b16 %v4348, %v4347
        %v4391 = vpack.c.b16 %v4350, %v4349
        %v4392 = vpack.c.b16 %v4352, %v4351
        %v4393 = vpack.c.b16 %v4354, %v4353
        %v4394 = vpack.c.b16 %v4356, %v4355
        %v4395 = vpack.c.b16 %v4358, %v4357
        %v4396 = vpack.c.b16 %v4360, %v4359
        %v4397 = vpack.c.b16 %v4362, %v4361
        %v4398 = vpack.c.b16 %v4364, %v4363
        %v4399 = vpack.c.b16 %v4366, %v4365
        %v4400 = vpack.c.b16 %v4368, %v4367
        %4433 = vmatprep.subr.bf16.mxu0 0
        %4434 = vmatpush1.bf16.msra.mxu0 %v4376
        %4435 = vmatprep.subr.bf16.mxu0 0
        %4436 = vmatpush1.bf16.msra.mxu0 %v4375
        %4437 = vmatprep.subr.bf16.mxu0 0
        %4438 = vmatpush1.bf16.msra.mxu0 %v4374
        %4439 = vmatprep.subr.bf16.mxu0 0
        %4440 = vmatpush1.bf16.msra.mxu0 %v4373
        %4441 = vmatprep.subr.bf16.mxu0 0
        %4442 = vmatpush1.bf16.msra.mxu0 %v4372
        %4443 = vmatprep.subr.bf16.mxu0 0
        %4444 = vmatpush1.bf16.msra.mxu0 %v4371
        %4445 = vmatprep.subr.bf16.mxu0 0
        %4446 = vmatpush1.bf16.msra.mxu0 %v4370
        %4447 = vmatprep.subr.bf16.mxu0 0
        %4448 = vmatpush1.bf16.msra.mxu0 %v4369
        %4449 = vmatprep.subr.bf16.mxu0 0
        %4450 = vmatpush2.bf16.msra.mxu0 %v4384
        %4451 = vmatprep.subr.bf16.mxu0 0
        %4452 = vmatpush2.bf16.msra.mxu0 %v4383
        %4453 = vmatprep.subr.bf16.mxu0 0
        %4454 = vmatpush2.bf16.msra.mxu0 %v4382
        %4455 = vmatprep.subr.bf16.mxu0 0
        %4456 = vmatpush2.bf16.msra.mxu0 %v4381
        %4457 = vmatprep.subr.bf16.mxu0 0
        %4458 = vmatpush2.bf16.msra.mxu0 %v4380
        %4459 = vmatprep.subr.bf16.mxu0 0
        %4460 = vmatpush2.bf16.msra.mxu0 %v4379
        %4461 = vmatprep.subr.bf16.mxu0 0
        %4462 = vmatpush2.bf16.msra.mxu0 %v4378
        %4463 = vmatprep.subr.bf16.mxu0 0
        %4464 = vmatpush2.bf16.msra.mxu0 %v4377
        %4465 = vmatprep.mubr.bf16.mxu0 %v4050
        %4466 = vmatmul.mubr.bf16.gmra.mxu0 %v4049
        %v4467 = vpop.f32.mrf.mxu0
        %v4468 = vadd.f32 0.0, %v4467
        %v4469 = vpop.f32.mrf.mxu0
        %v4470 = vpop.f32.mrf.mxu0
        %v4471 = vadd.f32 0.0, %v4470
        %v4472 = vpop.f32.mrf.mxu0
        %4473 = vmatprep.mubr.bf16.mxu0 %v4054
        %4474 = vmatmul.mubr.bf16.gmra.mxu0 %v4053
        %v4475 = vpop.f32.mrf.mxu0
        %v4476 = vadd.f32 0.0, %v4475
        %v4477 = vpop.f32.mrf.mxu0
        %v4478 = vpop.f32.mrf.mxu0
        %v4479 = vadd.f32 0.0, %v4478
        %v4480 = vpop.f32.mrf.mxu0
        %4481 = vmatprep.mubr.bf16.mxu0 %v4058
        %4482 = vmatmul.mubr.bf16.gmra.mxu0 %v4057
        %v4483 = vpop.f32.mrf.mxu0
        %v4484 = vadd.f32 0.0, %v4483
        %v4485 = vpop.f32.mrf.mxu0
        %v4486 = vpop.f32.mrf.mxu0
        %v4487 = vadd.f32 0.0, %v4486
        %v4488 = vpop.f32.mrf.mxu0
        %4489 = vmatprep.mubr.bf16.mxu0 %v4062
        %4490 = vmatmul.mubr.bf16.gmra.mxu0 %v4061
        %v4491 = vpop.f32.mrf.mxu0
        %v4492 = vadd.f32 0.0, %v4491
        %v4493 = vpop.f32.mrf.mxu0
        %v4494 = vpop.f32.mrf.mxu0
        %v4495 = vadd.f32 0.0, %v4494
        %v4496 = vpop.f32.mrf.mxu0
        %4497 = vmatprep.mubr.bf16.mxu0 %v4066
        %4498 = vmatmul.mubr.bf16.gmra.mxu0 %v4065
        %v4499 = vpop.f32.mrf.mxu0
        %v4500 = vadd.f32 0.0, %v4499
        %v4501 = vpop.f32.mrf.mxu0
        %v4502 = vpop.f32.mrf.mxu0
        %v4503 = vadd.f32 0.0, %v4502
        %v4504 = vpop.f32.mrf.mxu0
        %4505 = vmatprep.mubr.bf16.mxu0 %v4070
        %4506 = vmatmul.mubr.bf16.gmra.mxu0 %v4069
        %v4507 = vpop.f32.mrf.mxu0
        %v4508 = vadd.f32 0.0, %v4507
        %v4509 = vpop.f32.mrf.mxu0
        %v4510 = vpop.f32.mrf.mxu0
        %v4511 = vadd.f32 0.0, %v4510
        %v4512 = vpop.f32.mrf.mxu0
        %4513 = vmatprep.mubr.bf16.mxu0 %v4074
        %4514 = vmatmul.mubr.bf16.gmra.mxu0 %v4073
        %v4515 = vpop.f32.mrf.mxu0
        %v4516 = vadd.f32 0.0, %v4515
        %v4517 = vpop.f32.mrf.mxu0
        %v4518 = vpop.f32.mrf.mxu0
        %v4519 = vadd.f32 0.0, %v4518
        %v4520 = vpop.f32.mrf.mxu0
        %4521 = vmatprep.mubr.bf16.mxu0 %v4078
        %4522 = vmatmul.mubr.bf16.gmra.mxu0 %v4077
        %v4523 = vpop.f32.mrf.mxu0
        %v4524 = vadd.f32 0.0, %v4523
        %v4525 = vpop.f32.mrf.mxu0
        %v4526 = vpop.f32.mrf.mxu0
        %v4527 = vadd.f32 0.0, %v4526
        %v4528 = vpop.f32.mrf.mxu0
        %4529 = vmatprep.mubr.bf16.mxu0 %v4082
        %4530 = vmatmul.mubr.bf16.gmra.mxu0 %v4081
        %v4531 = vpop.f32.mrf.mxu0
        %v4532 = vadd.f32 0.0, %v4531
        %v4533 = vpop.f32.mrf.mxu0
        %v4534 = vpop.f32.mrf.mxu0
        %v4535 = vadd.f32 0.0, %v4534
        %v4536 = vpop.f32.mrf.mxu0
        %4537 = vmatprep.mubr.bf16.mxu0 %v4086
        %4538 = vmatmul.mubr.bf16.gmra.mxu0 %v4085
        %v4539 = vpop.f32.mrf.mxu0
        %v4540 = vadd.f32 0.0, %v4539
        %v4541 = vpop.f32.mrf.mxu0
        %v4542 = vpop.f32.mrf.mxu0
        %v4543 = vadd.f32 0.0, %v4542
        %v4544 = vpop.f32.mrf.mxu0
        %4545 = vmatprep.mubr.bf16.mxu0 %v4090
        %4546 = vmatmul.mubr.bf16.gmra.mxu0 %v4089
        %v4547 = vpop.f32.mrf.mxu0
        %v4548 = vadd.f32 0.0, %v4547
        %v4549 = vpop.f32.mrf.mxu0
        %v4550 = vpop.f32.mrf.mxu0
        %v4551 = vadd.f32 0.0, %v4550
        %v4552 = vpop.f32.mrf.mxu0
        %4553 = vmatprep.mubr.bf16.mxu0 %v4094
        %4554 = vmatmul.mubr.bf16.gmra.mxu0 %v4093
        %v4555 = vpop.f32.mrf.mxu0
        %v4556 = vadd.f32 0.0, %v4555
        %v4557 = vpop.f32.mrf.mxu0
        %v4558 = vpop.f32.mrf.mxu0
        %v4559 = vadd.f32 0.0, %v4558
        %v4560 = vpop.f32.mrf.mxu0
        %4561 = vmatprep.mubr.bf16.mxu0 %v4098
        %4562 = vmatmul.mubr.bf16.gmra.mxu0 %v4097
        %v4563 = vpop.f32.mrf.mxu0
        %v4564 = vadd.f32 0.0, %v4563
        %v4565 = vpop.f32.mrf.mxu0
        %v4566 = vpop.f32.mrf.mxu0
        %v4567 = vadd.f32 0.0, %v4566
        %v4568 = vpop.f32.mrf.mxu0
        %4569 = vmatprep.mubr.bf16.mxu0 %v4102
        %4570 = vmatmul.mubr.bf16.gmra.mxu0 %v4101
        %v4571 = vpop.f32.mrf.mxu0
        %v4572 = vadd.f32 0.0, %v4571
        %v4573 = vpop.f32.mrf.mxu0
        %v4574 = vpop.f32.mrf.mxu0
        %v4575 = vadd.f32 0.0, %v4574
        %v4576 = vpop.f32.mrf.mxu0
        %4577 = vmatprep.mubr.bf16.mxu0 %v4106
        %4578 = vmatmul.mubr.bf16.gmra.mxu0 %v4105
        %v4579 = vpop.f32.mrf.mxu0
        %v4580 = vadd.f32 0.0, %v4579
        %v4581 = vpop.f32.mrf.mxu0
        %v4582 = vpop.f32.mrf.mxu0
        %v4583 = vadd.f32 0.0, %v4582
        %v4584 = vpop.f32.mrf.mxu0
        %4585 = vmatprep.mubr.bf16.mxu0 %v4110
        %4586 = vmatmul.mubr.bf16.gmra.mxu0 %v4109
        %v4587 = vpop.f32.mrf.mxu0
        %v4588 = vadd.f32 0.0, %v4587
        %v4589 = vpop.f32.mrf.mxu0
        %v4590 = vpop.f32.mrf.mxu0
        %v4591 = vadd.f32 0.0, %v4590
        %v4592 = vpop.f32.mrf.mxu0
        %4593 = vmatprep.mubr.bf16.mxu0 %v4114
        %4594 = vmatmul.mubr.bf16.gmra.mxu0 %v4113
        %v4595 = vpop.f32.mrf.mxu0
        %v4596 = vadd.f32 0.0, %v4595
        %v4597 = vpop.f32.mrf.mxu0
        %v4598 = vpop.f32.mrf.mxu0
        %v4599 = vadd.f32 0.0, %v4598
        %v4600 = vpop.f32.mrf.mxu0
        %4601 = vmatprep.mubr.bf16.mxu0 %v4118
        %4602 = vmatmul.mubr.bf16.gmra.mxu0 %v4117
        %v4603 = vpop.f32.mrf.mxu0
        %v4604 = vadd.f32 0.0, %v4603
        %v4605 = vpop.f32.mrf.mxu0
        %v4606 = vpop.f32.mrf.mxu0
        %v4607 = vadd.f32 0.0, %v4606
        %v4608 = vpop.f32.mrf.mxu0
        %4609 = vmatprep.mubr.bf16.mxu0 %v4122
        %4610 = vmatmul.mubr.bf16.gmra.mxu0 %v4121
        %v4611 = vpop.f32.mrf.mxu0
        %v4612 = vadd.f32 0.0, %v4611
        %v4613 = vpop.f32.mrf.mxu0
        %v4614 = vpop.f32.mrf.mxu0
        %v4615 = vadd.f32 0.0, %v4614
        %v4616 = vpop.f32.mrf.mxu0
        %4617 = vmatprep.mubr.bf16.mxu0 %v4126
        %4618 = vmatmul.mubr.bf16.gmra.mxu0 %v4125
        %v4619 = vpop.f32.mrf.mxu0
        %v4620 = vadd.f32 0.0, %v4619
        %v4621 = vpop.f32.mrf.mxu0
        %v4622 = vpop.f32.mrf.mxu0
        %v4623 = vadd.f32 0.0, %v4622
        %v4624 = vpop.f32.mrf.mxu0
        %4625 = vmatprep.mubr.bf16.mxu0 %v4130
        %4626 = vmatmul.mubr.bf16.gmra.mxu0 %v4129
        %v4627 = vpop.f32.mrf.mxu0
        %v4628 = vadd.f32 0.0, %v4627
        %v4629 = vpop.f32.mrf.mxu0
        %v4630 = vpop.f32.mrf.mxu0
        %v4631 = vadd.f32 0.0, %v4630
        %v4632 = vpop.f32.mrf.mxu0
        %4633 = vmatprep.mubr.bf16.mxu0 %v4134
        %4634 = vmatmul.mubr.bf16.gmra.mxu0 %v4133
        %v4635 = vpop.f32.mrf.mxu0
        %v4636 = vadd.f32 0.0, %v4635
        %v4637 = vpop.f32.mrf.mxu0
        %v4638 = vpop.f32.mrf.mxu0
        %v4639 = vadd.f32 0.0, %v4638
        %v4640 = vpop.f32.mrf.mxu0
        %4641 = vmatprep.mubr.bf16.mxu0 %v4138
        %4642 = vmatmul.mubr.bf16.gmra.mxu0 %v4137
        %v4643 = vpop.f32.mrf.mxu0
        %v4644 = vadd.f32 0.0, %v4643
        %v4645 = vpop.f32.mrf.mxu0
        %v4646 = vpop.f32.mrf.mxu0
        %v4647 = vadd.f32 0.0, %v4646
        %v4648 = vpop.f32.mrf.mxu0
        %4649 = vmatprep.mubr.bf16.mxu0 %v4142
        %4650 = vmatmul.mubr.bf16.gmra.mxu0 %v4141
        %v4651 = vpop.f32.mrf.mxu0
        %v4652 = vadd.f32 0.0, %v4651
        %v4653 = vpop.f32.mrf.mxu0
        %v4654 = vpop.f32.mrf.mxu0
        %v4655 = vadd.f32 0.0, %v4654
        %v4656 = vpop.f32.mrf.mxu0
        %4657 = vmatprep.mubr.bf16.mxu0 %v4146
        %4658 = vmatmul.mubr.bf16.gmra.mxu0 %v4145
        %v4659 = vpop.f32.mrf.mxu0
        %v4660 = vadd.f32 0.0, %v4659
        %v4661 = vpop.f32.mrf.mxu0
        %v4662 = vpop.f32.mrf.mxu0
        %v4663 = vadd.f32 0.0, %v4662
        %v4664 = vpop.f32.mrf.mxu0
        %4665 = vmatprep.mubr.bf16.mxu0 %v4150
        %4666 = vmatmul.mubr.bf16.gmra.mxu0 %v4149
        %v4667 = vpop.f32.mrf.mxu0
        %v4668 = vadd.f32 0.0, %v4667
        %v4669 = vpop.f32.mrf.mxu0
        %v4670 = vpop.f32.mrf.mxu0
        %v4671 = vadd.f32 0.0, %v4670
        %v4672 = vpop.f32.mrf.mxu0
        %4673 = vmatprep.mubr.bf16.mxu0 %v4154
        %4674 = vmatmul.mubr.bf16.gmra.mxu0 %v4153
        %v4675 = vpop.f32.mrf.mxu0
        %v4676 = vadd.f32 0.0, %v4675
        %v4677 = vpop.f32.mrf.mxu0
        %v4678 = vpop.f32.mrf.mxu0
        %v4679 = vadd.f32 0.0, %v4678
        %v4680 = vpop.f32.mrf.mxu0
        %4681 = vmatprep.mubr.bf16.mxu0 %v4158
        %4682 = vmatmul.mubr.bf16.gmra.mxu0 %v4157
        %v4683 = vpop.f32.mrf.mxu0
        %v4684 = vadd.f32 0.0, %v4683
        %v4685 = vpop.f32.mrf.mxu0
        %v4686 = vpop.f32.mrf.mxu0
        %v4687 = vadd.f32 0.0, %v4686
        %v4688 = vpop.f32.mrf.mxu0
        %4689 = vmatprep.mubr.bf16.mxu0 %v4162
        %4690 = vmatmul.mubr.bf16.gmra.mxu0 %v4161
        %v4691 = vpop.f32.mrf.mxu0
        %v4692 = vadd.f32 0.0, %v4691
        %v4693 = vpop.f32.mrf.mxu0
        %v4694 = vpop.f32.mrf.mxu0
        %v4695 = vadd.f32 0.0, %v4694
        %v4696 = vpop.f32.mrf.mxu0
        %4697 = vmatprep.mubr.bf16.mxu0 %v4166
        %4698 = vmatmul.mubr.bf16.gmra.mxu0 %v4165
        %v4699 = vpop.f32.mrf.mxu0
        %v4700 = vadd.f32 0.0, %v4699
        %v4701 = vpop.f32.mrf.mxu0
        %v4702 = vpop.f32.mrf.mxu0
        %v4703 = vadd.f32 0.0, %v4702
        %v4704 = vpop.f32.mrf.mxu0
        %4705 = vmatprep.mubr.bf16.mxu0 %v4170
        %4706 = vmatmul.mubr.bf16.gmra.mxu0 %v4169
        %v4707 = vpop.f32.mrf.mxu0
        %v4708 = vadd.f32 0.0, %v4707
        %v4709 = vpop.f32.mrf.mxu0
        %v4710 = vpop.f32.mrf.mxu0
        %v4711 = vadd.f32 0.0, %v4710
        %v4712 = vpop.f32.mrf.mxu0
        %4713 = vmatprep.mubr.bf16.mxu0 %v4174
        %4714 = vmatmul.mubr.bf16.gmra.mxu0 %v4173
        %v4715 = vpop.f32.mrf.mxu0
        %v4716 = vadd.f32 0.0, %v4715
        %v4717 = vpop.f32.mrf.mxu0
        %v4718 = vpop.f32.mrf.mxu0
        %v4719 = vadd.f32 0.0, %v4718
        %v4720 = vpop.f32.mrf.mxu0
        %4721 = vdwg.mxu0
        %4722 = vmatprep.subr.bf16.mxu0 0
        %4723 = vmatpush1.bf16.msra.mxu0 %v4392
        %4724 = vmatprep.subr.bf16.mxu0 0
        %4725 = vmatpush1.bf16.msra.mxu0 %v4391
        %4726 = vmatprep.subr.bf16.mxu0 0
        %4727 = vmatpush1.bf16.msra.mxu0 %v4390
        %4728 = vmatprep.subr.bf16.mxu0 0
        %4729 = vmatpush1.bf16.msra.mxu0 %v4389
        %4730 = vmatprep.subr.bf16.mxu0 0
        %4731 = vmatpush1.bf16.msra.mxu0 %v4388
        %4732 = vmatprep.subr.bf16.mxu0 0
        %4733 = vmatpush1.bf16.msra.mxu0 %v4387
        %4734 = vmatprep.subr.bf16.mxu0 0
        %4735 = vmatpush1.bf16.msra.mxu0 %v4386
        %4736 = vmatprep.subr.bf16.mxu0 0
        %4737 = vmatpush1.bf16.msra.mxu0 %v4385
        %4738 = vmatprep.subr.bf16.mxu0 0
        %4739 = vmatpush2.bf16.msra.mxu0 %v4400
        %4740 = vmatprep.subr.bf16.mxu0 0
        %4741 = vmatpush2.bf16.msra.mxu0 %v4399
        %4742 = vmatprep.subr.bf16.mxu0 0
        %4743 = vmatpush2.bf16.msra.mxu0 %v4398
        %4744 = vmatprep.subr.bf16.mxu0 0
        %4745 = vmatpush2.bf16.msra.mxu0 %v4397
        %4746 = vmatprep.subr.bf16.mxu0 0
        %4747 = vmatpush2.bf16.msra.mxu0 %v4396
        %4748 = vmatprep.subr.bf16.mxu0 0
        %4749 = vmatpush2.bf16.msra.mxu0 %v4395
        %4750 = vmatprep.subr.bf16.mxu0 0
        %4751 = vmatpush2.bf16.msra.mxu0 %v4394
        %4752 = vmatprep.subr.bf16.mxu0 0
        %4753 = vmatpush2.bf16.msra.mxu0 %v4393
        %4754 = vmatprep.mubr.bf16.mxu0 %v4052
        %4755 = vmatmul.mubr.bf16.gmra.mxu0 %v4051
        %v4756 = vpop.f32.mrf.mxu0
        %v4757 = vadd.f32 %v4468, %v4756
        %v4758 = vpop.f32.mrf.mxu0
        %v4759 = vpop.f32.mrf.mxu0
        %v4760 = vadd.f32 %v4471, %v4759
        %v4761 = vpop.f32.mrf.mxu0
        %4762 = vmatprep.mubr.bf16.mxu0 %v4056
        %4763 = vmatmul.mubr.bf16.gmra.mxu0 %v4055
        %v4764 = vpop.f32.mrf.mxu0
        %v4765 = vadd.f32 %v4476, %v4764
        %v4766 = vpop.f32.mrf.mxu0
        %v4767 = vpop.f32.mrf.mxu0
        %v4768 = vadd.f32 %v4479, %v4767
        %v4769 = vpop.f32.mrf.mxu0
        %4770 = vmatprep.mubr.bf16.mxu0 %v4060
        %4771 = vmatmul.mubr.bf16.gmra.mxu0 %v4059
        %v4772 = vpop.f32.mrf.mxu0
        %v4773 = vadd.f32 %v4484, %v4772
        %v4774 = vpop.f32.mrf.mxu0
        %v4775 = vpop.f32.mrf.mxu0
        %v4776 = vadd.f32 %v4487, %v4775
        %v4777 = vpop.f32.mrf.mxu0
        %4778 = vmatprep.mubr.bf16.mxu0 %v4064
        %4779 = vmatmul.mubr.bf16.gmra.mxu0 %v4063
        %v4780 = vpop.f32.mrf.mxu0
        %v4781 = vadd.f32 %v4492, %v4780
        %v4782 = vpop.f32.mrf.mxu0
        %v4783 = vpop.f32.mrf.mxu0
        %v4784 = vadd.f32 %v4495, %v4783
        %v4785 = vpop.f32.mrf.mxu0
        %4786 = vmatprep.mubr.bf16.mxu0 %v4068
        %4787 = vmatmul.mubr.bf16.gmra.mxu0 %v4067
        %v4788 = vpop.f32.mrf.mxu0
        %v4789 = vadd.f32 %v4500, %v4788
        %v4790 = vpop.f32.mrf.mxu0
        %v4791 = vpop.f32.mrf.mxu0
        %v4792 = vadd.f32 %v4503, %v4791
        %v4793 = vpop.f32.mrf.mxu0
        %4794 = vmatprep.mubr.bf16.mxu0 %v4072
        %4795 = vmatmul.mubr.bf16.gmra.mxu0 %v4071
        %v4796 = vpop.f32.mrf.mxu0
        %v4797 = vadd.f32 %v4508, %v4796
        %v4798 = vpop.f32.mrf.mxu0
        %v4799 = vpop.f32.mrf.mxu0
        %v4800 = vadd.f32 %v4511, %v4799
        %v4801 = vpop.f32.mrf.mxu0
        %4802 = vmatprep.mubr.bf16.mxu0 %v4076
        %4803 = vmatmul.mubr.bf16.gmra.mxu0 %v4075
        %v4804 = vpop.f32.mrf.mxu0
        %v4805 = vadd.f32 %v4516, %v4804
        %v4806 = vpop.f32.mrf.mxu0
        %v4807 = vpop.f32.mrf.mxu0
        %v4808 = vadd.f32 %v4519, %v4807
        %v4809 = vpop.f32.mrf.mxu0
        %4810 = vmatprep.mubr.bf16.mxu0 %v4080
        %4811 = vmatmul.mubr.bf16.gmra.mxu0 %v4079
        %v4812 = vpop.f32.mrf.mxu0
        %v4813 = vadd.f32 %v4524, %v4812
        %v4814 = vpop.f32.mrf.mxu0
        %v4815 = vpop.f32.mrf.mxu0
        %v4816 = vadd.f32 %v4527, %v4815
        %v4817 = vpop.f32.mrf.mxu0
        %4818 = vmatprep.mubr.bf16.mxu0 %v4084
        %4819 = vmatmul.mubr.bf16.gmra.mxu0 %v4083
        %v4820 = vpop.f32.mrf.mxu0
        %v4821 = vadd.f32 %v4532, %v4820
        %v4822 = vpop.f32.mrf.mxu0
        %v4823 = vpop.f32.mrf.mxu0
        %v4824 = vadd.f32 %v4535, %v4823
        %v4825 = vpop.f32.mrf.mxu0
        %4826 = vmatprep.mubr.bf16.mxu0 %v4088
        %4827 = vmatmul.mubr.bf16.gmra.mxu0 %v4087
        %v4828 = vpop.f32.mrf.mxu0
        %v4829 = vadd.f32 %v4540, %v4828
        %v4830 = vpop.f32.mrf.mxu0
        %v4831 = vpop.f32.mrf.mxu0
        %v4832 = vadd.f32 %v4543, %v4831
        %v4833 = vpop.f32.mrf.mxu0
        %4834 = vmatprep.mubr.bf16.mxu0 %v4092
        %4835 = vmatmul.mubr.bf16.gmra.mxu0 %v4091
        %v4836 = vpop.f32.mrf.mxu0
        %v4837 = vadd.f32 %v4548, %v4836
        %v4838 = vpop.f32.mrf.mxu0
        %v4839 = vpop.f32.mrf.mxu0
        %v4840 = vadd.f32 %v4551, %v4839
        %v4841 = vpop.f32.mrf.mxu0
        %4842 = vmatprep.mubr.bf16.mxu0 %v4096
        %4843 = vmatmul.mubr.bf16.gmra.mxu0 %v4095
        %v4844 = vpop.f32.mrf.mxu0
        %v4845 = vadd.f32 %v4556, %v4844
        %v4846 = vpop.f32.mrf.mxu0
        %v4847 = vpop.f32.mrf.mxu0
        %v4848 = vadd.f32 %v4559, %v4847
        %v4849 = vpop.f32.mrf.mxu0
        %4850 = vmatprep.mubr.bf16.mxu0 %v4100
        %4851 = vmatmul.mubr.bf16.gmra.mxu0 %v4099
        %v4852 = vpop.f32.mrf.mxu0
        %v4853 = vadd.f32 %v4564, %v4852
        %v4854 = vpop.f32.mrf.mxu0
        %v4855 = vpop.f32.mrf.mxu0
        %v4856 = vadd.f32 %v4567, %v4855
        %v4857 = vpop.f32.mrf.mxu0
        %4858 = vmatprep.mubr.bf16.mxu0 %v4104
        %4859 = vmatmul.mubr.bf16.gmra.mxu0 %v4103
        %v4860 = vpop.f32.mrf.mxu0
        %v4861 = vadd.f32 %v4572, %v4860
        %v4862 = vpop.f32.mrf.mxu0
        %v4863 = vpop.f32.mrf.mxu0
        %v4864 = vadd.f32 %v4575, %v4863
        %v4865 = vpop.f32.mrf.mxu0
        %4866 = vmatprep.mubr.bf16.mxu0 %v4108
        %4867 = vmatmul.mubr.bf16.gmra.mxu0 %v4107
        %v4868 = vpop.f32.mrf.mxu0
        %v4869 = vadd.f32 %v4580, %v4868
        %v4870 = vpop.f32.mrf.mxu0
        %v4871 = vpop.f32.mrf.mxu0
        %v4872 = vadd.f32 %v4583, %v4871
        %v4873 = vpop.f32.mrf.mxu0
        %4874 = vmatprep.mubr.bf16.mxu0 %v4112
        %4875 = vmatmul.mubr.bf16.gmra.mxu0 %v4111
        %v4876 = vpop.f32.mrf.mxu0
        %v4877 = vadd.f32 %v4588, %v4876
        %v4878 = vpop.f32.mrf.mxu0
        %v4879 = vpop.f32.mrf.mxu0
        %v4880 = vadd.f32 %v4591, %v4879
        %v4881 = vpop.f32.mrf.mxu0
        %4882 = vmatprep.mubr.bf16.mxu0 %v4116
        %4883 = vmatmul.mubr.bf16.gmra.mxu0 %v4115
        %v4884 = vpop.f32.mrf.mxu0
        %v4885 = vadd.f32 %v4596, %v4884
        %v4886 = vpop.f32.mrf.mxu0
        %v4887 = vpop.f32.mrf.mxu0
        %v4888 = vadd.f32 %v4599, %v4887
        %v4889 = vpop.f32.mrf.mxu0
        %4890 = vmatprep.mubr.bf16.mxu0 %v4120
        %4891 = vmatmul.mubr.bf16.gmra.mxu0 %v4119
        %v4892 = vpop.f32.mrf.mxu0
        %v4893 = vadd.f32 %v4604, %v4892
        %v4894 = vpop.f32.mrf.mxu0
        %v4895 = vpop.f32.mrf.mxu0
        %v4896 = vadd.f32 %v4607, %v4895
        %v4897 = vpop.f32.mrf.mxu0
        %4898 = vmatprep.mubr.bf16.mxu0 %v4124
        %4899 = vmatmul.mubr.bf16.gmra.mxu0 %v4123
        %v4900 = vpop.f32.mrf.mxu0
        %v4901 = vadd.f32 %v4612, %v4900
        %v4902 = vpop.f32.mrf.mxu0
        %v4903 = vpop.f32.mrf.mxu0
        %v4904 = vadd.f32 %v4615, %v4903
        %v4905 = vpop.f32.mrf.mxu0
        %4906 = vmatprep.mubr.bf16.mxu0 %v4128
        %4907 = vmatmul.mubr.bf16.gmra.mxu0 %v4127
        %v4908 = vpop.f32.mrf.mxu0
        %v4909 = vadd.f32 %v4620, %v4908
        %v4910 = vpop.f32.mrf.mxu0
        %v4911 = vpop.f32.mrf.mxu0
        %v4912 = vadd.f32 %v4623, %v4911
        %v4913 = vpop.f32.mrf.mxu0
        %4914 = vmatprep.mubr.bf16.mxu0 %v4132
        %4915 = vmatmul.mubr.bf16.gmra.mxu0 %v4131
        %v4916 = vpop.f32.mrf.mxu0
        %v4917 = vadd.f32 %v4628, %v4916
        %v4918 = vpop.f32.mrf.mxu0
        %v4919 = vpop.f32.mrf.mxu0
        %v4920 = vadd.f32 %v4631, %v4919
        %v4921 = vpop.f32.mrf.mxu0
        %4922 = vmatprep.mubr.bf16.mxu0 %v4136
        %4923 = vmatmul.mubr.bf16.gmra.mxu0 %v4135
        %v4924 = vpop.f32.mrf.mxu0
        %v4925 = vadd.f32 %v4636, %v4924
        %v4926 = vpop.f32.mrf.mxu0
        %v4927 = vpop.f32.mrf.mxu0
        %v4928 = vadd.f32 %v4639, %v4927
        %v4929 = vpop.f32.mrf.mxu0
        %4930 = vmatprep.mubr.bf16.mxu0 %v4140
        %4931 = vmatmul.mubr.bf16.gmra.mxu0 %v4139
        %v4932 = vpop.f32.mrf.mxu0
        %v4933 = vadd.f32 %v4644, %v4932
        %v4934 = vpop.f32.mrf.mxu0
        %v4935 = vpop.f32.mrf.mxu0
        %v4936 = vadd.f32 %v4647, %v4935
        %v4937 = vpop.f32.mrf.mxu0
        %4938 = vmatprep.mubr.bf16.mxu0 %v4144
        %4939 = vmatmul.mubr.bf16.gmra.mxu0 %v4143
        %v4940 = vpop.f32.mrf.mxu0
        %v4941 = vadd.f32 %v4652, %v4940
        %v4942 = vpop.f32.mrf.mxu0
        %v4943 = vpop.f32.mrf.mxu0
        %v4944 = vadd.f32 %v4655, %v4943
        %v4945 = vpop.f32.mrf.mxu0
        %4946 = vmatprep.mubr.bf16.mxu0 %v4148
        %4947 = vmatmul.mubr.bf16.gmra.mxu0 %v4147
        %v4948 = vpop.f32.mrf.mxu0
        %v4949 = vadd.f32 %v4660, %v4948
        %v4950 = vpop.f32.mrf.mxu0
        %v4951 = vpop.f32.mrf.mxu0
        %v4952 = vadd.f32 %v4663, %v4951
        %v4953 = vpop.f32.mrf.mxu0
        %4954 = vmatprep.mubr.bf16.mxu0 %v4152
        %4955 = vmatmul.mubr.bf16.gmra.mxu0 %v4151
        %v4956 = vpop.f32.mrf.mxu0
        %v4957 = vadd.f32 %v4668, %v4956
        %v4958 = vpop.f32.mrf.mxu0
        %v4959 = vpop.f32.mrf.mxu0
        %v4960 = vadd.f32 %v4671, %v4959
        %v4961 = vpop.f32.mrf.mxu0
        %4962 = vmatprep.mubr.bf16.mxu0 %v4156
        %4963 = vmatmul.mubr.bf16.gmra.mxu0 %v4155
        %v4964 = vpop.f32.mrf.mxu0
        %v4965 = vadd.f32 %v4676, %v4964
        %v4966 = vpop.f32.mrf.mxu0
        %v4967 = vpop.f32.mrf.mxu0
        %v4968 = vadd.f32 %v4679, %v4967
        %v4969 = vpop.f32.mrf.mxu0
        %4970 = vmatprep.mubr.bf16.mxu0 %v4160
        %4971 = vmatmul.mubr.bf16.gmra.mxu0 %v4159
        %v4972 = vpop.f32.mrf.mxu0
        %v4973 = vadd.f32 %v4684, %v4972
        %v4974 = vpop.f32.mrf.mxu0
        %v4975 = vpop.f32.mrf.mxu0
        %v4976 = vadd.f32 %v4687, %v4975
        %v4977 = vpop.f32.mrf.mxu0
        %4978 = vmatprep.mubr.bf16.mxu0 %v4164
        %4979 = vmatmul.mubr.bf16.gmra.mxu0 %v4163
        %v4980 = vpop.f32.mrf.mxu0
        %v4981 = vadd.f32 %v4692, %v4980
        %v4982 = vpop.f32.mrf.mxu0
        %v4983 = vpop.f32.mrf.mxu0
        %v4984 = vadd.f32 %v4695, %v4983
        %v4985 = vpop.f32.mrf.mxu0
        %4986 = vmatprep.mubr.bf16.mxu0 %v4168
        %4987 = vmatmul.mubr.bf16.gmra.mxu0 %v4167
        %v4988 = vpop.f32.mrf.mxu0
        %v4989 = vadd.f32 %v4700, %v4988
        %v4990 = vpop.f32.mrf.mxu0
        %v4991 = vpop.f32.mrf.mxu0
        %v4992 = vadd.f32 %v4703, %v4991
        %v4993 = vpop.f32.mrf.mxu0
        %4994 = vmatprep.mubr.bf16.mxu0 %v4172
        %4995 = vmatmul.mubr.bf16.gmra.mxu0 %v4171
        %v4996 = vpop.f32.mrf.mxu0
        %v4997 = vadd.f32 %v4708, %v4996
        %v4998 = vpop.f32.mrf.mxu0
        %v4999 = vpop.f32.mrf.mxu0
        %v5000 = vadd.f32 %v4711, %v4999
        %v5001 = vpop.f32.mrf.mxu0
        %5002 = vmatprep.mubr.bf16.mxu0 %v4176
        %5003 = vmatmul.mubr.bf16.gmra.mxu0 %v4175
        %v5004 = vpop.f32.mrf.mxu0
        %v5005 = vadd.f32 %v4716, %v5004
        %v5006 = vpop.f32.mrf.mxu0
        %v5007 = vpop.f32.mrf.mxu0
        %v5008 = vadd.f32 %v4719, %v5007
        %v5009 = vpop.f32.mrf.mxu0
        %5010 = vdwg.mxu0
        %v5011 = vld [vmem:[%s3] sm:$0xff]
        %v5012 = vld [vmem:[%s3 + $0x8] sm:$0xff]
        %v5013 = vld [vmem:[%s3 + $0x10] sm:$0xff]
        %v5014 = vld [vmem:[%s3 + $0x18] sm:$0xff]
        %v5015 = vld [vmem:[%s3 + $0x20] sm:$0xff]
        %v5016 = vld [vmem:[%s3 + $0x28] sm:$0xff]
        %v5017 = vld [vmem:[%s3 + $0x30] sm:$0xff]
        %v5018 = vld [vmem:[%s3 + $0x38] sm:$0xff]
        %v5019 = vld [vmem:[%s3 + $0x40] sm:$0xff]
        %v5020 = vld [vmem:[%s3 + $0x48] sm:$0xff]
        %v5021 = vld [vmem:[%s3 + $0x50] sm:$0xff]
        %v5022 = vld [vmem:[%s3 + $0x58] sm:$0xff]
        %v5023 = vld [vmem:[%s3 + $0x60] sm:$0xff]
        %v5024 = vld [vmem:[%s3 + $0x68] sm:$0xff]
        %v5025 = vld [vmem:[%s3 + $0x70] sm:$0xff]
        %v5026 = vld [vmem:[%s3 + $0x78] sm:$0xff]
        %v5027 = vld [vmem:[%s3 + $0x80] sm:$0xff]
        %v5028 = vld [vmem:[%s3 + $0x88] sm:$0xff]
        %v5029 = vld [vmem:[%s3 + $0x90] sm:$0xff]
        %v5030 = vld [vmem:[%s3 + $0x98] sm:$0xff]
        %v5031 = vld [vmem:[%s3 + $0xa0] sm:$0xff]
        %v5032 = vld [vmem:[%s3 + $0xa8] sm:$0xff]
        %v5033 = vld [vmem:[%s3 + $0xb0] sm:$0xff]
        %v5034 = vld [vmem:[%s3 + $0xb8] sm:$0xff]
        %v5035 = vld [vmem:[%s3 + $0xc0] sm:$0xff]
        %v5036 = vld [vmem:[%s3 + $0xc8] sm:$0xff]
        %v5037 = vld [vmem:[%s3 + $0xd0] sm:$0xff]
        %v5038 = vld [vmem:[%s3 + $0xd8] sm:$0xff]
        %v5039 = vld [vmem:[%s3 + $0xe0] sm:$0xff]
        %v5040 = vld [vmem:[%s3 + $0xe8] sm:$0xff]
        %v5041 = vld [vmem:[%s3 + $0xf0] sm:$0xff]
        %v5042 = vld [vmem:[%s3 + $0xf8] sm:$0xff]
        %v5043 = vld [vmem:[%s3 + $0x100] sm:$0xff]
        %v5044 = vld [vmem:[%s3 + $0x108] sm:$0xff]
        %v5045 = vld [vmem:[%s3 + $0x110] sm:$0xff]
        %v5046 = vld [vmem:[%s3 + $0x118] sm:$0xff]
        %v5047 = vld [vmem:[%s3 + $0x120] sm:$0xff]
        %v5048 = vld [vmem:[%s3 + $0x128] sm:$0xff]
        %v5049 = vld [vmem:[%s3 + $0x130] sm:$0xff]
        %v5050 = vld [vmem:[%s3 + $0x138] sm:$0xff]
        %v5051 = vpack.c.bf16 %v4760, %v4757
        %v5052 = vpack.c.bf16 %v4768, %v4765
        %v5053 = vpack.c.bf16 %v4776, %v4773
        %v5054 = vpack.c.bf16 %v4784, %v4781
        %v5055 = vpack.c.bf16 %v4792, %v4789
        %v5056 = vpack.c.bf16 %v4800, %v4797
        %v5057 = vpack.c.bf16 %v4808, %v4805
        %v5058 = vpack.c.bf16 %v4816, %v4813
        %v5059 = vpack.c.bf16 %v4824, %v4821
        %v5060 = vpack.c.bf16 %v4832, %v4829
        %v5061 = vpack.c.bf16 %v4840, %v4837
        %v5062 = vpack.c.bf16 %v4848, %v4845
        %v5063 = vpack.c.bf16 %v4856, %v4853
        %v5064 = vpack.c.bf16 %v4864, %v4861
        %v5065 = vpack.c.bf16 %v4872, %v4869
        %v5066 = vpack.c.bf16 %v4880, %v4877
        %v5067 = vpack.c.bf16 %v4888, %v4885
        %v5068 = vpack.c.bf16 %v4896, %v4893
        %v5069 = vpack.c.bf16 %v4904, %v4901
        %v5070 = vpack.c.bf16 %v4912, %v4909
        %v5071 = vpack.c.bf16 %v4920, %v4917
        %v5072 = vpack.c.bf16 %v4928, %v4925
        %v5073 = vpack.c.bf16 %v4936, %v4933
        %v5074 = vpack.c.bf16 %v4944, %v4941
        %v5075 = vpack.c.bf16 %v4952, %v4949
        %v5076 = vpack.c.bf16 %v4960, %v4957
        %v5077 = vpack.c.bf16 %v4968, %v4965
        %v5078 = vpack.c.bf16 %v4976, %v4973
        %v5079 = vpack.c.bf16 %v4984, %v4981
        %v5080 = vpack.c.bf16 %v4992, %v4989
        %v5081 = vpack.c.bf16 %v5000, %v4997
        %v5082 = vpack.c.bf16 %v5008, %v5005
        %v5123 = vunpack.c.l.b16 %v5011
        %v5124 = vunpack.c.h.b16 %v5011
        %v5125 = vunpack.c.l.b16 %v5012
        %v5126 = vunpack.c.h.b16 %v5012
        %v5127 = vunpack.c.l.b16 %v5013
        %v5128 = vunpack.c.h.b16 %v5013
        %v5129 = vunpack.c.l.b16 %v5014
        %v5130 = vunpack.c.h.b16 %v5014
        %v5131 = vunpack.c.l.b16 %v5015
        %v5132 = vunpack.c.h.b16 %v5015
        %v5133 = vunpack.c.l.b16 %v5016
        %v5134 = vunpack.c.h.b16 %v5016
        %v5135 = vunpack.c.l.b16 %v5017
        %v5136 = vunpack.c.h.b16 %v5017
        %v5137 = vunpack.c.l.b16 %v5018
        %v5138 = vunpack.c.h.b16 %v5018
        %v5139 = vunpack.c.l.b16 %v5019
        %v5140 = vunpack.c.h.b16 %v5019
        %v5141 = vunpack.c.l.b16 %v5020
        %v5142 = vunpack.c.h.b16 %v5020
        %v5143 = vunpack.c.l.b16 %v5021
        %v5144 = vunpack.c.h.b16 %v5021
        %v5145 = vunpack.c.l.b16 %v5022
        %v5146 = vunpack.c.h.b16 %v5022
        %v5147 = vunpack.c.l.b16 %v5023
        %v5148 = vunpack.c.h.b16 %v5023
        %v5149 = vunpack.c.l.b16 %v5024
        %v5150 = vunpack.c.h.b16 %v5024
        %v5151 = vunpack.c.l.b16 %v5025
        %v5152 = vunpack.c.h.b16 %v5025
        %v5153 = vunpack.c.l.b16 %v5026
        %v5154 = vunpack.c.h.b16 %v5026
        %v5155 = vunpack.c.l.b16 %v5027
        %v5156 = vunpack.c.h.b16 %v5027
        %v5157 = vunpack.c.l.b16 %v5028
        %v5158 = vunpack.c.h.b16 %v5028
        %v5159 = vunpack.c.l.b16 %v5029
        %v5160 = vunpack.c.h.b16 %v5029
        %v5161 = vunpack.c.l.b16 %v5030
        %v5162 = vunpack.c.h.b16 %v5030
        %v5163 = vunpack.c.l.b16 %v5031
        %v5164 = vunpack.c.h.b16 %v5031
        %v5165 = vunpack.c.l.b16 %v5032
        %v5166 = vunpack.c.h.b16 %v5032
        %v5167 = vunpack.c.l.b16 %v5033
        %v5168 = vunpack.c.h.b16 %v5033
        %v5169 = vunpack.c.l.b16 %v5034
        %v5170 = vunpack.c.h.b16 %v5034
        %v5171 = vunpack.c.l.b16 %v5035
        %v5172 = vunpack.c.h.b16 %v5035
        %v5173 = vunpack.c.l.b16 %v5036
        %v5174 = vunpack.c.h.b16 %v5036
        %v5175 = vunpack.c.l.b16 %v5037
        %v5176 = vunpack.c.h.b16 %v5037
        %v5177 = vunpack.c.l.b16 %v5038
        %v5178 = vunpack.c.h.b16 %v5038
        %v5179 = vunpack.c.l.b16 %v5039
        %v5180 = vunpack.c.h.b16 %v5039
        %v5181 = vunpack.c.l.b16 %v5040
        %v5182 = vunpack.c.h.b16 %v5040
        %v5183 = vunpack.c.l.b16 %v5041
        %v5184 = vunpack.c.h.b16 %v5041
        %v5185 = vunpack.c.l.b16 %v5042
        %v5186 = vunpack.c.h.b16 %v5042
        %v5187 = vunpack.c.l.b16 %v5043
        %v5188 = vunpack.c.h.b16 %v5043
        %v5189 = vunpack.c.l.b16 %v5044
        %v5190 = vunpack.c.h.b16 %v5044
        %v5191 = vunpack.c.l.b16 %v5045
        %v5192 = vunpack.c.h.b16 %v5045
        %v5193 = vunpack.c.l.b16 %v5046
        %v5194 = vunpack.c.h.b16 %v5046
        %v5195 = vunpack.c.l.b16 %v5047
        %v5196 = vunpack.c.h.b16 %v5047
        %v5197 = vunpack.c.l.b16 %v5048
        %v5198 = vunpack.c.h.b16 %v5048
        %v5199 = vunpack.c.l.b16 %v5049
        %v5200 = vunpack.c.h.b16 %v5049
        %v5201 = vunpack.c.l.b16 %v5050
        %v5202 = vunpack.c.h.b16 %v5050
        %v5203 = vpack.c.b16 %v5127, %v5123
        %v5204 = vpack.c.b16 %v5128, %v5124
        %v5205 = vpack.c.b16 %v5129, %v5125
        %v5206 = vpack.c.b16 %v5130, %v5126
        %v5207 = vpack.c.b16 %v5135, %v5131
        %v5208 = vpack.c.b16 %v5136, %v5132
        %v5209 = vpack.c.b16 %v5137, %v5133
        %v5210 = vpack.c.b16 %v5138, %v5134
        %v5211 = vpack.c.b16 %v5143, %v5139
        %v5212 = vpack.c.b16 %v5144, %v5140
        %v5213 = vpack.c.b16 %v5145, %v5141
        %v5214 = vpack.c.b16 %v5146, %v5142
        %v5215 = vpack.c.b16 %v5151, %v5147
        %v5216 = vpack.c.b16 %v5152, %v5148
        %v5217 = vpack.c.b16 %v5153, %v5149
        %v5218 = vpack.c.b16 %v5154, %v5150
        %v5219 = vpack.c.b16 %v5159, %v5155
        %v5220 = vpack.c.b16 %v5160, %v5156
        %v5221 = vpack.c.b16 %v5161, %v5157
        %v5222 = vpack.c.b16 %v5162, %v5158
        %v5223 = vpack.c.b16 %v5167, %v5163
        %v5224 = vpack.c.b16 %v5168, %v5164
        %v5225 = vpack.c.b16 %v5169, %v5165
        %v5226 = vpack.c.b16 %v5170, %v5166
        %v5227 = vpack.c.b16 %v5175, %v5171
        %v5228 = vpack.c.b16 %v5176, %v5172
        %v5229 = vpack.c.b16 %v5177, %v5173
        %v5230 = vpack.c.b16 %v5178, %v5174
        %v5231 = vpack.c.b16 %v5183, %v5179
        %v5232 = vpack.c.b16 %v5184, %v5180
        %v5233 = vpack.c.b16 %v5185, %v5181
        %v5234 = vpack.c.b16 %v5186, %v5182
        %v5235 = vpack.c.b16 %v5191, %v5187
        %v5236 = vpack.c.b16 %v5192, %v5188
        %v5237 = vpack.c.b16 %v5193, %v5189
        %v5238 = vpack.c.b16 %v5194, %v5190
        %v5239 = vpack.c.b16 %v5199, %v5195
        %v5240 = vpack.c.b16 %v5200, %v5196
        %v5241 = vpack.c.b16 %v5201, %v5197
        %v5242 = vpack.c.b16 %v5202, %v5198
        %5283 = vmatprep.subr.bf16.mxu0 0
        %5284 = vmatpush1.bf16.msra.mxu0 %v5058
        %5285 = vmatprep.subr.bf16.mxu0 0
        %5286 = vmatpush1.bf16.msra.mxu0 %v5057
        %5287 = vmatprep.subr.bf16.mxu0 0
        %5288 = vmatpush1.bf16.msra.mxu0 %v5056
        %5289 = vmatprep.subr.bf16.mxu0 0
        %5290 = vmatpush1.bf16.msra.mxu0 %v5055
        %5291 = vmatprep.subr.bf16.mxu0 0
        %5292 = vmatpush1.bf16.msra.mxu0 %v5054
        %5293 = vmatprep.subr.bf16.mxu0 0
        %5294 = vmatpush1.bf16.msra.mxu0 %v5053
        %5295 = vmatprep.subr.bf16.mxu0 0
        %5296 = vmatpush1.bf16.msra.mxu0 %v5052
        %5297 = vmatprep.subr.bf16.mxu0 0
        %5298 = vmatpush1.bf16.msra.mxu0 %v5051
        %5299 = vmatprep.subr.bf16.mxu0 0
        %5300 = vmatpush2.bf16.msra.mxu0 %v5066
        %5301 = vmatprep.subr.bf16.mxu0 0
        %5302 = vmatpush2.bf16.msra.mxu0 %v5065
        %5303 = vmatprep.subr.bf16.mxu0 0
        %5304 = vmatpush2.bf16.msra.mxu0 %v5064
        %5305 = vmatprep.subr.bf16.mxu0 0
        %5306 = vmatpush2.bf16.msra.mxu0 %v5063
        %5307 = vmatprep.subr.bf16.mxu0 0
        %5308 = vmatpush2.bf16.msra.mxu0 %v5062
        %5309 = vmatprep.subr.bf16.mxu0 0
        %5310 = vmatpush2.bf16.msra.mxu0 %v5061
        %5311 = vmatprep.subr.bf16.mxu0 0
        %5312 = vmatpush2.bf16.msra.mxu0 %v5060
        %5313 = vmatprep.subr.bf16.mxu0 0
        %5314 = vmatpush2.bf16.msra.mxu0 %v5059
        %5315 = vmatprep.mubr.bf16.mxu0 %v5204
        %5316 = vmatmul.mubr.bf16.gmra.mxu0 %v5203
        %v5317 = vpop.f32.mrf.mxu0
        %v5318 = vadd.f32 0.0, %v5317
        %v5319 = vpop.f32.mrf.mxu0
        %v5320 = vpop.f32.mrf.mxu0
        %v5321 = vadd.f32 0.0, %v5320
        %v5322 = vpop.f32.mrf.mxu0
        %5323 = vmatprep.mubr.bf16.mxu0 %v5208
        %5324 = vmatmul.mubr.bf16.gmra.mxu0 %v5207
        %v5325 = vpop.f32.mrf.mxu0
        %v5326 = vadd.f32 0.0, %v5325
        %v5327 = vpop.f32.mrf.mxu0
        %v5328 = vpop.f32.mrf.mxu0
        %v5329 = vadd.f32 0.0, %v5328
        %v5330 = vpop.f32.mrf.mxu0
        %5331 = vmatprep.mubr.bf16.mxu0 %v5212
        %5332 = vmatmul.mubr.bf16.gmra.mxu0 %v5211
        %v5333 = vpop.f32.mrf.mxu0
        %v5334 = vadd.f32 0.0, %v5333
        %v5335 = vpop.f32.mrf.mxu0
        %v5336 = vpop.f32.mrf.mxu0
        %v5337 = vadd.f32 0.0, %v5336
        %v5338 = vpop.f32.mrf.mxu0
        %5339 = vmatprep.mubr.bf16.mxu0 %v5216
        %5340 = vmatmul.mubr.bf16.gmra.mxu0 %v5215
        %v5341 = vpop.f32.mrf.mxu0
        %v5342 = vadd.f32 0.0, %v5341
        %v5343 = vpop.f32.mrf.mxu0
        %v5344 = vpop.f32.mrf.mxu0
        %v5345 = vadd.f32 0.0, %v5344
        %v5346 = vpop.f32.mrf.mxu0
        %5347 = vmatprep.mubr.bf16.mxu0 %v5220
        %5348 = vmatmul.mubr.bf16.gmra.mxu0 %v5219
        %v5349 = vpop.f32.mrf.mxu0
        %v5350 = vadd.f32 0.0, %v5349
        %v5351 = vpop.f32.mrf.mxu0
        %v5352 = vpop.f32.mrf.mxu0
        %v5353 = vadd.f32 0.0, %v5352
        %v5354 = vpop.f32.mrf.mxu0
        %5355 = vmatprep.mubr.bf16.mxu0 %v5224
        %5356 = vmatmul.mubr.bf16.gmra.mxu0 %v5223
        %v5357 = vpop.f32.mrf.mxu0
        %v5358 = vadd.f32 0.0, %v5357
        %v5359 = vpop.f32.mrf.mxu0
        %v5360 = vpop.f32.mrf.mxu0
        %v5361 = vadd.f32 0.0, %v5360
        %v5362 = vpop.f32.mrf.mxu0
        %5363 = vmatprep.mubr.bf16.mxu0 %v5228
        %5364 = vmatmul.mubr.bf16.gmra.mxu0 %v5227
        %v5365 = vpop.f32.mrf.mxu0
        %v5366 = vadd.f32 0.0, %v5365
        %v5367 = vpop.f32.mrf.mxu0
        %v5368 = vpop.f32.mrf.mxu0
        %v5369 = vadd.f32 0.0, %v5368
        %v5370 = vpop.f32.mrf.mxu0
        %5371 = vmatprep.mubr.bf16.mxu0 %v5232
        %5372 = vmatmul.mubr.bf16.gmra.mxu0 %v5231
        %v5373 = vpop.f32.mrf.mxu0
        %v5374 = vadd.f32 0.0, %v5373
        %v5375 = vpop.f32.mrf.mxu0
        %v5376 = vpop.f32.mrf.mxu0
        %v5377 = vadd.f32 0.0, %v5376
        %v5378 = vpop.f32.mrf.mxu0
        %5379 = vmatprep.mubr.bf16.mxu0 %v5236
        %5380 = vmatmul.mubr.bf16.gmra.mxu0 %v5235
        %v5381 = vpop.f32.mrf.mxu0
        %v5382 = vadd.f32 0.0, %v5381
        %v5383 = vpop.f32.mrf.mxu0
        %v5384 = vpop.f32.mrf.mxu0
        %v5385 = vadd.f32 0.0, %v5384
        %v5386 = vpop.f32.mrf.mxu0
        %5387 = vmatprep.mubr.bf16.mxu0 %v5240
        %5388 = vmatmul.mubr.bf16.gmra.mxu0 %v5239
        %v5389 = vpop.f32.mrf.mxu0
        %v5390 = vadd.f32 0.0, %v5389
        %v5391 = vpop.f32.mrf.mxu0
        %v5392 = vpop.f32.mrf.mxu0
        %v5393 = vadd.f32 0.0, %v5392
        %v5394 = vpop.f32.mrf.mxu0
        %5395 = vdwg.mxu0
        %5396 = vmatprep.subr.bf16.mxu0 0
        %5397 = vmatpush1.bf16.msra.mxu0 %v5074
        %5398 = vmatprep.subr.bf16.mxu0 0
        %5399 = vmatpush1.bf16.msra.mxu0 %v5073
        %5400 = vmatprep.subr.bf16.mxu0 0
        %5401 = vmatpush1.bf16.msra.mxu0 %v5072
        %5402 = vmatprep.subr.bf16.mxu0 0
        %5403 = vmatpush1.bf16.msra.mxu0 %v5071
        %5404 = vmatprep.subr.bf16.mxu0 0
        %5405 = vmatpush1.bf16.msra.mxu0 %v5070
        %5406 = vmatprep.subr.bf16.mxu0 0
        %5407 = vmatpush1.bf16.msra.mxu0 %v5069
        %5408 = vmatprep.subr.bf16.mxu0 0
        %5409 = vmatpush1.bf16.msra.mxu0 %v5068
        %5410 = vmatprep.subr.bf16.mxu0 0
        %5411 = vmatpush1.bf16.msra.mxu0 %v5067
        %5412 = vmatprep.subr.bf16.mxu0 0
        %5413 = vmatpush2.bf16.msra.mxu0 %v5082
        %5414 = vmatprep.subr.bf16.mxu0 0
        %5415 = vmatpush2.bf16.msra.mxu0 %v5081
        %5416 = vmatprep.subr.bf16.mxu0 0
        %5417 = vmatpush2.bf16.msra.mxu0 %v5080
        %5418 = vmatprep.subr.bf16.mxu0 0
        %5419 = vmatpush2.bf16.msra.mxu0 %v5079
        %5420 = vmatprep.subr.bf16.mxu0 0
        %5421 = vmatpush2.bf16.msra.mxu0 %v5078
        %5422 = vmatprep.subr.bf16.mxu0 0
        %5423 = vmatpush2.bf16.msra.mxu0 %v5077
        %5424 = vmatprep.subr.bf16.mxu0 0
        %5425 = vmatpush2.bf16.msra.mxu0 %v5076
        %5426 = vmatprep.subr.bf16.mxu0 0
        %5427 = vmatpush2.bf16.msra.mxu0 %v5075
        %5428 = vmatprep.mubr.bf16.mxu0 %v5206
        %5429 = vmatmul.mubr.bf16.gmra.mxu0 %v5205
        %v5430 = vpop.f32.mrf.mxu0
        %v5431 = vadd.f32 %v5318, %v5430
        %v5432 = vpop.f32.mrf.mxu0
        %v5433 = vpop.f32.mrf.mxu0
        %v5434 = vadd.f32 %v5321, %v5433
        %v5435 = vpop.f32.mrf.mxu0
        %5436 = vmatprep.mubr.bf16.mxu0 %v5210
        %5437 = vmatmul.mubr.bf16.gmra.mxu0 %v5209
        %v5438 = vpop.f32.mrf.mxu0
        %v5439 = vadd.f32 %v5326, %v5438
        %v5440 = vpop.f32.mrf.mxu0
        %v5441 = vpop.f32.mrf.mxu0
        %v5442 = vadd.f32 %v5329, %v5441
        %v5443 = vpop.f32.mrf.mxu0
        %5444 = vmatprep.mubr.bf16.mxu0 %v5214
        %5445 = vmatmul.mubr.bf16.gmra.mxu0 %v5213
        %v5446 = vpop.f32.mrf.mxu0
        %v5447 = vadd.f32 %v5334, %v5446
        %v5448 = vpop.f32.mrf.mxu0
        %v5449 = vpop.f32.mrf.mxu0
        %v5450 = vadd.f32 %v5337, %v5449
        %v5451 = vpop.f32.mrf.mxu0
        %5452 = vmatprep.mubr.bf16.mxu0 %v5218
        %5453 = vmatmul.mubr.bf16.gmra.mxu0 %v5217
        %v5454 = vpop.f32.mrf.mxu0
        %v5455 = vadd.f32 %v5342, %v5454
        %v5456 = vpop.f32.mrf.mxu0
        %v5457 = vpop.f32.mrf.mxu0
        %v5458 = vadd.f32 %v5345, %v5457
        %v5459 = vpop.f32.mrf.mxu0
        %5460 = vmatprep.mubr.bf16.mxu0 %v5222
        %5461 = vmatmul.mubr.bf16.gmra.mxu0 %v5221
        %v5462 = vpop.f32.mrf.mxu0
        %v5463 = vadd.f32 %v5350, %v5462
        %v5464 = vpop.f32.mrf.mxu0
        %v5465 = vpop.f32.mrf.mxu0
        %v5466 = vadd.f32 %v5353, %v5465
        %v5467 = vpop.f32.mrf.mxu0
        %5468 = vmatprep.mubr.bf16.mxu0 %v5226
        %5469 = vmatmul.mubr.bf16.gmra.mxu0 %v5225
        %v5470 = vpop.f32.mrf.mxu0
        %v5471 = vadd.f32 %v5358, %v5470
        %v5472 = vpop.f32.mrf.mxu0
        %v5473 = vpop.f32.mrf.mxu0
        %v5474 = vadd.f32 %v5361, %v5473
        %v5475 = vpop.f32.mrf.mxu0
        %5476 = vmatprep.mubr.bf16.mxu0 %v5230
        %5477 = vmatmul.mubr.bf16.gmra.mxu0 %v5229
        %v5478 = vpop.f32.mrf.mxu0
        %v5479 = vadd.f32 %v5366, %v5478
        %v5480 = vpop.f32.mrf.mxu0
        %v5481 = vpop.f32.mrf.mxu0
        %v5482 = vadd.f32 %v5369, %v5481
        %v5483 = vpop.f32.mrf.mxu0
        %5484 = vmatprep.mubr.bf16.mxu0 %v5234
        %5485 = vmatmul.mubr.bf16.gmra.mxu0 %v5233
        %v5486 = vpop.f32.mrf.mxu0
        %v5487 = vadd.f32 %v5374, %v5486
        %v5488 = vpop.f32.mrf.mxu0
        %v5489 = vpop.f32.mrf.mxu0
        %v5490 = vadd.f32 %v5377, %v5489
        %v5491 = vpop.f32.mrf.mxu0
        %5492 = vmatprep.mubr.bf16.mxu0 %v5238
        %5493 = vmatmul.mubr.bf16.gmra.mxu0 %v5237
        %v5494 = vpop.f32.mrf.mxu0
        %v5495 = vadd.f32 %v5382, %v5494
        %v5496 = vpop.f32.mrf.mxu0
        %v5497 = vpop.f32.mrf.mxu0
        %v5498 = vadd.f32 %v5385, %v5497
        %v5499 = vpop.f32.mrf.mxu0
        %5500 = vmatprep.mubr.bf16.mxu0 %v5242
        %5501 = vmatmul.mubr.bf16.gmra.mxu0 %v5241
        %v5502 = vpop.f32.mrf.mxu0
        %v5503 = vadd.f32 %v5390, %v5502
        %v5504 = vpop.f32.mrf.mxu0
        %v5505 = vpop.f32.mrf.mxu0
        %v5506 = vadd.f32 %v5393, %v5505
        %v5507 = vpop.f32.mrf.mxu0
        %5508 = vdwg.mxu0
        %v5509 = vpack.c.bf16 %v5434, %v5431
        %v5510 = vpack.c.bf16 %v5442, %v5439
        %v5511 = vpack.c.bf16 %v5450, %v5447
        %v5512 = vpack.c.bf16 %v5458, %v5455
        %v5513 = vpack.c.bf16 %v5466, %v5463
        %v5514 = vpack.c.bf16 %v5474, %v5471
        %v5515 = vpack.c.bf16 %v5482, %v5479
        %v5516 = vpack.c.bf16 %v5490, %v5487
        %v5517 = vpack.c.bf16 %v5498, %v5495
        %v5518 = vpack.c.bf16 %v5506, %v5503
        %v5519 = vld [vmem:[%s4] sm:$0xff]
        %v5520 = vld [vmem:[%s4 + $0x8] sm:$0xff]
        %v5521 = vld [vmem:[%s4 + $0x10] sm:$0xff]
        %v5522 = vld [vmem:[%s4 + $0x18] sm:$0xff]
        %v5523 = vld [vmem:[%s4 + $0x20] sm:$0xff]
        %v5524 = vld [vmem:[%s4 + $0x28] sm:$0xff]
        %v5525 = vld [vmem:[%s4 + $0x30] sm:$0xff]
        %v5526 = vld [vmem:[%s4 + $0x38] sm:$0xff]
        %v5527 = vld [vmem:[%s4 + $0x40] sm:$0xff]
        %v5528 = vld [vmem:[%s4 + $0x48] sm:$0xff]
        %v5529 = vld [vmem:[%s4 + $0x50] sm:$0xff]
        %v5530 = vld [vmem:[%s4 + $0x58] sm:$0xff]
        %v5531 = vld [vmem:[%s4 + $0x60] sm:$0xff]
        %v5532 = vld [vmem:[%s4 + $0x68] sm:$0xff]
        %v5533 = vld [vmem:[%s4 + $0x70] sm:$0xff]
        %v5534 = vld [vmem:[%s4 + $0x78] sm:$0xff]
        %s5535 = scalar_lea.vmem %s4, 128
        %v5536 = vld [vmem:[%s5535] sm:$0xff]
        %v5537 = vld [vmem:[%s5535 + $0x8] sm:$0xff]
        %v5538 = vld [vmem:[%s5535 + $0x10] sm:$0xff]
        %v5539 = vld [vmem:[%s5535 + $0x18] sm:$0xff]
        %v5540 = vld [vmem:[%s5535 + $0x20] sm:$0xff]
        %v5541 = vld [vmem:[%s5535 + $0x28] sm:$0xff]
        %v5542 = vld [vmem:[%s5535 + $0x30] sm:$0xff]
        %v5543 = vld [vmem:[%s5535 + $0x38] sm:$0xff]
        %v5544 = vld [vmem:[%s5535 + $0x40] sm:$0xff]
        %v5545 = vld [vmem:[%s5535 + $0x48] sm:$0xff]
        %v5546 = vld [vmem:[%s5535 + $0x50] sm:$0xff]
        %v5547 = vld [vmem:[%s5535 + $0x58] sm:$0xff]
        %v5548 = vld [vmem:[%s5535 + $0x60] sm:$0xff]
        %v5549 = vld [vmem:[%s5535 + $0x68] sm:$0xff]
        %v5550 = vld [vmem:[%s5535 + $0x70] sm:$0xff]
        %v5551 = vld [vmem:[%s5535 + $0x78] sm:$0xff]
        %vm5552 = vsmask.f32 7424
        %v5554 = vshrl.u32 %v5509, 16
        %v5556 = vshll.u32 %v5509, 16
        %v5558 = vrot.slane %v5556, 1
        %v5559 = vor.u32 %v5554, %v5558
        %v5561 = vshll.u32 %v5510, 16
        %v5563 = vrot.slane %v5561, 1
        %v5564 = vsel %vm5552, %v5559, %v5563
        %v5565 = vshrl.u32 %v5510, 16
        %v5567 = vor.u32 %v5565, %v5563
        %v5569 = vshll.u32 %v5511, 16
        %v5571 = vrot.slane %v5569, 1
        %v5572 = vsel %vm5552, %v5567, %v5571
        %v5573 = vshrl.u32 %v5511, 16
        %v5575 = vor.u32 %v5573, %v5571
        %v5577 = vshll.u32 %v5512, 16
        %v5579 = vrot.slane %v5577, 1
        %v5580 = vsel %vm5552, %v5575, %v5579
        %v5581 = vshrl.u32 %v5512, 16
        %v5583 = vor.u32 %v5581, %v5579
        %v5585 = vshll.u32 %v5513, 16
        %v5587 = vrot.slane %v5585, 1
        %v5588 = vsel %vm5552, %v5583, %v5587
        %v5589 = vshrl.u32 %v5513, 16
        %v5591 = vor.u32 %v5589, %v5587
        %v5593 = vshll.u32 %v5514, 16
        %v5595 = vrot.slane %v5593, 1
        %v5596 = vsel %vm5552, %v5591, %v5595
        %v5597 = vshrl.u32 %v5514, 16
        %v5599 = vor.u32 %v5597, %v5595
        %v5601 = vshll.u32 %v5515, 16
        %v5603 = vrot.slane %v5601, 1
        %v5604 = vsel %vm5552, %v5599, %v5603
        %v5605 = vshrl.u32 %v5515, 16
        %v5607 = vor.u32 %v5605, %v5603
        %v5609 = vshll.u32 %v5516, 16
        %v5611 = vrot.slane %v5609, 1
        %v5612 = vsel %vm5552, %v5607, %v5611
        %v5613 = vshrl.u32 %v5516, 16
        %v5615 = vor.u32 %v5613, %v5611
        %v5617 = vshll.u32 %v5517, 16
        %v5619 = vrot.slane %v5617, 1
        %v5620 = vsel %vm5552, %v5615, %v5619
        %v5621 = vshrl.u32 %v5517, 16
        %v5623 = vor.u32 %v5621, %v5619
        %v5625 = vshll.u32 %v5518, 16
        %v5627 = vrot.slane %v5625, 1
        %v5628 = vsel %vm5552, %v5623, %v5627
        %v5629 = vshrl.u32 %v5518, 16
        %v5631 = vor.u32 %v5629, %v5627
        %v5658 = vunpack.c.l.b16 %v5536
        %v5659 = vunpack.c.h.b16 %v5536
        %v5660 = vunpack.c.l.b16 %v5537
        %v5661 = vunpack.c.h.b16 %v5537
        %v5662 = vunpack.c.l.b16 %v5538
        %v5663 = vunpack.c.h.b16 %v5538
        %v5664 = vunpack.c.l.b16 %v5539
        %v5665 = vunpack.c.h.b16 %v5539
        %v5666 = vunpack.c.l.b16 %v5540
        %v5667 = vunpack.c.h.b16 %v5540
        %v5668 = vunpack.c.l.b16 %v5541
        %v5669 = vunpack.c.h.b16 %v5541
        %v5670 = vunpack.c.l.b16 %v5542
        %v5671 = vunpack.c.h.b16 %v5542
        %v5672 = vunpack.c.l.b16 %v5543
        %v5673 = vunpack.c.h.b16 %v5543
        %v5674 = vunpack.c.l.b16 %v5544
        %v5675 = vunpack.c.h.b16 %v5544
        %v5676 = vunpack.c.l.b16 %v5545
        %v5677 = vunpack.c.h.b16 %v5545
        %v5678 = vunpack.c.l.b16 %v5546
        %v5679 = vunpack.c.h.b16 %v5546
        %v5680 = vunpack.c.l.b16 %v5547
        %v5681 = vunpack.c.h.b16 %v5547
        %v5682 = vunpack.c.l.b16 %v5548
        %v5683 = vunpack.c.h.b16 %v5548
        %v5684 = vunpack.c.l.b16 %v5549
        %v5685 = vunpack.c.h.b16 %v5549
        %v5686 = vunpack.c.l.b16 %v5550
        %v5687 = vunpack.c.h.b16 %v5550
        %v5688 = vunpack.c.l.b16 %v5551
        %v5689 = vunpack.c.h.b16 %v5551
        %v5690 = vpack.c.b16 %v5660, %v5658
        %v5691 = vpack.c.b16 %v5661, %v5659
        %v5692 = vpack.c.b16 %v5664, %v5662
        %v5693 = vpack.c.b16 %v5665, %v5663
        %v5694 = vpack.c.b16 %v5668, %v5666
        %v5695 = vpack.c.b16 %v5669, %v5667
        %v5696 = vpack.c.b16 %v5672, %v5670
        %v5697 = vpack.c.b16 %v5673, %v5671
        %v5698 = vpack.c.b16 %v5676, %v5674
        %v5699 = vpack.c.b16 %v5677, %v5675
        %v5700 = vpack.c.b16 %v5680, %v5678
        %v5701 = vpack.c.b16 %v5681, %v5679
        %v5702 = vpack.c.b16 %v5684, %v5682
        %v5703 = vpack.c.b16 %v5685, %v5683
        %v5704 = vpack.c.b16 %v5688, %v5686
        %v5705 = vpack.c.b16 %v5689, %v5687
        %5722 = vmatprep.subr.bf16.mxu0 %v5705
        %5723 = vmatpush1.bf16.msra.mxu0 %v5704
        %5724 = vmatprep.subr.bf16.mxu0 %v5703
        %5725 = vmatpush1.bf16.msra.mxu0 %v5702
        %5726 = vmatprep.subr.bf16.mxu0 %v5701
        %5727 = vmatpush1.bf16.msra.mxu0 %v5700
        %5728 = vmatprep.subr.bf16.mxu0 %v5699
        %5729 = vmatpush1.bf16.msra.mxu0 %v5698
        %5730 = vmatprep.subr.bf16.mxu0 %v5697
        %5731 = vmatpush1.bf16.msra.mxu0 %v5696
        %5732 = vmatprep.subr.bf16.mxu0 %v5695
        %5733 = vmatpush1.bf16.msra.mxu0 %v5694
        %5734 = vmatprep.subr.bf16.mxu0 %v5693
        %5735 = vmatpush1.bf16.msra.mxu0 %v5692
        %5736 = vmatprep.subr.bf16.mxu0 %v5691
        %5737 = vmatpush1.bf16.msra.mxu0 %v5690
        %5738 = vmatprep.subr.bf16.mxu0 0
        %5739 = vmatpush2.bf16.msra.mxu0 0
        %5740 = vmatprep.subr.bf16.mxu0 0
        %5741 = vmatpush2.bf16.msra.mxu0 0
        %5742 = vmatprep.subr.bf16.mxu0 0
        %5743 = vmatpush2.bf16.msra.mxu0 0
        %5744 = vmatprep.subr.bf16.mxu0 0
        %5745 = vmatpush2.bf16.msra.mxu0 0
        %5746 = vmatprep.subr.bf16.mxu0 0
        %5747 = vmatpush2.bf16.msra.mxu0 0
        %5748 = vmatprep.subr.bf16.mxu0 0
        %5749 = vmatpush2.bf16.msra.mxu0 0
        %5750 = vmatprep.subr.bf16.mxu0 0
        %5751 = vmatpush2.bf16.msra.mxu0 0
        %5752 = vmatprep.subr.bf16.mxu0 0
        %5753 = vmatpush2.bf16.msra.mxu0 0
        %5754 = vmatprep.mubr.bf16.mxu0 0
        %5755 = vmatmul.mubr.bf16.gmra.mxu0 %v5564
        %v5756 = vpop.f32.mrf.mxu0
        %v5757 = vadd.f32 0.0, %v5756
        %v5758 = vpop.f32.mrf.mxu0
        %v5759 = vadd.f32 0.0, %v5758
        %v5760 = vpop.f32.mrf.mxu0
        %v5761 = vadd.f32 0.0, %v5760
        %v5762 = vpop.f32.mrf.mxu0
        %v5763 = vadd.f32 0.0, %v5762
        %5764 = vmatprep.mubr.bf16.mxu0 0
        %5765 = vmatmul.mubr.bf16.gmra.mxu0 %v5572
        %v5766 = vpop.f32.mrf.mxu0
        %v5767 = vadd.f32 0.0, %v5766
        %v5768 = vpop.f32.mrf.mxu0
        %v5769 = vadd.f32 0.0, %v5768
        %v5770 = vpop.f32.mrf.mxu0
        %v5771 = vadd.f32 0.0, %v5770
        %v5772 = vpop.f32.mrf.mxu0
        %v5773 = vadd.f32 0.0, %v5772
        %5774 = vmatprep.mubr.bf16.mxu0 0
        %5775 = vmatmul.mubr.bf16.gmra.mxu0 %v5580
        %v5776 = vpop.f32.mrf.mxu0
        %v5777 = vadd.f32 0.0, %v5776
        %v5778 = vpop.f32.mrf.mxu0
        %v5779 = vadd.f32 0.0, %v5778
        %v5780 = vpop.f32.mrf.mxu0
        %v5781 = vadd.f32 0.0, %v5780
        %v5782 = vpop.f32.mrf.mxu0
        %v5783 = vadd.f32 0.0, %v5782
        %5784 = vmatprep.mubr.bf16.mxu0 0
        %5785 = vmatmul.mubr.bf16.gmra.mxu0 %v5588
        %v5786 = vpop.f32.mrf.mxu0
        %v5787 = vadd.f32 0.0, %v5786
        %v5788 = vpop.f32.mrf.mxu0
        %v5789 = vadd.f32 0.0, %v5788
        %v5790 = vpop.f32.mrf.mxu0
        %v5791 = vadd.f32 0.0, %v5790
        %v5792 = vpop.f32.mrf.mxu0
        %v5793 = vadd.f32 0.0, %v5792
        %5794 = vmatprep.mubr.bf16.mxu0 0
        %5795 = vmatmul.mubr.bf16.gmra.mxu0 %v5596
        %v5796 = vpop.f32.mrf.mxu0
        %v5797 = vadd.f32 0.0, %v5796
        %v5798 = vpop.f32.mrf.mxu0
        %v5799 = vadd.f32 0.0, %v5798
        %v5800 = vpop.f32.mrf.mxu0
        %v5801 = vadd.f32 0.0, %v5800
        %v5802 = vpop.f32.mrf.mxu0
        %v5803 = vadd.f32 0.0, %v5802
        %5804 = vmatprep.mubr.bf16.mxu0 0
        %5805 = vmatmul.mubr.bf16.gmra.mxu0 %v5604
        %v5806 = vpop.f32.mrf.mxu0
        %v5807 = vadd.f32 0.0, %v5806
        %v5808 = vpop.f32.mrf.mxu0
        %v5809 = vadd.f32 0.0, %v5808
        %v5810 = vpop.f32.mrf.mxu0
        %v5811 = vadd.f32 0.0, %v5810
        %v5812 = vpop.f32.mrf.mxu0
        %v5813 = vadd.f32 0.0, %v5812
        %5814 = vmatprep.mubr.bf16.mxu0 0
        %5815 = vmatmul.mubr.bf16.gmra.mxu0 %v5612
        %v5816 = vpop.f32.mrf.mxu0
        %v5817 = vadd.f32 0.0, %v5816
        %v5818 = vpop.f32.mrf.mxu0
        %v5819 = vadd.f32 0.0, %v5818
        %v5820 = vpop.f32.mrf.mxu0
        %v5821 = vadd.f32 0.0, %v5820
        %v5822 = vpop.f32.mrf.mxu0
        %v5823 = vadd.f32 0.0, %v5822
        %5824 = vmatprep.mubr.bf16.mxu0 0
        %5825 = vmatmul.mubr.bf16.gmra.mxu0 %v5620
        %v5826 = vpop.f32.mrf.mxu0
        %v5827 = vadd.f32 0.0, %v5826
        %v5828 = vpop.f32.mrf.mxu0
        %v5829 = vadd.f32 0.0, %v5828
        %v5830 = vpop.f32.mrf.mxu0
        %v5831 = vadd.f32 0.0, %v5830
        %v5832 = vpop.f32.mrf.mxu0
        %v5833 = vadd.f32 0.0, %v5832
        %5834 = vmatprep.mubr.bf16.mxu0 0
        %5835 = vmatmul.mubr.bf16.gmra.mxu0 %v5628
        %v5836 = vpop.f32.mrf.mxu0
        %v5837 = vadd.f32 0.0, %v5836
        %v5838 = vpop.f32.mrf.mxu0
        %v5839 = vadd.f32 0.0, %v5838
        %v5840 = vpop.f32.mrf.mxu0
        %v5841 = vadd.f32 0.0, %v5840
        %v5842 = vpop.f32.mrf.mxu0
        %v5843 = vadd.f32 0.0, %v5842
        %5844 = vmatprep.mubr.bf16.mxu0 0
        %5845 = vmatmul.mubr.bf16.gmra.mxu0 %v5631
        %v5846 = vpop.f32.mrf.mxu0
        %v5847 = vadd.f32 0.0, %v5846
        %v5848 = vpop.f32.mrf.mxu0
        %v5849 = vadd.f32 0.0, %v5848
        %v5850 = vpop.f32.mrf.mxu0
        %v5851 = vadd.f32 0.0, %v5850
        %v5852 = vpop.f32.mrf.mxu0
        %v5853 = vadd.f32 0.0, %v5852
        %5854 = vdwg.mxu0
        %v5871 = vunpack.c.l.b16 %v5519
        %v5872 = vunpack.c.h.b16 %v5519
        %v5873 = vunpack.c.l.b16 %v5520
        %v5874 = vunpack.c.h.b16 %v5520
        %v5875 = vunpack.c.l.b16 %v5521
        %v5876 = vunpack.c.h.b16 %v5521
        %v5877 = vunpack.c.l.b16 %v5522
        %v5878 = vunpack.c.h.b16 %v5522
        %v5879 = vunpack.c.l.b16 %v5523
        %v5880 = vunpack.c.h.b16 %v5523
        %v5881 = vunpack.c.l.b16 %v5524
        %v5882 = vunpack.c.h.b16 %v5524
        %v5883 = vunpack.c.l.b16 %v5525
        %v5884 = vunpack.c.h.b16 %v5525
        %v5885 = vunpack.c.l.b16 %v5526
        %v5886 = vunpack.c.h.b16 %v5526
        %v5887 = vunpack.c.l.b16 %v5527
        %v5888 = vunpack.c.h.b16 %v5527
        %v5889 = vunpack.c.l.b16 %v5528
        %v5890 = vunpack.c.h.b16 %v5528
        %v5891 = vunpack.c.l.b16 %v5529
        %v5892 = vunpack.c.h.b16 %v5529
        %v5893 = vunpack.c.l.b16 %v5530
        %v5894 = vunpack.c.h.b16 %v5530
        %v5895 = vunpack.c.l.b16 %v5531
        %v5896 = vunpack.c.h.b16 %v5531
        %v5897 = vunpack.c.l.b16 %v5532
        %v5898 = vunpack.c.h.b16 %v5532
        %v5899 = vunpack.c.l.b16 %v5533
        %v5900 = vunpack.c.h.b16 %v5533
        %v5901 = vunpack.c.l.b16 %v5534
        %v5902 = vunpack.c.h.b16 %v5534
        %v5903 = vpack.c.b16 %v5873, %v5871
        %v5904 = vpack.c.b16 %v5874, %v5872
        %v5905 = vpack.c.b16 %v5877, %v5875
        %v5906 = vpack.c.b16 %v5878, %v5876
        %v5907 = vpack.c.b16 %v5881, %v5879
        %v5908 = vpack.c.b16 %v5882, %v5880
        %v5909 = vpack.c.b16 %v5885, %v5883
        %v5910 = vpack.c.b16 %v5886, %v5884
        %v5911 = vpack.c.b16 %v5889, %v5887
        %v5912 = vpack.c.b16 %v5890, %v5888
        %v5913 = vpack.c.b16 %v5893, %v5891
        %v5914 = vpack.c.b16 %v5894, %v5892
        %v5915 = vpack.c.b16 %v5897, %v5895
        %v5916 = vpack.c.b16 %v5898, %v5896
        %v5917 = vpack.c.b16 %v5901, %v5899
        %v5918 = vpack.c.b16 %v5902, %v5900
        %5935 = vmatprep.subr.bf16.mxu0 %v5918
        %5936 = vmatpush1.bf16.msra.mxu0 %v5917
        %5937 = vmatprep.subr.bf16.mxu0 %v5916
        %5938 = vmatpush1.bf16.msra.mxu0 %v5915
        %5939 = vmatprep.subr.bf16.mxu0 %v5914
        %5940 = vmatpush1.bf16.msra.mxu0 %v5913
        %5941 = vmatprep.subr.bf16.mxu0 %v5912
        %5942 = vmatpush1.bf16.msra.mxu0 %v5911
        %5943 = vmatprep.subr.bf16.mxu0 %v5910
        %5944 = vmatpush1.bf16.msra.mxu0 %v5909
        %5945 = vmatprep.subr.bf16.mxu0 %v5908
        %5946 = vmatpush1.bf16.msra.mxu0 %v5907
        %5947 = vmatprep.subr.bf16.mxu0 %v5906
        %5948 = vmatpush1.bf16.msra.mxu0 %v5905
        %5949 = vmatprep.subr.bf16.mxu0 %v5904
        %5950 = vmatpush1.bf16.msra.mxu0 %v5903
        %5951 = vmatprep.subr.bf16.mxu0 0
        %5952 = vmatpush2.bf16.msra.mxu0 0
        %5953 = vmatprep.subr.bf16.mxu0 0
        %5954 = vmatpush2.bf16.msra.mxu0 0
        %5955 = vmatprep.subr.bf16.mxu0 0
        %5956 = vmatpush2.bf16.msra.mxu0 0
        %5957 = vmatprep.subr.bf16.mxu0 0
        %5958 = vmatpush2.bf16.msra.mxu0 0
        %5959 = vmatprep.subr.bf16.mxu0 0
        %5960 = vmatpush2.bf16.msra.mxu0 0
        %5961 = vmatprep.subr.bf16.mxu0 0
        %5962 = vmatpush2.bf16.msra.mxu0 0
        %5963 = vmatprep.subr.bf16.mxu0 0
        %5964 = vmatpush2.bf16.msra.mxu0 0
        %5965 = vmatprep.subr.bf16.mxu0 0
        %5966 = vmatpush2.bf16.msra.mxu0 0
        %5967 = vmatprep.mubr.bf16.mxu0 0
        %5968 = vmatmul.mubr.bf16.gmra.mxu0 %v5509
        %v5969 = vpop.f32.mrf.mxu0
        %v5970 = vadd.f32 %v5757, %v5969
        %v5971 = vpop.f32.mrf.mxu0
        %v5972 = vadd.f32 %v5759, %v5971
        %v5973 = vpop.f32.mrf.mxu0
        %v5974 = vadd.f32 %v5761, %v5973
        %v5975 = vpop.f32.mrf.mxu0
        %v5976 = vadd.f32 %v5763, %v5975
        %5977 = vmatprep.mubr.bf16.mxu0 0
        %5978 = vmatmul.mubr.bf16.gmra.mxu0 %v5510
        %v5979 = vpop.f32.mrf.mxu0
        %v5980 = vadd.f32 %v5767, %v5979
        %v5981 = vpop.f32.mrf.mxu0
        %v5982 = vadd.f32 %v5769, %v5981
        %v5983 = vpop.f32.mrf.mxu0
        %v5984 = vadd.f32 %v5771, %v5983
        %v5985 = vpop.f32.mrf.mxu0
        %v5986 = vadd.f32 %v5773, %v5985
        %5987 = vmatprep.mubr.bf16.mxu0 0
        %5988 = vmatmul.mubr.bf16.gmra.mxu0 %v5511
        %v5989 = vpop.f32.mrf.mxu0
        %v5990 = vadd.f32 %v5777, %v5989
        %v5991 = vpop.f32.mrf.mxu0
        %v5992 = vadd.f32 %v5779, %v5991
        %v5993 = vpop.f32.mrf.mxu0
        %v5994 = vadd.f32 %v5781, %v5993
        %v5995 = vpop.f32.mrf.mxu0
        %v5996 = vadd.f32 %v5783, %v5995
        %5997 = vmatprep.mubr.bf16.mxu0 0
        %5998 = vmatmul.mubr.bf16.gmra.mxu0 %v5512
        %v5999 = vpop.f32.mrf.mxu0
        %v6000 = vadd.f32 %v5787, %v5999
        %v6001 = vpop.f32.mrf.mxu0
        %v6002 = vadd.f32 %v5789, %v6001
        %v6003 = vpop.f32.mrf.mxu0
        %v6004 = vadd.f32 %v5791, %v6003
        %v6005 = vpop.f32.mrf.mxu0
        %v6006 = vadd.f32 %v5793, %v6005
        %6007 = vmatprep.mubr.bf16.mxu0 0
        %6008 = vmatmul.mubr.bf16.gmra.mxu0 %v5513
        %v6009 = vpop.f32.mrf.mxu0
        %v6010 = vadd.f32 %v5797, %v6009
        %v6011 = vpop.f32.mrf.mxu0
        %v6012 = vadd.f32 %v5799, %v6011
        %v6013 = vpop.f32.mrf.mxu0
        %v6014 = vadd.f32 %v5801, %v6013
        %v6015 = vpop.f32.mrf.mxu0
        %v6016 = vadd.f32 %v5803, %v6015
        %6017 = vmatprep.mubr.bf16.mxu0 0
        %6018 = vmatmul.mubr.bf16.gmra.mxu0 %v5514
        %v6019 = vpop.f32.mrf.mxu0
        %v6020 = vadd.f32 %v5807, %v6019
        %v6021 = vpop.f32.mrf.mxu0
        %v6022 = vadd.f32 %v5809, %v6021
        %v6023 = vpop.f32.mrf.mxu0
        %v6024 = vadd.f32 %v5811, %v6023
        %v6025 = vpop.f32.mrf.mxu0
        %v6026 = vadd.f32 %v5813, %v6025
        %6027 = vmatprep.mubr.bf16.mxu0 0
        %6028 = vmatmul.mubr.bf16.gmra.mxu0 %v5515
        %v6029 = vpop.f32.mrf.mxu0
        %v6030 = vadd.f32 %v5817, %v6029
        %v6031 = vpop.f32.mrf.mxu0
        %v6032 = vadd.f32 %v5819, %v6031
        %v6033 = vpop.f32.mrf.mxu0
        %v6034 = vadd.f32 %v5821, %v6033
        %v6035 = vpop.f32.mrf.mxu0
        %v6036 = vadd.f32 %v5823, %v6035
        %6037 = vmatprep.mubr.bf16.mxu0 0
        %6038 = vmatmul.mubr.bf16.gmra.mxu0 %v5516
        %v6039 = vpop.f32.mrf.mxu0
        %v6040 = vadd.f32 %v5827, %v6039
        %v6041 = vpop.f32.mrf.mxu0
        %v6042 = vadd.f32 %v5829, %v6041
        %v6043 = vpop.f32.mrf.mxu0
        %v6044 = vadd.f32 %v5831, %v6043
        %v6045 = vpop.f32.mrf.mxu0
        %v6046 = vadd.f32 %v5833, %v6045
        %6047 = vmatprep.mubr.bf16.mxu0 0
        %6048 = vmatmul.mubr.bf16.gmra.mxu0 %v5517
        %v6049 = vpop.f32.mrf.mxu0
        %v6050 = vadd.f32 %v5837, %v6049
        %v6051 = vpop.f32.mrf.mxu0
        %v6052 = vadd.f32 %v5839, %v6051
        %v6053 = vpop.f32.mrf.mxu0
        %v6054 = vadd.f32 %v5841, %v6053
        %v6055 = vpop.f32.mrf.mxu0
        %v6056 = vadd.f32 %v5843, %v6055
        %6057 = vmatprep.mubr.bf16.mxu0 0
        %6058 = vmatmul.mubr.bf16.gmra.mxu0 %v5518
        %v6059 = vpop.f32.mrf.mxu0
        %v6060 = vadd.f32 %v5847, %v6059
        %v6061 = vpop.f32.mrf.mxu0
        %v6062 = vadd.f32 %v5849, %v6061
        %v6063 = vpop.f32.mrf.mxu0
        %v6064 = vadd.f32 %v5851, %v6063
        %v6065 = vpop.f32.mrf.mxu0
        %v6066 = vadd.f32 %v5853, %v6065
        %6067 = vdwg.mxu0
        %s6068 = scalar_lea.vmem %s4, 256
        %v6069 = vld [vmem:[%s6068] sm:$0xff]
        %v6070 = vld [vmem:[%s6068 + $0x8] sm:$0xff]
        %v6071 = vld [vmem:[%s6068 + $0x10] sm:$0xff]
        %v6072 = vld [vmem:[%s6068 + $0x18] sm:$0xff]
        %v6073 = vld [vmem:[%s6068 + $0x20] sm:$0xff]
        %v6074 = vld [vmem:[%s6068 + $0x28] sm:$0xff]
        %v6075 = vld [vmem:[%s6068 + $0x30] sm:$0xff]
        %v6076 = vld [vmem:[%s6068 + $0x38] sm:$0xff]
        %v6077 = vld [vmem:[%s6068 + $0x40] sm:$0xff]
        %v6078 = vld [vmem:[%s6068 + $0x48] sm:$0xff]
        %v6079 = vld [vmem:[%s6068 + $0x50] sm:$0xff]
        %v6080 = vld [vmem:[%s6068 + $0x58] sm:$0xff]
        %v6081 = vld [vmem:[%s6068 + $0x60] sm:$0xff]
        %v6082 = vld [vmem:[%s6068 + $0x68] sm:$0xff]
        %v6083 = vld [vmem:[%s6068 + $0x70] sm:$0xff]
        %v6084 = vld [vmem:[%s6068 + $0x78] sm:$0xff]
        %vm6095 = vcmask 1046528
        %v6096 = vrot.slane %v5509, 1
        %v6097 = vrot.slane %v5510, 1
        %v6098 = vsel %vm6095, %v6096, %v6097
        %v6099 = vrot.slane %v5511, 1
        %v6100 = vsel %vm6095, %v6097, %v6099
        %v6101 = vrot.slane %v5512, 1
        %v6102 = vsel %vm6095, %v6099, %v6101
        %v6103 = vrot.slane %v5513, 1
        %v6104 = vsel %vm6095, %v6101, %v6103
        %v6105 = vrot.slane %v5514, 1
        %v6106 = vsel %vm6095, %v6103, %v6105
        %v6107 = vrot.slane %v5515, 1
        %v6108 = vsel %vm6095, %v6105, %v6107
        %v6109 = vrot.slane %v5516, 1
        %v6110 = vsel %vm6095, %v6107, %v6109
        %v6111 = vrot.slane %v5517, 1
        %v6112 = vsel %vm6095, %v6109, %v6111
        %v6113 = vrot.slane %v5518, 1
        %v6114 = vsel %vm6095, %v6111, %v6113
        %v6141 = vunpack.c.l.b16 %v6069
        %v6142 = vunpack.c.h.b16 %v6069
        %v6143 = vunpack.c.l.b16 %v6070
        %v6144 = vunpack.c.h.b16 %v6070
        %v6145 = vunpack.c.l.b16 %v6071
        %v6146 = vunpack.c.h.b16 %v6071
        %v6147 = vunpack.c.l.b16 %v6072
        %v6148 = vunpack.c.h.b16 %v6072
        %v6149 = vunpack.c.l.b16 %v6073
        %v6150 = vunpack.c.h.b16 %v6073
        %v6151 = vunpack.c.l.b16 %v6074
        %v6152 = vunpack.c.h.b16 %v6074
        %v6153 = vunpack.c.l.b16 %v6075
        %v6154 = vunpack.c.h.b16 %v6075
        %v6155 = vunpack.c.l.b16 %v6076
        %v6156 = vunpack.c.h.b16 %v6076
        %v6157 = vunpack.c.l.b16 %v6077
        %v6158 = vunpack.c.h.b16 %v6077
        %v6159 = vunpack.c.l.b16 %v6078
        %v6160 = vunpack.c.h.b16 %v6078
        %v6161 = vunpack.c.l.b16 %v6079
        %v6162 = vunpack.c.h.b16 %v6079
        %v6163 = vunpack.c.l.b16 %v6080
        %v6164 = vunpack.c.h.b16 %v6080
        %v6165 = vunpack.c.l.b16 %v6081
        %v6166 = vunpack.c.h.b16 %v6081
        %v6167 = vunpack.c.l.b16 %v6082
        %v6168 = vunpack.c.h.b16 %v6082
        %v6169 = vunpack.c.l.b16 %v6083
        %v6170 = vunpack.c.h.b16 %v6083
        %v6171 = vunpack.c.l.b16 %v6084
        %v6172 = vunpack.c.h.b16 %v6084
        %v6173 = vpack.c.b16 %v6143, %v6141
        %v6174 = vpack.c.b16 %v6144, %v6142
        %v6175 = vpack.c.b16 %v6147, %v6145
        %v6176 = vpack.c.b16 %v6148, %v6146
        %v6177 = vpack.c.b16 %v6151, %v6149
        %v6178 = vpack.c.b16 %v6152, %v6150
        %v6179 = vpack.c.b16 %v6155, %v6153
        %v6180 = vpack.c.b16 %v6156, %v6154
        %v6181 = vpack.c.b16 %v6159, %v6157
        %v6182 = vpack.c.b16 %v6160, %v6158
        %v6183 = vpack.c.b16 %v6163, %v6161
        %v6184 = vpack.c.b16 %v6164, %v6162
        %v6185 = vpack.c.b16 %v6167, %v6165
        %v6186 = vpack.c.b16 %v6168, %v6166
        %v6187 = vpack.c.b16 %v6171, %v6169
        %v6188 = vpack.c.b16 %v6172, %v6170
        %6205 = vmatprep.subr.bf16.mxu0 %v6188
        %6206 = vmatpush1.bf16.msra.mxu0 %v6187
        %6207 = vmatprep.subr.bf16.mxu0 %v6186
        %6208 = vmatpush1.bf16.msra.mxu0 %v6185
        %6209 = vmatprep.subr.bf16.mxu0 %v6184
        %6210 = vmatpush1.bf16.msra.mxu0 %v6183
        %6211 = vmatprep.subr.bf16.mxu0 %v6182
        %6212 = vmatpush1.bf16.msra.mxu0 %v6181
        %6213 = vmatprep.subr.bf16.mxu0 %v6180
        %6214 = vmatpush1.bf16.msra.mxu0 %v6179
        %6215 = vmatprep.subr.bf16.mxu0 %v6178
        %6216 = vmatpush1.bf16.msra.mxu0 %v6177
        %6217 = vmatprep.subr.bf16.mxu0 %v6176
        %6218 = vmatpush1.bf16.msra.mxu0 %v6175
        %6219 = vmatprep.subr.bf16.mxu0 %v6174
        %6220 = vmatpush1.bf16.msra.mxu0 %v6173
        %6221 = vmatprep.subr.bf16.mxu0 0
        %6222 = vmatpush2.bf16.msra.mxu0 0
        %6223 = vmatprep.subr.bf16.mxu0 0
        %6224 = vmatpush2.bf16.msra.mxu0 0
        %6225 = vmatprep.subr.bf16.mxu0 0
        %6226 = vmatpush2.bf16.msra.mxu0 0
        %6227 = vmatprep.subr.bf16.mxu0 0
        %6228 = vmatpush2.bf16.msra.mxu0 0
        %6229 = vmatprep.subr.bf16.mxu0 0
        %6230 = vmatpush2.bf16.msra.mxu0 0
        %6231 = vmatprep.subr.bf16.mxu0 0
        %6232 = vmatpush2.bf16.msra.mxu0 0
        %6233 = vmatprep.subr.bf16.mxu0 0
        %6234 = vmatpush2.bf16.msra.mxu0 0
        %6235 = vmatprep.subr.bf16.mxu0 0
        %6236 = vmatpush2.bf16.msra.mxu0 0
        %6237 = vmatprep.mubr.bf16.mxu0 0
        %6238 = vmatmul.mubr.bf16.gmra.mxu0 %v6098
        %v6239 = vpop.f32.mrf.mxu0
        %v6240 = vadd.f32 0.0, %v6239
        %v6241 = vpop.f32.mrf.mxu0
        %v6242 = vadd.f32 0.0, %v6241
        %v6243 = vpop.f32.mrf.mxu0
        %v6244 = vadd.f32 0.0, %v6243
        %v6245 = vpop.f32.mrf.mxu0
        %v6246 = vadd.f32 0.0, %v6245
        %6247 = vmatprep.mubr.bf16.mxu0 0
        %6248 = vmatmul.mubr.bf16.gmra.mxu0 %v6100
        %v6249 = vpop.f32.mrf.mxu0
        %v6250 = vadd.f32 0.0, %v6249
        %v6251 = vpop.f32.mrf.mxu0
        %v6252 = vadd.f32 0.0, %v6251
        %v6253 = vpop.f32.mrf.mxu0
        %v6254 = vadd.f32 0.0, %v6253
        %v6255 = vpop.f32.mrf.mxu0
        %v6256 = vadd.f32 0.0, %v6255
        %6257 = vmatprep.mubr.bf16.mxu0 0
        %6258 = vmatmul.mubr.bf16.gmra.mxu0 %v6102
        %v6259 = vpop.f32.mrf.mxu0
        %v6260 = vadd.f32 0.0, %v6259
        %v6261 = vpop.f32.mrf.mxu0
        %v6262 = vadd.f32 0.0, %v6261
        %v6263 = vpop.f32.mrf.mxu0
        %v6264 = vadd.f32 0.0, %v6263
        %v6265 = vpop.f32.mrf.mxu0
        %v6266 = vadd.f32 0.0, %v6265
        %6267 = vmatprep.mubr.bf16.mxu0 0
        %6268 = vmatmul.mubr.bf16.gmra.mxu0 %v6104
        %v6269 = vpop.f32.mrf.mxu0
        %v6270 = vadd.f32 0.0, %v6269
        %v6271 = vpop.f32.mrf.mxu0
        %v6272 = vadd.f32 0.0, %v6271
        %v6273 = vpop.f32.mrf.mxu0
        %v6274 = vadd.f32 0.0, %v6273
        %v6275 = vpop.f32.mrf.mxu0
        %v6276 = vadd.f32 0.0, %v6275
        %6277 = vmatprep.mubr.bf16.mxu0 0
        %6278 = vmatmul.mubr.bf16.gmra.mxu0 %v6106
        %v6279 = vpop.f32.mrf.mxu0
        %v6280 = vadd.f32 0.0, %v6279
        %v6281 = vpop.f32.mrf.mxu0
        %v6282 = vadd.f32 0.0, %v6281
        %v6283 = vpop.f32.mrf.mxu0
        %v6284 = vadd.f32 0.0, %v6283
        %v6285 = vpop.f32.mrf.mxu0
        %v6286 = vadd.f32 0.0, %v6285
        %6287 = vmatprep.mubr.bf16.mxu0 0
        %6288 = vmatmul.mubr.bf16.gmra.mxu0 %v6108
        %v6289 = vpop.f32.mrf.mxu0
        %v6290 = vadd.f32 0.0, %v6289
        %v6291 = vpop.f32.mrf.mxu0
        %v6292 = vadd.f32 0.0, %v6291
        %v6293 = vpop.f32.mrf.mxu0
        %v6294 = vadd.f32 0.0, %v6293
        %v6295 = vpop.f32.mrf.mxu0
        %v6296 = vadd.f32 0.0, %v6295
        %6297 = vmatprep.mubr.bf16.mxu0 0
        %6298 = vmatmul.mubr.bf16.gmra.mxu0 %v6110
        %v6299 = vpop.f32.mrf.mxu0
        %v6300 = vadd.f32 0.0, %v6299
        %v6301 = vpop.f32.mrf.mxu0
        %v6302 = vadd.f32 0.0, %v6301
        %v6303 = vpop.f32.mrf.mxu0
        %v6304 = vadd.f32 0.0, %v6303
        %v6305 = vpop.f32.mrf.mxu0
        %v6306 = vadd.f32 0.0, %v6305
        %6307 = vmatprep.mubr.bf16.mxu0 0
        %6308 = vmatmul.mubr.bf16.gmra.mxu0 %v6112
        %v6309 = vpop.f32.mrf.mxu0
        %v6310 = vadd.f32 0.0, %v6309
        %v6311 = vpop.f32.mrf.mxu0
        %v6312 = vadd.f32 0.0, %v6311
        %v6313 = vpop.f32.mrf.mxu0
        %v6314 = vadd.f32 0.0, %v6313
        %v6315 = vpop.f32.mrf.mxu0
        %v6316 = vadd.f32 0.0, %v6315
        %6317 = vmatprep.mubr.bf16.mxu0 0
        %6318 = vmatmul.mubr.bf16.gmra.mxu0 %v6114
        %v6319 = vpop.f32.mrf.mxu0
        %v6320 = vadd.f32 0.0, %v6319
        %v6321 = vpop.f32.mrf.mxu0
        %v6322 = vadd.f32 0.0, %v6321
        %v6323 = vpop.f32.mrf.mxu0
        %v6324 = vadd.f32 0.0, %v6323
        %v6325 = vpop.f32.mrf.mxu0
        %v6326 = vadd.f32 0.0, %v6325
        %6327 = vmatprep.mubr.bf16.mxu0 0
        %6328 = vmatmul.mubr.bf16.gmra.mxu0 %v6113
        %v6329 = vpop.f32.mrf.mxu0
        %v6330 = vadd.f32 0.0, %v6329
        %v6331 = vpop.f32.mrf.mxu0
        %v6332 = vadd.f32 0.0, %v6331
        %v6333 = vpop.f32.mrf.mxu0
        %v6334 = vadd.f32 0.0, %v6333
        %v6335 = vpop.f32.mrf.mxu0
        %v6336 = vadd.f32 0.0, %v6335
        %6337 = vdwg.mxu0
        %v6338 = vadd.f32 %v5970, %v6240
        %v6339 = vadd.f32 %v5972, %v6242
        %v6340 = vadd.f32 %v5974, %v6244
        %v6341 = vadd.f32 %v5976, %v6246
        %v6342 = vadd.f32 %v5980, %v6250
        %v6343 = vadd.f32 %v5982, %v6252
        %v6344 = vadd.f32 %v5984, %v6254
        %v6345 = vadd.f32 %v5986, %v6256
        %v6346 = vadd.f32 %v5990, %v6260
        %v6347 = vadd.f32 %v5992, %v6262
        %v6348 = vadd.f32 %v5994, %v6264
        %v6349 = vadd.f32 %v5996, %v6266
        %v6350 = vadd.f32 %v6000, %v6270
        %v6351 = vadd.f32 %v6002, %v6272
        %v6352 = vadd.f32 %v6004, %v6274
        %v6353 = vadd.f32 %v6006, %v6276
        %v6354 = vadd.f32 %v6010, %v6280
        %v6355 = vadd.f32 %v6012, %v6282
        %v6356 = vadd.f32 %v6014, %v6284
        %v6357 = vadd.f32 %v6016, %v6286
        %v6358 = vadd.f32 %v6020, %v6290
        %v6359 = vadd.f32 %v6022, %v6292
        %v6360 = vadd.f32 %v6024, %v6294
        %v6361 = vadd.f32 %v6026, %v6296
        %v6362 = vadd.f32 %v6030, %v6300
        %v6363 = vadd.f32 %v6032, %v6302
        %v6364 = vadd.f32 %v6034, %v6304
        %v6365 = vadd.f32 %v6036, %v6306
        %v6366 = vadd.f32 %v6040, %v6310
        %v6367 = vadd.f32 %v6042, %v6312
        %v6368 = vadd.f32 %v6044, %v6314
        %v6369 = vadd.f32 %v6046, %v6316
        %v6370 = vadd.f32 %v6050, %v6320
        %v6371 = vadd.f32 %v6052, %v6322
        %v6372 = vadd.f32 %v6054, %v6324
        %v6373 = vadd.f32 %v6056, %v6326
        %v6374 = vadd.f32 %v6060, %v6330
        %v6375 = vadd.f32 %v6062, %v6332
        %v6376 = vadd.f32 %v6064, %v6334
        %v6377 = vadd.f32 %v6066, %v6336
        %s6378 = scalar_lea.vmem %s4, 384
        %v6379 = vld [vmem:[%s6378] sm:$0xff]
        %v6380 = vld [vmem:[%s6378 + $0x8] sm:$0xff]
        %v6381 = vld [vmem:[%s6378 + $0x10] sm:$0xff]
        %v6382 = vld [vmem:[%s6378 + $0x18] sm:$0xff]
        %v6383 = vld [vmem:[%s6378 + $0x20] sm:$0xff]
        %v6384 = vld [vmem:[%s6378 + $0x28] sm:$0xff]
        %v6385 = vld [vmem:[%s6378 + $0x30] sm:$0xff]
        %v6386 = vld [vmem:[%s6378 + $0x38] sm:$0xff]
        %v6387 = vld [vmem:[%s6378 + $0x40] sm:$0xff]
        %v6388 = vld [vmem:[%s6378 + $0x48] sm:$0xff]
        %v6389 = vld [vmem:[%s6378 + $0x50] sm:$0xff]
        %v6390 = vld [vmem:[%s6378 + $0x58] sm:$0xff]
        %v6391 = vld [vmem:[%s6378 + $0x60] sm:$0xff]
        %v6392 = vld [vmem:[%s6378 + $0x68] sm:$0xff]
        %v6393 = vld [vmem:[%s6378 + $0x70] sm:$0xff]
        %v6394 = vld [vmem:[%s6378 + $0x78] sm:$0xff]
        %vm6395 = vsmask.f32 6400
        %v6396 = vrot.slane %v5554, 1
        %v6397 = vrot.slane %v5556, 2
        %v6398 = vor.u32 %v6396, %v6397
        %v6399 = vrot.slane %v5565, 1
        %v6400 = vrot.slane %v5561, 2
        %v6401 = vor.u32 %v6399, %v6400
        %v6402 = vsel %vm6395, %v6398, %v6401
        %v6403 = vrot.slane %v5573, 1
        %v6404 = vrot.slane %v5569, 2
        %v6405 = vor.u32 %v6403, %v6404
        %v6406 = vsel %vm6395, %v6401, %v6405
        %v6407 = vrot.slane %v5581, 1
        %v6408 = vrot.slane %v5577, 2
        %v6409 = vor.u32 %v6407, %v6408
        %v6410 = vsel %vm6395, %v6405, %v6409
        %v6411 = vrot.slane %v5589, 1
        %v6412 = vrot.slane %v5585, 2
        %v6413 = vor.u32 %v6411, %v6412
        %v6414 = vsel %vm6395, %v6409, %v6413
        %v6415 = vrot.slane %v5597, 1
        %v6416 = vrot.slane %v5593, 2
        %v6417 = vor.u32 %v6415, %v6416
        %v6418 = vsel %vm6395, %v6413, %v6417
        %v6419 = vrot.slane %v5605, 1
        %v6420 = vrot.slane %v5601, 2
        %v6421 = vor.u32 %v6419, %v6420
        %v6422 = vsel %vm6395, %v6417, %v6421
        %v6423 = vrot.slane %v5613, 1
        %v6424 = vrot.slane %v5609, 2
        %v6425 = vor.u32 %v6423, %v6424
        %v6426 = vsel %vm6395, %v6421, %v6425
        %v6427 = vrot.slane %v5621, 1
        %v6428 = vrot.slane %v5617, 2
        %v6429 = vor.u32 %v6427, %v6428
        %v6430 = vsel %vm6395, %v6425, %v6429
        %v6431 = vrot.slane %v5629, 1
        %v6432 = vrot.slane %v5625, 2
        %v6433 = vor.u32 %v6431, %v6432
        %v6434 = vsel %vm6395, %v6429, %v6433
        %v6461 = vunpack.c.l.b16 %v6379
        %v6462 = vunpack.c.h.b16 %v6379
        %v6463 = vunpack.c.l.b16 %v6380
        %v6464 = vunpack.c.h.b16 %v6380
        %v6465 = vunpack.c.l.b16 %v6381
        %v6466 = vunpack.c.h.b16 %v6381
        %v6467 = vunpack.c.l.b16 %v6382
        %v6468 = vunpack.c.h.b16 %v6382
        %v6469 = vunpack.c.l.b16 %v6383
        %v6470 = vunpack.c.h.b16 %v6383
        %v6471 = vunpack.c.l.b16 %v6384
        %v6472 = vunpack.c.h.b16 %v6384
        %v6473 = vunpack.c.l.b16 %v6385
        %v6474 = vunpack.c.h.b16 %v6385
        %v6475 = vunpack.c.l.b16 %v6386
        %v6476 = vunpack.c.h.b16 %v6386
        %v6477 = vunpack.c.l.b16 %v6387
        %v6478 = vunpack.c.h.b16 %v6387
        %v6479 = vunpack.c.l.b16 %v6388
        %v6480 = vunpack.c.h.b16 %v6388
        %v6481 = vunpack.c.l.b16 %v6389
        %v6482 = vunpack.c.h.b16 %v6389
        %v6483 = vunpack.c.l.b16 %v6390
        %v6484 = vunpack.c.h.b16 %v6390
        %v6485 = vunpack.c.l.b16 %v6391
        %v6486 = vunpack.c.h.b16 %v6391
        %v6487 = vunpack.c.l.b16 %v6392
        %v6488 = vunpack.c.h.b16 %v6392
        %v6489 = vunpack.c.l.b16 %v6393
        %v6490 = vunpack.c.h.b16 %v6393
        %v6491 = vunpack.c.l.b16 %v6394
        %v6492 = vunpack.c.h.b16 %v6394
        %v6493 = vpack.c.b16 %v6463, %v6461
        %v6494 = vpack.c.b16 %v6464, %v6462
        %v6495 = vpack.c.b16 %v6467, %v6465
        %v6496 = vpack.c.b16 %v6468, %v6466
        %v6497 = vpack.c.b16 %v6471, %v6469
        %v6498 = vpack.c.b16 %v6472, %v6470
        %v6499 = vpack.c.b16 %v6475, %v6473
        %v6500 = vpack.c.b16 %v6476, %v6474
        %v6501 = vpack.c.b16 %v6479, %v6477
        %v6502 = vpack.c.b16 %v6480, %v6478
        %v6503 = vpack.c.b16 %v6483, %v6481
        %v6504 = vpack.c.b16 %v6484, %v6482
        %v6505 = vpack.c.b16 %v6487, %v6485
        %v6506 = vpack.c.b16 %v6488, %v6486
        %v6507 = vpack.c.b16 %v6491, %v6489
        %v6508 = vpack.c.b16 %v6492, %v6490
        %6525 = vmatprep.subr.bf16.mxu0 %v6508
        %6526 = vmatpush1.bf16.msra.mxu0 %v6507
        %6527 = vmatprep.subr.bf16.mxu0 %v6506
        %6528 = vmatpush1.bf16.msra.mxu0 %v6505
        %6529 = vmatprep.subr.bf16.mxu0 %v6504
        %6530 = vmatpush1.bf16.msra.mxu0 %v6503
        %6531 = vmatprep.subr.bf16.mxu0 %v6502
        %6532 = vmatpush1.bf16.msra.mxu0 %v6501
        %6533 = vmatprep.subr.bf16.mxu0 %v6500
        %6534 = vmatpush1.bf16.msra.mxu0 %v6499
        %6535 = vmatprep.subr.bf16.mxu0 %v6498
        %6536 = vmatpush1.bf16.msra.mxu0 %v6497
        %6537 = vmatprep.subr.bf16.mxu0 %v6496
        %6538 = vmatpush1.bf16.msra.mxu0 %v6495
        %6539 = vmatprep.subr.bf16.mxu0 %v6494
        %6540 = vmatpush1.bf16.msra.mxu0 %v6493
        %6541 = vmatprep.subr.bf16.mxu0 0
        %6542 = vmatpush2.bf16.msra.mxu0 0
        %6543 = vmatprep.subr.bf16.mxu0 0
        %6544 = vmatpush2.bf16.msra.mxu0 0
        %6545 = vmatprep.subr.bf16.mxu0 0
        %6546 = vmatpush2.bf16.msra.mxu0 0
        %6547 = vmatprep.subr.bf16.mxu0 0
        %6548 = vmatpush2.bf16.msra.mxu0 0
        %6549 = vmatprep.subr.bf16.mxu0 0
        %6550 = vmatpush2.bf16.msra.mxu0 0
        %6551 = vmatprep.subr.bf16.mxu0 0
        %6552 = vmatpush2.bf16.msra.mxu0 0
        %6553 = vmatprep.subr.bf16.mxu0 0
        %6554 = vmatpush2.bf16.msra.mxu0 0
        %6555 = vmatprep.subr.bf16.mxu0 0
        %6556 = vmatpush2.bf16.msra.mxu0 0
        %6557 = vmatprep.mubr.bf16.mxu0 0
        %6558 = vmatmul.mubr.bf16.gmra.mxu0 %v6402
        %v6559 = vpop.f32.mrf.mxu0
        %v6560 = vadd.f32 0.0, %v6559
        %v6561 = vpop.f32.mrf.mxu0
        %v6562 = vadd.f32 0.0, %v6561
        %v6563 = vpop.f32.mrf.mxu0
        %v6564 = vadd.f32 0.0, %v6563
        %v6565 = vpop.f32.mrf.mxu0
        %v6566 = vadd.f32 0.0, %v6565
        %6567 = vmatprep.mubr.bf16.mxu0 0
        %6568 = vmatmul.mubr.bf16.gmra.mxu0 %v6406
        %v6569 = vpop.f32.mrf.mxu0
        %v6570 = vadd.f32 0.0, %v6569
        %v6571 = vpop.f32.mrf.mxu0
        %v6572 = vadd.f32 0.0, %v6571
        %v6573 = vpop.f32.mrf.mxu0
        %v6574 = vadd.f32 0.0, %v6573
        %v6575 = vpop.f32.mrf.mxu0
        %v6576 = vadd.f32 0.0, %v6575
        %6577 = vmatprep.mubr.bf16.mxu0 0
        %6578 = vmatmul.mubr.bf16.gmra.mxu0 %v6410
        %v6579 = vpop.f32.mrf.mxu0
        %v6580 = vadd.f32 0.0, %v6579
        %v6581 = vpop.f32.mrf.mxu0
        %v6582 = vadd.f32 0.0, %v6581
        %v6583 = vpop.f32.mrf.mxu0
        %v6584 = vadd.f32 0.0, %v6583
        %v6585 = vpop.f32.mrf.mxu0
        %v6586 = vadd.f32 0.0, %v6585
        %6587 = vmatprep.mubr.bf16.mxu0 0
        %6588 = vmatmul.mubr.bf16.gmra.mxu0 %v6414
        %v6589 = vpop.f32.mrf.mxu0
        %v6590 = vadd.f32 0.0, %v6589
        %v6591 = vpop.f32.mrf.mxu0
        %v6592 = vadd.f32 0.0, %v6591
        %v6593 = vpop.f32.mrf.mxu0
        %v6594 = vadd.f32 0.0, %v6593
        %v6595 = vpop.f32.mrf.mxu0
        %v6596 = vadd.f32 0.0, %v6595
        %6597 = vmatprep.mubr.bf16.mxu0 0
        %6598 = vmatmul.mubr.bf16.gmra.mxu0 %v6418
        %v6599 = vpop.f32.mrf.mxu0
        %v6600 = vadd.f32 0.0, %v6599
        %v6601 = vpop.f32.mrf.mxu0
        %v6602 = vadd.f32 0.0, %v6601
        %v6603 = vpop.f32.mrf.mxu0
        %v6604 = vadd.f32 0.0, %v6603
        %v6605 = vpop.f32.mrf.mxu0
        %v6606 = vadd.f32 0.0, %v6605
        %6607 = vmatprep.mubr.bf16.mxu0 0
        %6608 = vmatmul.mubr.bf16.gmra.mxu0 %v6422
        %v6609 = vpop.f32.mrf.mxu0
        %v6610 = vadd.f32 0.0, %v6609
        %v6611 = vpop.f32.mrf.mxu0
        %v6612 = vadd.f32 0.0, %v6611
        %v6613 = vpop.f32.mrf.mxu0
        %v6614 = vadd.f32 0.0, %v6613
        %v6615 = vpop.f32.mrf.mxu0
        %v6616 = vadd.f32 0.0, %v6615
        %6617 = vmatprep.mubr.bf16.mxu0 0
        %6618 = vmatmul.mubr.bf16.gmra.mxu0 %v6426
        %v6619 = vpop.f32.mrf.mxu0
        %v6620 = vadd.f32 0.0, %v6619
        %v6621 = vpop.f32.mrf.mxu0
        %v6622 = vadd.f32 0.0, %v6621
        %v6623 = vpop.f32.mrf.mxu0
        %v6624 = vadd.f32 0.0, %v6623
        %v6625 = vpop.f32.mrf.mxu0
        %v6626 = vadd.f32 0.0, %v6625
        %6627 = vmatprep.mubr.bf16.mxu0 0
        %6628 = vmatmul.mubr.bf16.gmra.mxu0 %v6430
        %v6629 = vpop.f32.mrf.mxu0
        %v6630 = vadd.f32 0.0, %v6629
        %v6631 = vpop.f32.mrf.mxu0
        %v6632 = vadd.f32 0.0, %v6631
        %v6633 = vpop.f32.mrf.mxu0
        %v6634 = vadd.f32 0.0, %v6633
        %v6635 = vpop.f32.mrf.mxu0
        %v6636 = vadd.f32 0.0, %v6635
        %6637 = vmatprep.mubr.bf16.mxu0 0
        %6638 = vmatmul.mubr.bf16.gmra.mxu0 %v6434
        %v6639 = vpop.f32.mrf.mxu0
        %v6640 = vadd.f32 0.0, %v6639
        %v6641 = vpop.f32.mrf.mxu0
        %v6642 = vadd.f32 0.0, %v6641
        %v6643 = vpop.f32.mrf.mxu0
        %v6644 = vadd.f32 0.0, %v6643
        %v6645 = vpop.f32.mrf.mxu0
        %v6646 = vadd.f32 0.0, %v6645
        %6647 = vmatprep.mubr.bf16.mxu0 0
        %6648 = vmatmul.mubr.bf16.gmra.mxu0 %v6433
        %v6649 = vpop.f32.mrf.mxu0
        %v6650 = vadd.f32 0.0, %v6649
        %v6651 = vpop.f32.mrf.mxu0
        %v6652 = vadd.f32 0.0, %v6651
        %v6653 = vpop.f32.mrf.mxu0
        %v6654 = vadd.f32 0.0, %v6653
        %v6655 = vpop.f32.mrf.mxu0
        %v6656 = vadd.f32 0.0, %v6655
        %6657 = vdwg.mxu0
        %v6658 = vadd.f32 %v6338, %v6560
        %v6659 = vadd.f32 %v6339, %v6562
        %v6660 = vadd.f32 %v6340, %v6564
        %v6661 = vadd.f32 %v6341, %v6566
        %v6662 = vadd.f32 %v6342, %v6570
        %v6663 = vadd.f32 %v6343, %v6572
        %v6664 = vadd.f32 %v6344, %v6574
        %v6665 = vadd.f32 %v6345, %v6576
        %v6666 = vadd.f32 %v6346, %v6580
        %v6667 = vadd.f32 %v6347, %v6582
        %v6668 = vadd.f32 %v6348, %v6584
        %v6669 = vadd.f32 %v6349, %v6586
        %v6670 = vadd.f32 %v6350, %v6590
        %v6671 = vadd.f32 %v6351, %v6592
        %v6672 = vadd.f32 %v6352, %v6594
        %v6673 = vadd.f32 %v6353, %v6596
        %v6674 = vadd.f32 %v6354, %v6600
        %v6675 = vadd.f32 %v6355, %v6602
        %v6676 = vadd.f32 %v6356, %v6604
        %v6677 = vadd.f32 %v6357, %v6606
        %v6678 = vadd.f32 %v6358, %v6610
        %v6679 = vadd.f32 %v6359, %v6612
        %v6680 = vadd.f32 %v6360, %v6614
        %v6681 = vadd.f32 %v6361, %v6616
        %v6682 = vadd.f32 %v6362, %v6620
        %v6683 = vadd.f32 %v6363, %v6622
        %v6684 = vadd.f32 %v6364, %v6624
        %v6685 = vadd.f32 %v6365, %v6626
        %v6686 = vadd.f32 %v6366, %v6630
        %v6687 = vadd.f32 %v6367, %v6632
        %v6688 = vadd.f32 %v6368, %v6634
        %v6689 = vadd.f32 %v6369, %v6636
        %v6690 = vadd.f32 %v6370, %v6640
        %v6691 = vadd.f32 %v6371, %v6642
        %v6692 = vadd.f32 %v6372, %v6644
        %v6693 = vadd.f32 %v6373, %v6646
        %v6694 = vadd.f32 %v6374, %v6650
        %v6695 = vadd.f32 %v6375, %v6652
        %v6696 = vadd.f32 %v6376, %v6654
        %v6697 = vadd.f32 %v6377, %v6656
        %s6698 = scalar_lea.vmem %s4, 512
        %v6699 = vld [vmem:[%s6698] sm:$0xff]
        %v6700 = vld [vmem:[%s6698 + $0x8] sm:$0xff]
        %v6701 = vld [vmem:[%s6698 + $0x10] sm:$0xff]
        %v6702 = vld [vmem:[%s6698 + $0x18] sm:$0xff]
        %v6703 = vld [vmem:[%s6698 + $0x20] sm:$0xff]
        %v6704 = vld [vmem:[%s6698 + $0x28] sm:$0xff]
        %v6705 = vld [vmem:[%s6698 + $0x30] sm:$0xff]
        %v6706 = vld [vmem:[%s6698 + $0x38] sm:$0xff]
        %v6707 = vld [vmem:[%s6698 + $0x40] sm:$0xff]
        %v6708 = vld [vmem:[%s6698 + $0x48] sm:$0xff]
        %v6709 = vld [vmem:[%s6698 + $0x50] sm:$0xff]
        %v6710 = vld [vmem:[%s6698 + $0x58] sm:$0xff]
        %v6711 = vld [vmem:[%s6698 + $0x60] sm:$0xff]
        %v6712 = vld [vmem:[%s6698 + $0x68] sm:$0xff]
        %v6713 = vld [vmem:[%s6698 + $0x70] sm:$0xff]
        %v6714 = vld [vmem:[%s6698 + $0x78] sm:$0xff]
        %vm6715 = vcmask 1045504
        %v6716 = vrot.slane %v5509, 2
        %v6717 = vrot.slane %v5510, 2
        %v6718 = vsel %vm6715, %v6716, %v6717
        %v6719 = vrot.slane %v5511, 2
        %v6720 = vsel %vm6715, %v6717, %v6719
        %v6721 = vrot.slane %v5512, 2
        %v6722 = vsel %vm6715, %v6719, %v6721
        %v6723 = vrot.slane %v5513, 2
        %v6724 = vsel %vm6715, %v6721, %v6723
        %v6725 = vrot.slane %v5514, 2
        %v6726 = vsel %vm6715, %v6723, %v6725
        %v6727 = vrot.slane %v5515, 2
        %v6728 = vsel %vm6715, %v6725, %v6727
        %v6729 = vrot.slane %v5516, 2
        %v6730 = vsel %vm6715, %v6727, %v6729
        %v6731 = vrot.slane %v5517, 2
        %v6732 = vsel %vm6715, %v6729, %v6731
        %v6733 = vrot.slane %v5518, 2
        %v6734 = vsel %vm6715, %v6731, %v6733
        %v6761 = vunpack.c.l.b16 %v6699
        %v6762 = vunpack.c.h.b16 %v6699
        %v6763 = vunpack.c.l.b16 %v6700
        %v6764 = vunpack.c.h.b16 %v6700
        %v6765 = vunpack.c.l.b16 %v6701
        %v6766 = vunpack.c.h.b16 %v6701
        %v6767 = vunpack.c.l.b16 %v6702
        %v6768 = vunpack.c.h.b16 %v6702
        %v6769 = vunpack.c.l.b16 %v6703
        %v6770 = vunpack.c.h.b16 %v6703
        %v6771 = vunpack.c.l.b16 %v6704
        %v6772 = vunpack.c.h.b16 %v6704
        %v6773 = vunpack.c.l.b16 %v6705
        %v6774 = vunpack.c.h.b16 %v6705
        %v6775 = vunpack.c.l.b16 %v6706
        %v6776 = vunpack.c.h.b16 %v6706
        %v6777 = vunpack.c.l.b16 %v6707
        %v6778 = vunpack.c.h.b16 %v6707
        %v6779 = vunpack.c.l.b16 %v6708
        %v6780 = vunpack.c.h.b16 %v6708
        %v6781 = vunpack.c.l.b16 %v6709
        %v6782 = vunpack.c.h.b16 %v6709
        %v6783 = vunpack.c.l.b16 %v6710
        %v6784 = vunpack.c.h.b16 %v6710
        %v6785 = vunpack.c.l.b16 %v6711
        %v6786 = vunpack.c.h.b16 %v6711
        %v6787 = vunpack.c.l.b16 %v6712
        %v6788 = vunpack.c.h.b16 %v6712
        %v6789 = vunpack.c.l.b16 %v6713
        %v6790 = vunpack.c.h.b16 %v6713
        %v6791 = vunpack.c.l.b16 %v6714
        %v6792 = vunpack.c.h.b16 %v6714
        %v6793 = vpack.c.b16 %v6763, %v6761
        %v6794 = vpack.c.b16 %v6764, %v6762
        %v6795 = vpack.c.b16 %v6767, %v6765
        %v6796 = vpack.c.b16 %v6768, %v6766
        %v6797 = vpack.c.b16 %v6771, %v6769
        %v6798 = vpack.c.b16 %v6772, %v6770
        %v6799 = vpack.c.b16 %v6775, %v6773
        %v6800 = vpack.c.b16 %v6776, %v6774
        %v6801 = vpack.c.b16 %v6779, %v6777
        %v6802 = vpack.c.b16 %v6780, %v6778
        %v6803 = vpack.c.b16 %v6783, %v6781
        %v6804 = vpack.c.b16 %v6784, %v6782
        %v6805 = vpack.c.b16 %v6787, %v6785
        %v6806 = vpack.c.b16 %v6788, %v6786
        %v6807 = vpack.c.b16 %v6791, %v6789
        %v6808 = vpack.c.b16 %v6792, %v6790
        %6825 = vmatprep.subr.bf16.mxu0 %v6808
        %6826 = vmatpush1.bf16.msra.mxu0 %v6807
        %6827 = vmatprep.subr.bf16.mxu0 %v6806
        %6828 = vmatpush1.bf16.msra.mxu0 %v6805
        %6829 = vmatprep.subr.bf16.mxu0 %v6804
        %6830 = vmatpush1.bf16.msra.mxu0 %v6803
        %6831 = vmatprep.subr.bf16.mxu0 %v6802
        %6832 = vmatpush1.bf16.msra.mxu0 %v6801
        %6833 = vmatprep.subr.bf16.mxu0 %v6800
        %6834 = vmatpush1.bf16.msra.mxu0 %v6799
        %6835 = vmatprep.subr.bf16.mxu0 %v6798
        %6836 = vmatpush1.bf16.msra.mxu0 %v6797
        %6837 = vmatprep.subr.bf16.mxu0 %v6796
        %6838 = vmatpush1.bf16.msra.mxu0 %v6795
        %6839 = vmatprep.subr.bf16.mxu0 %v6794
        %6840 = vmatpush1.bf16.msra.mxu0 %v6793
        %6841 = vmatprep.subr.bf16.mxu0 0
        %6842 = vmatpush2.bf16.msra.mxu0 0
        %6843 = vmatprep.subr.bf16.mxu0 0
        %6844 = vmatpush2.bf16.msra.mxu0 0
        %6845 = vmatprep.subr.bf16.mxu0 0
        %6846 = vmatpush2.bf16.msra.mxu0 0
        %6847 = vmatprep.subr.bf16.mxu0 0
        %6848 = vmatpush2.bf16.msra.mxu0 0
        %6849 = vmatprep.subr.bf16.mxu0 0
        %6850 = vmatpush2.bf16.msra.mxu0 0
        %6851 = vmatprep.subr.bf16.mxu0 0
        %6852 = vmatpush2.bf16.msra.mxu0 0
        %6853 = vmatprep.subr.bf16.mxu0 0
        %6854 = vmatpush2.bf16.msra.mxu0 0
        %6855 = vmatprep.subr.bf16.mxu0 0
        %6856 = vmatpush2.bf16.msra.mxu0 0
        %6857 = vmatprep.mubr.bf16.mxu0 0
        %6858 = vmatmul.mubr.bf16.gmra.mxu0 %v6718
        %v6859 = vpop.f32.mrf.mxu0
        %v6860 = vadd.f32 0.0, %v6859
        %v6861 = vpop.f32.mrf.mxu0
        %v6862 = vadd.f32 0.0, %v6861
        %v6863 = vpop.f32.mrf.mxu0
        %v6864 = vadd.f32 0.0, %v6863
        %v6865 = vpop.f32.mrf.mxu0
        %v6866 = vadd.f32 0.0, %v6865
        %6867 = vmatprep.mubr.bf16.mxu0 0
        %6868 = vmatmul.mubr.bf16.gmra.mxu0 %v6720
        %v6869 = vpop.f32.mrf.mxu0
        %v6870 = vadd.f32 0.0, %v6869
        %v6871 = vpop.f32.mrf.mxu0
        %v6872 = vadd.f32 0.0, %v6871
        %v6873 = vpop.f32.mrf.mxu0
        %v6874 = vadd.f32 0.0, %v6873
        %v6875 = vpop.f32.mrf.mxu0
        %v6876 = vadd.f32 0.0, %v6875
        %6877 = vmatprep.mubr.bf16.mxu0 0
        %6878 = vmatmul.mubr.bf16.gmra.mxu0 %v6722
        %v6879 = vpop.f32.mrf.mxu0
        %v6880 = vadd.f32 0.0, %v6879
        %v6881 = vpop.f32.mrf.mxu0
        %v6882 = vadd.f32 0.0, %v6881
        %v6883 = vpop.f32.mrf.mxu0
        %v6884 = vadd.f32 0.0, %v6883
        %v6885 = vpop.f32.mrf.mxu0
        %v6886 = vadd.f32 0.0, %v6885
        %6887 = vmatprep.mubr.bf16.mxu0 0
        %6888 = vmatmul.mubr.bf16.gmra.mxu0 %v6724
        %v6889 = vpop.f32.mrf.mxu0
        %v6890 = vadd.f32 0.0, %v6889
        %v6891 = vpop.f32.mrf.mxu0
        %v6892 = vadd.f32 0.0, %v6891
        %v6893 = vpop.f32.mrf.mxu0
        %v6894 = vadd.f32 0.0, %v6893
        %v6895 = vpop.f32.mrf.mxu0
        %v6896 = vadd.f32 0.0, %v6895
        %6897 = vmatprep.mubr.bf16.mxu0 0
        %6898 = vmatmul.mubr.bf16.gmra.mxu0 %v6726
        %v6899 = vpop.f32.mrf.mxu0
        %v6900 = vadd.f32 0.0, %v6899
        %v6901 = vpop.f32.mrf.mxu0
        %v6902 = vadd.f32 0.0, %v6901
        %v6903 = vpop.f32.mrf.mxu0
        %v6904 = vadd.f32 0.0, %v6903
        %v6905 = vpop.f32.mrf.mxu0
        %v6906 = vadd.f32 0.0, %v6905
        %6907 = vmatprep.mubr.bf16.mxu0 0
        %6908 = vmatmul.mubr.bf16.gmra.mxu0 %v6728
        %v6909 = vpop.f32.mrf.mxu0
        %v6910 = vadd.f32 0.0, %v6909
        %v6911 = vpop.f32.mrf.mxu0
        %v6912 = vadd.f32 0.0, %v6911
        %v6913 = vpop.f32.mrf.mxu0
        %v6914 = vadd.f32 0.0, %v6913
        %v6915 = vpop.f32.mrf.mxu0
        %v6916 = vadd.f32 0.0, %v6915
        %6917 = vmatprep.mubr.bf16.mxu0 0
        %6918 = vmatmul.mubr.bf16.gmra.mxu0 %v6730
        %v6919 = vpop.f32.mrf.mxu0
        %v6920 = vadd.f32 0.0, %v6919
        %v6921 = vpop.f32.mrf.mxu0
        %v6922 = vadd.f32 0.0, %v6921
        %v6923 = vpop.f32.mrf.mxu0
        %v6924 = vadd.f32 0.0, %v6923
        %v6925 = vpop.f32.mrf.mxu0
        %v6926 = vadd.f32 0.0, %v6925
        %6927 = vmatprep.mubr.bf16.mxu0 0
        %6928 = vmatmul.mubr.bf16.gmra.mxu0 %v6732
        %v6929 = vpop.f32.mrf.mxu0
        %v6930 = vadd.f32 0.0, %v6929
        %v6931 = vpop.f32.mrf.mxu0
        %v6932 = vadd.f32 0.0, %v6931
        %v6933 = vpop.f32.mrf.mxu0
        %v6934 = vadd.f32 0.0, %v6933
        %v6935 = vpop.f32.mrf.mxu0
        %v6936 = vadd.f32 0.0, %v6935
        %6937 = vmatprep.mubr.bf16.mxu0 0
        %6938 = vmatmul.mubr.bf16.gmra.mxu0 %v6734
        %v6939 = vpop.f32.mrf.mxu0
        %v6940 = vadd.f32 0.0, %v6939
        %v6941 = vpop.f32.mrf.mxu0
        %v6942 = vadd.f32 0.0, %v6941
        %v6943 = vpop.f32.mrf.mxu0
        %v6944 = vadd.f32 0.0, %v6943
        %v6945 = vpop.f32.mrf.mxu0
        %v6946 = vadd.f32 0.0, %v6945
        %6947 = vmatprep.mubr.bf16.mxu0 0
        %6948 = vmatmul.mubr.bf16.gmra.mxu0 %v6733
        %v6949 = vpop.f32.mrf.mxu0
        %v6950 = vadd.f32 0.0, %v6949
        %v6951 = vpop.f32.mrf.mxu0
        %v6952 = vadd.f32 0.0, %v6951
        %v6953 = vpop.f32.mrf.mxu0
        %v6954 = vadd.f32 0.0, %v6953
        %v6955 = vpop.f32.mrf.mxu0
        %v6956 = vadd.f32 0.0, %v6955
        %6957 = vdwg.mxu0
        %v6958 = vadd.f32 %v6658, %v6860
        %v6959 = vadd.f32 %v6659, %v6862
        %v6960 = vadd.f32 %v6660, %v6864
        %v6961 = vadd.f32 %v6661, %v6866
        %v6962 = vadd.f32 %v6662, %v6870
        %v6963 = vadd.f32 %v6663, %v6872
        %v6964 = vadd.f32 %v6664, %v6874
        %v6965 = vadd.f32 %v6665, %v6876
        %v6966 = vadd.f32 %v6666, %v6880
        %v6967 = vadd.f32 %v6667, %v6882
        %v6968 = vadd.f32 %v6668, %v6884
        %v6969 = vadd.f32 %v6669, %v6886
        %v6970 = vadd.f32 %v6670, %v6890
        %v6971 = vadd.f32 %v6671, %v6892
        %v6972 = vadd.f32 %v6672, %v6894
        %v6973 = vadd.f32 %v6673, %v6896
        %v6974 = vadd.f32 %v6674, %v6900
        %v6975 = vadd.f32 %v6675, %v6902
        %v6976 = vadd.f32 %v6676, %v6904
        %v6977 = vadd.f32 %v6677, %v6906
        %v6978 = vadd.f32 %v6678, %v6910
        %v6979 = vadd.f32 %v6679, %v6912
        %v6980 = vadd.f32 %v6680, %v6914
        %v6981 = vadd.f32 %v6681, %v6916
        %v6982 = vadd.f32 %v6682, %v6920
        %v6983 = vadd.f32 %v6683, %v6922
        %v6984 = vadd.f32 %v6684, %v6924
        %v6985 = vadd.f32 %v6685, %v6926
        %v6986 = vadd.f32 %v6686, %v6930
        %v6987 = vadd.f32 %v6687, %v6932
        %v6988 = vadd.f32 %v6688, %v6934
        %v6989 = vadd.f32 %v6689, %v6936
        %v6990 = vadd.f32 %v6690, %v6940
        %v6991 = vadd.f32 %v6691, %v6942
        %v6992 = vadd.f32 %v6692, %v6944
        %v6993 = vadd.f32 %v6693, %v6946
        %v6994 = vadd.f32 %v6694, %v6950
        %v6995 = vadd.f32 %v6695, %v6952
        %v6996 = vadd.f32 %v6696, %v6954
        %v6997 = vadd.f32 %v6697, %v6956
        %vm6998 = vcmp.ge.f32.partialorder %v6958, 0.0
        %vm6999 = vcmp.ge.f32.partialorder %v6959, 0.0
        %vm7000 = vcmp.ge.f32.partialorder %v6960, 0.0
        %vm7001 = vcmp.ge.f32.partialorder %v6961, 0.0
        %vm7002 = vcmp.ge.f32.partialorder %v6962, 0.0
        %vm7003 = vcmp.ge.f32.partialorder %v6963, 0.0
        %vm7004 = vcmp.ge.f32.partialorder %v6964, 0.0
        %vm7005 = vcmp.ge.f32.partialorder %v6965, 0.0
        %vm7006 = vcmp.ge.f32.partialorder %v6966, 0.0
        %vm7007 = vcmp.ge.f32.partialorder %v6967, 0.0
        %vm7008 = vcmp.ge.f32.partialorder %v6968, 0.0
        %vm7009 = vcmp.ge.f32.partialorder %v6969, 0.0
        %vm7010 = vcmp.ge.f32.partialorder %v6970, 0.0
        %vm7011 = vcmp.ge.f32.partialorder %v6971, 0.0
        %vm7012 = vcmp.ge.f32.partialorder %v6972, 0.0
        %vm7013 = vcmp.ge.f32.partialorder %v6973, 0.0
        %vm7014 = vcmp.ge.f32.partialorder %v6974, 0.0
        %vm7015 = vcmp.ge.f32.partialorder %v6975, 0.0
        %vm7016 = vcmp.ge.f32.partialorder %v6976, 0.0
        %vm7017 = vcmp.ge.f32.partialorder %v6977, 0.0
        %vm7018 = vcmp.ge.f32.partialorder %v6978, 0.0
        %vm7019 = vcmp.ge.f32.partialorder %v6979, 0.0
        %vm7020 = vcmp.ge.f32.partialorder %v6980, 0.0
        %vm7021 = vcmp.ge.f32.partialorder %v6981, 0.0
        %vm7022 = vcmp.ge.f32.partialorder %v6982, 0.0
        %vm7023 = vcmp.ge.f32.partialorder %v6983, 0.0
        %vm7024 = vcmp.ge.f32.partialorder %v6984, 0.0
        %vm7025 = vcmp.ge.f32.partialorder %v6985, 0.0
        %vm7026 = vcmp.ge.f32.partialorder %v6986, 0.0
        %vm7027 = vcmp.ge.f32.partialorder %v6987, 0.0
        %vm7028 = vcmp.ge.f32.partialorder %v6988, 0.0
        %vm7029 = vcmp.ge.f32.partialorder %v6989, 0.0
        %vm7030 = vcmp.ge.f32.partialorder %v6990, 0.0
        %vm7031 = vcmp.ge.f32.partialorder %v6991, 0.0
        %vm7032 = vcmp.ge.f32.partialorder %v6992, 0.0
        %vm7033 = vcmp.ge.f32.partialorder %v6993, 0.0
        %vm7034 = vcmp.ge.f32.partialorder %v6994, 0.0
        %vm7035 = vcmp.ge.f32.partialorder %v6995, 0.0
        %vm7036 = vcmp.ge.f32.partialorder %v6996, 0.0
        %vm7037 = vcmp.ge.f32.partialorder %v6997, 0.0
        %v7038 = vmul.f32 %v6958, 0.01
        %v7039 = vmul.f32 %v6959, 0.01
        %v7040 = vmul.f32 %v6960, 0.01
        %v7041 = vmul.f32 %v6961, 0.01
        %v7042 = vmul.f32 %v6962, 0.01
        %v7043 = vmul.f32 %v6963, 0.01
        %v7044 = vmul.f32 %v6964, 0.01
        %v7045 = vmul.f32 %v6965, 0.01
        %v7046 = vmul.f32 %v6966, 0.01
        %v7047 = vmul.f32 %v6967, 0.01
        %v7048 = vmul.f32 %v6968, 0.01
        %v7049 = vmul.f32 %v6969, 0.01
        %v7050 = vmul.f32 %v6970, 0.01
        %v7051 = vmul.f32 %v6971, 0.01
        %v7052 = vmul.f32 %v6972, 0.01
        %v7053 = vmul.f32 %v6973, 0.01
        %v7054 = vmul.f32 %v6974, 0.01
        %v7055 = vmul.f32 %v6975, 0.01
        %v7056 = vmul.f32 %v6976, 0.01
        %v7057 = vmul.f32 %v6977, 0.01
        %v7058 = vmul.f32 %v6978, 0.01
        %v7059 = vmul.f32 %v6979, 0.01
        %v7060 = vmul.f32 %v6980, 0.01
        %v7061 = vmul.f32 %v6981, 0.01
        %v7062 = vmul.f32 %v6982, 0.01
        %v7063 = vmul.f32 %v6983, 0.01
        %v7064 = vmul.f32 %v6984, 0.01
        %v7065 = vmul.f32 %v6985, 0.01
        %v7066 = vmul.f32 %v6986, 0.01
        %v7067 = vmul.f32 %v6987, 0.01
        %v7068 = vmul.f32 %v6988, 0.01
        %v7069 = vmul.f32 %v6989, 0.01
        %v7070 = vmul.f32 %v6990, 0.01
        %v7071 = vmul.f32 %v6991, 0.01
        %v7072 = vmul.f32 %v6992, 0.01
        %v7073 = vmul.f32 %v6993, 0.01
        %v7074 = vmul.f32 %v6994, 0.01
        %v7075 = vmul.f32 %v6995, 0.01
        %v7076 = vmul.f32 %v6996, 0.01
        %v7077 = vmul.f32 %v6997, 0.01
        %v7078 = vsel %vm6998, %v6958, %v7038
        %v7079 = vsel %vm6999, %v6959, %v7039
        %v7080 = vsel %vm7000, %v6960, %v7040
        %v7081 = vsel %vm7001, %v6961, %v7041
        %v7082 = vsel %vm7002, %v6962, %v7042
        %v7083 = vsel %vm7003, %v6963, %v7043
        %v7084 = vsel %vm7004, %v6964, %v7044
        %v7085 = vsel %vm7005, %v6965, %v7045
        %v7086 = vsel %vm7006, %v6966, %v7046
        %v7087 = vsel %vm7007, %v6967, %v7047
        %v7088 = vsel %vm7008, %v6968, %v7048
        %v7089 = vsel %vm7009, %v6969, %v7049
        %v7090 = vsel %vm7010, %v6970, %v7050
        %v7091 = vsel %vm7011, %v6971, %v7051
        %v7092 = vsel %vm7012, %v6972, %v7052
        %v7093 = vsel %vm7013, %v6973, %v7053
        %v7094 = vsel %vm7014, %v6974, %v7054
        %v7095 = vsel %vm7015, %v6975, %v7055
        %v7096 = vsel %vm7016, %v6976, %v7056
        %v7097 = vsel %vm7017, %v6977, %v7057
        %v7098 = vsel %vm7018, %v6978, %v7058
        %v7099 = vsel %vm7019, %v6979, %v7059
        %v7100 = vsel %vm7020, %v6980, %v7060
        %v7101 = vsel %vm7021, %v6981, %v7061
        %v7102 = vsel %vm7022, %v6982, %v7062
        %v7103 = vsel %vm7023, %v6983, %v7063
        %v7104 = vsel %vm7024, %v6984, %v7064
        %v7105 = vsel %vm7025, %v6985, %v7065
        %v7106 = vsel %vm7026, %v6986, %v7066
        %v7107 = vsel %vm7027, %v6987, %v7067
        %v7108 = vsel %vm7028, %v6988, %v7068
        %v7109 = vsel %vm7029, %v6989, %v7069
        %v7110 = vsel %vm7030, %v6990, %v7070
        %v7111 = vsel %vm7031, %v6991, %v7071
        %v7112 = vsel %vm7032, %v6992, %v7072
        %v7113 = vsel %vm7033, %v6993, %v7073
        %v7114 = vsel %vm7034, %v6994, %v7074
        %v7115 = vsel %vm7035, %v6995, %v7075
        %v7116 = vsel %vm7036, %v6996, %v7076
        %v7117 = vsel %vm7037, %v6997, %v7077
        %v7118 = vpack.c.bf16 %v7080, %v7078
        %v7119 = vpack.c.bf16 %v7081, %v7079
        %v7120 = vpack.c.bf16 %v7084, %v7082
        %v7121 = vpack.c.bf16 %v7085, %v7083
        %v7122 = vpack.c.bf16 %v7088, %v7086
        %v7123 = vpack.c.bf16 %v7089, %v7087
        %v7124 = vpack.c.bf16 %v7092, %v7090
        %v7125 = vpack.c.bf16 %v7093, %v7091
        %v7126 = vpack.c.bf16 %v7096, %v7094
        %v7127 = vpack.c.bf16 %v7097, %v7095
        %v7128 = vpack.c.bf16 %v7100, %v7098
        %v7129 = vpack.c.bf16 %v7101, %v7099
        %v7130 = vpack.c.bf16 %v7104, %v7102
        %v7131 = vpack.c.bf16 %v7105, %v7103
        %v7132 = vpack.c.bf16 %v7108, %v7106
        %v7133 = vpack.c.bf16 %v7109, %v7107
        %v7134 = vpack.c.bf16 %v7112, %v7110
        %v7135 = vpack.c.bf16 %v7113, %v7111
        %v7136 = vpack.c.bf16 %v7116, %v7114
        %v7137 = vpack.c.bf16 %v7117, %v7115
        %v7138 = vld [vmem:[%s5] sm:$0xf]
        %v7139 = vld [vmem:[%s5 + $0x4] sm:$0xf]
        %v7140 = vld [vmem:[%s5 + $0x8] sm:$0xf]
        %v7141 = vld [vmem:[%s5 + $0xc] sm:$0xf]
        %v7142 = vld [vmem:[%s5 + $0x10] sm:$0xf]
        %v7143 = vld [vmem:[%s5 + $0x14] sm:$0xf]
        %v7144 = vld [vmem:[%s5 + $0x18] sm:$0xf]
        %v7145 = vld [vmem:[%s5 + $0x1c] sm:$0xf]
        %v7146 = vld [vmem:[%s5 + $0x20] sm:$0xf]
        %v7147 = vld [vmem:[%s5 + $0x24] sm:$0xf]
        %v7148 = vld [vmem:[%s5 + $0x28] sm:$0xf]
        %v7149 = vld [vmem:[%s5 + $0x2c] sm:$0xf]
        %v7150 = vld [vmem:[%s5 + $0x30] sm:$0xf]
        %v7151 = vld [vmem:[%s5 + $0x34] sm:$0xf]
        %v7152 = vld [vmem:[%s5 + $0x38] sm:$0xf]
        %v7153 = vld [vmem:[%s5 + $0x3c] sm:$0xf]
        %v7154 = vld [vmem:[%s5 + $0x40] sm:$0xf]
        %v7155 = vld [vmem:[%s5 + $0x44] sm:$0xf]
        %v7156 = vld [vmem:[%s5 + $0x48] sm:$0xf]
        %v7157 = vld [vmem:[%s5 + $0x4c] sm:$0xf]
        %v7158 = vld [vmem:[%s5 + $0x50] sm:$0xf]
        %v7159 = vld [vmem:[%s5 + $0x54] sm:$0xf]
        %v7160 = vld [vmem:[%s5 + $0x58] sm:$0xf]
        %v7161 = vld [vmem:[%s5 + $0x5c] sm:$0xf]
        %v7162 = vld [vmem:[%s5 + $0x60] sm:$0xf]
        %v7163 = vld [vmem:[%s5 + $0x64] sm:$0xf]
        %v7164 = vld [vmem:[%s5 + $0x68] sm:$0xf]
        %v7165 = vld [vmem:[%s5 + $0x6c] sm:$0xf]
        %v7166 = vld [vmem:[%s5 + $0x70] sm:$0xf]
        %v7167 = vld [vmem:[%s5 + $0x74] sm:$0xf]
        %v7168 = vld [vmem:[%s5 + $0x78] sm:$0xf]
        %v7169 = vld [vmem:[%s5 + $0x7c] sm:$0xf]
        %v7202 = vunpack.c.l.b16 %v7138
        %v7203 = vunpack.c.l.b16 %v7139
        %v7204 = vunpack.c.l.b16 %v7140
        %v7205 = vunpack.c.l.b16 %v7141
        %v7206 = vunpack.c.l.b16 %v7142
        %v7207 = vunpack.c.l.b16 %v7143
        %v7208 = vunpack.c.l.b16 %v7144
        %v7209 = vunpack.c.l.b16 %v7145
        %v7210 = vunpack.c.l.b16 %v7146
        %v7211 = vunpack.c.l.b16 %v7147
        %v7212 = vunpack.c.l.b16 %v7148
        %v7213 = vunpack.c.l.b16 %v7149
        %v7214 = vunpack.c.l.b16 %v7150
        %v7215 = vunpack.c.l.b16 %v7151
        %v7216 = vunpack.c.l.b16 %v7152
        %v7217 = vunpack.c.l.b16 %v7153
        %v7218 = vunpack.c.l.b16 %v7154
        %v7219 = vunpack.c.l.b16 %v7155
        %v7220 = vunpack.c.l.b16 %v7156
        %v7221 = vunpack.c.l.b16 %v7157
        %v7222 = vunpack.c.l.b16 %v7158
        %v7223 = vunpack.c.l.b16 %v7159
        %v7224 = vunpack.c.l.b16 %v7160
        %v7225 = vunpack.c.l.b16 %v7161
        %v7226 = vunpack.c.l.b16 %v7162
        %v7227 = vunpack.c.l.b16 %v7163
        %v7228 = vunpack.c.l.b16 %v7164
        %v7229 = vunpack.c.l.b16 %v7165
        %v7230 = vunpack.c.l.b16 %v7166
        %v7231 = vunpack.c.l.b16 %v7167
        %v7232 = vunpack.c.l.b16 %v7168
        %v7233 = vunpack.c.l.b16 %v7169
        %v7234 = vpack.c.b16 %v7203, %v7202
        %v7235 = vpack.c.b16 %v7205, %v7204
        %v7236 = vpack.c.b16 %v7207, %v7206
        %v7237 = vpack.c.b16 %v7209, %v7208
        %v7238 = vpack.c.b16 %v7211, %v7210
        %v7239 = vpack.c.b16 %v7213, %v7212
        %v7240 = vpack.c.b16 %v7215, %v7214
        %v7241 = vpack.c.b16 %v7217, %v7216
        %v7242 = vpack.c.b16 %v7219, %v7218
        %v7243 = vpack.c.b16 %v7221, %v7220
        %v7244 = vpack.c.b16 %v7223, %v7222
        %v7245 = vpack.c.b16 %v7225, %v7224
        %v7246 = vpack.c.b16 %v7227, %v7226
        %v7247 = vpack.c.b16 %v7229, %v7228
        %v7248 = vpack.c.b16 %v7231, %v7230
        %v7249 = vpack.c.b16 %v7233, %v7232
        %7266 = vmatprep.subr.bf16.mxu0 0
        %7267 = vmatpush1.bf16.msra.mxu0 %v7241
        %7268 = vmatprep.subr.bf16.mxu0 0
        %7269 = vmatpush1.bf16.msra.mxu0 %v7240
        %7270 = vmatprep.subr.bf16.mxu0 0
        %7271 = vmatpush1.bf16.msra.mxu0 %v7239
        %7272 = vmatprep.subr.bf16.mxu0 0
        %7273 = vmatpush1.bf16.msra.mxu0 %v7238
        %7274 = vmatprep.subr.bf16.mxu0 0
        %7275 = vmatpush1.bf16.msra.mxu0 %v7237
        %7276 = vmatprep.subr.bf16.mxu0 0
        %7277 = vmatpush1.bf16.msra.mxu0 %v7236
        %7278 = vmatprep.subr.bf16.mxu0 0
        %7279 = vmatpush1.bf16.msra.mxu0 %v7235
        %7280 = vmatprep.subr.bf16.mxu0 0
        %7281 = vmatpush1.bf16.msra.mxu0 %v7234
        %7282 = vmatprep.subr.bf16.mxu0 0
        %7283 = vmatpush2.bf16.msra.mxu0 %v7249
        %7284 = vmatprep.subr.bf16.mxu0 0
        %7285 = vmatpush2.bf16.msra.mxu0 %v7248
        %7286 = vmatprep.subr.bf16.mxu0 0
        %7287 = vmatpush2.bf16.msra.mxu0 %v7247
        %7288 = vmatprep.subr.bf16.mxu0 0
        %7289 = vmatpush2.bf16.msra.mxu0 %v7246
        %7290 = vmatprep.subr.bf16.mxu0 0
        %7291 = vmatpush2.bf16.msra.mxu0 %v7245
        %7292 = vmatprep.subr.bf16.mxu0 0
        %7293 = vmatpush2.bf16.msra.mxu0 %v7244
        %7294 = vmatprep.subr.bf16.mxu0 0
        %7295 = vmatpush2.bf16.msra.mxu0 %v7243
        %7296 = vmatprep.subr.bf16.mxu0 0
        %7297 = vmatpush2.bf16.msra.mxu0 %v7242
        %7298 = vmatprep.mubr.bf16.mxu0 %v7119
        %7299 = vmatmul.mubr.bf16.gmra.mxu0 %v7118
        %v7300 = vpop.f32.mrf.mxu0
        %v7301 = vadd.f32 0.0, %v7300
        %v7302 = vpop.f32.mrf.mxu0
        %v7303 = vpop.f32.mrf.mxu0
        %v7304 = vadd.f32 0.0, %v7303
        %v7305 = vpop.f32.mrf.mxu0
        %7306 = vmatprep.mubr.bf16.mxu0 %v7121
        %7307 = vmatmul.mubr.bf16.gmra.mxu0 %v7120
        %v7308 = vpop.f32.mrf.mxu0
        %v7309 = vadd.f32 0.0, %v7308
        %v7310 = vpop.f32.mrf.mxu0
        %v7311 = vpop.f32.mrf.mxu0
        %v7312 = vadd.f32 0.0, %v7311
        %v7313 = vpop.f32.mrf.mxu0
        %7314 = vmatprep.mubr.bf16.mxu0 %v7123
        %7315 = vmatmul.mubr.bf16.gmra.mxu0 %v7122
        %v7316 = vpop.f32.mrf.mxu0
        %v7317 = vadd.f32 0.0, %v7316
        %v7318 = vpop.f32.mrf.mxu0
        %v7319 = vpop.f32.mrf.mxu0
        %v7320 = vadd.f32 0.0, %v7319
        %v7321 = vpop.f32.mrf.mxu0
        %7322 = vmatprep.mubr.bf16.mxu0 %v7125
        %7323 = vmatmul.mubr.bf16.gmra.mxu0 %v7124
        %v7324 = vpop.f32.mrf.mxu0
        %v7325 = vadd.f32 0.0, %v7324
        %v7326 = vpop.f32.mrf.mxu0
        %v7327 = vpop.f32.mrf.mxu0
        %v7328 = vadd.f32 0.0, %v7327
        %v7329 = vpop.f32.mrf.mxu0
        %7330 = vmatprep.mubr.bf16.mxu0 %v7127
        %7331 = vmatmul.mubr.bf16.gmra.mxu0 %v7126
        %v7332 = vpop.f32.mrf.mxu0
        %v7333 = vadd.f32 0.0, %v7332
        %v7334 = vpop.f32.mrf.mxu0
        %v7335 = vpop.f32.mrf.mxu0
        %v7336 = vadd.f32 0.0, %v7335
        %v7337 = vpop.f32.mrf.mxu0
        %7338 = vmatprep.mubr.bf16.mxu0 %v7129
        %7339 = vmatmul.mubr.bf16.gmra.mxu0 %v7128
        %v7340 = vpop.f32.mrf.mxu0
        %v7341 = vadd.f32 0.0, %v7340
        %v7342 = vpop.f32.mrf.mxu0
        %v7343 = vpop.f32.mrf.mxu0
        %v7344 = vadd.f32 0.0, %v7343
        %v7345 = vpop.f32.mrf.mxu0
        %7346 = vmatprep.mubr.bf16.mxu0 %v7131
        %7347 = vmatmul.mubr.bf16.gmra.mxu0 %v7130
        %v7348 = vpop.f32.mrf.mxu0
        %v7349 = vadd.f32 0.0, %v7348
        %v7350 = vpop.f32.mrf.mxu0
        %v7351 = vpop.f32.mrf.mxu0
        %v7352 = vadd.f32 0.0, %v7351
        %v7353 = vpop.f32.mrf.mxu0
        %7354 = vmatprep.mubr.bf16.mxu0 %v7133
        %7355 = vmatmul.mubr.bf16.gmra.mxu0 %v7132
        %v7356 = vpop.f32.mrf.mxu0
        %v7357 = vadd.f32 0.0, %v7356
        %v7358 = vpop.f32.mrf.mxu0
        %v7359 = vpop.f32.mrf.mxu0
        %v7360 = vadd.f32 0.0, %v7359
        %v7361 = vpop.f32.mrf.mxu0
        %7362 = vmatprep.mubr.bf16.mxu0 %v7135
        %7363 = vmatmul.mubr.bf16.gmra.mxu0 %v7134
        %v7364 = vpop.f32.mrf.mxu0
        %v7365 = vadd.f32 0.0, %v7364
        %v7366 = vpop.f32.mrf.mxu0
        %v7367 = vpop.f32.mrf.mxu0
        %v7368 = vadd.f32 0.0, %v7367
        %v7369 = vpop.f32.mrf.mxu0
        %7370 = vmatprep.mubr.bf16.mxu0 %v7137
        %7371 = vmatmul.mubr.bf16.gmra.mxu0 %v7136
        %v7372 = vpop.f32.mrf.mxu0
        %v7373 = vadd.f32 0.0, %v7372
        %v7374 = vpop.f32.mrf.mxu0
        %v7375 = vpop.f32.mrf.mxu0
        %v7376 = vadd.f32 0.0, %v7375
        %v7377 = vpop.f32.mrf.mxu0
        %7378 = vdwg.mxu0
        %v7379 = vld [vmem:[%s6] sm:$0xff]
        %v7380 = vld [vmem:[%s6 + $0x8] sm:$0xff]
        %v7381 = vld [vmem:[%s6 + $0x10] sm:$0xff]
        %v7382 = vld [vmem:[%s6 + $0x18] sm:$0xff]
        %v7383 = vld [vmem:[%s6 + $0x20] sm:$0xff]
        %v7384 = vld [vmem:[%s6 + $0x28] sm:$0xff]
        %v7385 = vpack.c.bf16 %v7304, %v7301
        %v7386 = vpack.c.bf16 %v7312, %v7309
        %v7387 = vpack.c.bf16 %v7320, %v7317
        %v7388 = vpack.c.bf16 %v7328, %v7325
        %v7389 = vpack.c.bf16 %v7336, %v7333
        %v7390 = vpack.c.bf16 %v7344, %v7341
        %v7391 = vpack.c.bf16 %v7352, %v7349
        %v7392 = vpack.c.bf16 %v7360, %v7357
        %v7393 = vpack.c.bf16 %v7368, %v7365
        %v7394 = vpack.c.bf16 %v7376, %v7373
        %v7401 = vunpack.c.l.b16 %v7379
        %v7402 = vunpack.c.h.b16 %v7379
        %v7403 = vunpack.c.l.b16 %v7380
        %v7404 = vunpack.c.h.b16 %v7380
        %v7405 = vunpack.c.l.b16 %v7381
        %v7406 = vunpack.c.h.b16 %v7381
        %v7407 = vunpack.c.l.b16 %v7382
        %v7408 = vunpack.c.h.b16 %v7382
        %v7409 = vunpack.c.l.b16 %v7383
        %v7410 = vunpack.c.h.b16 %v7383
        %v7411 = vunpack.c.l.b16 %v7384
        %v7412 = vunpack.c.h.b16 %v7384
        %v7413 = vpack.c.b16 %v7403, %v7401
        %v7414 = vpack.c.b16 %v7404, %v7402
        %v7415 = vpack.c.b16 %v7407, %v7405
        %v7416 = vpack.c.b16 %v7408, %v7406
        %v7417 = vpack.c.b16 %v7411, %v7409
        %v7418 = vpack.c.b16 %v7412, %v7410
        %vm7422 = vcmask 228352
        %v7424 = vsel %vm7422, %v7414, 0
        %v7427 = vsel %vm7422, %v7416, 0
        %v7430 = vsel %vm7422, %v7418, 0
        %vm7432 = vcmask 1045504
        %v7434 = vsel %vm7432, %v7394, 0
        %7436 = vmatprep.subr.bf16.mxu0 0
        %7437 = vmatpush1.bf16.msra.mxu0 %v7392
        %7438 = vmatprep.subr.bf16.mxu0 0
        %7439 = vmatpush1.bf16.msra.mxu0 %v7391
        %7440 = vmatprep.subr.bf16.mxu0 0
        %7441 = vmatpush1.bf16.msra.mxu0 %v7390
        %7442 = vmatprep.subr.bf16.mxu0 0
        %7443 = vmatpush1.bf16.msra.mxu0 %v7389
        %7444 = vmatprep.subr.bf16.mxu0 0
        %7445 = vmatpush1.bf16.msra.mxu0 %v7388
        %7446 = vmatprep.subr.bf16.mxu0 0
        %7447 = vmatpush1.bf16.msra.mxu0 %v7387
        %7448 = vmatprep.subr.bf16.mxu0 0
        %7449 = vmatpush1.bf16.msra.mxu0 %v7386
        %7450 = vmatprep.subr.bf16.mxu0 0
        %7451 = vmatpush1.bf16.msra.mxu0 %v7385
        %7452 = vmatprep.subr.bf16.mxu0 0
        %7453 = vmatpush2.bf16.msra.mxu0 0
        %7454 = vmatprep.subr.bf16.mxu0 0
        %7455 = vmatpush2.bf16.msra.mxu0 0
        %7456 = vmatprep.subr.bf16.mxu0 0
        %7457 = vmatpush2.bf16.msra.mxu0 0
        %7458 = vmatprep.subr.bf16.mxu0 0
        %7459 = vmatpush2.bf16.msra.mxu0 0
        %7460 = vmatprep.subr.bf16.mxu0 0
        %7461 = vmatpush2.bf16.msra.mxu0 0
        %7462 = vmatprep.subr.bf16.mxu0 0
        %7463 = vmatpush2.bf16.msra.mxu0 0
        %7464 = vmatprep.subr.bf16.mxu0 0
        %7465 = vmatpush2.bf16.msra.mxu0 %v7434
        %7466 = vmatprep.subr.bf16.mxu0 0
        %7467 = vmatpush2.bf16.msra.mxu0 %v7393
        %7468 = vmatprep.mubr.bf16.mxu0 %v7424
        %7469 = vmatmul.mubr.bf16.gmra.mxu0 %v7413
        %v7470 = vpop.f32.mrf.mxu0
        %v7471 = vadd.f32 0.0, %v7470
        %v7472 = vpop.f32.mrf.mxu0
        %v7473 = vpop.f32.mrf.mxu0
        %v7474 = vadd.f32 0.0, %v7473
        %v7475 = vpop.f32.mrf.mxu0
        %7476 = vmatprep.mubr.bf16.mxu0 %v7427
        %7477 = vmatmul.mubr.bf16.gmra.mxu0 %v7415
        %v7478 = vpop.f32.mrf.mxu0
        %v7479 = vadd.f32 0.0, %v7478
        %v7480 = vpop.f32.mrf.mxu0
        %v7481 = vpop.f32.mrf.mxu0
        %v7482 = vadd.f32 0.0, %v7481
        %v7483 = vpop.f32.mrf.mxu0
        %7484 = vmatprep.mubr.bf16.mxu0 %v7430
        %7485 = vmatmul.mubr.bf16.gmra.mxu0 %v7417
        %v7486 = vpop.f32.mrf.mxu0
        %v7487 = vadd.f32 0.0, %v7486
        %v7488 = vpop.f32.mrf.mxu0
        %v7489 = vpop.f32.mrf.mxu0
        %v7490 = vadd.f32 0.0, %v7489
        %v7491 = vpop.f32.mrf.mxu0
        %7492 = vdwg.mxu0
        %v7493 = vpack.c.bf16 %v7474, %v7471
        %v7494 = vpack.c.bf16 %v7482, %v7479
        %v7495 = vpack.c.bf16 %v7490, %v7487
        %v7496 = vld [vmem:[%s7] sm:$0xf]
        %v7497 = vld [vmem:[%s7 + $0x4] sm:$0xf]
        %v7498 = vld [vmem:[%s7 + $0x8] sm:$0xf]
        %v7499 = vld [vmem:[%s7 + $0xc] sm:$0xf]
        %v7500 = vld [vmem:[%s7 + $0x10] sm:$0xf]
        %v7501 = vld [vmem:[%s7 + $0x14] sm:$0xf]
        %v7502 = vld [vmem:[%s7 + $0x18] sm:$0xf]
        %v7503 = vld [vmem:[%s7 + $0x1c] sm:$0xf]
        %s7504 = scalar_lea.vmem %s7, 32
        %v7505 = vld [vmem:[%s7504] sm:$0xf]
        %v7506 = vld [vmem:[%s7504 + $0x4] sm:$0xf]
        %v7507 = vld [vmem:[%s7504 + $0x8] sm:$0xf]
        %v7508 = vld [vmem:[%s7504 + $0xc] sm:$0xf]
        %v7509 = vld [vmem:[%s7504 + $0x10] sm:$0xf]
        %v7510 = vld [vmem:[%s7504 + $0x14] sm:$0xf]
        %v7511 = vld [vmem:[%s7504 + $0x18] sm:$0xf]
        %v7512 = vld [vmem:[%s7504 + $0x1c] sm:$0xf]
        %v7514 = vshrl.u32 %v7493, 16
        %v7516 = vshll.u32 %v7493, 16
        %v7518 = vrot.slane %v7516, 1
        %v7519 = vor.u32 %v7514, %v7518
        %v7521 = vshll.u32 %v7494, 16
        %v7523 = vrot.slane %v7521, 1
        %v7524 = vsel %vm5552, %v7519, %v7523
        %v7525 = vshrl.u32 %v7494, 16
        %v7527 = vor.u32 %v7525, %v7523
        %v7529 = vshll.u32 %v7495, 16
        %v7531 = vrot.slane %v7529, 1
        %v7532 = vsel %vm5552, %v7527, %v7531
        %v7533 = vshrl.u32 %v7495, 16
        %v7535 = vor.u32 %v7533, %v7531
        %v7544 = vunpack.c.l.b16 %v7505
        %v7545 = vunpack.c.l.b16 %v7506
        %v7546 = vunpack.c.l.b16 %v7507
        %v7547 = vunpack.c.l.b16 %v7508
        %v7548 = vunpack.c.l.b16 %v7509
        %v7549 = vunpack.c.l.b16 %v7510
        %v7550 = vunpack.c.l.b16 %v7511
        %v7551 = vunpack.c.l.b16 %v7512
        %v7552 = vpack.c.b16 %v7545, %v7544
        %v7553 = vpack.c.b16 %v7547, %v7546
        %v7554 = vpack.c.b16 %v7549, %v7548
        %v7555 = vpack.c.b16 %v7551, %v7550
        %v7561 = vsel %vm1772, %v7524, 0
        %v7564 = vsel %vm1772, %v7532, 0
        %v7567 = vsel %vm1772, %v7535, 0
        %7569 = vmatprep.subr.bf16.mxu0 0
        %7570 = vmatpush1.bf16.msra.mxu0 0
        %7571 = vmatprep.subr.bf16.mxu0 0
        %7572 = vmatpush1.bf16.msra.mxu0 0
        %7573 = vmatprep.subr.bf16.mxu0 0
        %7574 = vmatpush1.bf16.msra.mxu0 0
        %7575 = vmatprep.subr.bf16.mxu0 0
        %7576 = vmatpush1.bf16.msra.mxu0 0
        %7577 = vmatprep.subr.bf16.mxu0 0
        %7578 = vmatpush1.bf16.msra.mxu0 %v7555
        %7579 = vmatprep.subr.bf16.mxu0 0
        %7580 = vmatpush1.bf16.msra.mxu0 %v7554
        %7581 = vmatprep.subr.bf16.mxu0 0
        %7582 = vmatpush1.bf16.msra.mxu0 %v7553
        %7583 = vmatprep.subr.bf16.mxu0 0
        %7584 = vmatpush1.bf16.msra.mxu0 %v7552
        %7585 = vmatprep.subr.bf16.mxu0 0
        %7586 = vmatpush2.bf16.msra.mxu0 0
        %7587 = vmatprep.subr.bf16.mxu0 0
        %7588 = vmatpush2.bf16.msra.mxu0 0
        %7589 = vmatprep.subr.bf16.mxu0 0
        %7590 = vmatpush2.bf16.msra.mxu0 0
        %7591 = vmatprep.subr.bf16.mxu0 0
        %7592 = vmatpush2.bf16.msra.mxu0 0
        %7593 = vmatprep.subr.bf16.mxu0 0
        %7594 = vmatpush2.bf16.msra.mxu0 0
        %7595 = vmatprep.subr.bf16.mxu0 0
        %7596 = vmatpush2.bf16.msra.mxu0 0
        %7597 = vmatprep.subr.bf16.mxu0 0
        %7598 = vmatpush2.bf16.msra.mxu0 0
        %7599 = vmatprep.subr.bf16.mxu0 0
        %7600 = vmatpush2.bf16.msra.mxu0 0
        %7601 = vmatprep.mubr.bf16.mxu0 0
        %7602 = vmatmul.mubr.bf16.gmra.mxu0 %v7561
        %v7603 = vpop.f32.mrf.mxu0
        %v7604 = vadd.f32 0.0, %v7603
        %v7605 = vpop.f32.mrf.mxu0
        %v7606 = vpop.f32.mrf.mxu0
        %v7607 = vadd.f32 0.0, %v7606
        %v7608 = vpop.f32.mrf.mxu0
        %7609 = vmatprep.mubr.bf16.mxu0 0
        %7610 = vmatmul.mubr.bf16.gmra.mxu0 %v7564
        %v7611 = vpop.f32.mrf.mxu0
        %v7612 = vadd.f32 0.0, %v7611
        %v7613 = vpop.f32.mrf.mxu0
        %v7614 = vpop.f32.mrf.mxu0
        %v7615 = vadd.f32 0.0, %v7614
        %v7616 = vpop.f32.mrf.mxu0
        %7617 = vmatprep.mubr.bf16.mxu0 0
        %7618 = vmatmul.mubr.bf16.gmra.mxu0 %v7567
        %v7619 = vpop.f32.mrf.mxu0
        %v7620 = vadd.f32 0.0, %v7619
        %v7621 = vpop.f32.mrf.mxu0
        %v7622 = vpop.f32.mrf.mxu0
        %v7623 = vadd.f32 0.0, %v7622
        %v7624 = vpop.f32.mrf.mxu0
        %7625 = vdwg.mxu0
        %v7634 = vunpack.c.l.b16 %v7496
        %v7635 = vunpack.c.l.b16 %v7497
        %v7636 = vunpack.c.l.b16 %v7498
        %v7637 = vunpack.c.l.b16 %v7499
        %v7638 = vunpack.c.l.b16 %v7500
        %v7639 = vunpack.c.l.b16 %v7501
        %v7640 = vunpack.c.l.b16 %v7502
        %v7641 = vunpack.c.l.b16 %v7503
        %v7642 = vpack.c.b16 %v7635, %v7634
        %v7643 = vpack.c.b16 %v7637, %v7636
        %v7644 = vpack.c.b16 %v7639, %v7638
        %v7645 = vpack.c.b16 %v7641, %v7640
        %v7650 = vsel %vm1772, %v7493, 0
        %v7652 = vsel %vm1772, %v7494, 0
        %v7654 = vsel %vm1772, %v7495, 0
        %7656 = vmatprep.subr.bf16.mxu0 0
        %7657 = vmatpush1.bf16.msra.mxu0 0
        %7658 = vmatprep.subr.bf16.mxu0 0
        %7659 = vmatpush1.bf16.msra.mxu0 0
        %7660 = vmatprep.subr.bf16.mxu0 0
        %7661 = vmatpush1.bf16.msra.mxu0 0
        %7662 = vmatprep.subr.bf16.mxu0 0
        %7663 = vmatpush1.bf16.msra.mxu0 0
        %7664 = vmatprep.subr.bf16.mxu0 0
        %7665 = vmatpush1.bf16.msra.mxu0 %v7645
        %7666 = vmatprep.subr.bf16.mxu0 0
        %7667 = vmatpush1.bf16.msra.mxu0 %v7644
        %7668 = vmatprep.subr.bf16.mxu0 0
        %7669 = vmatpush1.bf16.msra.mxu0 %v7643
        %7670 = vmatprep.subr.bf16.mxu0 0
        %7671 = vmatpush1.bf16.msra.mxu0 %v7642
        %7672 = vmatprep.subr.bf16.mxu0 0
        %7673 = vmatpush2.bf16.msra.mxu0 0
        %7674 = vmatprep.subr.bf16.mxu0 0
        %7675 = vmatpush2.bf16.msra.mxu0 0
        %7676 = vmatprep.subr.bf16.mxu0 0
        %7677 = vmatpush2.bf16.msra.mxu0 0
        %7678 = vmatprep.subr.bf16.mxu0 0
        %7679 = vmatpush2.bf16.msra.mxu0 0
        %7680 = vmatprep.subr.bf16.mxu0 0
        %7681 = vmatpush2.bf16.msra.mxu0 0
        %7682 = vmatprep.subr.bf16.mxu0 0
        %7683 = vmatpush2.bf16.msra.mxu0 0
        %7684 = vmatprep.subr.bf16.mxu0 0
        %7685 = vmatpush2.bf16.msra.mxu0 0
        %7686 = vmatprep.subr.bf16.mxu0 0
        %7687 = vmatpush2.bf16.msra.mxu0 0
        %7688 = vmatprep.mubr.bf16.mxu0 0
        %7689 = vmatmul.mubr.bf16.gmra.mxu0 %v7650
        %v7690 = vpop.f32.mrf.mxu0
        %v7691 = vadd.f32 %v7604, %v7690
        %v7692 = vpop.f32.mrf.mxu0
        %v7693 = vpop.f32.mrf.mxu0
        %v7694 = vadd.f32 %v7607, %v7693
        %v7695 = vpop.f32.mrf.mxu0
        %7696 = vmatprep.mubr.bf16.mxu0 0
        %7697 = vmatmul.mubr.bf16.gmra.mxu0 %v7652
        %v7698 = vpop.f32.mrf.mxu0
        %v7699 = vadd.f32 %v7612, %v7698
        %v7700 = vpop.f32.mrf.mxu0
        %v7701 = vpop.f32.mrf.mxu0
        %v7702 = vadd.f32 %v7615, %v7701
        %v7703 = vpop.f32.mrf.mxu0
        %7704 = vmatprep.mubr.bf16.mxu0 0
        %7705 = vmatmul.mubr.bf16.gmra.mxu0 %v7654
        %v7706 = vpop.f32.mrf.mxu0
        %v7707 = vadd.f32 %v7620, %v7706
        %v7708 = vpop.f32.mrf.mxu0
        %v7709 = vpop.f32.mrf.mxu0
        %v7710 = vadd.f32 %v7623, %v7709
        %v7711 = vpop.f32.mrf.mxu0
        %7712 = vdwg.mxu0
        %s7713 = scalar_lea.vmem %s7, 64
        %v7714 = vld [vmem:[%s7713] sm:$0xf]
        %v7715 = vld [vmem:[%s7713 + $0x4] sm:$0xf]
        %v7716 = vld [vmem:[%s7713 + $0x8] sm:$0xf]
        %v7717 = vld [vmem:[%s7713 + $0xc] sm:$0xf]
        %v7718 = vld [vmem:[%s7713 + $0x10] sm:$0xf]
        %v7719 = vld [vmem:[%s7713 + $0x14] sm:$0xf]
        %v7720 = vld [vmem:[%s7713 + $0x18] sm:$0xf]
        %v7721 = vld [vmem:[%s7713 + $0x1c] sm:$0xf]
        %v7725 = vrot.slane %v7493, 1
        %v7726 = vrot.slane %v7494, 1
        %v7727 = vsel %vm6095, %v7725, %v7726
        %v7728 = vrot.slane %v7495, 1
        %v7729 = vsel %vm6095, %v7726, %v7728
        %v7738 = vunpack.c.l.b16 %v7714
        %v7739 = vunpack.c.l.b16 %v7715
        %v7740 = vunpack.c.l.b16 %v7716
        %v7741 = vunpack.c.l.b16 %v7717
        %v7742 = vunpack.c.l.b16 %v7718
        %v7743 = vunpack.c.l.b16 %v7719
        %v7744 = vunpack.c.l.b16 %v7720
        %v7745 = vunpack.c.l.b16 %v7721
        %v7746 = vpack.c.b16 %v7739, %v7738
        %v7747 = vpack.c.b16 %v7741, %v7740
        %v7748 = vpack.c.b16 %v7743, %v7742
        %v7749 = vpack.c.b16 %v7745, %v7744
        %v7755 = vsel %vm1772, %v7727, 0
        %v7758 = vsel %vm1772, %v7729, 0
        %v7761 = vsel %vm1772, %v7728, 0
        %7763 = vmatprep.subr.bf16.mxu0 0
        %7764 = vmatpush1.bf16.msra.mxu0 0
        %7765 = vmatprep.subr.bf16.mxu0 0
        %7766 = vmatpush1.bf16.msra.mxu0 0
        %7767 = vmatprep.subr.bf16.mxu0 0
        %7768 = vmatpush1.bf16.msra.mxu0 0
        %7769 = vmatprep.subr.bf16.mxu0 0
        %7770 = vmatpush1.bf16.msra.mxu0 0
        %7771 = vmatprep.subr.bf16.mxu0 0
        %7772 = vmatpush1.bf16.msra.mxu0 %v7749
        %7773 = vmatprep.subr.bf16.mxu0 0
        %7774 = vmatpush1.bf16.msra.mxu0 %v7748
        %7775 = vmatprep.subr.bf16.mxu0 0
        %7776 = vmatpush1.bf16.msra.mxu0 %v7747
        %7777 = vmatprep.subr.bf16.mxu0 0
        %7778 = vmatpush1.bf16.msra.mxu0 %v7746
        %7779 = vmatprep.subr.bf16.mxu0 0
        %7780 = vmatpush2.bf16.msra.mxu0 0
        %7781 = vmatprep.subr.bf16.mxu0 0
        %7782 = vmatpush2.bf16.msra.mxu0 0
        %7783 = vmatprep.subr.bf16.mxu0 0
        %7784 = vmatpush2.bf16.msra.mxu0 0
        %7785 = vmatprep.subr.bf16.mxu0 0
        %7786 = vmatpush2.bf16.msra.mxu0 0
        %7787 = vmatprep.subr.bf16.mxu0 0
        %7788 = vmatpush2.bf16.msra.mxu0 0
        %7789 = vmatprep.subr.bf16.mxu0 0
        %7790 = vmatpush2.bf16.msra.mxu0 0
        %7791 = vmatprep.subr.bf16.mxu0 0
        %7792 = vmatpush2.bf16.msra.mxu0 0
        %7793 = vmatprep.subr.bf16.mxu0 0
        %7794 = vmatpush2.bf16.msra.mxu0 0
        %7795 = vmatprep.mubr.bf16.mxu0 0
        %7796 = vmatmul.mubr.bf16.gmra.mxu0 %v7755
        %v7797 = vpop.f32.mrf.mxu0
        %v7798 = vadd.f32 0.0, %v7797
        %v7799 = vpop.f32.mrf.mxu0
        %v7800 = vpop.f32.mrf.mxu0
        %v7801 = vadd.f32 0.0, %v7800
        %v7802 = vpop.f32.mrf.mxu0
        %7803 = vmatprep.mubr.bf16.mxu0 0
        %7804 = vmatmul.mubr.bf16.gmra.mxu0 %v7758
        %v7805 = vpop.f32.mrf.mxu0
        %v7806 = vadd.f32 0.0, %v7805
        %v7807 = vpop.f32.mrf.mxu0
        %v7808 = vpop.f32.mrf.mxu0
        %v7809 = vadd.f32 0.0, %v7808
        %v7810 = vpop.f32.mrf.mxu0
        %7811 = vmatprep.mubr.bf16.mxu0 0
        %7812 = vmatmul.mubr.bf16.gmra.mxu0 %v7761
        %v7813 = vpop.f32.mrf.mxu0
        %v7814 = vadd.f32 0.0, %v7813
        %v7815 = vpop.f32.mrf.mxu0
        %v7816 = vpop.f32.mrf.mxu0
        %v7817 = vadd.f32 0.0, %v7816
        %v7818 = vpop.f32.mrf.mxu0
        %7819 = vdwg.mxu0
        %v7820 = vadd.f32 %v7691, %v7798
        %v7821 = vadd.f32 %v7694, %v7801
        %v7822 = vadd.f32 %v7699, %v7806
        %v7823 = vadd.f32 %v7702, %v7809
        %v7824 = vadd.f32 %v7707, %v7814
        %v7825 = vadd.f32 %v7710, %v7817
        %vm7826 = vcmp.ge.f32.partialorder %v7820, 0.0
        %vm7827 = vcmp.ge.f32.partialorder %v7821, 0.0
        %vm7828 = vcmp.ge.f32.partialorder %v7822, 0.0
        %vm7829 = vcmp.ge.f32.partialorder %v7823, 0.0
        %vm7830 = vcmp.ge.f32.partialorder %v7824, 0.0
        %vm7831 = vcmp.ge.f32.partialorder %v7825, 0.0
        %v7832 = vmul.f32 %v7820, 0.01
        %v7833 = vmul.f32 %v7821, 0.01
        %v7834 = vmul.f32 %v7822, 0.01
        %v7835 = vmul.f32 %v7823, 0.01
        %v7836 = vmul.f32 %v7824, 0.01
        %v7837 = vmul.f32 %v7825, 0.01
        %v7838 = vsel %vm7826, %v7820, %v7832
        %v7839 = vsel %vm7827, %v7821, %v7833
        %v7840 = vsel %vm7828, %v7822, %v7834
        %v7841 = vsel %vm7829, %v7823, %v7835
        %v7842 = vsel %vm7830, %v7824, %v7836
        %v7843 = vsel %vm7831, %v7825, %v7837
        %v7844 = vpack.c.bf16 %v7839, %v7838
        %v7845 = vpack.c.bf16 %v7841, %v7840
        %v7846 = vpack.c.bf16 %v7843, %v7842
        %v7847 = vld [vmem:[%s8] sm:$0xf]
        %v7848 = vld [vmem:[%s8 + $0x4] sm:$0xf]
        %v7849 = vld [vmem:[%s8 + $0x8] sm:$0xf]
        %v7850 = vld [vmem:[%s8 + $0xc] sm:$0xf]
        %v7851 = vld [vmem:[%s8 + $0x10] sm:$0xf]
        %v7857 = vunpack.c.l.b16 %v7847
        %v7858 = vunpack.c.l.b16 %v7848
        %v7859 = vunpack.c.l.b16 %v7849
        %v7860 = vunpack.c.l.b16 %v7850
        %v7861 = vunpack.c.l.b16 %v7851
        %v7862 = vpack.c.b16 %v7858, %v7857
        %v7863 = vpack.c.b16 %v7860, %v7859
        %v7864 = vpack.c.b16 %v7861, %v7861
        %vm7867 = vcmask 326656
        %v7869 = vsel %vm7867, %v7844, 0
        %v7872 = vsel %vm7867, %v7845, 0
        %v7875 = vsel %vm7867, %v7846, 0
        %vm7877 = vcmask 1043456
        %v7879 = vsel %vm7877, %v7864, 0
        %7881 = vmatprep.subr.bf16.mxu0 0
        %7882 = vmatpush1.bf16.msra.mxu0 0
        %7883 = vmatprep.subr.bf16.mxu0 0
        %7884 = vmatpush1.bf16.msra.mxu0 0
        %7885 = vmatprep.subr.bf16.mxu0 0
        %7886 = vmatpush1.bf16.msra.mxu0 0
        %7887 = vmatprep.subr.bf16.mxu0 0
        %7888 = vmatpush1.bf16.msra.mxu0 0
        %7889 = vmatprep.subr.bf16.mxu0 0
        %7890 = vmatpush1.bf16.msra.mxu0 0
        %7891 = vmatprep.subr.bf16.mxu0 0
        %7892 = vmatpush1.bf16.msra.mxu0 %v7879
        %7893 = vmatprep.subr.bf16.mxu0 0
        %7894 = vmatpush1.bf16.msra.mxu0 %v7863
        %7895 = vmatprep.subr.bf16.mxu0 0
        %7896 = vmatpush1.bf16.msra.mxu0 %v7862
        %7897 = vmatprep.subr.bf16.mxu0 0
        %7898 = vmatpush2.bf16.msra.mxu0 0
        %7899 = vmatprep.subr.bf16.mxu0 0
        %7900 = vmatpush2.bf16.msra.mxu0 0
        %7901 = vmatprep.subr.bf16.mxu0 0
        %7902 = vmatpush2.bf16.msra.mxu0 0
        %7903 = vmatprep.subr.bf16.mxu0 0
        %7904 = vmatpush2.bf16.msra.mxu0 0
        %7905 = vmatprep.subr.bf16.mxu0 0
        %7906 = vmatpush2.bf16.msra.mxu0 0
        %7907 = vmatprep.subr.bf16.mxu0 0
        %7908 = vmatpush2.bf16.msra.mxu0 0
        %7909 = vmatprep.subr.bf16.mxu0 0
        %7910 = vmatpush2.bf16.msra.mxu0 0
        %7911 = vmatprep.subr.bf16.mxu0 0
        %7912 = vmatpush2.bf16.msra.mxu0 0
        %7913 = vmatprep.mubr.bf16.mxu0 0
        %7914 = vmatmul.mubr.bf16.gmra.mxu0 %v7869
        %v7915 = vpop.f32.mrf.mxu0
        %v7916 = vadd.f32 0.0, %v7915
        %v7917 = vpop.f32.mrf.mxu0
        %v7918 = vpop.f32.mrf.mxu0
        %v7919 = vadd.f32 0.0, %v7918
        %v7920 = vpop.f32.mrf.mxu0
        %7921 = vmatprep.mubr.bf16.mxu0 0
        %7922 = vmatmul.mubr.bf16.gmra.mxu0 %v7872
        %v7923 = vpop.f32.mrf.mxu0
        %v7924 = vadd.f32 0.0, %v7923
        %v7925 = vpop.f32.mrf.mxu0
        %v7926 = vpop.f32.mrf.mxu0
        %v7927 = vadd.f32 0.0, %v7926
        %v7928 = vpop.f32.mrf.mxu0
        %7929 = vmatprep.mubr.bf16.mxu0 0
        %7930 = vmatmul.mubr.bf16.gmra.mxu0 %v7875
        %v7931 = vpop.f32.mrf.mxu0
        %v7932 = vadd.f32 0.0, %v7931
        %v7933 = vpop.f32.mrf.mxu0
        %v7934 = vpop.f32.mrf.mxu0
        %v7935 = vadd.f32 0.0, %v7934
        %v7936 = vpop.f32.mrf.mxu0
        %7937 = vdwg.mxu0
        %v7938 = vld [vmem:[%s9] sm:$0xf]
        %v7939 = vpack.c.bf16 %v7919, %v7916
        %v7940 = vpack.c.bf16 %v7927, %v7924
        %v7941 = vpack.c.bf16 %v7935, %v7932
        %vm7942 = vcmask 375808
        %v7944 = vsel %vm7942, %v7938, 0
        %vm7946 = vcmask 1046528
        %v7948 = vsel %vm7946, %v7941, 0
        %7950 = vmatprep.subr.bf16.mxu0 0
        %7951 = vmatpush1.bf16.msra.mxu0 0
        %7952 = vmatprep.subr.bf16.mxu0 0
        %7953 = vmatpush1.bf16.msra.mxu0 0
        %7954 = vmatprep.subr.bf16.mxu0 0
        %7955 = vmatpush1.bf16.msra.mxu0 0
        %7956 = vmatprep.subr.bf16.mxu0 0
        %7957 = vmatpush1.bf16.msra.mxu0 0
        %7958 = vmatprep.subr.bf16.mxu0 0
        %7959 = vmatpush1.bf16.msra.mxu0 0
        %7960 = vmatprep.subr.bf16.mxu0 0
        %7961 = vmatpush1.bf16.msra.mxu0 %v7948
        %7962 = vmatprep.subr.bf16.mxu0 0
        %7963 = vmatpush1.bf16.msra.mxu0 %v7940
        %7964 = vmatprep.subr.bf16.mxu0 0
        %7965 = vmatpush1.bf16.msra.mxu0 %v7939
        %7966 = vmatprep.subr.bf16.mxu0 0
        %7967 = vmatpush2.bf16.msra.mxu0 0
        %7968 = vmatprep.subr.bf16.mxu0 0
        %7969 = vmatpush2.bf16.msra.mxu0 0
        %7970 = vmatprep.subr.bf16.mxu0 0
        %7971 = vmatpush2.bf16.msra.mxu0 0
        %7972 = vmatprep.subr.bf16.mxu0 0
        %7973 = vmatpush2.bf16.msra.mxu0 0
        %7974 = vmatprep.subr.bf16.mxu0 0
        %7975 = vmatpush2.bf16.msra.mxu0 0
        %7976 = vmatprep.subr.bf16.mxu0 0
        %7977 = vmatpush2.bf16.msra.mxu0 0
        %7978 = vmatprep.subr.bf16.mxu0 0
        %7979 = vmatpush2.bf16.msra.mxu0 0
        %7980 = vmatprep.subr.bf16.mxu0 0
        %7981 = vmatpush2.bf16.msra.mxu0 0
        %7982 = vmatprep.mubr.bf16.mxu0 0
        %7983 = vmatmul.mubr.bf16.gmra.mxu0 %v7944
        %v7984 = vpop.f32.mrf.mxu0
        %v7985 = vadd.f32 0.0, %v7984
        %v7986 = vpop.f32.mrf.mxu0
        %v7987 = vpop.f32.mrf.mxu0
        %v7988 = vpop.f32.mrf.mxu0
        %7989 = vdwg.mxu0
        %vm7990 = vcmask 80896
        %v7991 = vsel %vm7990, %v7985, -inf
        %7992 = vmax.xlane.f32.xlu0 %v7991
        %v7993 = vpop.xlane.xlu0 %7992
        %v7994 = vsub.f32 %v7985, %v7993
        %v7995 = vmul.f32 %v7994, 1.442695
        %v7996 = vpow.pop %v7995
        %v7997 = vsel %vm7990, %v7996, 0.0
        %7998 = vadd.xlane.f32.xlu0 %v7997
        %v7999 = vpop.xlane.xlu0 %7998
        %v8000 = vrcp.pop %v7999
        %v8001 = vmul.f32 %v7996, %v8000
        %8002 = vst.msk [vmem:[%s355] sm:$0xff] %vm7990, %v8001
        %s8003 = sand.u32 %s247, 1
        %s8004 = scalar_lea.sflag [#allocation3], %s8003
        %s8005 = sand.u32 %s247, 1
        %s8006 = smul.addr %s8005, 8
        %s8007 = scalar_lea.vmem [#allocation2], %s8006
        // Predicated region
        $region61: #{net_forward.1} parent=59 // pred_check
          %p8008 = pneg %p257
        $region62: #{net_forward.1} parent=59 // pred_check_branch
          %8010 = sbr.rel (%p8008) target = $region64
        $region63: #{net_forward.1} parent=59 // pred_region
          %s8012 = ssub.s32 128, 128
          %8013 = vsyncadd %s8004, %s8012
          %s8014 = smul.addr %s24, 128
          %s8015 = scalar_lea.hbm %s10, %s8014
          %s8017 = sshll.u32 %s8007, 4
          %s8018 = int_to_ptr.vmem [resolvable:$true] %s8017
          %8020 = dma.vmem_to_hbm [thread:$0]  %s8018, 128, %s8015, %s8004
        $region64: #{net_forward.1} parent=59 // pred_fallthru
          _
      $region60: #{net_forward.1} parent=5 // pred_fallthru
        _
      %p8021 = scmp.le.s32.totalorder 2, %s19
      // Predicated region
      $region65: #{net_forward.1} parent=5 // pred_check
        %p8022 = pneg %p8021
      $region66: #{net_forward.1} parent=5 // pred_check_branch
        %8024 = sbr.rel (%p8022) target = $region68
      $region67: #{net_forward.1} parent=5 // pred_region
        %s8025 = ssub.s32 %s19, 2
        // Predicated region
        $region69: #{net_forward.1} parent=67 // pred_check
          %p8026 = pneg %p263
        $region70: #{net_forward.1} parent=67 // pred_check_branch
          %8028 = sbr.rel (%p8026) target = $region72
        $region71: #{net_forward.1} parent=67 // pred_region
          %s8029 = sand.u32 %s248, 1
          %s8030 = scalar_lea.sflag [#allocation3], %s8029
          %s8031 = sand.u32 %s248, 1
          %s8032 = smul.addr %s8031, 8
          %s8033 = scalar_lea.vmem [#allocation2], %s8032
          %8034 = dma.done %s8030, 128
        $region72: #{net_forward.1} parent=67 // pred_fallthru
          _
      $region68: #{net_forward.1} parent=5 // pred_fallthru
        _
    $region6: #{net_forward.1} parent=1 // loop_footer
      %s23 = sadd.s32 1, %s19
    $region7: #{net_forward.1} parent=1 // loop_footer_branch
      %18 = sbr.rel target = $region3
    $region8: #{net_forward.1} parent=1 // loop_exit
      _
    %8035 = vsyncpa [#allocation3], 1
    %s8036 = scalar_lea.sflag [#allocation3], 1
    %8037 = vsyncpa %s8036, 1

</llo_original>
